<compile_context>
chip_gen: v6e
topology: v6e:2x2x1
jax: 0.10.0
libtpu: 0.0.40
codegen_flags: <defaults>
</compile_context>

<pallas_src>
import jax
import jax.numpy as jnp
from jax.experimental import pallas as pl
from jax.experimental.pallas import tpu as pltpu

EPS = 1e-5
LANE = 128
_VMEM_LIMIT = 32 * 1024 * 1024        # safe on v5e/v6e/v7x
_TILE_BUDGET = 3 * 1024 * 1024        # per-buffer budget (BlockSpec double-buffers)


# ----------------------------------------------------------------------------
# helpers
# ----------------------------------------------------------------------------
def _round_up(x, m):
    return (x + m - 1) // m * m


def _pick_tile(n, target, multiple=1):
    """Largest divisor of n that is <= target (preferring multiples of `multiple`)."""
    best = None
    for d in range(min(n, target), 0, -1):
        if n % d == 0:
            if best is None:
                best = d
            if d % multiple == 0:
                return d
    return best if best is not None else n


# ----------------------------------------------------------------------------
# Pass 1: 3x3 conv (9 shifted matmuls) + per-tile BN moments
# ----------------------------------------------------------------------------
def _conv3x3_moments_kernel(x_ref, w_ref, y_ref, s_ref, q_ref):
    # x_ref: (1, TH+2, W+2, Cin)  bf16   halo row tile
    # w_ref: (3, 3, Cin, Cout)    bf16   resident across the grid
    # y_ref: (1, TH, W, Cout)     f32    pre-BN conv output
    # s_ref: (1, 1, Cout)         f32    sum_y   over this tile
    # q_ref: (1, 1, Cout)         f32    sum_y^2 over this tile
    th = y_ref.shape[1]
    w_out = y_ref.shape[2]
    cin = x_ref.shape[3]
    cout = y_ref.shape[3]

    x = x_ref[0]                                   # (TH+2, W+2, Cin)
    acc = None
    for ky in range(3):
        for kx in range(3):
            patch = x[ky:ky + th, kx:kx + w_out, :].reshape(th * w_out, cin)
            part = jnp.dot(patch, w_ref[ky, kx],
                           preferred_element_type=jnp.float32)
            acc = part if acc is None else acc + part   # (TH*W, Cout) fp32

    y_ref[0] = acc.reshape(th, w_out, cout)
    # Single-pass moments (E[y], E[y^2]); global reduction happens outside.
    s_ref[0] = jnp.sum(acc, axis=0, keepdims=True)
    q_ref[0] = jnp.sum(acc * acc, axis=0, keepdims=True)


def _conv3x3_pass1(x_tiles, w):
    nt_total, th_p2, wp2, cin = x_tiles.shape
    th, w_out = th_p2 - 2, wp2 - 2
    cout = w.shape[-1]

    flops = 2 * nt_total * th * w_out * 9 * cin * cout
    bytes_accessed = (x_tiles.size * 2 + w.size * 2
                      + nt_total * th * w_out * cout * 4
                      + 2 * nt_total * cout * 4)

    return pl.pallas_call(
        _conv3x3_moments_kernel,
        out_shape=(
            jax.ShapeDtypeStruct((nt_total, th, w_out, cout), jnp.float32),
            jax.ShapeDtypeStruct((nt_total, 1, cout), jnp.float32),
            jax.ShapeDtypeStruct((nt_total, 1, cout), jnp.float32),
        ),
        grid=(nt_total,),
        in_specs=[
            pl.BlockSpec((1, th_p2, wp2, cin), lambda t: (t, 0, 0, 0)),
            pl.BlockSpec((3, 3, cin, cout), lambda t: (0, 0, 0, 0)),
        ],
        out_specs=(
            pl.BlockSpec((1, th, w_out, cout), lambda t: (t, 0, 0, 0)),
            pl.BlockSpec((1, 1, cout), lambda t: (t, 0, 0)),
            pl.BlockSpec((1, 1, cout), lambda t: (t, 0, 0)),
        ),
        compiler_params=pltpu.CompilerParams(
            dimension_semantics=("parallel",),
            vmem_limit_bytes=_VMEM_LIMIT),
        cost_estimate=pl.CostEstimate(
            flops=flops, transcendentals=0, bytes_accessed=bytes_accessed),
    )(x_tiles, w)


# ----------------------------------------------------------------------------
# Pass 2: fused per-channel FMA (BatchNorm) + ReLU, bf16 lane-dense output
# ----------------------------------------------------------------------------
def _bn_relu_kernel(y_ref, scale_ref, shift_ref, o_ref):
    y = y_ref[...]                                          # (TM, Cout) fp32
    o = jnp.maximum(y * scale_ref[...] + shift_ref[...], 0.0)
    o_ref[...] = o.astype(o_ref.dtype)


def _bn_relu_pass2(y2d, scale, shift, out_dtype=jnp.bfloat16):
    m, cout = y2d.shape
    # biggest row tile fitting the budget (fp32 in + bf16 out per row)
    target = max(8, _TILE_BUDGET // (cout * 6))
    tm = _pick_tile(m, min(m, target), multiple=8)
    if tm % 8 != 0 and tm != m:   # respect the (8, 128) block constraint
        tm = m
    return pl.pallas_call(
        _bn_relu_kernel,
        out_shape=jax.ShapeDtypeStruct((m, cout), out_dtype),
        grid=(m // tm,),
        in_specs=[
            pl.BlockSpec((tm, cout), lambda i: (i, 0)),
            pl.BlockSpec((1, cout), lambda i: (0, 0)),
            pl.BlockSpec((1, cout), lambda i: (0, 0)),
        ],
        out_specs=pl.BlockSpec((tm, cout), lambda i: (i, 0)),
        compiler_params=pltpu.CompilerParams(
            dimension_semantics=("parallel",),
            vmem_limit_bytes=_VMEM_LIMIT),
        cost_estimate=pl.CostEstimate(
            flops=2 * m * cout, transcendentals=0,
            bytes_accessed=m * cout * (4 + 2) + 2 * cout * 4),
    )(y2d, scale, shift)


# ----------------------------------------------------------------------------
# One Conv3x3 -> BatchNorm(batch stats) -> ReLU block (two-pass, exact)
# ----------------------------------------------------------------------------
def conv3x3_bn_relu(x_nhwc, w, gamma, beta):
    """x_nhwc: (N,H,W,Cin_p) bf16, w: (3,3,Cin_p,Cout_p) bf16 -> (N,H,W,Cout_p) bf16."""
    n, h, wd, cin = x_nhwc.shape
    cout = w.shape[-1]

    # Biggest row tile whose halo-input (bf16) + output (fp32) fit the budget.
    per_row = (wd + 2) * cin * 2 + wd * cout * 4
    th = _pick_tile(h, max(1, min(h, _TILE_BUDGET // per_row)))
    nt = h // th

    # Halo row tiles: (N*nt, TH+2, W+2, Cin_p).  Only ~(TH+2)/TH read
    # amplification vs. the 9x of im2col.  nt==1 needs no gather at all.
    xp = jnp.pad(x_nhwc, ((0, 0), (1, 1), (1, 1), (0, 0)))
    if nt == 1:
        xt = xp
    else:
        row_idx = jnp.arange(nt)[:, None] * th + jnp.arange(th + 2)[None, :]
        xt = xp[:, row_idx].reshape(n * nt, th + 2, wd + 2, cin)

    y_pre, s, q = _conv3x3_pass1(xt, w)

    # Global batch statistics (BatchNorm2d training mode: biased variance,
    # eps=1e-5).  Tiny (Cout,) math; E[y^2]-E[y]^2 single-pass form.
    count = float(n * h * wd)
    mean = jnp.sum(s, axis=(0, 1)) / count
    var = jnp.maximum(jnp.sum(q, axis=(0, 1)) / count - mean * mean, 0.0)
    scale = gamma * jax.lax.rsqrt(var + EPS)
    shift = beta - mean * scale
    # NOTE: the Conv2d bias adds a per-channel constant that is removed exactly
    # by the mean subtraction above, so it is omitted (mathematically identical).

    y2d = y_pre.reshape(n * h * wd, cout)
    out = _bn_relu_pass2(y2d,
                         scale[None, :].astype(jnp.float32),
                         shift[None, :].astype(jnp.float32))
    return out.reshape(n, h, wd, cout)


# ----------------------------------------------------------------------------
# unet2dUp forward (external tensors stay NCHW like PyTorch)
# ----------------------------------------------------------------------------
def unet2d_up_forward(x, x1, params, out_channels):
    """x: (N,Cin,H,W), x1: (N,Cin//2,2H,2W) NCHW -> (N,Cout,2H,2W) NCHW fp32."""
    n, c, h, wd = x.shape
    c1 = x1.shape[1]

    # single NCHW -> NHWC layout change per input
    x_nhwc = jnp.transpose(x, (0, 2, 3, 1)).astype(jnp.bfloat16)
    x1_nhwc = jnp.transpose(x1, (0, 2, 3, 1)).astype(jnp.bfloat16)

    # nn.Upsample(scale_factor=2, mode='nearest') as broadcast + reshape
    x_up = jnp.broadcast_to(x_nhwc[:, :, None, :, None, :],
                            (n, h, 2, wd, 2, c)).reshape(n, 2 * h, 2 * wd, c)

    # channels-last concat fused with zero-padding up to the 128-lane boundary
    cin_real = c + c1
    cin_p = params["w1"].shape[2]
    parts = [x_up, x1_nhwc]
    if cin_p > cin_real:
        parts.append(jnp.zeros((n, 2 * h, 2 * wd, cin_p - cin_real), jnp.bfloat16))
    x2 = jnp.concatenate(parts, axis=-1)

    y = conv3x3_bn_relu(x2, params["w1"], params["g1"], params["be1"])
    y = conv3x3_bn_relu(y, params["w2"], params["g2"], params["be2"])

    # drop channel padding, back to NCHW fp32
    y = y[..., :out_channels].astype(jnp.float32)
    return jnp.transpose(y, (0, 3, 1, 2))


# ----------------------------------------------------------------------------
# Pure-JAX reference (same math, same bf16 casting points) for self-validation
# ----------------------------------------------------------------------------
def _reference_forward(x, x1, params, out_channels):
    n, c, h, wd = x.shape
    c1 = x1.shape[1]
    x_nhwc = jnp.transpose(x, (0, 2, 3, 1)).astype(jnp.bfloat16).astype(jnp.float32)
    x1_nhwc = jnp.transpose(x1, (0, 2, 3, 1)).astype(jnp.bfloat16).astype(jnp.float32)
    x_up = jnp.broadcast_to(x_nhwc[:, :, None, :, None, :],
                            (n, h, 2, wd, 2, c)).reshape(n, 2 * h, 2 * wd, c)
    cin_p = params["w1"].shape[2]
    parts = [x_up, x1_nhwc]
    if cin_p > c + c1:
        parts.append(jnp.zeros((n, 2 * h, 2 * wd, cin_p - c - c1), jnp.float32))
    z = jnp.concatenate(parts, axis=-1)

    def block(z, w, g, b):
        y = jax.lax.conv_general_dilated(
            z, w.astype(jnp.float32), (1, 1), 'SAME',
            dimension_numbers=('NHWC', 'HWIO', 'NHWC'),
            precision=jax.lax.Precision.HIGHEST)
        mean = jnp.mean(y, axis=(0, 1, 2))
        var = jnp.var(y, axis=(0, 1, 2))
        y = (y - mean) * (g * jax.lax.rsqrt(var + EPS)) + b
        y = jnp.maximum(y, 0.0)
        return y.astype(jnp.bfloat16).astype(jnp.float32)

    y = block(z, params["w1"], params["g1"], params["be1"])
    y = block(y, params["w2"], params["g2"], params["be2"])
    y = y[..., :out_channels]
    return jnp.transpose(y, (0, 3, 1, 2))


# ----------------------------------------------------------------------------
# Deterministic parameter construction (mirrors nn.Conv2d / nn.BatchNorm2d init)
# Weight layout here is (ky, kx, Cin_p, Cout_p); a PyTorch (O, C, kh, kw) weight
# would map via transpose(2, 3, 1, 0) into the real sub-block.
# ----------------------------------------------------------------------------
def make_params(in_channels, out_channels, key):
    cin_real = in_channels // 2 + in_channels   # int(in_channels/2 + in_channels)
    cin_p = _round_up(cin_real, LANE)
    cout_p = _round_up(out_channels, LANE)
    k1, k2 = jax.random.split(key, 2)

    def conv_init(k, cin, cin_pad, cout, cout_pad):
        bound = 1.0 / (cin * 9.0) ** 0.5
        w = jax.random.uniform(k, (3, 3, cin, cout), jnp.float32, -bound, bound)
        wp = jnp.zeros((3, 3, cin_pad, cout_pad), jnp.float32)
        wp = wp.at[:, :, :cin, :cout].set(w)
        return wp.astype(jnp.bfloat16)

    w1 = conv_init(k1, cin_real, cin_p, out_channels, cout_p)
    w2 = conv_init(k2, out_channels, cout_p, out_channels, cout_p)
    ones = jnp.ones((cout_p,), jnp.float32)      # BatchNorm gamma init
    zeros = jnp.zeros((cout_p,), jnp.float32)    # BatchNorm beta init
    return {"w1": w1, "g1": ones, "be1": zeros,
            "w2": w2, "g2": ones, "be2": zeros}


if __name__ == "__main__":
    in_channels, out_channels = 4, 4
    n, h, w = 2, 16, 16

    key = jax.random.PRNGKey(0)
    kx, kx1, kp = jax.random.split(key, 3)
    x = jax.random.normal(kx, (n, in_channels, h, w), jnp.float32)            # (2,4,16,16)
    x1 = jax.random.normal(kx1, (n, in_channels // 2, 2 * h, 2 * w),
                           jnp.float32)                                       # (2,2,32,32)
    params = make_params(in_channels, out_channels, kp)

    fwd = jax.jit(unet2d_up_forward, static_argnames=("out_channels",))
    out = jax.block_until_ready(fwd(x, x1, params, out_channels=out_channels))

    assert out.shape == (n, out_channels, 2 * h, 2 * w)
    assert bool(jnp.all(jnp.isfinite(out)))

    ref = _reference_forward(x, x1, params, out_channels)
    max_err = float(jnp.max(jnp.abs(out - ref)))
    assert bool(jnp.allclose(out, ref, atol=2e-2, rtol=2e-2)), max_err

    print("KERNEL_OK")
</pallas_src>

<mosaic_0001>
module attributes {stable_mosaic.version = 11 : i64} {
  func.func @_conv3x3_moments_kernel(%arg0: i32, %arg1: memref<1x34x34x128xbf16, #tpu.memory_space<vmem>>, %arg2: memref<3x3x128x128xbf16, #tpu.memory_space<vmem>>, %arg3: memref<1x32x32x128xf32, #tpu.memory_space<vmem>>, %arg4: memref<1x1x128xf32, #tpu.memory_space<vmem>>, %arg5: memref<1x1x128xf32, #tpu.memory_space<vmem>>) attributes {dimension_semantics = [#tpu.dimension_semantics<parallel>], iteration_bounds = array<i64: 2>, scalar_prefetch = 0 : i64, scratch_operands = 0 : i64, tpu.core_type = #tpu.core_type<tc>, window_params = [{transform_indices = @transform_0, window_bounds = array<i64: 1, 34, 34, 128>}, {pipeline_mode = #tpu.pipeline_mode<synchronous>, transform_indices = @transform_1, window_bounds = array<i64: 3, 3, 128, 128>}, {transform_indices = @transform_2, window_bounds = array<i64: 1, 32, 32, 128>}, {transform_indices = @transform_3, window_bounds = array<i64: 1, 1, 128>}, {transform_indices = @transform_4, window_bounds = array<i64: 1, 1, 128>}]} {
    %c0 = arith.constant 0 : index
    %c0_0 = arith.constant 0 : index
    %c0_1 = arith.constant 0 : index
    %c0_2 = arith.constant 0 : index
    %0 = vector.load %arg1[%c0, %c0_0, %c0_1, %c0_2] : memref<1x34x34x128xbf16, #tpu.memory_space<vmem>>, vector<1x34x34x128xbf16>
    %1 = vector.shape_cast %0 : vector<1x34x34x128xbf16> to vector<34x34x128xbf16>
    %2 = vector.extract_strided_slice %1 {offsets = [0, 0, 0], sizes = [32, 32, 128], strides = [1, 1, 1]} : vector<34x34x128xbf16> to vector<32x32x128xbf16>
    %3 = vector.shape_cast %2 : vector<32x32x128xbf16> to vector<1024x128xbf16>
    %c0_3 = arith.constant 0 : index
    %c0_4 = arith.constant 0 : index
    %c0_5 = arith.constant 0 : index
    %c0_6 = arith.constant 0 : index
    %4 = vector.load %arg2[%c0_3, %c0_4, %c0_5, %c0_6] : memref<3x3x128x128xbf16, #tpu.memory_space<vmem>>, vector<1x1x128x128xbf16>
    %5 = vector.shape_cast %4 : vector<1x1x128x128xbf16> to vector<128x128xbf16>
    %cst = arith.constant dense<0.000000e+00> : vector<1024x128xf32>
    %6 = tpu.matmul %3, %5, %cst {dimension_numbers = #tpu.dot_dimension_numbers<[1], [0], [0], [1], [0, 0, 1, 1], [], []>} : vector<1024x128xbf16>, vector<128x128xbf16>, vector<1024x128xf32> -> vector<1024x128xf32>
    %7 = vector.extract_strided_slice %1 {offsets = [0, 1, 0], sizes = [32, 32, 128], strides = [1, 1, 1]} : vector<34x34x128xbf16> to vector<32x32x128xbf16>
    %8 = vector.shape_cast %7 : vector<32x32x128xbf16> to vector<1024x128xbf16>
    %c0_7 = arith.constant 0 : index
    %c1 = arith.constant 1 : index
    %c0_8 = arith.constant 0 : index
    %c0_9 = arith.constant 0 : index
    %9 = vector.load %arg2[%c0_7, %c1, %c0_8, %c0_9] : memref<3x3x128x128xbf16, #tpu.memory_space<vmem>>, vector<1x1x128x128xbf16>
    %10 = vector.shape_cast %9 : vector<1x1x128x128xbf16> to vector<128x128xbf16>
    %cst_10 = arith.constant dense<0.000000e+00> : vector<1024x128xf32>
    %11 = tpu.matmul %8, %10, %cst_10 {dimension_numbers = #tpu.dot_dimension_numbers<[1], [0], [0], [1], [0, 0, 1, 1], [], []>} : vector<1024x128xbf16>, vector<128x128xbf16>, vector<1024x128xf32> -> vector<1024x128xf32>
    %12 = arith.addf %6, %11 : vector<1024x128xf32>
    %13 = vector.extract_strided_slice %1 {offsets = [0, 2, 0], sizes = [32, 32, 128], strides = [1, 1, 1]} : vector<34x34x128xbf16> to vector<32x32x128xbf16>
    %14 = vector.shape_cast %13 : vector<32x32x128xbf16> to vector<1024x128xbf16>
    %c0_11 = arith.constant 0 : index
    %c2 = arith.constant 2 : index
    %c0_12 = arith.constant 0 : index
    %c0_13 = arith.constant 0 : index
    %15 = vector.load %arg2[%c0_11, %c2, %c0_12, %c0_13] : memref<3x3x128x128xbf16, #tpu.memory_space<vmem>>, vector<1x1x128x128xbf16>
    %16 = vector.shape_cast %15 : vector<1x1x128x128xbf16> to vector<128x128xbf16>
    %cst_14 = arith.constant dense<0.000000e+00> : vector<1024x128xf32>
    %17 = tpu.matmul %14, %16, %cst_14 {dimension_numbers = #tpu.dot_dimension_numbers<[1], [0], [0], [1], [0, 0, 1, 1], [], []>} : vector<1024x128xbf16>, vector<128x128xbf16>, vector<1024x128xf32> -> vector<1024x128xf32>
    %18 = arith.addf %12, %17 : vector<1024x128xf32>
    %19 = vector.extract_strided_slice %1 {offsets = [1, 0, 0], sizes = [32, 32, 128], strides = [1, 1, 1]} : vector<34x34x128xbf16> to vector<32x32x128xbf16>
    %20 = vector.shape_cast %19 : vector<32x32x128xbf16> to vector<1024x128xbf16>
    %c1_15 = arith.constant 1 : index
    %c0_16 = arith.constant 0 : index
    %c0_17 = arith.constant 0 : index
    %c0_18 = arith.constant 0 : index
    %21 = vector.load %arg2[%c1_15, %c0_16, %c0_17, %c0_18] : memref<3x3x128x128xbf16, #tpu.memory_space<vmem>>, vector<1x1x128x128xbf16>
    %22 = vector.shape_cast %21 : vector<1x1x128x128xbf16> to vector<128x128xbf16>
    %cst_19 = arith.constant dense<0.000000e+00> : vector<1024x128xf32>
    %23 = tpu.matmul %20, %22, %cst_19 {dimension_numbers = #tpu.dot_dimension_numbers<[1], [0], [0], [1], [0, 0, 1, 1], [], []>} : vector<1024x128xbf16>, vector<128x128xbf16>, vector<1024x128xf32> -> vector<1024x128xf32>
    %24 = arith.addf %18, %23 : vector<1024x128xf32>
    %25 = vector.extract_strided_slice %1 {offsets = [1, 1, 0], sizes = [32, 32, 128], strides = [1, 1, 1]} : vector<34x34x128xbf16> to vector<32x32x128xbf16>
    %26 = vector.shape_cast %25 : vector<32x32x128xbf16> to vector<1024x128xbf16>
    %c1_20 = arith.constant 1 : index
    %c1_21 = arith.constant 1 : index
    %c0_22 = arith.constant 0 : index
    %c0_23 = arith.constant 0 : index
    %27 = vector.load %arg2[%c1_20, %c1_21, %c0_22, %c0_23] : memref<3x3x128x128xbf16, #tpu.memory_space<vmem>>, vector<1x1x128x128xbf16>
    %28 = vector.shape_cast %27 : vector<1x1x128x128xbf16> to vector<128x128xbf16>
    %cst_24 = arith.constant dense<0.000000e+00> : vector<1024x128xf32>
    %29 = tpu.matmul %26, %28, %cst_24 {dimension_numbers = #tpu.dot_dimension_numbers<[1], [0], [0], [1], [0, 0, 1, 1], [], []>} : vector<1024x128xbf16>, vector<128x128xbf16>, vector<1024x128xf32> -> vector<1024x128xf32>
    %30 = arith.addf %24, %29 : vector<1024x128xf32>
    %31 = vector.extract_strided_slice %1 {offsets = [1, 2, 0], sizes = [32, 32, 128], strides = [1, 1, 1]} : vector<34x34x128xbf16> to vector<32x32x128xbf16>
    %32 = vector.shape_cast %31 : vector<32x32x128xbf16> to vector<1024x128xbf16>
    %c1_25 = arith.constant 1 : index
    %c2_26 = arith.constant 2 : index
    %c0_27 = arith.constant 0 : index
    %c0_28 = arith.constant 0 : index
    %33 = vector.load %arg2[%c1_25, %c2_26, %c0_27, %c0_28] : memref<3x3x128x128xbf16, #tpu.memory_space<vmem>>, vector<1x1x128x128xbf16>
    %34 = vector.shape_cast %33 : vector<1x1x128x128xbf16> to vector<128x128xbf16>
    %cst_29 = arith.constant dense<0.000000e+00> : vector<1024x128xf32>
    %35 = tpu.matmul %32, %34, %cst_29 {dimension_numbers = #tpu.dot_dimension_numbers<[1], [0], [0], [1], [0, 0, 1, 1], [], []>} : vector<1024x128xbf16>, vector<128x128xbf16>, vector<1024x128xf32> -> vector<1024x128xf32>
    %36 = arith.addf %30, %35 : vector<1024x128xf32>
    %37 = vector.extract_strided_slice %1 {offsets = [2, 0, 0], sizes = [32, 32, 128], strides = [1, 1, 1]} : vector<34x34x128xbf16> to vector<32x32x128xbf16>
    %38 = vector.shape_cast %37 : vector<32x32x128xbf16> to vector<1024x128xbf16>
    %c2_30 = arith.constant 2 : index
    %c0_31 = arith.constant 0 : index
    %c0_32 = arith.constant 0 : index
    %c0_33 = arith.constant 0 : index
    %39 = vector.load %arg2[%c2_30, %c0_31, %c0_32, %c0_33] : memref<3x3x128x128xbf16, #tpu.memory_space<vmem>>, vector<1x1x128x128xbf16>
    %40 = vector.shape_cast %39 : vector<1x1x128x128xbf16> to vector<128x128xbf16>
    %cst_34 = arith.constant dense<0.000000e+00> : vector<1024x128xf32>
    %41 = tpu.matmul %38, %40, %cst_34 {dimension_numbers = #tpu.dot_dimension_numbers<[1], [0], [0], [1], [0, 0, 1, 1], [], []>} : vector<1024x128xbf16>, vector<128x128xbf16>, vector<1024x128xf32> -> vector<1024x128xf32>
    %42 = arith.addf %36, %41 : vector<1024x128xf32>
    %43 = vector.extract_strided_slice %1 {offsets = [2, 1, 0], sizes = [32, 32, 128], strides = [1, 1, 1]} : vector<34x34x128xbf16> to vector<32x32x128xbf16>
    %44 = vector.shape_cast %43 : vector<32x32x128xbf16> to vector<1024x128xbf16>
    %c2_35 = arith.constant 2 : index
    %c1_36 = arith.constant 1 : index
    %c0_37 = arith.constant 0 : index
    %c0_38 = arith.constant 0 : index
    %45 = vector.load %arg2[%c2_35, %c1_36, %c0_37, %c0_38] : memref<3x3x128x128xbf16, #tpu.memory_space<vmem>>, vector<1x1x128x128xbf16>
    %46 = vector.shape_cast %45 : vector<1x1x128x128xbf16> to vector<128x128xbf16>
    %cst_39 = arith.constant dense<0.000000e+00> : vector<1024x128xf32>
    %47 = tpu.matmul %44, %46, %cst_39 {dimension_numbers = #tpu.dot_dimension_numbers<[1], [0], [0], [1], [0, 0, 1, 1], [], []>} : vector<1024x128xbf16>, vector<128x128xbf16>, vector<1024x128xf32> -> vector<1024x128xf32>
    %48 = arith.addf %42, %47 : vector<1024x128xf32>
    %49 = vector.extract_strided_slice %1 {offsets = [2, 2, 0], sizes = [32, 32, 128], strides = [1, 1, 1]} : vector<34x34x128xbf16> to vector<32x32x128xbf16>
    %50 = vector.shape_cast %49 : vector<32x32x128xbf16> to vector<1024x128xbf16>
    %c2_40 = arith.constant 2 : index
    %c2_41 = arith.constant 2 : index
    %c0_42 = arith.constant 0 : index
    %c0_43 = arith.constant 0 : index
    %51 = vector.load %arg2[%c2_40, %c2_41, %c0_42, %c0_43] : memref<3x3x128x128xbf16, #tpu.memory_space<vmem>>, vector<1x1x128x128xbf16>
    %52 = vector.shape_cast %51 : vector<1x1x128x128xbf16> to vector<128x128xbf16>
    %cst_44 = arith.constant dense<0.000000e+00> : vector<1024x128xf32>
    %53 = tpu.matmul %50, %52, %cst_44 {dimension_numbers = #tpu.dot_dimension_numbers<[1], [0], [0], [1], [0, 0, 1, 1], [], []>} : vector<1024x128xbf16>, vector<128x128xbf16>, vector<1024x128xf32> -> vector<1024x128xf32>
    %54 = arith.addf %48, %53 : vector<1024x128xf32>
    %55 = vector.shape_cast %54 : vector<1024x128xf32> to vector<32x32x128xf32>
    %c0_45 = arith.constant 0 : index
    %c0_46 = arith.constant 0 : index
    %c0_47 = arith.constant 0 : index
    %c0_48 = arith.constant 0 : index
    %56 = vector.load %arg3[%c0_45, %c0_46, %c0_47, %c0_48] : memref<1x32x32x128xf32, #tpu.memory_space<vmem>>, vector<1x32x32x128xf32>
    %57 = vector.shape_cast %56 : vector<1x32x32x128xf32> to vector<32x32x128xf32>
    %58 = vector.shape_cast %55 : vector<32x32x128xf32> to vector<1x32x32x128xf32>
    tpu.vector_store %arg3[%c0_45, %c0_46, %c0_47, %c0_48], %58 {strides = array<i32>} : memref<1x32x32x128xf32, #tpu.memory_space<vmem>>, vector<1x32x32x128xf32>,
    %cst_49 = arith.constant dense<0.000000e+00> : vector<128xf32>
    %59 = vector.multi_reduction <add>, %54, %cst_49 [0] : vector<1024x128xf32> to vector<128xf32>
    %60 = vector.shape_cast %59 : vector<128xf32> to vector<1x128xf32>
    %c0_50 = arith.constant 0 : index
    %c0_51 = arith.constant 0 : index
    %c0_52 = arith.constant 0 : index
    %61 = vector.load %arg4[%c0_50, %c0_51, %c0_52] : memref<1x1x128xf32, #tpu.memory_space<vmem>>, vector<1x1x128xf32>
    %62 = vector.shape_cast %61 : vector<1x1x128xf32> to vector<1x128xf32>
    %63 = vector.shape_cast %60 : vector<1x128xf32> to vector<1x1x128xf32>
    tpu.vector_store %arg4[%c0_50, %c0_51, %c0_52], %63 {strides = array<i32>} : memref<1x1x128xf32, #tpu.memory_space<vmem>>, vector<1x1x128xf32>,
    %64 = arith.mulf %54, %54 : vector<1024x128xf32>
    %cst_53 = arith.constant dense<0.000000e+00> : vector<128xf32>
    %65 = vector.multi_reduction <add>, %64, %cst_53 [0] : vector<1024x128xf32> to vector<128xf32>
    %66 = vector.shape_cast %65 : vector<128xf32> to vector<1x128xf32>
    %c0_54 = arith.constant 0 : index
    %c0_55 = arith.constant 0 : index
    %c0_56 = arith.constant 0 : index
    %67 = vector.load %arg5[%c0_54, %c0_55, %c0_56] : memref<1x1x128xf32, #tpu.memory_space<vmem>>, vector<1x1x128xf32>
    %68 = vector.shape_cast %67 : vector<1x1x128xf32> to vector<1x128xf32>
    %69 = vector.shape_cast %66 : vector<1x128xf32> to vector<1x1x128xf32>
    tpu.vector_store %arg5[%c0_54, %c0_55, %c0_56], %69 {strides = array<i32>} : memref<1x1x128xf32, #tpu.memory_space<vmem>>, vector<1x1x128xf32>,
    return
  }
  func.func @transform_0(%arg0: i32) -> (i32, i32, i32, i32) {
    %c0_i32 = arith.constant 0 : i32
    %c0_i32_0 = arith.constant 0 : i32
    %c0_i32_1 = arith.constant 0 : i32
    %c0_i32_2 = arith.constant 0 : i32
    return %arg0, %c0_i32, %c0_i32_0, %c0_i32_1 : i32, i32, i32, i32
  }
  func.func @transform_1(%arg0: i32) -> (i32, i32, i32, i32) {
    %c0_i32 = arith.constant 0 : i32
    %c0_i32_0 = arith.constant 0 : i32
    %c0_i32_1 = arith.constant 0 : i32
    %c0_i32_2 = arith.constant 0 : i32
    %c0_i32_3 = arith.constant 0 : i32
    return %c0_i32, %c0_i32_0, %c0_i32_1, %c0_i32_2 : i32, i32, i32, i32
  }
  func.func @transform_2(%arg0: i32) -> (i32, i32, i32, i32) {
    %c0_i32 = arith.constant 0 : i32
    %c0_i32_0 = arith.constant 0 : i32
    %c0_i32_1 = arith.constant 0 : i32
    %c0_i32_2 = arith.constant 0 : i32
    return %arg0, %c0_i32, %c0_i32_0, %c0_i32_1 : i32, i32, i32, i32
  }
  func.func @transform_3(%arg0: i32) -> (i32, i32, i32) {
    %c0_i32 = arith.constant 0 : i32
    %c0_i32_0 = arith.constant 0 : i32
    %c0_i32_1 = arith.constant 0 : i32
    return %arg0, %c0_i32, %c0_i32_0 : i32, i32, i32
  }
  func.func @transform_4(%arg0: i32) -> (i32, i32, i32) {
    %c0_i32 = arith.constant 0 : i32
    %c0_i32_0 = arith.constant 0 : i32
    %c0_i32_1 = arith.constant 0 : i32
    return %arg0, %c0_i32, %c0_i32_0 : i32, i32, i32
  }
}

module attributes {stable_mosaic.version = 11 : i64} {
  func.func @_bn_relu_kernel(%arg0: i32, %arg1: memref<2048x128xf32, #tpu.memory_space<vmem>>, %arg2: memref<1x128xf32, #tpu.memory_space<vmem>>, %arg3: memref<1x128xf32, #tpu.memory_space<vmem>>, %arg4: memref<2048x128xbf16, #tpu.memory_space<vmem>>) attributes {dimension_semantics = [#tpu.dimension_semantics<parallel>], iteration_bounds = array<i64: 1>, scalar_prefetch = 0 : i64, scratch_operands = 0 : i64, tpu.core_type = #tpu.core_type<tc>, window_params = [{transform_indices = @transform_0, window_bounds = array<i64: 2048, 128>}, {pipeline_mode = #tpu.pipeline_mode<synchronous>, transform_indices = @transform_1, window_bounds = array<i64: 1, 128>}, {pipeline_mode = #tpu.pipeline_mode<synchronous>, transform_indices = @transform_2, window_bounds = array<i64: 1, 128>}, {transform_indices = @transform_3, window_bounds = array<i64: 2048, 128>}]} {
    %c0 = arith.constant 0 : index
    %c0_0 = arith.constant 0 : index
    %0 = vector.load %arg1[%c0, %c0_0] : memref<2048x128xf32, #tpu.memory_space<vmem>>, vector<2048x128xf32>
    %c0_1 = arith.constant 0 : index
    %c0_2 = arith.constant 0 : index
    %1 = vector.load %arg2[%c0_1, %c0_2] : memref<1x128xf32, #tpu.memory_space<vmem>>, vector<1x128xf32>
    %2 = vector.broadcast %1 : vector<1x128xf32> to vector<2048x128xf32>
    %3 = arith.mulf %0, %2 : vector<2048x128xf32>
    %c0_3 = arith.constant 0 : index
    %c0_4 = arith.constant 0 : index
    %4 = vector.load %arg3[%c0_3, %c0_4] : memref<1x128xf32, #tpu.memory_space<vmem>>, vector<1x128xf32>
    %5 = vector.broadcast %4 : vector<1x128xf32> to vector<2048x128xf32>
    %6 = arith.addf %3, %5 : vector<2048x128xf32>
    %cst = arith.constant 0.000000e+00 : f32
    %7 = vector.broadcast %cst : f32 to vector<2048x128xf32>
    %8 = arith.maximumf %6, %7 : vector<2048x128xf32>
    %9 = arith.truncf %8 : vector<2048x128xf32> to vector<2048x128xbf16>
    %c0_5 = arith.constant 0 : index
    %c0_6 = arith.constant 0 : index
    %10 = vector.load %arg4[%c0_5, %c0_6] : memref<2048x128xbf16, #tpu.memory_space<vmem>>, vector<2048x128xbf16>
    tpu.vector_store %arg4[%c0_5, %c0_6], %9 {strides = array<i32>} : memref<2048x128xbf16, #tpu.memory_space<vmem>>, vector<2048x128xbf16>,
    return
  }
  func.func @transform_0(%arg0: i32) -> (i32, i32) {
    %c0_i32 = arith.constant 0 : i32
    %c0_i32_0 = arith.constant 0 : i32
    return %arg0, %c0_i32 : i32, i32
  }
  func.func @transform_1(%arg0: i32) -> (i32, i32) {
    %c0_i32 = arith.constant 0 : i32
    %c0_i32_0 = arith.constant 0 : i32
    %c0_i32_1 = arith.constant 0 : i32
    return %c0_i32, %c0_i32_0 : i32, i32
  }
  func.func @transform_2(%arg0: i32) -> (i32, i32) {
    %c0_i32 = arith.constant 0 : i32
    %c0_i32_0 = arith.constant 0 : i32
    %c0_i32_1 = arith.constant 0 : i32
    return %c0_i32, %c0_i32_0 : i32, i32
  }
  func.func @transform_3(%arg0: i32) -> (i32, i32) {
    %c0_i32 = arith.constant 0 : i32
    %c0_i32_0 = arith.constant 0 : i32
    return %arg0, %c0_i32 : i32, i32
  }
}

</mosaic_0001>

<llo_original>
// kernel: unet2d_up_forward.5
$region0: #{unet2d_up_forward.5}
  #allocation0 [shape = 'u32[]', space=smem, size = 0x4, offset = 0x4, fixed_abs, tag = 'smem constant byte address 0x4 - core index']
  #allocation1 [shape = 'u32[144,128]{1,0:T(1,128)}', space=vmem, size = 0x12000, scoped, tag = 'internal scratch']
  %s0 = inlined_call_operand.vmem [shape: f32[2048,128], index: 0, kind: input, shape index: {}]
  %s1 = inlined_call_operand.vmem [shape: f32[1,128], index: 1, kind: input, shape index: {}]
  %s2 = inlined_call_operand.vmem [shape: f32[1,128], index: 2, kind: input, shape index: {}]
  %s3 = inlined_call_operand.vmem [shape: bf16[2048,128], index: 3, kind: output, shape index: {}]
  %s4 = sld [smem:[#allocation0]]
  $region22: #{unet2d_up_forward.5} parent=0
    _
  %s6 = ssub.s32 1, %s4
  %s7 = scalar_select 0, %s6, %s4
  // Predicated region
  $region2: #{unet2d_up_forward.5} parent=0 // pred_check
    _
  $region3: #{unet2d_up_forward.5} parent=0 // pred_check_branch
    %9 = sbr.rel (0) target = $region5
  $region4: #{unet2d_up_forward.5} parent=0 // pred_region
    _
  $region5: #{unet2d_up_forward.5} parent=0 // pred_fallthru
    _
  // Predicated region
  $region6: #{unet2d_up_forward.5} parent=0 // pred_check
    _
  $region7: #{unet2d_up_forward.5} parent=0 // pred_check_branch
    %11 = sbr.rel (0) target = $region9
  $region8: #{unet2d_up_forward.5} parent=0 // pred_region
    _
  $region9: #{unet2d_up_forward.5} parent=0 // pred_fallthru
    _
  // Predicated region
  $region10: #{unet2d_up_forward.5} parent=0 // pred_check
    _
  $region11: #{unet2d_up_forward.5} parent=0 // pred_check_branch
    %13 = sbr.rel (0) target = $region13
  $region12: #{unet2d_up_forward.5} parent=0 // pred_region
    _
  $region13: #{unet2d_up_forward.5} parent=0 // pred_fallthru
    _
  %v14 = vld [vmem:[%s0] sm:$0xff]
  %v15 = vld [vmem:[%s0 + $0x8] sm:$0xff]
  %v16 = vld [vmem:[%s0 + $0x10] sm:$0xff]
  %v17 = vld [vmem:[%s0 + $0x18] sm:$0xff]
  %v18 = vld [vmem:[%s0 + $0x20] sm:$0xff]
  %v19 = vld [vmem:[%s0 + $0x28] sm:$0xff]
  %v20 = vld [vmem:[%s0 + $0x30] sm:$0xff]
  %v21 = vld [vmem:[%s0 + $0x38] sm:$0xff]
  %v22 = vld [vmem:[%s0 + $0x40] sm:$0xff]
  %v23 = vld [vmem:[%s0 + $0x48] sm:$0xff]
  %v24 = vld [vmem:[%s0 + $0x50] sm:$0xff]
  %v25 = vld [vmem:[%s0 + $0x58] sm:$0xff]
  %v26 = vld [vmem:[%s0 + $0x60] sm:$0xff]
  %v27 = vld [vmem:[%s0 + $0x68] sm:$0xff]
  %v28 = vld [vmem:[%s0 + $0x70] sm:$0xff]
  %v29 = vld [vmem:[%s0 + $0x78] sm:$0xff]
  %v30 = vld [vmem:[%s0 + $0x80] sm:$0xff]
  %v31 = vld [vmem:[%s0 + $0x88] sm:$0xff]
  %v32 = vld [vmem:[%s0 + $0x90] sm:$0xff]
  %v33 = vld [vmem:[%s0 + $0x98] sm:$0xff]
  %v34 = vld [vmem:[%s0 + $0xa0] sm:$0xff]
  %v35 = vld [vmem:[%s0 + $0xa8] sm:$0xff]
  %v36 = vld [vmem:[%s0 + $0xb0] sm:$0xff]
  %v37 = vld [vmem:[%s0 + $0xb8] sm:$0xff]
  %v38 = vld [vmem:[%s0 + $0xc0] sm:$0xff]
  %v39 = vld [vmem:[%s0 + $0xc8] sm:$0xff]
  %v40 = vld [vmem:[%s0 + $0xd0] sm:$0xff]
  %v41 = vld [vmem:[%s0 + $0xd8] sm:$0xff]
  %v42 = vld [vmem:[%s0 + $0xe0] sm:$0xff]
  %v43 = vld [vmem:[%s0 + $0xe8] sm:$0xff]
  %v44 = vld [vmem:[%s0 + $0xf0] sm:$0xff]
  %v45 = vld [vmem:[%s0 + $0xf8] sm:$0xff]
  %v46 = vld [vmem:[%s0 + $0x100] sm:$0xff]
  %v47 = vld [vmem:[%s0 + $0x108] sm:$0xff]
  %v48 = vld [vmem:[%s0 + $0x110] sm:$0xff]
  %v49 = vld [vmem:[%s0 + $0x118] sm:$0xff]
  %v50 = vld [vmem:[%s0 + $0x120] sm:$0xff]
  %v51 = vld [vmem:[%s0 + $0x128] sm:$0xff]
  %v52 = vld [vmem:[%s0 + $0x130] sm:$0xff]
  %v53 = vld [vmem:[%s0 + $0x138] sm:$0xff]
  %v54 = vld [vmem:[%s0 + $0x140] sm:$0xff]
  %v55 = vld [vmem:[%s0 + $0x148] sm:$0xff]
  %v56 = vld [vmem:[%s0 + $0x150] sm:$0xff]
  %v57 = vld [vmem:[%s0 + $0x158] sm:$0xff]
  %v58 = vld [vmem:[%s0 + $0x160] sm:$0xff]
  %v59 = vld [vmem:[%s0 + $0x168] sm:$0xff]
  %v60 = vld [vmem:[%s0 + $0x170] sm:$0xff]
  %v61 = vld [vmem:[%s0 + $0x178] sm:$0xff]
  %v62 = vld [vmem:[%s0 + $0x180] sm:$0xff]
  %v63 = vld [vmem:[%s0 + $0x188] sm:$0xff]
  %v64 = vld [vmem:[%s0 + $0x190] sm:$0xff]
  %v65 = vld [vmem:[%s0 + $0x198] sm:$0xff]
  %v66 = vld [vmem:[%s0 + $0x1a0] sm:$0xff]
  %v67 = vld [vmem:[%s0 + $0x1a8] sm:$0xff]
  %v68 = vld [vmem:[%s0 + $0x1b0] sm:$0xff]
  %v69 = vld [vmem:[%s0 + $0x1b8] sm:$0xff]
  %v70 = vld [vmem:[%s0 + $0x1c0] sm:$0xff]
  %v71 = vld [vmem:[%s0 + $0x1c8] sm:$0xff]
  %v72 = vld [vmem:[%s0 + $0x1d0] sm:$0xff]
  %v73 = vld [vmem:[%s0 + $0x1d8] sm:$0xff]
  %v74 = vld [vmem:[%s0 + $0x1e0] sm:$0xff]
  %v75 = vld [vmem:[%s0 + $0x1e8] sm:$0xff]
  %v76 = vld [vmem:[%s0 + $0x1f0] sm:$0xff]
  %v77 = vld [vmem:[%s0 + $0x1f8] sm:$0xff]
  %v78 = vld [vmem:[%s0 + $0x200] sm:$0xff]
  %v79 = vld [vmem:[%s0 + $0x208] sm:$0xff]
  %v80 = vld [vmem:[%s0 + $0x210] sm:$0xff]
  %v81 = vld [vmem:[%s0 + $0x218] sm:$0xff]
  %v82 = vld [vmem:[%s0 + $0x220] sm:$0xff]
  %v83 = vld [vmem:[%s0 + $0x228] sm:$0xff]
  %v84 = vld [vmem:[%s0 + $0x230] sm:$0xff]
  %v85 = vld [vmem:[%s0 + $0x238] sm:$0xff]
  %v86 = vld [vmem:[%s0 + $0x240] sm:$0xff]
  %v87 = vld [vmem:[%s0 + $0x248] sm:$0xff]
  %v88 = vld [vmem:[%s0 + $0x250] sm:$0xff]
  %v89 = vld [vmem:[%s0 + $0x258] sm:$0xff]
  %v90 = vld [vmem:[%s0 + $0x260] sm:$0xff]
  %v91 = vld [vmem:[%s0 + $0x268] sm:$0xff]
  %v92 = vld [vmem:[%s0 + $0x270] sm:$0xff]
  %v93 = vld [vmem:[%s0 + $0x278] sm:$0xff]
  %v94 = vld [vmem:[%s0 + $0x280] sm:$0xff]
  %v95 = vld [vmem:[%s0 + $0x288] sm:$0xff]
  %v96 = vld [vmem:[%s0 + $0x290] sm:$0xff]
  %v97 = vld [vmem:[%s0 + $0x298] sm:$0xff]
  %v98 = vld [vmem:[%s0 + $0x2a0] sm:$0xff]
  %v99 = vld [vmem:[%s0 + $0x2a8] sm:$0xff]
  %v100 = vld [vmem:[%s0 + $0x2b0] sm:$0xff]
  %v101 = vld [vmem:[%s0 + $0x2b8] sm:$0xff]
  %v102 = vld [vmem:[%s0 + $0x2c0] sm:$0xff]
  %v103 = vld [vmem:[%s0 + $0x2c8] sm:$0xff]
  %v104 = vld [vmem:[%s0 + $0x2d0] sm:$0xff]
  %v105 = vld [vmem:[%s0 + $0x2d8] sm:$0xff]
  %v106 = vld [vmem:[%s0 + $0x2e0] sm:$0xff]
  %v107 = vld [vmem:[%s0 + $0x2e8] sm:$0xff]
  %v108 = vld [vmem:[%s0 + $0x2f0] sm:$0xff]
  %v109 = vld [vmem:[%s0 + $0x2f8] sm:$0xff]
  %v110 = vld [vmem:[%s0 + $0x300] sm:$0xff]
  %v111 = vld [vmem:[%s0 + $0x308] sm:$0xff]
  %v112 = vld [vmem:[%s0 + $0x310] sm:$0xff]
  %v113 = vld [vmem:[%s0 + $0x318] sm:$0xff]
  %v114 = vld [vmem:[%s0 + $0x320] sm:$0xff]
  %v115 = vld [vmem:[%s0 + $0x328] sm:$0xff]
  %v116 = vld [vmem:[%s0 + $0x330] sm:$0xff]
  %v117 = vld [vmem:[%s0 + $0x338] sm:$0xff]
  %v118 = vld [vmem:[%s0 + $0x340] sm:$0xff]
  %v119 = vld [vmem:[%s0 + $0x348] sm:$0xff]
  %v120 = vld [vmem:[%s0 + $0x350] sm:$0xff]
  %v121 = vld [vmem:[%s0 + $0x358] sm:$0xff]
  %v122 = vld [vmem:[%s0 + $0x360] sm:$0xff]
  %v123 = vld [vmem:[%s0 + $0x368] sm:$0xff]
  %v124 = vld [vmem:[%s0 + $0x370] sm:$0xff]
  %v125 = vld [vmem:[%s0 + $0x378] sm:$0xff]
  %v126 = vld [vmem:[%s0 + $0x380] sm:$0xff]
  %v127 = vld [vmem:[%s0 + $0x388] sm:$0xff]
  %v128 = vld [vmem:[%s0 + $0x390] sm:$0xff]
  %v129 = vld [vmem:[%s0 + $0x398] sm:$0xff]
  %v130 = vld [vmem:[%s0 + $0x3a0] sm:$0xff]
  %v131 = vld [vmem:[%s0 + $0x3a8] sm:$0xff]
  %v132 = vld [vmem:[%s0 + $0x3b0] sm:$0xff]
  %v133 = vld [vmem:[%s0 + $0x3b8] sm:$0xff]
  %v134 = vld [vmem:[%s0 + $0x3c0] sm:$0xff]
  %v135 = vld [vmem:[%s0 + $0x3c8] sm:$0xff]
  %v136 = vld [vmem:[%s0 + $0x3d0] sm:$0xff]
  %v137 = vld [vmem:[%s0 + $0x3d8] sm:$0xff]
  %v138 = vld [vmem:[%s0 + $0x3e0] sm:$0xff]
  %v139 = vld [vmem:[%s0 + $0x3e8] sm:$0xff]
  %v140 = vld [vmem:[%s0 + $0x3f0] sm:$0xff]
  %v141 = vld [vmem:[%s0 + $0x3f8] sm:$0xff]
  %v142 = vld [vmem:[%s0 + $0x400] sm:$0xff]
  %v143 = vld [vmem:[%s0 + $0x408] sm:$0xff]
  %v144 = vld [vmem:[%s0 + $0x410] sm:$0xff]
  %v145 = vld [vmem:[%s0 + $0x418] sm:$0xff]
  %v146 = vld [vmem:[%s0 + $0x420] sm:$0xff]
  %v147 = vld [vmem:[%s0 + $0x428] sm:$0xff]
  %v148 = vld [vmem:[%s0 + $0x430] sm:$0xff]
  %v149 = vld [vmem:[%s0 + $0x438] sm:$0xff]
  %v150 = vld [vmem:[%s0 + $0x440] sm:$0xff]
  %v151 = vld [vmem:[%s0 + $0x448] sm:$0xff]
  %v152 = vld [vmem:[%s0 + $0x450] sm:$0xff]
  %v153 = vld [vmem:[%s0 + $0x458] sm:$0xff]
  %v154 = vld [vmem:[%s0 + $0x460] sm:$0xff]
  %v155 = vld [vmem:[%s0 + $0x468] sm:$0xff]
  %v156 = vld [vmem:[%s0 + $0x470] sm:$0xff]
  %v157 = vld [vmem:[%s0 + $0x478] sm:$0xff]
  %v158 = vld [vmem:[%s0 + $0x480] sm:$0xff]
  %v159 = vld [vmem:[%s0 + $0x488] sm:$0xff]
  %v160 = vld [vmem:[%s0 + $0x490] sm:$0xff]
  %v161 = vld [vmem:[%s0 + $0x498] sm:$0xff]
  %v162 = vld [vmem:[%s0 + $0x4a0] sm:$0xff]
  %v163 = vld [vmem:[%s0 + $0x4a8] sm:$0xff]
  %v164 = vld [vmem:[%s0 + $0x4b0] sm:$0xff]
  %v165 = vld [vmem:[%s0 + $0x4b8] sm:$0xff]
  %v166 = vld [vmem:[%s0 + $0x4c0] sm:$0xff]
  %v167 = vld [vmem:[%s0 + $0x4c8] sm:$0xff]
  %v168 = vld [vmem:[%s0 + $0x4d0] sm:$0xff]
  %v169 = vld [vmem:[%s0 + $0x4d8] sm:$0xff]
  %v170 = vld [vmem:[%s0 + $0x4e0] sm:$0xff]
  %v171 = vld [vmem:[%s0 + $0x4e8] sm:$0xff]
  %v172 = vld [vmem:[%s0 + $0x4f0] sm:$0xff]
  %v173 = vld [vmem:[%s0 + $0x4f8] sm:$0xff]
  %v174 = vld [vmem:[%s0 + $0x500] sm:$0xff]
  %v175 = vld [vmem:[%s0 + $0x508] sm:$0xff]
  %v176 = vld [vmem:[%s0 + $0x510] sm:$0xff]
  %v177 = vld [vmem:[%s0 + $0x518] sm:$0xff]
  %v178 = vld [vmem:[%s0 + $0x520] sm:$0xff]
  %v179 = vld [vmem:[%s0 + $0x528] sm:$0xff]
  %v180 = vld [vmem:[%s0 + $0x530] sm:$0xff]
  %v181 = vld [vmem:[%s0 + $0x538] sm:$0xff]
  %v182 = vld [vmem:[%s0 + $0x540] sm:$0xff]
  %v183 = vld [vmem:[%s0 + $0x548] sm:$0xff]
  %v184 = vld [vmem:[%s0 + $0x550] sm:$0xff]
  %v185 = vld [vmem:[%s0 + $0x558] sm:$0xff]
  %v186 = vld [vmem:[%s0 + $0x560] sm:$0xff]
  %v187 = vld [vmem:[%s0 + $0x568] sm:$0xff]
  %v188 = vld [vmem:[%s0 + $0x570] sm:$0xff]
  %v189 = vld [vmem:[%s0 + $0x578] sm:$0xff]
  %v190 = vld [vmem:[%s0 + $0x580] sm:$0xff]
  %v191 = vld [vmem:[%s0 + $0x588] sm:$0xff]
  %v192 = vld [vmem:[%s0 + $0x590] sm:$0xff]
  %v193 = vld [vmem:[%s0 + $0x598] sm:$0xff]
  %v194 = vld [vmem:[%s0 + $0x5a0] sm:$0xff]
  %v195 = vld [vmem:[%s0 + $0x5a8] sm:$0xff]
  %v196 = vld [vmem:[%s0 + $0x5b0] sm:$0xff]
  %v197 = vld [vmem:[%s0 + $0x5b8] sm:$0xff]
  %v198 = vld [vmem:[%s0 + $0x5c0] sm:$0xff]
  %v199 = vld [vmem:[%s0 + $0x5c8] sm:$0xff]
  %v200 = vld [vmem:[%s0 + $0x5d0] sm:$0xff]
  %v201 = vld [vmem:[%s0 + $0x5d8] sm:$0xff]
  %v202 = vld [vmem:[%s0 + $0x5e0] sm:$0xff]
  %v203 = vld [vmem:[%s0 + $0x5e8] sm:$0xff]
  %v204 = vld [vmem:[%s0 + $0x5f0] sm:$0xff]
  %v205 = vld [vmem:[%s0 + $0x5f8] sm:$0xff]
  %v206 = vld [vmem:[%s0 + $0x600] sm:$0xff]
  %v207 = vld [vmem:[%s0 + $0x608] sm:$0xff]
  %v208 = vld [vmem:[%s0 + $0x610] sm:$0xff]
  %v209 = vld [vmem:[%s0 + $0x618] sm:$0xff]
  %v210 = vld [vmem:[%s0 + $0x620] sm:$0xff]
  %v211 = vld [vmem:[%s0 + $0x628] sm:$0xff]
  %v212 = vld [vmem:[%s0 + $0x630] sm:$0xff]
  %v213 = vld [vmem:[%s0 + $0x638] sm:$0xff]
  %v214 = vld [vmem:[%s0 + $0x640] sm:$0xff]
  %v215 = vld [vmem:[%s0 + $0x648] sm:$0xff]
  %v216 = vld [vmem:[%s0 + $0x650] sm:$0xff]
  %v217 = vld [vmem:[%s0 + $0x658] sm:$0xff]
  %v218 = vld [vmem:[%s0 + $0x660] sm:$0xff]
  %v219 = vld [vmem:[%s0 + $0x668] sm:$0xff]
  %v220 = vld [vmem:[%s0 + $0x670] sm:$0xff]
  %v221 = vld [vmem:[%s0 + $0x678] sm:$0xff]
  %v222 = vld [vmem:[%s0 + $0x680] sm:$0xff]
  %v223 = vld [vmem:[%s0 + $0x688] sm:$0xff]
  %v224 = vld [vmem:[%s0 + $0x690] sm:$0xff]
  %v225 = vld [vmem:[%s0 + $0x698] sm:$0xff]
  %v226 = vld [vmem:[%s0 + $0x6a0] sm:$0xff]
  %v227 = vld [vmem:[%s0 + $0x6a8] sm:$0xff]
  %v228 = vld [vmem:[%s0 + $0x6b0] sm:$0xff]
  %v229 = vld [vmem:[%s0 + $0x6b8] sm:$0xff]
  %v230 = vld [vmem:[%s0 + $0x6c0] sm:$0xff]
  %v231 = vld [vmem:[%s0 + $0x6c8] sm:$0xff]
  %v232 = vld [vmem:[%s0 + $0x6d0] sm:$0xff]
  %v233 = vld [vmem:[%s0 + $0x6d8] sm:$0xff]
  %v234 = vld [vmem:[%s0 + $0x6e0] sm:$0xff]
  %v235 = vld [vmem:[%s0 + $0x6e8] sm:$0xff]
  %v236 = vld [vmem:[%s0 + $0x6f0] sm:$0xff]
  %v237 = vld [vmem:[%s0 + $0x6f8] sm:$0xff]
  %v238 = vld [vmem:[%s0 + $0x700] sm:$0xff]
  %v239 = vld [vmem:[%s0 + $0x708] sm:$0xff]
  %v240 = vld [vmem:[%s0 + $0x710] sm:$0xff]
  %v241 = vld [vmem:[%s0 + $0x718] sm:$0xff]
  %v242 = vld [vmem:[%s0 + $0x720] sm:$0xff]
  %v243 = vld [vmem:[%s0 + $0x728] sm:$0xff]
  %v244 = vld [vmem:[%s0 + $0x730] sm:$0xff]
  %v245 = vld [vmem:[%s0 + $0x738] sm:$0xff]
  %v246 = vld [vmem:[%s0 + $0x740] sm:$0xff]
  %v247 = vld [vmem:[%s0 + $0x748] sm:$0xff]
  %v248 = vld [vmem:[%s0 + $0x750] sm:$0xff]
  %v249 = vld [vmem:[%s0 + $0x758] sm:$0xff]
  %v250 = vld [vmem:[%s0 + $0x760] sm:$0xff]
  %v251 = vld [vmem:[%s0 + $0x768] sm:$0xff]
  %v252 = vld [vmem:[%s0 + $0x770] sm:$0xff]
  %v253 = vld [vmem:[%s0 + $0x778] sm:$0xff]
  %v254 = vld [vmem:[%s0 + $0x780] sm:$0xff]
  %v255 = vld [vmem:[%s0 + $0x788] sm:$0xff]
  %v256 = vld [vmem:[%s0 + $0x790] sm:$0xff]
  %v257 = vld [vmem:[%s0 + $0x798] sm:$0xff]
  %v258 = vld [vmem:[%s0 + $0x7a0] sm:$0xff]
  %v259 = vld [vmem:[%s0 + $0x7a8] sm:$0xff]
  %v260 = vld [vmem:[%s0 + $0x7b0] sm:$0xff]
  %v261 = vld [vmem:[%s0 + $0x7b8] sm:$0xff]
  %v262 = vld [vmem:[%s0 + $0x7c0] sm:$0xff]
  %v263 = vld [vmem:[%s0 + $0x7c8] sm:$0xff]
  %v264 = vld [vmem:[%s0 + $0x7d0] sm:$0xff]
  %v265 = vld [vmem:[%s0 + $0x7d8] sm:$0xff]
  %v266 = vld [vmem:[%s0 + $0x7e0] sm:$0xff]
  %v267 = vld [vmem:[%s0 + $0x7e8] sm:$0xff]
  %v268 = vld [vmem:[%s0 + $0x7f0] sm:$0xff]
  %v269 = vld [vmem:[%s0 + $0x7f8] sm:$0xff]
  %v270 = vld [vmem:[%s1] sm:$0x1]
  %v272 = vlaneseq
  %v273 = vshrl.u32 %v272, 7
  %v274 = vsub.s32 0, %v273
  %v275 = vrot.slane %v270, %v274
  %v277 = vmul.f32 %v14, %v275
  %v278 = vmul.f32 %v15, %v275
  %v279 = vmul.f32 %v16, %v275
  %v280 = vmul.f32 %v17, %v275
  %v281 = vmul.f32 %v18, %v275
  %v282 = vmul.f32 %v19, %v275
  %v283 = vmul.f32 %v20, %v275
  %v284 = vmul.f32 %v21, %v275
  %v285 = vmul.f32 %v22, %v275
  %v286 = vmul.f32 %v23, %v275
  %v287 = vmul.f32 %v24, %v275
  %v288 = vmul.f32 %v25, %v275
  %v289 = vmul.f32 %v26, %v275
  %v290 = vmul.f32 %v27, %v275
  %v291 = vmul.f32 %v28, %v275
  %v292 = vmul.f32 %v29, %v275
  %v293 = vmul.f32 %v30, %v275
  %v294 = vmul.f32 %v31, %v275
  %v295 = vmul.f32 %v32, %v275
  %v296 = vmul.f32 %v33, %v275
  %v297 = vmul.f32 %v34, %v275
  %v298 = vmul.f32 %v35, %v275
  %v299 = vmul.f32 %v36, %v275
  %v300 = vmul.f32 %v37, %v275
  %v301 = vmul.f32 %v38, %v275
  %v302 = vmul.f32 %v39, %v275
  %v303 = vmul.f32 %v40, %v275
  %v304 = vmul.f32 %v41, %v275
  %v305 = vmul.f32 %v42, %v275
  %v306 = vmul.f32 %v43, %v275
  %v307 = vmul.f32 %v44, %v275
  %v308 = vmul.f32 %v45, %v275
  %v309 = vmul.f32 %v46, %v275
  %v310 = vmul.f32 %v47, %v275
  %v311 = vmul.f32 %v48, %v275
  %v312 = vmul.f32 %v49, %v275
  %v313 = vmul.f32 %v50, %v275
  %v314 = vmul.f32 %v51, %v275
  %v315 = vmul.f32 %v52, %v275
  %v316 = vmul.f32 %v53, %v275
  %v317 = vmul.f32 %v54, %v275
  %v318 = vmul.f32 %v55, %v275
  %v319 = vmul.f32 %v56, %v275
  %v320 = vmul.f32 %v57, %v275
  %v321 = vmul.f32 %v58, %v275
  %v322 = vmul.f32 %v59, %v275
  %v323 = vmul.f32 %v60, %v275
  %v324 = vmul.f32 %v61, %v275
  %v325 = vmul.f32 %v62, %v275
  %v326 = vmul.f32 %v63, %v275
  %v327 = vmul.f32 %v64, %v275
  %v328 = vmul.f32 %v65, %v275
  %v329 = vmul.f32 %v66, %v275
  %v330 = vmul.f32 %v67, %v275
  %v331 = vmul.f32 %v68, %v275
  %v332 = vmul.f32 %v69, %v275
  %v333 = vmul.f32 %v70, %v275
  %v334 = vmul.f32 %v71, %v275
  %v335 = vmul.f32 %v72, %v275
  %v336 = vmul.f32 %v73, %v275
  %v337 = vmul.f32 %v74, %v275
  %v338 = vmul.f32 %v75, %v275
  %v339 = vmul.f32 %v76, %v275
  %v340 = vmul.f32 %v77, %v275
  %v341 = vmul.f32 %v78, %v275
  %v342 = vmul.f32 %v79, %v275
  %v343 = vmul.f32 %v80, %v275
  %v344 = vmul.f32 %v81, %v275
  %v345 = vmul.f32 %v82, %v275
  %v346 = vmul.f32 %v83, %v275
  %v347 = vmul.f32 %v84, %v275
  %v348 = vmul.f32 %v85, %v275
  %v349 = vmul.f32 %v86, %v275
  %v350 = vmul.f32 %v87, %v275
  %v351 = vmul.f32 %v88, %v275
  %v352 = vmul.f32 %v89, %v275
  %v353 = vmul.f32 %v90, %v275
  %v354 = vmul.f32 %v91, %v275
  %v355 = vmul.f32 %v92, %v275
  %v356 = vmul.f32 %v93, %v275
  %v357 = vmul.f32 %v94, %v275
  %v358 = vmul.f32 %v95, %v275
  %v359 = vmul.f32 %v96, %v275
  %v360 = vmul.f32 %v97, %v275
  %v361 = vmul.f32 %v98, %v275
  %v362 = vmul.f32 %v99, %v275
  %v363 = vmul.f32 %v100, %v275
  %v364 = vmul.f32 %v101, %v275
  %v365 = vmul.f32 %v102, %v275
  %v366 = vmul.f32 %v103, %v275
  %v367 = vmul.f32 %v104, %v275
  %v368 = vmul.f32 %v105, %v275
  %v369 = vmul.f32 %v106, %v275
  %v370 = vmul.f32 %v107, %v275
  %v371 = vmul.f32 %v108, %v275
  %v372 = vmul.f32 %v109, %v275
  %v373 = vmul.f32 %v110, %v275
  %v374 = vmul.f32 %v111, %v275
  %v375 = vmul.f32 %v112, %v275
  %v376 = vmul.f32 %v113, %v275
  %v377 = vmul.f32 %v114, %v275
  %v378 = vmul.f32 %v115, %v275
  %v379 = vmul.f32 %v116, %v275
  %v380 = vmul.f32 %v117, %v275
  %v381 = vmul.f32 %v118, %v275
  %v382 = vmul.f32 %v119, %v275
  %v383 = vmul.f32 %v120, %v275
  %v384 = vmul.f32 %v121, %v275
  %v385 = vmul.f32 %v122, %v275
  %v386 = vmul.f32 %v123, %v275
  %v387 = vmul.f32 %v124, %v275
  %v388 = vmul.f32 %v125, %v275
  %v389 = vmul.f32 %v126, %v275
  %v390 = vmul.f32 %v127, %v275
  %v391 = vmul.f32 %v128, %v275
  %v392 = vmul.f32 %v129, %v275
  %v393 = vmul.f32 %v130, %v275
  %v394 = vmul.f32 %v131, %v275
  %v395 = vmul.f32 %v132, %v275
  %v396 = vmul.f32 %v133, %v275
  %v397 = vmul.f32 %v134, %v275
  %v398 = vmul.f32 %v135, %v275
  %v399 = vmul.f32 %v136, %v275
  %v400 = vmul.f32 %v137, %v275
  %v401 = vmul.f32 %v138, %v275
  %v402 = vmul.f32 %v139, %v275
  %v403 = vmul.f32 %v140, %v275
  %v404 = vmul.f32 %v141, %v275
  %v405 = vmul.f32 %v142, %v275
  %v406 = vmul.f32 %v143, %v275
  %v407 = vmul.f32 %v144, %v275
  %v408 = vmul.f32 %v145, %v275
  %v409 = vmul.f32 %v146, %v275
  %v410 = vmul.f32 %v147, %v275
  %v411 = vmul.f32 %v148, %v275
  %v412 = vmul.f32 %v149, %v275
  %v413 = vmul.f32 %v150, %v275
  %v414 = vmul.f32 %v151, %v275
  %v415 = vmul.f32 %v152, %v275
  %v416 = vmul.f32 %v153, %v275
  %v417 = vmul.f32 %v154, %v275
  %v418 = vmul.f32 %v155, %v275
  %v419 = vmul.f32 %v156, %v275
  %v420 = vmul.f32 %v157, %v275
  %v421 = vmul.f32 %v158, %v275
  %v422 = vmul.f32 %v159, %v275
  %v423 = vmul.f32 %v160, %v275
  %v424 = vmul.f32 %v161, %v275
  %v425 = vmul.f32 %v162, %v275
  %v426 = vmul.f32 %v163, %v275
  %v427 = vmul.f32 %v164, %v275
  %v428 = vmul.f32 %v165, %v275
  %v429 = vmul.f32 %v166, %v275
  %v430 = vmul.f32 %v167, %v275
  %v431 = vmul.f32 %v168, %v275
  %v432 = vmul.f32 %v169, %v275
  %v433 = vmul.f32 %v170, %v275
  %v434 = vmul.f32 %v171, %v275
  %v435 = vmul.f32 %v172, %v275
  %v436 = vmul.f32 %v173, %v275
  %v437 = vmul.f32 %v174, %v275
  %v438 = vmul.f32 %v175, %v275
  %v439 = vmul.f32 %v176, %v275
  %v440 = vmul.f32 %v177, %v275
  %v441 = vmul.f32 %v178, %v275
  %v442 = vmul.f32 %v179, %v275
  %v443 = vmul.f32 %v180, %v275
  %v444 = vmul.f32 %v181, %v275
  %v445 = vmul.f32 %v182, %v275
  %v446 = vmul.f32 %v183, %v275
  %v447 = vmul.f32 %v184, %v275
  %v448 = vmul.f32 %v185, %v275
  %v449 = vmul.f32 %v186, %v275
  %v450 = vmul.f32 %v187, %v275
  %v451 = vmul.f32 %v188, %v275
  %v452 = vmul.f32 %v189, %v275
  %v453 = vmul.f32 %v190, %v275
  %v454 = vmul.f32 %v191, %v275
  %v455 = vmul.f32 %v192, %v275
  %v456 = vmul.f32 %v193, %v275
  %v457 = vmul.f32 %v194, %v275
  %v458 = vmul.f32 %v195, %v275
  %v459 = vmul.f32 %v196, %v275
  %v460 = vmul.f32 %v197, %v275
  %v461 = vmul.f32 %v198, %v275
  %v462 = vmul.f32 %v199, %v275
  %v463 = vmul.f32 %v200, %v275
  %v464 = vmul.f32 %v201, %v275
  %v465 = vmul.f32 %v202, %v275
  %v466 = vmul.f32 %v203, %v275
  %v467 = vmul.f32 %v204, %v275
  %v468 = vmul.f32 %v205, %v275
  %v469 = vmul.f32 %v206, %v275
  %v470 = vmul.f32 %v207, %v275
  %v471 = vmul.f32 %v208, %v275
  %v472 = vmul.f32 %v209, %v275
  %v473 = vmul.f32 %v210, %v275
  %v474 = vmul.f32 %v211, %v275
  %v475 = vmul.f32 %v212, %v275
  %v476 = vmul.f32 %v213, %v275
  %v477 = vmul.f32 %v214, %v275
  %v478 = vmul.f32 %v215, %v275
  %v479 = vmul.f32 %v216, %v275
  %v480 = vmul.f32 %v217, %v275
  %v481 = vmul.f32 %v218, %v275
  %v482 = vmul.f32 %v219, %v275
  %v483 = vmul.f32 %v220, %v275
  %v484 = vmul.f32 %v221, %v275
  %v485 = vmul.f32 %v222, %v275
  %v486 = vmul.f32 %v223, %v275
  %v487 = vmul.f32 %v224, %v275
  %v488 = vmul.f32 %v225, %v275
  %v489 = vmul.f32 %v226, %v275
  %v490 = vmul.f32 %v227, %v275
  %v491 = vmul.f32 %v228, %v275
  %v492 = vmul.f32 %v229, %v275
  %v493 = vmul.f32 %v230, %v275
  %v494 = vmul.f32 %v231, %v275
  %v495 = vmul.f32 %v232, %v275
  %v496 = vmul.f32 %v233, %v275
  %v497 = vmul.f32 %v234, %v275
  %v498 = vmul.f32 %v235, %v275
  %v499 = vmul.f32 %v236, %v275
  %v500 = vmul.f32 %v237, %v275
  %v501 = vmul.f32 %v238, %v275
  %v502 = vmul.f32 %v239, %v275
  %v503 = vmul.f32 %v240, %v275
  %v504 = vmul.f32 %v241, %v275
  %v505 = vmul.f32 %v242, %v275
  %v506 = vmul.f32 %v243, %v275
  %v507 = vmul.f32 %v244, %v275
  %v508 = vmul.f32 %v245, %v275
  %v509 = vmul.f32 %v246, %v275
  %v510 = vmul.f32 %v247, %v275
  %v511 = vmul.f32 %v248, %v275
  %v512 = vmul.f32 %v249, %v275
  %v513 = vmul.f32 %v250, %v275
  %v514 = vmul.f32 %v251, %v275
  %v515 = vmul.f32 %v252, %v275
  %v516 = vmul.f32 %v253, %v275
  %v517 = vmul.f32 %v254, %v275
  %v518 = vmul.f32 %v255, %v275
  %v519 = vmul.f32 %v256, %v275
  %v520 = vmul.f32 %v257, %v275
  %v521 = vmul.f32 %v258, %v275
  %v522 = vmul.f32 %v259, %v275
  %v523 = vmul.f32 %v260, %v275
  %v524 = vmul.f32 %v261, %v275
  %v525 = vmul.f32 %v262, %v275
  %v526 = vmul.f32 %v263, %v275
  %v527 = vmul.f32 %v264, %v275
  %v528 = vmul.f32 %v265, %v275
  %v529 = vmul.f32 %v266, %v275
  %v530 = vmul.f32 %v267, %v275
  %v531 = vmul.f32 %v268, %v275
  %v532 = vmul.f32 %v269, %v275
  %v533 = vld [vmem:[%s2] sm:$0x1]
  %v535 = vlaneseq
  %v536 = vshrl.u32 %v535, 7
  %v537 = vsub.s32 0, %v536
  %v538 = vrot.slane %v533, %v537
  %v540 = vadd.f32 %v277, %v538
  %v541 = vadd.f32 %v278, %v538
  %v542 = vadd.f32 %v279, %v538
  %v543 = vadd.f32 %v280, %v538
  %v544 = vadd.f32 %v281, %v538
  %v545 = vadd.f32 %v282, %v538
  %v546 = vadd.f32 %v283, %v538
  %v547 = vadd.f32 %v284, %v538
  %v548 = vadd.f32 %v285, %v538
  %v549 = vadd.f32 %v286, %v538
  %v550 = vadd.f32 %v287, %v538
  %v551 = vadd.f32 %v288, %v538
  %v552 = vadd.f32 %v289, %v538
  %v553 = vadd.f32 %v290, %v538
  %v554 = vadd.f32 %v291, %v538
  %v555 = vadd.f32 %v292, %v538
  %v556 = vadd.f32 %v293, %v538
  %v557 = vadd.f32 %v294, %v538
  %v558 = vadd.f32 %v295, %v538
  %v559 = vadd.f32 %v296, %v538
  %v560 = vadd.f32 %v297, %v538
  %v561 = vadd.f32 %v298, %v538
  %v562 = vadd.f32 %v299, %v538
  %v563 = vadd.f32 %v300, %v538
  %v564 = vadd.f32 %v301, %v538
  %v565 = vadd.f32 %v302, %v538
  %v566 = vadd.f32 %v303, %v538
  %v567 = vadd.f32 %v304, %v538
  %v568 = vadd.f32 %v305, %v538
  %v569 = vadd.f32 %v306, %v538
  %v570 = vadd.f32 %v307, %v538
  %v571 = vadd.f32 %v308, %v538
  %v572 = vadd.f32 %v309, %v538
  %v573 = vadd.f32 %v310, %v538
  %v574 = vadd.f32 %v311, %v538
  %v575 = vadd.f32 %v312, %v538
  %v576 = vadd.f32 %v313, %v538
  %v577 = vadd.f32 %v314, %v538
  %v578 = vadd.f32 %v315, %v538
  %v579 = vadd.f32 %v316, %v538
  %v580 = vadd.f32 %v317, %v538
  %v581 = vadd.f32 %v318, %v538
  %v582 = vadd.f32 %v319, %v538
  %v583 = vadd.f32 %v320, %v538
  %v584 = vadd.f32 %v321, %v538
  %v585 = vadd.f32 %v322, %v538
  %v586 = vadd.f32 %v323, %v538
  %v587 = vadd.f32 %v324, %v538
  %v588 = vadd.f32 %v325, %v538
  %v589 = vadd.f32 %v326, %v538
  %v590 = vadd.f32 %v327, %v538
  %v591 = vadd.f32 %v328, %v538
  %v592 = vadd.f32 %v329, %v538
  %v593 = vadd.f32 %v330, %v538
  %v594 = vadd.f32 %v331, %v538
  %v595 = vadd.f32 %v332, %v538
  %v596 = vadd.f32 %v333, %v538
  %v597 = vadd.f32 %v334, %v538
  %v598 = vadd.f32 %v335, %v538
  %v599 = vadd.f32 %v336, %v538
  %v600 = vadd.f32 %v337, %v538
  %v601 = vadd.f32 %v338, %v538
  %v602 = vadd.f32 %v339, %v538
  %v603 = vadd.f32 %v340, %v538
  %v604 = vadd.f32 %v341, %v538
  %v605 = vadd.f32 %v342, %v538
  %v606 = vadd.f32 %v343, %v538
  %v607 = vadd.f32 %v344, %v538
  %v608 = vadd.f32 %v345, %v538
  %v609 = vadd.f32 %v346, %v538
  %v610 = vadd.f32 %v347, %v538
  %v611 = vadd.f32 %v348, %v538
  %v612 = vadd.f32 %v349, %v538
  %v613 = vadd.f32 %v350, %v538
  %v614 = vadd.f32 %v351, %v538
  %v615 = vadd.f32 %v352, %v538
  %v616 = vadd.f32 %v353, %v538
  %v617 = vadd.f32 %v354, %v538
  %v618 = vadd.f32 %v355, %v538
  %v619 = vadd.f32 %v356, %v538
  %v620 = vadd.f32 %v357, %v538
  %v621 = vadd.f32 %v358, %v538
  %v622 = vadd.f32 %v359, %v538
  %v623 = vadd.f32 %v360, %v538
  %v624 = vadd.f32 %v361, %v538
  %v625 = vadd.f32 %v362, %v538
  %v626 = vadd.f32 %v363, %v538
  %v627 = vadd.f32 %v364, %v538
  %v628 = vadd.f32 %v365, %v538
  %v629 = vadd.f32 %v366, %v538
  %v630 = vadd.f32 %v367, %v538
  %v631 = vadd.f32 %v368, %v538
  %v632 = vadd.f32 %v369, %v538
  %v633 = vadd.f32 %v370, %v538
  %v634 = vadd.f32 %v371, %v538
  %v635 = vadd.f32 %v372, %v538
  %v636 = vadd.f32 %v373, %v538
  %v637 = vadd.f32 %v374, %v538
  %v638 = vadd.f32 %v375, %v538
  %v639 = vadd.f32 %v376, %v538
  %v640 = vadd.f32 %v377, %v538
  %v641 = vadd.f32 %v378, %v538
  %v642 = vadd.f32 %v379, %v538
  %v643 = vadd.f32 %v380, %v538
  %v644 = vadd.f32 %v381, %v538
  %v645 = vadd.f32 %v382, %v538
  %v646 = vadd.f32 %v383, %v538
  %v647 = vadd.f32 %v384, %v538
  %v648 = vadd.f32 %v385, %v538
  %v649 = vadd.f32 %v386, %v538
  %v650 = vadd.f32 %v387, %v538
  %v651 = vadd.f32 %v388, %v538
  %v652 = vadd.f32 %v389, %v538
  %v653 = vadd.f32 %v390, %v538
  %v654 = vadd.f32 %v391, %v538
  %v655 = vadd.f32 %v392, %v538
  %v656 = vadd.f32 %v393, %v538
  %v657 = vadd.f32 %v394, %v538
  %v658 = vadd.f32 %v395, %v538
  %v659 = vadd.f32 %v396, %v538
  %v660 = vadd.f32 %v397, %v538
  %v661 = vadd.f32 %v398, %v538
  %v662 = vadd.f32 %v399, %v538
  %v663 = vadd.f32 %v400, %v538
  %v664 = vadd.f32 %v401, %v538
  %v665 = vadd.f32 %v402, %v538
  %v666 = vadd.f32 %v403, %v538
  %v667 = vadd.f32 %v404, %v538
  %v668 = vadd.f32 %v405, %v538
  %v669 = vadd.f32 %v406, %v538
  %v670 = vadd.f32 %v407, %v538
  %v671 = vadd.f32 %v408, %v538
  %v672 = vadd.f32 %v409, %v538
  %v673 = vadd.f32 %v410, %v538
  %v674 = vadd.f32 %v411, %v538
  %v675 = vadd.f32 %v412, %v538
  %v676 = vadd.f32 %v413, %v538
  %v677 = vadd.f32 %v414, %v538
  %v678 = vadd.f32 %v415, %v538
  %v679 = vadd.f32 %v416, %v538
  %v680 = vadd.f32 %v417, %v538
  %v681 = vadd.f32 %v418, %v538
  %v682 = vadd.f32 %v419, %v538
  %v683 = vadd.f32 %v420, %v538
  %v684 = vadd.f32 %v421, %v538
  %v685 = vadd.f32 %v422, %v538
  %v686 = vadd.f32 %v423, %v538
  %v687 = vadd.f32 %v424, %v538
  %v688 = vadd.f32 %v425, %v538
  %v689 = vadd.f32 %v426, %v538
  %v690 = vadd.f32 %v427, %v538
  %v691 = vadd.f32 %v428, %v538
  %v692 = vadd.f32 %v429, %v538
  %v693 = vadd.f32 %v430, %v538
  %v694 = vadd.f32 %v431, %v538
  %v695 = vadd.f32 %v432, %v538
  %v696 = vadd.f32 %v433, %v538
  %v697 = vadd.f32 %v434, %v538
  %v698 = vadd.f32 %v435, %v538
  %v699 = vadd.f32 %v436, %v538
  %v700 = vadd.f32 %v437, %v538
  %v701 = vadd.f32 %v438, %v538
  %v702 = vadd.f32 %v439, %v538
  %v703 = vadd.f32 %v440, %v538
  %v704 = vadd.f32 %v441, %v538
  %v705 = vadd.f32 %v442, %v538
  %v706 = vadd.f32 %v443, %v538
  %v707 = vadd.f32 %v444, %v538
  %v708 = vadd.f32 %v445, %v538
  %v709 = vadd.f32 %v446, %v538
  %v710 = vadd.f32 %v447, %v538
  %v711 = vadd.f32 %v448, %v538
  %v712 = vadd.f32 %v449, %v538
  %v713 = vadd.f32 %v450, %v538
  %v714 = vadd.f32 %v451, %v538
  %v715 = vadd.f32 %v452, %v538
  %v716 = vadd.f32 %v453, %v538
  %v717 = vadd.f32 %v454, %v538
  %v718 = vadd.f32 %v455, %v538
  %v719 = vadd.f32 %v456, %v538
  %v720 = vadd.f32 %v457, %v538
  %v721 = vadd.f32 %v458, %v538
  %v722 = vadd.f32 %v459, %v538
  %v723 = vadd.f32 %v460, %v538
  %v724 = vadd.f32 %v461, %v538
  %v725 = vadd.f32 %v462, %v538
  %v726 = vadd.f32 %v463, %v538
  %v727 = vadd.f32 %v464, %v538
  %v728 = vadd.f32 %v465, %v538
  %v729 = vadd.f32 %v466, %v538
  %v730 = vadd.f32 %v467, %v538
  %v731 = vadd.f32 %v468, %v538
  %v732 = vadd.f32 %v469, %v538
  %v733 = vadd.f32 %v470, %v538
  %v734 = vadd.f32 %v471, %v538
  %v735 = vadd.f32 %v472, %v538
  %v736 = vadd.f32 %v473, %v538
  %v737 = vadd.f32 %v474, %v538
  %v738 = vadd.f32 %v475, %v538
  %v739 = vadd.f32 %v476, %v538
  %v740 = vadd.f32 %v477, %v538
  %v741 = vadd.f32 %v478, %v538
  %v742 = vadd.f32 %v479, %v538
  %v743 = vadd.f32 %v480, %v538
  %v744 = vadd.f32 %v481, %v538
  %v745 = vadd.f32 %v482, %v538
  %v746 = vadd.f32 %v483, %v538
  %v747 = vadd.f32 %v484, %v538
  %v748 = vadd.f32 %v485, %v538
  %v749 = vadd.f32 %v486, %v538
  %v750 = vadd.f32 %v487, %v538
  %v751 = vadd.f32 %v488, %v538
  %v752 = vadd.f32 %v489, %v538
  %v753 = vadd.f32 %v490, %v538
  %v754 = vadd.f32 %v491, %v538
  %v755 = vadd.f32 %v492, %v538
  %v756 = vadd.f32 %v493, %v538
  %v757 = vadd.f32 %v494, %v538
  %v758 = vadd.f32 %v495, %v538
  %v759 = vadd.f32 %v496, %v538
  %v760 = vadd.f32 %v497, %v538
  %v761 = vadd.f32 %v498, %v538
  %v762 = vadd.f32 %v499, %v538
  %v763 = vadd.f32 %v500, %v538
  %v764 = vadd.f32 %v501, %v538
  %v765 = vadd.f32 %v502, %v538
  %v766 = vadd.f32 %v503, %v538
  %v767 = vadd.f32 %v504, %v538
  %v768 = vadd.f32 %v505, %v538
  %v769 = vadd.f32 %v506, %v538
  %v770 = vadd.f32 %v507, %v538
  %v771 = vadd.f32 %v508, %v538
  %v772 = vadd.f32 %v509, %v538
  %v773 = vadd.f32 %v510, %v538
  %v774 = vadd.f32 %v511, %v538
  %v775 = vadd.f32 %v512, %v538
  %v776 = vadd.f32 %v513, %v538
  %v777 = vadd.f32 %v514, %v538
  %v778 = vadd.f32 %v515, %v538
  %v779 = vadd.f32 %v516, %v538
  %v780 = vadd.f32 %v517, %v538
  %v781 = vadd.f32 %v518, %v538
  %v782 = vadd.f32 %v519, %v538
  %v783 = vadd.f32 %v520, %v538
  %v784 = vadd.f32 %v521, %v538
  %v785 = vadd.f32 %v522, %v538
  %v786 = vadd.f32 %v523, %v538
  %v787 = vadd.f32 %v524, %v538
  %v788 = vadd.f32 %v525, %v538
  %v789 = vadd.f32 %v526, %v538
  %v790 = vadd.f32 %v527, %v538
  %v791 = vadd.f32 %v528, %v538
  %v792 = vadd.f32 %v529, %v538
  %v793 = vadd.f32 %v530, %v538
  %v794 = vadd.f32 %v531, %v538
  %v795 = vadd.f32 %v532, %v538
  %v796 = vmax.f32 %v540, 0.0
  %v797 = vmax.f32 %v541, 0.0
  %v798 = vmax.f32 %v542, 0.0
  %v799 = vmax.f32 %v543, 0.0
  %v800 = vmax.f32 %v544, 0.0
  %v801 = vmax.f32 %v545, 0.0
  %v802 = vmax.f32 %v546, 0.0
  %v803 = vmax.f32 %v547, 0.0
  %v804 = vmax.f32 %v548, 0.0
  %v805 = vmax.f32 %v549, 0.0
  %v806 = vmax.f32 %v550, 0.0
  %v807 = vmax.f32 %v551, 0.0
  %v808 = vmax.f32 %v552, 0.0
  %v809 = vmax.f32 %v553, 0.0
  %v810 = vmax.f32 %v554, 0.0
  %v811 = vmax.f32 %v555, 0.0
  %v812 = vmax.f32 %v556, 0.0
  %v813 = vmax.f32 %v557, 0.0
  %v814 = vmax.f32 %v558, 0.0
  %v815 = vmax.f32 %v559, 0.0
  %v816 = vmax.f32 %v560, 0.0
  %v817 = vmax.f32 %v561, 0.0
  %v818 = vmax.f32 %v562, 0.0
  %v819 = vmax.f32 %v563, 0.0
  %v820 = vmax.f32 %v564, 0.0
  %v821 = vmax.f32 %v565, 0.0
  %v822 = vmax.f32 %v566, 0.0
  %v823 = vmax.f32 %v567, 0.0
  %v824 = vmax.f32 %v568, 0.0
  %v825 = vmax.f32 %v569, 0.0
  %v826 = vmax.f32 %v570, 0.0
  %v827 = vmax.f32 %v571, 0.0
  %v828 = vmax.f32 %v572, 0.0
  %v829 = vmax.f32 %v573, 0.0
  %v830 = vmax.f32 %v574, 0.0
  %v831 = vmax.f32 %v575, 0.0
  %v832 = vmax.f32 %v576, 0.0
  %v833 = vmax.f32 %v577, 0.0
  %v834 = vmax.f32 %v578, 0.0
  %v835 = vmax.f32 %v579, 0.0
  %v836 = vmax.f32 %v580, 0.0
  %v837 = vmax.f32 %v581, 0.0
  %v838 = vmax.f32 %v582, 0.0
  %v839 = vmax.f32 %v583, 0.0
  %v840 = vmax.f32 %v584, 0.0
  %v841 = vmax.f32 %v585, 0.0
  %v842 = vmax.f32 %v586, 0.0
  %v843 = vmax.f32 %v587, 0.0
  %v844 = vmax.f32 %v588, 0.0
  %v845 = vmax.f32 %v589, 0.0
  %v846 = vmax.f32 %v590, 0.0
  %v847 = vmax.f32 %v591, 0.0
  %v848 = vmax.f32 %v592, 0.0
  %v849 = vmax.f32 %v593, 0.0
  %v850 = vmax.f32 %v594, 0.0
  %v851 = vmax.f32 %v595, 0.0
  %v852 = vmax.f32 %v596, 0.0
  %v853 = vmax.f32 %v597, 0.0
  %v854 = vmax.f32 %v598, 0.0
  %v855 = vmax.f32 %v599, 0.0
  %v856 = vmax.f32 %v600, 0.0
  %v857 = vmax.f32 %v601, 0.0
  %v858 = vmax.f32 %v602, 0.0
  %v859 = vmax.f32 %v603, 0.0
  %v860 = vmax.f32 %v604, 0.0
  %v861 = vmax.f32 %v605, 0.0
  %v862 = vmax.f32 %v606, 0.0
  %v863 = vmax.f32 %v607, 0.0
  %v864 = vmax.f32 %v608, 0.0
  %v865 = vmax.f32 %v609, 0.0
  %v866 = vmax.f32 %v610, 0.0
  %v867 = vmax.f32 %v611, 0.0
  %v868 = vmax.f32 %v612, 0.0
  %v869 = vmax.f32 %v613, 0.0
  %v870 = vmax.f32 %v614, 0.0
  %v871 = vmax.f32 %v615, 0.0
  %v872 = vmax.f32 %v616, 0.0
  %v873 = vmax.f32 %v617, 0.0
  %v874 = vmax.f32 %v618, 0.0
  %v875 = vmax.f32 %v619, 0.0
  %v876 = vmax.f32 %v620, 0.0
  %v877 = vmax.f32 %v621, 0.0
  %v878 = vmax.f32 %v622, 0.0
  %v879 = vmax.f32 %v623, 0.0
  %v880 = vmax.f32 %v624, 0.0
  %v881 = vmax.f32 %v625, 0.0
  %v882 = vmax.f32 %v626, 0.0
  %v883 = vmax.f32 %v627, 0.0
  %v884 = vmax.f32 %v628, 0.0
  %v885 = vmax.f32 %v629, 0.0
  %v886 = vmax.f32 %v630, 0.0
  %v887 = vmax.f32 %v631, 0.0
  %v888 = vmax.f32 %v632, 0.0
  %v889 = vmax.f32 %v633, 0.0
  %v890 = vmax.f32 %v634, 0.0
  %v891 = vmax.f32 %v635, 0.0
  %v892 = vmax.f32 %v636, 0.0
  %v893 = vmax.f32 %v637, 0.0
  %v894 = vmax.f32 %v638, 0.0
  %v895 = vmax.f32 %v639, 0.0
  %v896 = vmax.f32 %v640, 0.0
  %v897 = vmax.f32 %v641, 0.0
  %v898 = vmax.f32 %v642, 0.0
  %v899 = vmax.f32 %v643, 0.0
  %v900 = vmax.f32 %v644, 0.0
  %v901 = vmax.f32 %v645, 0.0
  %v902 = vmax.f32 %v646, 0.0
  %v903 = vmax.f32 %v647, 0.0
  %v904 = vmax.f32 %v648, 0.0
  %v905 = vmax.f32 %v649, 0.0
  %v906 = vmax.f32 %v650, 0.0
  %v907 = vmax.f32 %v651, 0.0
  %v908 = vmax.f32 %v652, 0.0
  %v909 = vmax.f32 %v653, 0.0
  %v910 = vmax.f32 %v654, 0.0
  %v911 = vmax.f32 %v655, 0.0
  %v912 = vmax.f32 %v656, 0.0
  %v913 = vmax.f32 %v657, 0.0
  %v914 = vmax.f32 %v658, 0.0
  %v915 = vmax.f32 %v659, 0.0
  %v916 = vmax.f32 %v660, 0.0
  %v917 = vmax.f32 %v661, 0.0
  %v918 = vmax.f32 %v662, 0.0
  %v919 = vmax.f32 %v663, 0.0
  %v920 = vmax.f32 %v664, 0.0
  %v921 = vmax.f32 %v665, 0.0
  %v922 = vmax.f32 %v666, 0.0
  %v923 = vmax.f32 %v667, 0.0
  %v924 = vmax.f32 %v668, 0.0
  %v925 = vmax.f32 %v669, 0.0
  %v926 = vmax.f32 %v670, 0.0
  %v927 = vmax.f32 %v671, 0.0
  %v928 = vmax.f32 %v672, 0.0
  %v929 = vmax.f32 %v673, 0.0
  %v930 = vmax.f32 %v674, 0.0
  %v931 = vmax.f32 %v675, 0.0
  %v932 = vmax.f32 %v676, 0.0
  %v933 = vmax.f32 %v677, 0.0
  %v934 = vmax.f32 %v678, 0.0
  %v935 = vmax.f32 %v679, 0.0
  %v936 = vmax.f32 %v680, 0.0
  %v937 = vmax.f32 %v681, 0.0
  %v938 = vmax.f32 %v682, 0.0
  %v939 = vmax.f32 %v683, 0.0
  %v940 = vmax.f32 %v684, 0.0
  %v941 = vmax.f32 %v685, 0.0
  %v942 = vmax.f32 %v686, 0.0
  %v943 = vmax.f32 %v687, 0.0
  %v944 = vmax.f32 %v688, 0.0
  %v945 = vmax.f32 %v689, 0.0
  %v946 = vmax.f32 %v690, 0.0
  %v947 = vmax.f32 %v691, 0.0
  %v948 = vmax.f32 %v692, 0.0
  %v949 = vmax.f32 %v693, 0.0
  %v950 = vmax.f32 %v694, 0.0
  %v951 = vmax.f32 %v695, 0.0
  %v952 = vmax.f32 %v696, 0.0
  %v953 = vmax.f32 %v697, 0.0
  %v954 = vmax.f32 %v698, 0.0
  %v955 = vmax.f32 %v699, 0.0
  %v956 = vmax.f32 %v700, 0.0
  %v957 = vmax.f32 %v701, 0.0
  %v958 = vmax.f32 %v702, 0.0
  %v959 = vmax.f32 %v703, 0.0
  %v960 = vmax.f32 %v704, 0.0
  %v961 = vmax.f32 %v705, 0.0
  %v962 = vmax.f32 %v706, 0.0
  %v963 = vmax.f32 %v707, 0.0
  %v964 = vmax.f32 %v708, 0.0
  %v965 = vmax.f32 %v709, 0.0
  %v966 = vmax.f32 %v710, 0.0
  %v967 = vmax.f32 %v711, 0.0
  %v968 = vmax.f32 %v712, 0.0
  %v969 = vmax.f32 %v713, 0.0
  %v970 = vmax.f32 %v714, 0.0
  %v971 = vmax.f32 %v715, 0.0
  %v972 = vmax.f32 %v716, 0.0
  %v973 = vmax.f32 %v717, 0.0
  %v974 = vmax.f32 %v718, 0.0
  %v975 = vmax.f32 %v719, 0.0
  %v976 = vmax.f32 %v720, 0.0
  %v977 = vmax.f32 %v721, 0.0
  %v978 = vmax.f32 %v722, 0.0
  %v979 = vmax.f32 %v723, 0.0
  %v980 = vmax.f32 %v724, 0.0
  %v981 = vmax.f32 %v725, 0.0
  %v982 = vmax.f32 %v726, 0.0
  %v983 = vmax.f32 %v727, 0.0
  %v984 = vmax.f32 %v728, 0.0
  %v985 = vmax.f32 %v729, 0.0
  %v986 = vmax.f32 %v730, 0.0
  %v987 = vmax.f32 %v731, 0.0
  %v988 = vmax.f32 %v732, 0.0
  %v989 = vmax.f32 %v733, 0.0
  %v990 = vmax.f32 %v734, 0.0
  %v991 = vmax.f32 %v735, 0.0
  %v992 = vmax.f32 %v736, 0.0
  %v993 = vmax.f32 %v737, 0.0
  %v994 = vmax.f32 %v738, 0.0
  %v995 = vmax.f32 %v739, 0.0
  %v996 = vmax.f32 %v740, 0.0
  %v997 = vmax.f32 %v741, 0.0
  %v998 = vmax.f32 %v742, 0.0
  %v999 = vmax.f32 %v743, 0.0
  %v1000 = vmax.f32 %v744, 0.0
  %v1001 = vmax.f32 %v745, 0.0
  %v1002 = vmax.f32 %v746, 0.0
  %v1003 = vmax.f32 %v747, 0.0
  %v1004 = vmax.f32 %v748, 0.0
  %v1005 = vmax.f32 %v749, 0.0
  %v1006 = vmax.f32 %v750, 0.0
  %v1007 = vmax.f32 %v751, 0.0
  %v1008 = vmax.f32 %v752, 0.0
  %v1009 = vmax.f32 %v753, 0.0
  %v1010 = vmax.f32 %v754, 0.0
  %v1011 = vmax.f32 %v755, 0.0
  %v1012 = vmax.f32 %v756, 0.0
  %v1013 = vmax.f32 %v757, 0.0
  %v1014 = vmax.f32 %v758, 0.0
  %v1015 = vmax.f32 %v759, 0.0
  %v1016 = vmax.f32 %v760, 0.0
  %v1017 = vmax.f32 %v761, 0.0
  %v1018 = vmax.f32 %v762, 0.0
  %v1019 = vmax.f32 %v763, 0.0
  %v1020 = vmax.f32 %v764, 0.0
  %v1021 = vmax.f32 %v765, 0.0
  %v1022 = vmax.f32 %v766, 0.0
  %v1023 = vmax.f32 %v767, 0.0
  %v1024 = vmax.f32 %v768, 0.0
  %v1025 = vmax.f32 %v769, 0.0
  %v1026 = vmax.f32 %v770, 0.0
  %v1027 = vmax.f32 %v771, 0.0
  %v1028 = vmax.f32 %v772, 0.0
  %v1029 = vmax.f32 %v773, 0.0
  %v1030 = vmax.f32 %v774, 0.0
  %v1031 = vmax.f32 %v775, 0.0
  %v1032 = vmax.f32 %v776, 0.0
  %v1033 = vmax.f32 %v777, 0.0
  %v1034 = vmax.f32 %v778, 0.0
  %v1035 = vmax.f32 %v779, 0.0
  %v1036 = vmax.f32 %v780, 0.0
  %v1037 = vmax.f32 %v781, 0.0
  %v1038 = vmax.f32 %v782, 0.0
  %v1039 = vmax.f32 %v783, 0.0
  %v1040 = vmax.f32 %v784, 0.0
  %v1041 = vmax.f32 %v785, 0.0
  %v1042 = vmax.f32 %v786, 0.0
  %v1043 = vmax.f32 %v787, 0.0
  %v1044 = vmax.f32 %v788, 0.0
  %v1045 = vmax.f32 %v789, 0.0
  %v1046 = vmax.f32 %v790, 0.0
  %v1047 = vmax.f32 %v791, 0.0
  %v1048 = vmax.f32 %v792, 0.0
  %v1049 = vmax.f32 %v793, 0.0
  %v1050 = vmax.f32 %v794, 0.0
  %v1051 = vmax.f32 %v795, 0.0
  %v1052 = vpack.c.bf16 %v797, %v796
  %v1053 = vpack.c.bf16 %v799, %v798
  %v1054 = vpack.c.bf16 %v801, %v800
  %v1055 = vpack.c.bf16 %v803, %v802
  %v1056 = vpack.c.bf16 %v805, %v804
  %v1057 = vpack.c.bf16 %v807, %v806
  %v1058 = vpack.c.bf16 %v809, %v808
  %v1059 = vpack.c.bf16 %v811, %v810
  %v1060 = vpack.c.bf16 %v813, %v812
  %v1061 = vpack.c.bf16 %v815, %v814
  %v1062 = vpack.c.bf16 %v817, %v816
  %v1063 = vpack.c.bf16 %v819, %v818
  %v1064 = vpack.c.bf16 %v821, %v820
  %v1065 = vpack.c.bf16 %v823, %v822
  %v1066 = vpack.c.bf16 %v825, %v824
  %v1067 = vpack.c.bf16 %v827, %v826
  %v1068 = vpack.c.bf16 %v829, %v828
  %v1069 = vpack.c.bf16 %v831, %v830
  %v1070 = vpack.c.bf16 %v833, %v832
  %v1071 = vpack.c.bf16 %v835, %v834
  %v1072 = vpack.c.bf16 %v837, %v836
  %v1073 = vpack.c.bf16 %v839, %v838
  %v1074 = vpack.c.bf16 %v841, %v840
  %v1075 = vpack.c.bf16 %v843, %v842
  %v1076 = vpack.c.bf16 %v845, %v844
  %v1077 = vpack.c.bf16 %v847, %v846
  %v1078 = vpack.c.bf16 %v849, %v848
  %v1079 = vpack.c.bf16 %v851, %v850
  %v1080 = vpack.c.bf16 %v853, %v852
  %v1081 = vpack.c.bf16 %v855, %v854
  %v1082 = vpack.c.bf16 %v857, %v856
  %v1083 = vpack.c.bf16 %v859, %v858
  %v1084 = vpack.c.bf16 %v861, %v860
  %v1085 = vpack.c.bf16 %v863, %v862
  %v1086 = vpack.c.bf16 %v865, %v864
  %v1087 = vpack.c.bf16 %v867, %v866
  %v1088 = vpack.c.bf16 %v869, %v868
  %v1089 = vpack.c.bf16 %v871, %v870
  %v1090 = vpack.c.bf16 %v873, %v872
  %v1091 = vpack.c.bf16 %v875, %v874
  %v1092 = vpack.c.bf16 %v877, %v876
  %v1093 = vpack.c.bf16 %v879, %v878
  %v1094 = vpack.c.bf16 %v881, %v880
  %v1095 = vpack.c.bf16 %v883, %v882
  %v1096 = vpack.c.bf16 %v885, %v884
  %v1097 = vpack.c.bf16 %v887, %v886
  %v1098 = vpack.c.bf16 %v889, %v888
  %v1099 = vpack.c.bf16 %v891, %v890
  %v1100 = vpack.c.bf16 %v893, %v892
  %v1101 = vpack.c.bf16 %v895, %v894
  %v1102 = vpack.c.bf16 %v897, %v896
  %v1103 = vpack.c.bf16 %v899, %v898
  %v1104 = vpack.c.bf16 %v901, %v900
  %v1105 = vpack.c.bf16 %v903, %v902
  %v1106 = vpack.c.bf16 %v905, %v904
  %v1107 = vpack.c.bf16 %v907, %v906
  %v1108 = vpack.c.bf16 %v909, %v908
  %v1109 = vpack.c.bf16 %v911, %v910
  %v1110 = vpack.c.bf16 %v913, %v912
  %v1111 = vpack.c.bf16 %v915, %v914
  %v1112 = vpack.c.bf16 %v917, %v916
  %v1113 = vpack.c.bf16 %v919, %v918
  %v1114 = vpack.c.bf16 %v921, %v920
  %v1115 = vpack.c.bf16 %v923, %v922
  %v1116 = vpack.c.bf16 %v925, %v924
  %v1117 = vpack.c.bf16 %v927, %v926
  %v1118 = vpack.c.bf16 %v929, %v928
  %v1119 = vpack.c.bf16 %v931, %v930
  %v1120 = vpack.c.bf16 %v933, %v932
  %v1121 = vpack.c.bf16 %v935, %v934
  %v1122 = vpack.c.bf16 %v937, %v936
  %v1123 = vpack.c.bf16 %v939, %v938
  %v1124 = vpack.c.bf16 %v941, %v940
  %v1125 = vpack.c.bf16 %v943, %v942
  %v1126 = vpack.c.bf16 %v945, %v944
  %v1127 = vpack.c.bf16 %v947, %v946
  %v1128 = vpack.c.bf16 %v949, %v948
  %v1129 = vpack.c.bf16 %v951, %v950
  %v1130 = vpack.c.bf16 %v953, %v952
  %v1131 = vpack.c.bf16 %v955, %v954
  %v1132 = vpack.c.bf16 %v957, %v956
  %v1133 = vpack.c.bf16 %v959, %v958
  %v1134 = vpack.c.bf16 %v961, %v960
  %v1135 = vpack.c.bf16 %v963, %v962
  %v1136 = vpack.c.bf16 %v965, %v964
  %v1137 = vpack.c.bf16 %v967, %v966
  %v1138 = vpack.c.bf16 %v969, %v968
  %v1139 = vpack.c.bf16 %v971, %v970
  %v1140 = vpack.c.bf16 %v973, %v972
  %v1141 = vpack.c.bf16 %v975, %v974
  %v1142 = vpack.c.bf16 %v977, %v976
  %v1143 = vpack.c.bf16 %v979, %v978
  %v1144 = vpack.c.bf16 %v981, %v980
  %v1145 = vpack.c.bf16 %v983, %v982
  %v1146 = vpack.c.bf16 %v985, %v984
  %v1147 = vpack.c.bf16 %v987, %v986
  %v1148 = vpack.c.bf16 %v989, %v988
  %v1149 = vpack.c.bf16 %v991, %v990
  %v1150 = vpack.c.bf16 %v993, %v992
  %v1151 = vpack.c.bf16 %v995, %v994
  %v1152 = vpack.c.bf16 %v997, %v996
  %v1153 = vpack.c.bf16 %v999, %v998
  %v1154 = vpack.c.bf16 %v1001, %v1000
  %v1155 = vpack.c.bf16 %v1003, %v1002
  %v1156 = vpack.c.bf16 %v1005, %v1004
  %v1157 = vpack.c.bf16 %v1007, %v1006
  %v1158 = vpack.c.bf16 %v1009, %v1008
  %v1159 = vpack.c.bf16 %v1011, %v1010
  %v1160 = vpack.c.bf16 %v1013, %v1012
  %v1161 = vpack.c.bf16 %v1015, %v1014
  %v1162 = vpack.c.bf16 %v1017, %v1016
  %v1163 = vpack.c.bf16 %v1019, %v1018
  %v1164 = vpack.c.bf16 %v1021, %v1020
  %v1165 = vpack.c.bf16 %v1023, %v1022
  %v1166 = vpack.c.bf16 %v1025, %v1024
  %v1167 = vpack.c.bf16 %v1027, %v1026
  %v1168 = vpack.c.bf16 %v1029, %v1028
  %v1169 = vpack.c.bf16 %v1031, %v1030
  %v1170 = vpack.c.bf16 %v1033, %v1032
  %v1171 = vpack.c.bf16 %v1035, %v1034
  %v1172 = vpack.c.bf16 %v1037, %v1036
  %v1173 = vpack.c.bf16 %v1039, %v1038
  %v1174 = vpack.c.bf16 %v1041, %v1040
  %v1175 = vpack.c.bf16 %v1043, %v1042
  %v1176 = vpack.c.bf16 %v1045, %v1044
  %v1177 = vpack.c.bf16 %v1047, %v1046
  %v1178 = vpack.c.bf16 %v1049, %v1048
  %v1179 = vpack.c.bf16 %v1051, %v1050
  %v1308 = vunpack.c.l.b16 %v1052
  %v1309 = vunpack.c.h.b16 %v1052
  %v1310 = vunpack.c.l.b16 %v1053
  %v1311 = vunpack.c.h.b16 %v1053
  %v1312 = vunpack.c.l.b16 %v1054
  %v1313 = vunpack.c.h.b16 %v1054
  %v1314 = vunpack.c.l.b16 %v1055
  %v1315 = vunpack.c.h.b16 %v1055
  %v1316 = vunpack.c.l.b16 %v1056
  %v1317 = vunpack.c.h.b16 %v1056
  %v1318 = vunpack.c.l.b16 %v1057
  %v1319 = vunpack.c.h.b16 %v1057
  %v1320 = vunpack.c.l.b16 %v1058
  %v1321 = vunpack.c.h.b16 %v1058
  %v1322 = vunpack.c.l.b16 %v1059
  %v1323 = vunpack.c.h.b16 %v1059
  %v1324 = vunpack.c.l.b16 %v1060
  %v1325 = vunpack.c.h.b16 %v1060
  %v1326 = vunpack.c.l.b16 %v1061
  %v1327 = vunpack.c.h.b16 %v1061
  %v1328 = vunpack.c.l.b16 %v1062
  %v1329 = vunpack.c.h.b16 %v1062
  %v1330 = vunpack.c.l.b16 %v1063
  %v1331 = vunpack.c.h.b16 %v1063
  %v1332 = vunpack.c.l.b16 %v1064
  %v1333 = vunpack.c.h.b16 %v1064
  %v1334 = vunpack.c.l.b16 %v1065
  %v1335 = vunpack.c.h.b16 %v1065
  %v1336 = vunpack.c.l.b16 %v1066
  %v1337 = vunpack.c.h.b16 %v1066
  %v1338 = vunpack.c.l.b16 %v1067
  %v1339 = vunpack.c.h.b16 %v1067
  %v1340 = vunpack.c.l.b16 %v1068
  %v1341 = vunpack.c.h.b16 %v1068
  %v1342 = vunpack.c.l.b16 %v1069
  %v1343 = vunpack.c.h.b16 %v1069
  %v1344 = vunpack.c.l.b16 %v1070
  %v1345 = vunpack.c.h.b16 %v1070
  %v1346 = vunpack.c.l.b16 %v1071
  %v1347 = vunpack.c.h.b16 %v1071
  %v1348 = vunpack.c.l.b16 %v1072
  %v1349 = vunpack.c.h.b16 %v1072
  %v1350 = vunpack.c.l.b16 %v1073
  %v1351 = vunpack.c.h.b16 %v1073
  %v1352 = vunpack.c.l.b16 %v1074
  %v1353 = vunpack.c.h.b16 %v1074
  %v1354 = vunpack.c.l.b16 %v1075
  %v1355 = vunpack.c.h.b16 %v1075
  %v1356 = vunpack.c.l.b16 %v1076
  %v1357 = vunpack.c.h.b16 %v1076
  %v1358 = vunpack.c.l.b16 %v1077
  %v1359 = vunpack.c.h.b16 %v1077
  %v1360 = vunpack.c.l.b16 %v1078
  %v1361 = vunpack.c.h.b16 %v1078
  %v1362 = vunpack.c.l.b16 %v1079
  %v1363 = vunpack.c.h.b16 %v1079
  %v1364 = vunpack.c.l.b16 %v1080
  %v1365 = vunpack.c.h.b16 %v1080
  %v1366 = vunpack.c.l.b16 %v1081
  %v1367 = vunpack.c.h.b16 %v1081
  %v1368 = vunpack.c.l.b16 %v1082
  %v1369 = vunpack.c.h.b16 %v1082
  %v1370 = vunpack.c.l.b16 %v1083
  %v1371 = vunpack.c.h.b16 %v1083
  %v1372 = vunpack.c.l.b16 %v1084
  %v1373 = vunpack.c.h.b16 %v1084
  %v1374 = vunpack.c.l.b16 %v1085
  %v1375 = vunpack.c.h.b16 %v1085
  %v1376 = vunpack.c.l.b16 %v1086
  %v1377 = vunpack.c.h.b16 %v1086
  %v1378 = vunpack.c.l.b16 %v1087
  %v1379 = vunpack.c.h.b16 %v1087
  %v1380 = vunpack.c.l.b16 %v1088
  %v1381 = vunpack.c.h.b16 %v1088
  %v1382 = vunpack.c.l.b16 %v1089
  %v1383 = vunpack.c.h.b16 %v1089
  %v1384 = vunpack.c.l.b16 %v1090
  %v1385 = vunpack.c.h.b16 %v1090
  %v1386 = vunpack.c.l.b16 %v1091
  %v1387 = vunpack.c.h.b16 %v1091
  %v1388 = vunpack.c.l.b16 %v1092
  %v1389 = vunpack.c.h.b16 %v1092
  %v1390 = vunpack.c.l.b16 %v1093
  %v1391 = vunpack.c.h.b16 %v1093
  %v1392 = vunpack.c.l.b16 %v1094
  %v1393 = vunpack.c.h.b16 %v1094
  %v1394 = vunpack.c.l.b16 %v1095
  %v1395 = vunpack.c.h.b16 %v1095
  %v1396 = vunpack.c.l.b16 %v1096
  %v1397 = vunpack.c.h.b16 %v1096
  %v1398 = vunpack.c.l.b16 %v1097
  %v1399 = vunpack.c.h.b16 %v1097
  %v1400 = vunpack.c.l.b16 %v1098
  %v1401 = vunpack.c.h.b16 %v1098
  %v1402 = vunpack.c.l.b16 %v1099
  %v1403 = vunpack.c.h.b16 %v1099
  %v1404 = vunpack.c.l.b16 %v1100
  %v1405 = vunpack.c.h.b16 %v1100
  %v1406 = vunpack.c.l.b16 %v1101
  %v1407 = vunpack.c.h.b16 %v1101
  %v1408 = vunpack.c.l.b16 %v1102
  %v1409 = vunpack.c.h.b16 %v1102
  %v1410 = vunpack.c.l.b16 %v1103
  %v1411 = vunpack.c.h.b16 %v1103
  %v1412 = vunpack.c.l.b16 %v1104
  %v1413 = vunpack.c.h.b16 %v1104
  %v1414 = vunpack.c.l.b16 %v1105
  %v1415 = vunpack.c.h.b16 %v1105
  %v1416 = vunpack.c.l.b16 %v1106
  %v1417 = vunpack.c.h.b16 %v1106
  %v1418 = vunpack.c.l.b16 %v1107
  %v1419 = vunpack.c.h.b16 %v1107
  %v1420 = vunpack.c.l.b16 %v1108
  %v1421 = vunpack.c.h.b16 %v1108
  %v1422 = vunpack.c.l.b16 %v1109
  %v1423 = vunpack.c.h.b16 %v1109
  %v1424 = vunpack.c.l.b16 %v1110
  %v1425 = vunpack.c.h.b16 %v1110
  %v1426 = vunpack.c.l.b16 %v1111
  %v1427 = vunpack.c.h.b16 %v1111
  %v1428 = vunpack.c.l.b16 %v1112
  %v1429 = vunpack.c.h.b16 %v1112
  %v1430 = vunpack.c.l.b16 %v1113
  %v1431 = vunpack.c.h.b16 %v1113
  %v1432 = vunpack.c.l.b16 %v1114
  %v1433 = vunpack.c.h.b16 %v1114
  %v1434 = vunpack.c.l.b16 %v1115
  %v1435 = vunpack.c.h.b16 %v1115
  %v1436 = vunpack.c.l.b16 %v1116
  %v1437 = vunpack.c.h.b16 %v1116
  %v1438 = vunpack.c.l.b16 %v1117
  %v1439 = vunpack.c.h.b16 %v1117
  %v1440 = vunpack.c.l.b16 %v1118
  %v1441 = vunpack.c.h.b16 %v1118
  %v1442 = vunpack.c.l.b16 %v1119
  %v1443 = vunpack.c.h.b16 %v1119
  %v1444 = vunpack.c.l.b16 %v1120
  %v1445 = vunpack.c.h.b16 %v1120
  %v1446 = vunpack.c.l.b16 %v1121
  %v1447 = vunpack.c.h.b16 %v1121
  %v1448 = vunpack.c.l.b16 %v1122
  %v1449 = vunpack.c.h.b16 %v1122
  %v1450 = vunpack.c.l.b16 %v1123
  %v1451 = vunpack.c.h.b16 %v1123
  %v1452 = vunpack.c.l.b16 %v1124
  %v1453 = vunpack.c.h.b16 %v1124
  %v1454 = vunpack.c.l.b16 %v1125
  %v1455 = vunpack.c.h.b16 %v1125
  %v1456 = vunpack.c.l.b16 %v1126
  %v1457 = vunpack.c.h.b16 %v1126
  %v1458 = vunpack.c.l.b16 %v1127
  %v1459 = vunpack.c.h.b16 %v1127
  %v1460 = vunpack.c.l.b16 %v1128
  %v1461 = vunpack.c.h.b16 %v1128
  %v1462 = vunpack.c.l.b16 %v1129
  %v1463 = vunpack.c.h.b16 %v1129
  %v1464 = vunpack.c.l.b16 %v1130
  %v1465 = vunpack.c.h.b16 %v1130
  %v1466 = vunpack.c.l.b16 %v1131
  %v1467 = vunpack.c.h.b16 %v1131
  %v1468 = vunpack.c.l.b16 %v1132
  %v1469 = vunpack.c.h.b16 %v1132
  %v1470 = vunpack.c.l.b16 %v1133
  %v1471 = vunpack.c.h.b16 %v1133
  %v1472 = vunpack.c.l.b16 %v1134
  %v1473 = vunpack.c.h.b16 %v1134
  %v1474 = vunpack.c.l.b16 %v1135
  %v1475 = vunpack.c.h.b16 %v1135
  %v1476 = vunpack.c.l.b16 %v1136
  %v1477 = vunpack.c.h.b16 %v1136
  %v1478 = vunpack.c.l.b16 %v1137
  %v1479 = vunpack.c.h.b16 %v1137
  %v1480 = vunpack.c.l.b16 %v1138
  %v1481 = vunpack.c.h.b16 %v1138
  %v1482 = vunpack.c.l.b16 %v1139
  %v1483 = vunpack.c.h.b16 %v1139
  %v1484 = vunpack.c.l.b16 %v1140
  %v1485 = vunpack.c.h.b16 %v1140
  %v1486 = vunpack.c.l.b16 %v1141
  %v1487 = vunpack.c.h.b16 %v1141
  %v1488 = vunpack.c.l.b16 %v1142
  %v1489 = vunpack.c.h.b16 %v1142
  %v1490 = vunpack.c.l.b16 %v1143
  %v1491 = vunpack.c.h.b16 %v1143
  %v1492 = vunpack.c.l.b16 %v1144
  %v1493 = vunpack.c.h.b16 %v1144
  %v1494 = vunpack.c.l.b16 %v1145
  %v1495 = vunpack.c.h.b16 %v1145
  %v1496 = vunpack.c.l.b16 %v1146
  %v1497 = vunpack.c.h.b16 %v1146
  %v1498 = vunpack.c.l.b16 %v1147
  %v1499 = vunpack.c.h.b16 %v1147
  %v1500 = vunpack.c.l.b16 %v1148
  %v1501 = vunpack.c.h.b16 %v1148
  %v1502 = vunpack.c.l.b16 %v1149
  %v1503 = vunpack.c.h.b16 %v1149
  %v1504 = vunpack.c.l.b16 %v1150
  %v1505 = vunpack.c.h.b16 %v1150
  %v1506 = vunpack.c.l.b16 %v1151
  %v1507 = vunpack.c.h.b16 %v1151
  %v1508 = vunpack.c.l.b16 %v1152
  %v1509 = vunpack.c.h.b16 %v1152
  %v1510 = vunpack.c.l.b16 %v1153
  %v1511 = vunpack.c.h.b16 %v1153
  %v1512 = vunpack.c.l.b16 %v1154
  %v1513 = vunpack.c.h.b16 %v1154
  %v1514 = vunpack.c.l.b16 %v1155
  %v1515 = vunpack.c.h.b16 %v1155
  %v1516 = vunpack.c.l.b16 %v1156
  %v1517 = vunpack.c.h.b16 %v1156
  %v1518 = vunpack.c.l.b16 %v1157
  %v1519 = vunpack.c.h.b16 %v1157
  %v1520 = vunpack.c.l.b16 %v1158
  %v1521 = vunpack.c.h.b16 %v1158
  %v1522 = vunpack.c.l.b16 %v1159
  %v1523 = vunpack.c.h.b16 %v1159
  %v1524 = vunpack.c.l.b16 %v1160
  %v1525 = vunpack.c.h.b16 %v1160
  %v1526 = vunpack.c.l.b16 %v1161
  %v1527 = vunpack.c.h.b16 %v1161
  %v1528 = vunpack.c.l.b16 %v1162
  %v1529 = vunpack.c.h.b16 %v1162
  %v1530 = vunpack.c.l.b16 %v1163
  %v1531 = vunpack.c.h.b16 %v1163
  %v1532 = vunpack.c.l.b16 %v1164
  %v1533 = vunpack.c.h.b16 %v1164
  %v1534 = vunpack.c.l.b16 %v1165
  %v1535 = vunpack.c.h.b16 %v1165
  %v1536 = vunpack.c.l.b16 %v1166
  %v1537 = vunpack.c.h.b16 %v1166
  %v1538 = vunpack.c.l.b16 %v1167
  %v1539 = vunpack.c.h.b16 %v1167
  %v1540 = vunpack.c.l.b16 %v1168
  %v1541 = vunpack.c.h.b16 %v1168
  %v1542 = vunpack.c.l.b16 %v1169
  %v1543 = vunpack.c.h.b16 %v1169
  %v1544 = vunpack.c.l.b16 %v1170
  %v1545 = vunpack.c.h.b16 %v1170
  %v1546 = vunpack.c.l.b16 %v1171
  %v1547 = vunpack.c.h.b16 %v1171
  %v1548 = vunpack.c.l.b16 %v1172
  %v1549 = vunpack.c.h.b16 %v1172
  %v1550 = vunpack.c.l.b16 %v1173
  %v1551 = vunpack.c.h.b16 %v1173
  %v1552 = vunpack.c.l.b16 %v1174
  %v1553 = vunpack.c.h.b16 %v1174
  %v1554 = vunpack.c.l.b16 %v1175
  %v1555 = vunpack.c.h.b16 %v1175
  %v1556 = vunpack.c.l.b16 %v1176
  %v1557 = vunpack.c.h.b16 %v1176
  %v1558 = vunpack.c.l.b16 %v1177
  %v1559 = vunpack.c.h.b16 %v1177
  %v1560 = vunpack.c.l.b16 %v1178
  %v1561 = vunpack.c.h.b16 %v1178
  %v1562 = vunpack.c.l.b16 %v1179
  %v1563 = vunpack.c.h.b16 %v1179
  %v1564 = vpack.c.b16 %v1308, %v1308
  %v1565 = vpack.c.b16 %v1309, %v1309
  %v1566 = vpack.c.b16 %v1310, %v1310
  %v1567 = vpack.c.b16 %v1311, %v1311
  %v1568 = vpack.c.b16 %v1312, %v1312
  %v1569 = vpack.c.b16 %v1313, %v1313
  %v1570 = vpack.c.b16 %v1314, %v1314
  %v1571 = vpack.c.b16 %v1315, %v1315
  %v1572 = vpack.c.b16 %v1316, %v1316
  %v1573 = vpack.c.b16 %v1317, %v1317
  %v1574 = vpack.c.b16 %v1318, %v1318
  %v1575 = vpack.c.b16 %v1319, %v1319
  %v1576 = vpack.c.b16 %v1320, %v1320
  %v1577 = vpack.c.b16 %v1321, %v1321
  %v1578 = vpack.c.b16 %v1322, %v1322
  %v1579 = vpack.c.b16 %v1323, %v1323
  %v1580 = vpack.c.b16 %v1324, %v1324
  %v1581 = vpack.c.b16 %v1325, %v1325
  %v1582 = vpack.c.b16 %v1326, %v1326
  %v1583 = vpack.c.b16 %v1327, %v1327
  %v1584 = vpack.c.b16 %v1328, %v1328
  %v1585 = vpack.c.b16 %v1329, %v1329
  %v1586 = vpack.c.b16 %v1330, %v1330
  %v1587 = vpack.c.b16 %v1331, %v1331
  %v1588 = vpack.c.b16 %v1332, %v1332
  %v1589 = vpack.c.b16 %v1333, %v1333
  %v1590 = vpack.c.b16 %v1334, %v1334
  %v1591 = vpack.c.b16 %v1335, %v1335
  %v1592 = vpack.c.b16 %v1336, %v1336
  %v1593 = vpack.c.b16 %v1337, %v1337
  %v1594 = vpack.c.b16 %v1338, %v1338
  %v1595 = vpack.c.b16 %v1339, %v1339
  %v1596 = vpack.c.b16 %v1340, %v1340
  %v1597 = vpack.c.b16 %v1341, %v1341
  %v1598 = vpack.c.b16 %v1342, %v1342
  %v1599 = vpack.c.b16 %v1343, %v1343
  %v1600 = vpack.c.b16 %v1344, %v1344
  %v1601 = vpack.c.b16 %v1345, %v1345
  %v1602 = vpack.c.b16 %v1346, %v1346
  %v1603 = vpack.c.b16 %v1347, %v1347
  %v1604 = vpack.c.b16 %v1348, %v1348
  %v1605 = vpack.c.b16 %v1349, %v1349
  %v1606 = vpack.c.b16 %v1350, %v1350
  %v1607 = vpack.c.b16 %v1351, %v1351
  %v1608 = vpack.c.b16 %v1352, %v1352
  %v1609 = vpack.c.b16 %v1353, %v1353
  %v1610 = vpack.c.b16 %v1354, %v1354
  %v1611 = vpack.c.b16 %v1355, %v1355
  %v1612 = vpack.c.b16 %v1356, %v1356
  %v1613 = vpack.c.b16 %v1357, %v1357
  %v1614 = vpack.c.b16 %v1358, %v1358
  %v1615 = vpack.c.b16 %v1359, %v1359
  %v1616 = vpack.c.b16 %v1360, %v1360
  %v1617 = vpack.c.b16 %v1361, %v1361
  %v1618 = vpack.c.b16 %v1362, %v1362
  %v1619 = vpack.c.b16 %v1363, %v1363
  %v1620 = vpack.c.b16 %v1364, %v1364
  %v1621 = vpack.c.b16 %v1365, %v1365
  %v1622 = vpack.c.b16 %v1366, %v1366
  %v1623 = vpack.c.b16 %v1367, %v1367
  %v1624 = vpack.c.b16 %v1368, %v1368
  %v1625 = vpack.c.b16 %v1369, %v1369
  %v1626 = vpack.c.b16 %v1370, %v1370
  %v1627 = vpack.c.b16 %v1371, %v1371
  %v1628 = vpack.c.b16 %v1372, %v1372
  %v1629 = vpack.c.b16 %v1373, %v1373
  %v1630 = vpack.c.b16 %v1374, %v1374
  %v1631 = vpack.c.b16 %v1375, %v1375
  %v1632 = vpack.c.b16 %v1376, %v1376
  %v1633 = vpack.c.b16 %v1377, %v1377
  %v1634 = vpack.c.b16 %v1378, %v1378
  %v1635 = vpack.c.b16 %v1379, %v1379
  %v1636 = vpack.c.b16 %v1380, %v1380
  %v1637 = vpack.c.b16 %v1381, %v1381
  %v1638 = vpack.c.b16 %v1382, %v1382
  %v1639 = vpack.c.b16 %v1383, %v1383
  %v1640 = vpack.c.b16 %v1384, %v1384
  %v1641 = vpack.c.b16 %v1385, %v1385
  %v1642 = vpack.c.b16 %v1386, %v1386
  %v1643 = vpack.c.b16 %v1387, %v1387
  %v1644 = vpack.c.b16 %v1388, %v1388
  %v1645 = vpack.c.b16 %v1389, %v1389
  %v1646 = vpack.c.b16 %v1390, %v1390
  %v1647 = vpack.c.b16 %v1391, %v1391
  %v1648 = vpack.c.b16 %v1392, %v1392
  %v1649 = vpack.c.b16 %v1393, %v1393
  %v1650 = vpack.c.b16 %v1394, %v1394
  %v1651 = vpack.c.b16 %v1395, %v1395
  %v1652 = vpack.c.b16 %v1396, %v1396
  %v1653 = vpack.c.b16 %v1397, %v1397
  %v1654 = vpack.c.b16 %v1398, %v1398
  %v1655 = vpack.c.b16 %v1399, %v1399
  %v1656 = vpack.c.b16 %v1400, %v1400
  %v1657 = vpack.c.b16 %v1401, %v1401
  %v1658 = vpack.c.b16 %v1402, %v1402
  %v1659 = vpack.c.b16 %v1403, %v1403
  %v1660 = vpack.c.b16 %v1404, %v1404
  %v1661 = vpack.c.b16 %v1405, %v1405
  %v1662 = vpack.c.b16 %v1406, %v1406
  %v1663 = vpack.c.b16 %v1407, %v1407
  %v1664 = vpack.c.b16 %v1408, %v1408
  %v1665 = vpack.c.b16 %v1409, %v1409
  %v1666 = vpack.c.b16 %v1410, %v1410
  %v1667 = vpack.c.b16 %v1411, %v1411
  %v1668 = vpack.c.b16 %v1412, %v1412
  %v1669 = vpack.c.b16 %v1413, %v1413
  %v1670 = vpack.c.b16 %v1414, %v1414
  %v1671 = vpack.c.b16 %v1415, %v1415
  %v1672 = vpack.c.b16 %v1416, %v1416
  %v1673 = vpack.c.b16 %v1417, %v1417
  %v1674 = vpack.c.b16 %v1418, %v1418
  %v1675 = vpack.c.b16 %v1419, %v1419
  %v1676 = vpack.c.b16 %v1420, %v1420
  %v1677 = vpack.c.b16 %v1421, %v1421
  %v1678 = vpack.c.b16 %v1422, %v1422
  %v1679 = vpack.c.b16 %v1423, %v1423
  %v1680 = vpack.c.b16 %v1424, %v1424
  %v1681 = vpack.c.b16 %v1425, %v1425
  %v1682 = vpack.c.b16 %v1426, %v1426
  %v1683 = vpack.c.b16 %v1427, %v1427
  %v1684 = vpack.c.b16 %v1428, %v1428
  %v1685 = vpack.c.b16 %v1429, %v1429
  %v1686 = vpack.c.b16 %v1430, %v1430
  %v1687 = vpack.c.b16 %v1431, %v1431
  %v1688 = vpack.c.b16 %v1432, %v1432
  %v1689 = vpack.c.b16 %v1433, %v1433
  %v1690 = vpack.c.b16 %v1434, %v1434
  %v1691 = vpack.c.b16 %v1435, %v1435
  %v1692 = vpack.c.b16 %v1436, %v1436
  %v1693 = vpack.c.b16 %v1437, %v1437
  %v1694 = vpack.c.b16 %v1438, %v1438
  %v1695 = vpack.c.b16 %v1439, %v1439
  %v1696 = vpack.c.b16 %v1440, %v1440
  %v1697 = vpack.c.b16 %v1441, %v1441
  %v1698 = vpack.c.b16 %v1442, %v1442
  %v1699 = vpack.c.b16 %v1443, %v1443
  %v1700 = vpack.c.b16 %v1444, %v1444
  %v1701 = vpack.c.b16 %v1445, %v1445
  %v1702 = vpack.c.b16 %v1446, %v1446
  %v1703 = vpack.c.b16 %v1447, %v1447
  %v1704 = vpack.c.b16 %v1448, %v1448
  %v1705 = vpack.c.b16 %v1449, %v1449
  %v1706 = vpack.c.b16 %v1450, %v1450
  %v1707 = vpack.c.b16 %v1451, %v1451
  %v1708 = vpack.c.b16 %v1452, %v1452
  %v1709 = vpack.c.b16 %v1453, %v1453
  %v1710 = vpack.c.b16 %v1454, %v1454
  %v1711 = vpack.c.b16 %v1455, %v1455
  %v1712 = vpack.c.b16 %v1456, %v1456
  %v1713 = vpack.c.b16 %v1457, %v1457
  %v1714 = vpack.c.b16 %v1458, %v1458
  %v1715 = vpack.c.b16 %v1459, %v1459
  %v1716 = vpack.c.b16 %v1460, %v1460
  %v1717 = vpack.c.b16 %v1461, %v1461
  %v1718 = vpack.c.b16 %v1462, %v1462
  %v1719 = vpack.c.b16 %v1463, %v1463
  %v1720 = vpack.c.b16 %v1464, %v1464
  %v1721 = vpack.c.b16 %v1465, %v1465
  %v1722 = vpack.c.b16 %v1466, %v1466
  %v1723 = vpack.c.b16 %v1467, %v1467
  %v1724 = vpack.c.b16 %v1468, %v1468
  %v1725 = vpack.c.b16 %v1469, %v1469
  %v1726 = vpack.c.b16 %v1470, %v1470
  %v1727 = vpack.c.b16 %v1471, %v1471
  %v1728 = vpack.c.b16 %v1472, %v1472
  %v1729 = vpack.c.b16 %v1473, %v1473
  %v1730 = vpack.c.b16 %v1474, %v1474
  %v1731 = vpack.c.b16 %v1475, %v1475
  %v1732 = vpack.c.b16 %v1476, %v1476
  %v1733 = vpack.c.b16 %v1477, %v1477
  %v1734 = vpack.c.b16 %v1478, %v1478
  %v1735 = vpack.c.b16 %v1479, %v1479
  %v1736 = vpack.c.b16 %v1480, %v1480
  %v1737 = vpack.c.b16 %v1481, %v1481
  %v1738 = vpack.c.b16 %v1482, %v1482
  %v1739 = vpack.c.b16 %v1483, %v1483
  %v1740 = vpack.c.b16 %v1484, %v1484
  %v1741 = vpack.c.b16 %v1485, %v1485
  %v1742 = vpack.c.b16 %v1486, %v1486
  %v1743 = vpack.c.b16 %v1487, %v1487
  %v1744 = vpack.c.b16 %v1488, %v1488
  %v1745 = vpack.c.b16 %v1489, %v1489
  %v1746 = vpack.c.b16 %v1490, %v1490
  %v1747 = vpack.c.b16 %v1491, %v1491
  %v1748 = vpack.c.b16 %v1492, %v1492
  %v1749 = vpack.c.b16 %v1493, %v1493
  %v1750 = vpack.c.b16 %v1494, %v1494
  %v1751 = vpack.c.b16 %v1495, %v1495
  %v1752 = vpack.c.b16 %v1496, %v1496
  %v1753 = vpack.c.b16 %v1497, %v1497
  %v1754 = vpack.c.b16 %v1498, %v1498
  %v1755 = vpack.c.b16 %v1499, %v1499
  %v1756 = vpack.c.b16 %v1500, %v1500
  %v1757 = vpack.c.b16 %v1501, %v1501
  %v1758 = vpack.c.b16 %v1502, %v1502
  %v1759 = vpack.c.b16 %v1503, %v1503
  %v1760 = vpack.c.b16 %v1504, %v1504
  %v1761 = vpack.c.b16 %v1505, %v1505
  %v1762 = vpack.c.b16 %v1506, %v1506
  %v1763 = vpack.c.b16 %v1507, %v1507
  %v1764 = vpack.c.b16 %v1508, %v1508
  %v1765 = vpack.c.b16 %v1509, %v1509
  %v1766 = vpack.c.b16 %v1510, %v1510
  %v1767 = vpack.c.b16 %v1511, %v1511
  %v1768 = vpack.c.b16 %v1512, %v1512
  %v1769 = vpack.c.b16 %v1513, %v1513
  %v1770 = vpack.c.b16 %v1514, %v1514
  %v1771 = vpack.c.b16 %v1515, %v1515
  %v1772 = vpack.c.b16 %v1516, %v1516
  %v1773 = vpack.c.b16 %v1517, %v1517
  %v1774 = vpack.c.b16 %v1518, %v1518
  %v1775 = vpack.c.b16 %v1519, %v1519
  %v1776 = vpack.c.b16 %v1520, %v1520
  %v1777 = vpack.c.b16 %v1521, %v1521
  %v1778 = vpack.c.b16 %v1522, %v1522
  %v1779 = vpack.c.b16 %v1523, %v1523
  %v1780 = vpack.c.b16 %v1524, %v1524
  %v1781 = vpack.c.b16 %v1525, %v1525
  %v1782 = vpack.c.b16 %v1526, %v1526
  %v1783 = vpack.c.b16 %v1527, %v1527
  %v1784 = vpack.c.b16 %v1528, %v1528
  %v1785 = vpack.c.b16 %v1529, %v1529
  %v1786 = vpack.c.b16 %v1530, %v1530
  %v1787 = vpack.c.b16 %v1531, %v1531
  %v1788 = vpack.c.b16 %v1532, %v1532
  %v1789 = vpack.c.b16 %v1533, %v1533
  %v1790 = vpack.c.b16 %v1534, %v1534
  %v1791 = vpack.c.b16 %v1535, %v1535
  %v1792 = vpack.c.b16 %v1536, %v1536
  %v1793 = vpack.c.b16 %v1537, %v1537
  %v1794 = vpack.c.b16 %v1538, %v1538
  %v1795 = vpack.c.b16 %v1539, %v1539
  %v1796 = vpack.c.b16 %v1540, %v1540
  %v1797 = vpack.c.b16 %v1541, %v1541
  %v1798 = vpack.c.b16 %v1542, %v1542
  %v1799 = vpack.c.b16 %v1543, %v1543
  %v1800 = vpack.c.b16 %v1544, %v1544
  %v1801 = vpack.c.b16 %v1545, %v1545
  %v1802 = vpack.c.b16 %v1546, %v1546
  %v1803 = vpack.c.b16 %v1547, %v1547
  %v1804 = vpack.c.b16 %v1548, %v1548
  %v1805 = vpack.c.b16 %v1549, %v1549
  %v1806 = vpack.c.b16 %v1550, %v1550
  %v1807 = vpack.c.b16 %v1551, %v1551
  %v1808 = vpack.c.b16 %v1552, %v1552
  %v1809 = vpack.c.b16 %v1553, %v1553
  %v1810 = vpack.c.b16 %v1554, %v1554
  %v1811 = vpack.c.b16 %v1555, %v1555
  %v1812 = vpack.c.b16 %v1556, %v1556
  %v1813 = vpack.c.b16 %v1557, %v1557
  %v1814 = vpack.c.b16 %v1558, %v1558
  %v1815 = vpack.c.b16 %v1559, %v1559
  %v1816 = vpack.c.b16 %v1560, %v1560
  %v1817 = vpack.c.b16 %v1561, %v1561
  %v1818 = vpack.c.b16 %v1562, %v1562
  %v1819 = vpack.c.b16 %v1563, %v1563
  %2076 = vst [vmem:[%s3] sm:$0xf] %v1564
  %2077 = vst [vmem:[%s3 + $0x4] sm:$0xf] %v1565
  %2078 = vst [vmem:[%s3 + $0x8] sm:$0xf] %v1566
  %2079 = vst [vmem:[%s3 + $0xc] sm:$0xf] %v1567
  %2080 = vst [vmem:[%s3 + $0x10] sm:$0xf] %v1568
  %2081 = vst [vmem:[%s3 + $0x14] sm:$0xf] %v1569
  %2082 = vst [vmem:[%s3 + $0x18] sm:$0xf] %v1570
  %2083 = vst [vmem:[%s3 + $0x1c] sm:$0xf] %v1571
  %2084 = vst [vmem:[%s3 + $0x20] sm:$0xf] %v1572
  %2085 = vst [vmem:[%s3 + $0x24] sm:$0xf] %v1573
  %2086 = vst [vmem:[%s3 + $0x28] sm:$0xf] %v1574
  %2087 = vst [vmem:[%s3 + $0x2c] sm:$0xf] %v1575
  %2088 = vst [vmem:[%s3 + $0x30] sm:$0xf] %v1576
  %2089 = vst [vmem:[%s3 + $0x34] sm:$0xf] %v1577
  %2090 = vst [vmem:[%s3 + $0x38] sm:$0xf] %v1578
  %2091 = vst [vmem:[%s3 + $0x3c] sm:$0xf] %v1579
  %2092 = vst [vmem:[%s3 + $0x40] sm:$0xf] %v1580
  %2093 = vst [vmem:[%s3 + $0x44] sm:$0xf] %v1581
  %2094 = vst [vmem:[%s3 + $0x48] sm:$0xf] %v1582
  %2095 = vst [vmem:[%s3 + $0x4c] sm:$0xf] %v1583
  %2096 = vst [vmem:[%s3 + $0x50] sm:$0xf] %v1584
  %2097 = vst [vmem:[%s3 + $0x54] sm:$0xf] %v1585
  %2098 = vst [vmem:[%s3 + $0x58] sm:$0xf] %v1586
  %2099 = vst [vmem:[%s3 + $0x5c] sm:$0xf] %v1587
  %2100 = vst [vmem:[%s3 + $0x60] sm:$0xf] %v1588
  %2101 = vst [vmem:[%s3 + $0x64] sm:$0xf] %v1589
  %2102 = vst [vmem:[%s3 + $0x68] sm:$0xf] %v1590
  %2103 = vst [vmem:[%s3 + $0x6c] sm:$0xf] %v1591
  %2104 = vst [vmem:[%s3 + $0x70] sm:$0xf] %v1592
  %2105 = vst [vmem:[%s3 + $0x74] sm:$0xf] %v1593
  %2106 = vst [vmem:[%s3 + $0x78] sm:$0xf] %v1594
  %2107 = vst [vmem:[%s3 + $0x7c] sm:$0xf] %v1595
  %2108 = vst [vmem:[%s3 + $0x80] sm:$0xf] %v1596
  %2109 = vst [vmem:[%s3 + $0x84] sm:$0xf] %v1597
  %2110 = vst [vmem:[%s3 + $0x88] sm:$0xf] %v1598
  %2111 = vst [vmem:[%s3 + $0x8c] sm:$0xf] %v1599
  %2112 = vst [vmem:[%s3 + $0x90] sm:$0xf] %v1600
  %2113 = vst [vmem:[%s3 + $0x94] sm:$0xf] %v1601
  %2114 = vst [vmem:[%s3 + $0x98] sm:$0xf] %v1602
  %2115 = vst [vmem:[%s3 + $0x9c] sm:$0xf] %v1603
  %2116 = vst [vmem:[%s3 + $0xa0] sm:$0xf] %v1604
  %2117 = vst [vmem:[%s3 + $0xa4] sm:$0xf] %v1605
  %2118 = vst [vmem:[%s3 + $0xa8] sm:$0xf] %v1606
  %2119 = vst [vmem:[%s3 + $0xac] sm:$0xf] %v1607
  %2120 = vst [vmem:[%s3 + $0xb0] sm:$0xf] %v1608
  %2121 = vst [vmem:[%s3 + $0xb4] sm:$0xf] %v1609
  %2122 = vst [vmem:[%s3 + $0xb8] sm:$0xf] %v1610
  %2123 = vst [vmem:[%s3 + $0xbc] sm:$0xf] %v1611
  %2124 = vst [vmem:[%s3 + $0xc0] sm:$0xf] %v1612
  %2125 = vst [vmem:[%s3 + $0xc4] sm:$0xf] %v1613
  %2126 = vst [vmem:[%s3 + $0xc8] sm:$0xf] %v1614
  %2127 = vst [vmem:[%s3 + $0xcc] sm:$0xf] %v1615
  %2128 = vst [vmem:[%s3 + $0xd0] sm:$0xf] %v1616
  %2129 = vst [vmem:[%s3 + $0xd4] sm:$0xf] %v1617
  %2130 = vst [vmem:[%s3 + $0xd8] sm:$0xf] %v1618
  %2131 = vst [vmem:[%s3 + $0xdc] sm:$0xf] %v1619
  %2132 = vst [vmem:[%s3 + $0xe0] sm:$0xf] %v1620
  %2133 = vst [vmem:[%s3 + $0xe4] sm:$0xf] %v1621
  %2134 = vst [vmem:[%s3 + $0xe8] sm:$0xf] %v1622
  %2135 = vst [vmem:[%s3 + $0xec] sm:$0xf] %v1623
  %2136 = vst [vmem:[%s3 + $0xf0] sm:$0xf] %v1624
  %2137 = vst [vmem:[%s3 + $0xf4] sm:$0xf] %v1625
  %2138 = vst [vmem:[%s3 + $0xf8] sm:$0xf] %v1626
  %2139 = vst [vmem:[%s3 + $0xfc] sm:$0xf] %v1627
  %2140 = vst [vmem:[%s3 + $0x100] sm:$0xf] %v1628
  %2141 = vst [vmem:[%s3 + $0x104] sm:$0xf] %v1629
  %2142 = vst [vmem:[%s3 + $0x108] sm:$0xf] %v1630
  %2143 = vst [vmem:[%s3 + $0x10c] sm:$0xf] %v1631
  %2144 = vst [vmem:[%s3 + $0x110] sm:$0xf] %v1632
  %2145 = vst [vmem:[%s3 + $0x114] sm:$0xf] %v1633
  %2146 = vst [vmem:[%s3 + $0x118] sm:$0xf] %v1634
  %2147 = vst [vmem:[%s3 + $0x11c] sm:$0xf] %v1635
  %2148 = vst [vmem:[%s3 + $0x120] sm:$0xf] %v1636
  %2149 = vst [vmem:[%s3 + $0x124] sm:$0xf] %v1637
  %2150 = vst [vmem:[%s3 + $0x128] sm:$0xf] %v1638
  %2151 = vst [vmem:[%s3 + $0x12c] sm:$0xf] %v1639
  %2152 = vst [vmem:[%s3 + $0x130] sm:$0xf] %v1640
  %2153 = vst [vmem:[%s3 + $0x134] sm:$0xf] %v1641
  %2154 = vst [vmem:[%s3 + $0x138] sm:$0xf] %v1642
  %2155 = vst [vmem:[%s3 + $0x13c] sm:$0xf] %v1643
  %2156 = vst [vmem:[%s3 + $0x140] sm:$0xf] %v1644
  %2157 = vst [vmem:[%s3 + $0x144] sm:$0xf] %v1645
  %2158 = vst [vmem:[%s3 + $0x148] sm:$0xf] %v1646
  %2159 = vst [vmem:[%s3 + $0x14c] sm:$0xf] %v1647
  %2160 = vst [vmem:[%s3 + $0x150] sm:$0xf] %v1648
  %2161 = vst [vmem:[%s3 + $0x154] sm:$0xf] %v1649
  %2162 = vst [vmem:[%s3 + $0x158] sm:$0xf] %v1650
  %2163 = vst [vmem:[%s3 + $0x15c] sm:$0xf] %v1651
  %2164 = vst [vmem:[%s3 + $0x160] sm:$0xf] %v1652
  %2165 = vst [vmem:[%s3 + $0x164] sm:$0xf] %v1653
  %2166 = vst [vmem:[%s3 + $0x168] sm:$0xf] %v1654
  %2167 = vst [vmem:[%s3 + $0x16c] sm:$0xf] %v1655
  %2168 = vst [vmem:[%s3 + $0x170] sm:$0xf] %v1656
  %2169 = vst [vmem:[%s3 + $0x174] sm:$0xf] %v1657
  %2170 = vst [vmem:[%s3 + $0x178] sm:$0xf] %v1658
  %2171 = vst [vmem:[%s3 + $0x17c] sm:$0xf] %v1659
  %2172 = vst [vmem:[%s3 + $0x180] sm:$0xf] %v1660
  %2173 = vst [vmem:[%s3 + $0x184] sm:$0xf] %v1661
  %2174 = vst [vmem:[%s3 + $0x188] sm:$0xf] %v1662
  %2175 = vst [vmem:[%s3 + $0x18c] sm:$0xf] %v1663
  %2176 = vst [vmem:[%s3 + $0x190] sm:$0xf] %v1664
  %2177 = vst [vmem:[%s3 + $0x194] sm:$0xf] %v1665
  %2178 = vst [vmem:[%s3 + $0x198] sm:$0xf] %v1666
  %2179 = vst [vmem:[%s3 + $0x19c] sm:$0xf] %v1667
  %2180 = vst [vmem:[%s3 + $0x1a0] sm:$0xf] %v1668
  %2181 = vst [vmem:[%s3 + $0x1a4] sm:$0xf] %v1669
  %2182 = vst [vmem:[%s3 + $0x1a8] sm:$0xf] %v1670
  %2183 = vst [vmem:[%s3 + $0x1ac] sm:$0xf] %v1671
  %2184 = vst [vmem:[%s3 + $0x1b0] sm:$0xf] %v1672
  %2185 = vst [vmem:[%s3 + $0x1b4] sm:$0xf] %v1673
  %2186 = vst [vmem:[%s3 + $0x1b8] sm:$0xf] %v1674
  %2187 = vst [vmem:[%s3 + $0x1bc] sm:$0xf] %v1675
  %2188 = vst [vmem:[%s3 + $0x1c0] sm:$0xf] %v1676
  %2189 = vst [vmem:[%s3 + $0x1c4] sm:$0xf] %v1677
  %2190 = vst [vmem:[%s3 + $0x1c8] sm:$0xf] %v1678
  %2191 = vst [vmem:[%s3 + $0x1cc] sm:$0xf] %v1679
  %2192 = vst [vmem:[%s3 + $0x1d0] sm:$0xf] %v1680
  %2193 = vst [vmem:[%s3 + $0x1d4] sm:$0xf] %v1681
  %2194 = vst [vmem:[%s3 + $0x1d8] sm:$0xf] %v1682
  %2195 = vst [vmem:[%s3 + $0x1dc] sm:$0xf] %v1683
  %2196 = vst [vmem:[%s3 + $0x1e0] sm:$0xf] %v1684
  %2197 = vst [vmem:[%s3 + $0x1e4] sm:$0xf] %v1685
  %2198 = vst [vmem:[%s3 + $0x1e8] sm:$0xf] %v1686
  %2199 = vst [vmem:[%s3 + $0x1ec] sm:$0xf] %v1687
  %2200 = vst [vmem:[%s3 + $0x1f0] sm:$0xf] %v1688
  %2201 = vst [vmem:[%s3 + $0x1f4] sm:$0xf] %v1689
  %2202 = vst [vmem:[%s3 + $0x1f8] sm:$0xf] %v1690
  %2203 = vst [vmem:[%s3 + $0x1fc] sm:$0xf] %v1691
  %2204 = vst [vmem:[%s3 + $0x200] sm:$0xf] %v1692
  %2205 = vst [vmem:[%s3 + $0x204] sm:$0xf] %v1693
  %2206 = vst [vmem:[%s3 + $0x208] sm:$0xf] %v1694
  %2207 = vst [vmem:[%s3 + $0x20c] sm:$0xf] %v1695
  %2208 = vst [vmem:[%s3 + $0x210] sm:$0xf] %v1696
  %2209 = vst [vmem:[%s3 + $0x214] sm:$0xf] %v1697
  %2210 = vst [vmem:[%s3 + $0x218] sm:$0xf] %v1698
  %2211 = vst [vmem:[%s3 + $0x21c] sm:$0xf] %v1699
  %2212 = vst [vmem:[%s3 + $0x220] sm:$0xf] %v1700
  %2213 = vst [vmem:[%s3 + $0x224] sm:$0xf] %v1701
  %2214 = vst [vmem:[%s3 + $0x228] sm:$0xf] %v1702
  %2215 = vst [vmem:[%s3 + $0x22c] sm:$0xf] %v1703
  %2216 = vst [vmem:[%s3 + $0x230] sm:$0xf] %v1704
  %2217 = vst [vmem:[%s3 + $0x234] sm:$0xf] %v1705
  %2218 = vst [vmem:[%s3 + $0x238] sm:$0xf] %v1706
  %2219 = vst [vmem:[%s3 + $0x23c] sm:$0xf] %v1707
  %2220 = vst [vmem:[%s3 + $0x240] sm:$0xf] %v1708
  %2221 = vst [vmem:[%s3 + $0x244] sm:$0xf] %v1709
  %2222 = vst [vmem:[%s3 + $0x248] sm:$0xf] %v1710
  %2223 = vst [vmem:[%s3 + $0x24c] sm:$0xf] %v1711
  %2224 = vst [vmem:[%s3 + $0x250] sm:$0xf] %v1712
  %2225 = vst [vmem:[%s3 + $0x254] sm:$0xf] %v1713
  %2226 = vst [vmem:[%s3 + $0x258] sm:$0xf] %v1714
  %2227 = vst [vmem:[%s3 + $0x25c] sm:$0xf] %v1715
  %2228 = vst [vmem:[%s3 + $0x260] sm:$0xf] %v1716
  %2229 = vst [vmem:[%s3 + $0x264] sm:$0xf] %v1717
  %2230 = vst [vmem:[%s3 + $0x268] sm:$0xf] %v1718
  %2231 = vst [vmem:[%s3 + $0x26c] sm:$0xf] %v1719
  %2232 = vst [vmem:[%s3 + $0x270] sm:$0xf] %v1720
  %2233 = vst [vmem:[%s3 + $0x274] sm:$0xf] %v1721
  %2234 = vst [vmem:[%s3 + $0x278] sm:$0xf] %v1722
  %2235 = vst [vmem:[%s3 + $0x27c] sm:$0xf] %v1723
  %2236 = vst [vmem:[%s3 + $0x280] sm:$0xf] %v1724
  %2237 = vst [vmem:[%s3 + $0x284] sm:$0xf] %v1725
  %2238 = vst [vmem:[%s3 + $0x288] sm:$0xf] %v1726
  %2239 = vst [vmem:[%s3 + $0x28c] sm:$0xf] %v1727
  %2240 = vst [vmem:[%s3 + $0x290] sm:$0xf] %v1728
  %2241 = vst [vmem:[%s3 + $0x294] sm:$0xf] %v1729
  %2242 = vst [vmem:[%s3 + $0x298] sm:$0xf] %v1730
  %2243 = vst [vmem:[%s3 + $0x29c] sm:$0xf] %v1731
  %2244 = vst [vmem:[%s3 + $0x2a0] sm:$0xf] %v1732
  %2245 = vst [vmem:[%s3 + $0x2a4] sm:$0xf] %v1733
  %2246 = vst [vmem:[%s3 + $0x2a8] sm:$0xf] %v1734
  %2247 = vst [vmem:[%s3 + $0x2ac] sm:$0xf] %v1735
  %2248 = vst [vmem:[%s3 + $0x2b0] sm:$0xf] %v1736
  %2249 = vst [vmem:[%s3 + $0x2b4] sm:$0xf] %v1737
  %2250 = vst [vmem:[%s3 + $0x2b8] sm:$0xf] %v1738
  %2251 = vst [vmem:[%s3 + $0x2bc] sm:$0xf] %v1739
  %2252 = vst [vmem:[%s3 + $0x2c0] sm:$0xf] %v1740
  %2253 = vst [vmem:[%s3 + $0x2c4] sm:$0xf] %v1741
  %2254 = vst [vmem:[%s3 + $0x2c8] sm:$0xf] %v1742
  %2255 = vst [vmem:[%s3 + $0x2cc] sm:$0xf] %v1743
  %2256 = vst [vmem:[%s3 + $0x2d0] sm:$0xf] %v1744
  %2257 = vst [vmem:[%s3 + $0x2d4] sm:$0xf] %v1745
  %2258 = vst [vmem:[%s3 + $0x2d8] sm:$0xf] %v1746
  %2259 = vst [vmem:[%s3 + $0x2dc] sm:$0xf] %v1747
  %2260 = vst [vmem:[%s3 + $0x2e0] sm:$0xf] %v1748
  %2261 = vst [vmem:[%s3 + $0x2e4] sm:$0xf] %v1749
  %2262 = vst [vmem:[%s3 + $0x2e8] sm:$0xf] %v1750
  %2263 = vst [vmem:[%s3 + $0x2ec] sm:$0xf] %v1751
  %2264 = vst [vmem:[%s3 + $0x2f0] sm:$0xf] %v1752
  %2265 = vst [vmem:[%s3 + $0x2f4] sm:$0xf] %v1753
  %2266 = vst [vmem:[%s3 + $0x2f8] sm:$0xf] %v1754
  %2267 = vst [vmem:[%s3 + $0x2fc] sm:$0xf] %v1755
  %2268 = vst [vmem:[%s3 + $0x300] sm:$0xf] %v1756
  %2269 = vst [vmem:[%s3 + $0x304] sm:$0xf] %v1757
  %2270 = vst [vmem:[%s3 + $0x308] sm:$0xf] %v1758
  %2271 = vst [vmem:[%s3 + $0x30c] sm:$0xf] %v1759
  %2272 = vst [vmem:[%s3 + $0x310] sm:$0xf] %v1760
  %2273 = vst [vmem:[%s3 + $0x314] sm:$0xf] %v1761
  %2274 = vst [vmem:[%s3 + $0x318] sm:$0xf] %v1762
  %2275 = vst [vmem:[%s3 + $0x31c] sm:$0xf] %v1763
  %2276 = vst [vmem:[%s3 + $0x320] sm:$0xf] %v1764
  %2277 = vst [vmem:[%s3 + $0x324] sm:$0xf] %v1765
  %2278 = vst [vmem:[%s3 + $0x328] sm:$0xf] %v1766
  %2279 = vst [vmem:[%s3 + $0x32c] sm:$0xf] %v1767
  %2280 = vst [vmem:[%s3 + $0x330] sm:$0xf] %v1768
  %2281 = vst [vmem:[%s3 + $0x334] sm:$0xf] %v1769
  %2282 = vst [vmem:[%s3 + $0x338] sm:$0xf] %v1770
  %2283 = vst [vmem:[%s3 + $0x33c] sm:$0xf] %v1771
  %2284 = vst [vmem:[%s3 + $0x340] sm:$0xf] %v1772
  %2285 = vst [vmem:[%s3 + $0x344] sm:$0xf] %v1773
  %2286 = vst [vmem:[%s3 + $0x348] sm:$0xf] %v1774
  %2287 = vst [vmem:[%s3 + $0x34c] sm:$0xf] %v1775
  %2288 = vst [vmem:[%s3 + $0x350] sm:$0xf] %v1776
  %2289 = vst [vmem:[%s3 + $0x354] sm:$0xf] %v1777
  %2290 = vst [vmem:[%s3 + $0x358] sm:$0xf] %v1778
  %2291 = vst [vmem:[%s3 + $0x35c] sm:$0xf] %v1779
  %2292 = vst [vmem:[%s3 + $0x360] sm:$0xf] %v1780
  %2293 = vst [vmem:[%s3 + $0x364] sm:$0xf] %v1781
  %2294 = vst [vmem:[%s3 + $0x368] sm:$0xf] %v1782
  %2295 = vst [vmem:[%s3 + $0x36c] sm:$0xf] %v1783
  %2296 = vst [vmem:[%s3 + $0x370] sm:$0xf] %v1784
  %2297 = vst [vmem:[%s3 + $0x374] sm:$0xf] %v1785
  %2298 = vst [vmem:[%s3 + $0x378] sm:$0xf] %v1786
  %2299 = vst [vmem:[%s3 + $0x37c] sm:$0xf] %v1787
  %2300 = vst [vmem:[%s3 + $0x380] sm:$0xf] %v1788
  %2301 = vst [vmem:[%s3 + $0x384] sm:$0xf] %v1789
  %2302 = vst [vmem:[%s3 + $0x388] sm:$0xf] %v1790
  %2303 = vst [vmem:[%s3 + $0x38c] sm:$0xf] %v1791
  %2304 = vst [vmem:[%s3 + $0x390] sm:$0xf] %v1792
  %2305 = vst [vmem:[%s3 + $0x394] sm:$0xf] %v1793
  %2306 = vst [vmem:[%s3 + $0x398] sm:$0xf] %v1794
  %2307 = vst [vmem:[%s3 + $0x39c] sm:$0xf] %v1795
  %2308 = vst [vmem:[%s3 + $0x3a0] sm:$0xf] %v1796
  %2309 = vst [vmem:[%s3 + $0x3a4] sm:$0xf] %v1797
  %2310 = vst [vmem:[%s3 + $0x3a8] sm:$0xf] %v1798
  %2311 = vst [vmem:[%s3 + $0x3ac] sm:$0xf] %v1799
  %2312 = vst [vmem:[%s3 + $0x3b0] sm:$0xf] %v1800
  %2313 = vst [vmem:[%s3 + $0x3b4] sm:$0xf] %v1801
  %2314 = vst [vmem:[%s3 + $0x3b8] sm:$0xf] %v1802
  %2315 = vst [vmem:[%s3 + $0x3bc] sm:$0xf] %v1803
  %2316 = vst [vmem:[%s3 + $0x3c0] sm:$0xf] %v1804
  %2317 = vst [vmem:[%s3 + $0x3c4] sm:$0xf] %v1805
  %2318 = vst [vmem:[%s3 + $0x3c8] sm:$0xf] %v1806
  %2319 = vst [vmem:[%s3 + $0x3cc] sm:$0xf] %v1807
  %2320 = vst [vmem:[%s3 + $0x3d0] sm:$0xf] %v1808
  %2321 = vst [vmem:[%s3 + $0x3d4] sm:$0xf] %v1809
  %2322 = vst [vmem:[%s3 + $0x3d8] sm:$0xf] %v1810
  %2323 = vst [vmem:[%s3 + $0x3dc] sm:$0xf] %v1811
  %2324 = vst [vmem:[%s3 + $0x3e0] sm:$0xf] %v1812
  %2325 = vst [vmem:[%s3 + $0x3e4] sm:$0xf] %v1813
  %2326 = vst [vmem:[%s3 + $0x3e8] sm:$0xf] %v1814
  %2327 = vst [vmem:[%s3 + $0x3ec] sm:$0xf] %v1815
  %2328 = vst [vmem:[%s3 + $0x3f0] sm:$0xf] %v1816
  %2329 = vst [vmem:[%s3 + $0x3f4] sm:$0xf] %v1817
  %2330 = vst [vmem:[%s3 + $0x3f8] sm:$0xf] %v1818
  %2331 = vst [vmem:[%s3 + $0x3fc] sm:$0xf] %v1819
  // Predicated region
  $region14: #{unet2d_up_forward.5} parent=0 // pred_check
    _
  $region15: #{unet2d_up_forward.5} parent=0 // pred_check_branch
    %2333 = sbr.rel (0) target = $region17
  $region16: #{unet2d_up_forward.5} parent=0 // pred_region
    _
  $region17: #{unet2d_up_forward.5} parent=0 // pred_fallthru
    _
  // Predicated region
  $region18: #{unet2d_up_forward.5} parent=0 // pred_check
    _
  $region19: #{unet2d_up_forward.5} parent=0 // pred_check_branch
    %2335 = sbr.rel (0) target = $region21
  $region20: #{unet2d_up_forward.5} parent=0 // pred_region
    _
  $region21: #{unet2d_up_forward.5} parent=0 // pred_fallthru
    _

// kernel: unet2d_up_forward.4
$region0: #{unet2d_up_forward.4}
  #allocation0 [shape = 'u32[]', space=smem, size = 0x4, offset = 0x4, fixed_abs, tag = 'smem constant byte address 0x4 - core index']
  #allocation1 [shape = 'u32[144,128]{1,0:T(1,128)}', space=vmem, size = 0x12000, scoped, tag = 'internal scratch']
  %s0 = inlined_call_operand.vmem [shape: bf16[2,34,34,128], index: 0, kind: input, shape index: {}]
  %s1 = inlined_call_operand.vmem [shape: bf16[3,3,128,128], index: 1, kind: input, shape index: {}]
  %s2 = inlined_call_operand.vmem [shape: f32[2,32,32,128], index: 2, kind: output, shape index: {0}]
  %s3 = inlined_call_operand.vmem [shape: f32[2,1,128], index: 3, kind: output, shape index: {1}]
  %s4 = inlined_call_operand.vmem [shape: f32[2,1,128], index: 4, kind: output, shape index: {2}]
  %5 = xla_tuple %s2, %s3, %s4
  %s6 = sld [smem:[#allocation0]]
  $region57: #{unet2d_up_forward.4} parent=0
    _
  %s8 = ssub.s32 1, %s6
  %s9 = scalar_select 0, %s8, %s6
  loop: start=0, step=1, limit=4
  $region2: #{unet2d_up_forward.4} parent=0 // loop_pre_header
    _
  $region3: #{unet2d_up_forward.4} parent=0 // loop_header
    %s11 = sphi 0, %s15
    %p12 = scmp.ge.s32.totalorder %s11, 4
    %s21 = sphi 0, %s23
    %s24 = sphi 0, %s21
    %s25 = sphi 0, %s24
    %s41 = sphi 0, %s25
    %s45 = sphi 0, %s45
    %s47 = sphi 0, %s45
    %s48 = sphi 0, %s47
    %s62 = sphi 0, %s48
    %s68 = sphi 0, %s70
    %s71 = sphi 0, %s68
    %s72 = sphi 0, %s71
    %s88 = sphi 0, %s72
    %s94 = sphi 0, %s96
    %s97 = sphi 0, %s94
    %s98 = sphi 0, %s97
    %s114 = sphi 0, %s98
    %s120 = sphi 0, %s122
    %s123 = sphi 0, %s120
    %s124 = sphi 0, %s123
    %s140 = sphi 0, %s124
  $region4: #{unet2d_up_forward.4} parent=0 // loop_header_branch
    %14 = sbr.rel (%p12) target = $region8
  $region5: #{unet2d_up_forward.4} parent=0 // loop_body
    %s16 = ssub.s32 %s11, 1
    %s17 = ssub.s32 %s11, 2
    %s18 = sadd.s32 %s11, 1
    %s19 = ssub.s32 %s11, %s18
    %p20 = scmp.eq.s32.totalorder %s19, 0
    %s22 = sadd.s32 %s21, 1
    %s23 = scalar_select %p20, %s21, %s22
    %p26 = pneg %p20
    %p27 = scmp.eq.s32.totalorder %s11, 1
    %p28 = por %p26, %p27
    %p29 = scmp.ne.s32.totalorder %s21, %s24
    %p30 = scmp.eq.s32.totalorder %s11, 0
    %p31 = por %p29, %p30
    %p32 = scmp.ne.s32.totalorder %s21, %s24
    %p33 = scmp.eq.s32.totalorder %s16, 1
    %p34 = por %p32, %p33
    %p35 = scmp.ne.s32.totalorder %s24, %s25
    %p36 = scmp.eq.s32.totalorder %s16, 0
    %p37 = por %p35, %p36
    %p38 = scmp.ne.s32.totalorder %s24, %s25
    %p39 = scmp.eq.s32.totalorder %s17, 1
    %p40 = por %p38, %p39
    %p42 = scmp.ne.s32.totalorder %s25, %s41
    %p43 = scmp.eq.s32.totalorder %s17, 0
    %p44 = por %p42, %p43
    %s46 = sadd.s32 %s45, 1
    %p49 = scmp.eq.s32.totalorder %s11, 1
    %p50 = scmp.ne.s32.totalorder %s45, %s47
    %p51 = scmp.eq.s32.totalorder %s11, 0
    %p52 = por %p50, %p51
    %p53 = scmp.ne.s32.totalorder %s45, %s47
    %p54 = scmp.eq.s32.totalorder %s16, 1
    %p55 = por %p53, %p54
    %p56 = scmp.ne.s32.totalorder %s47, %s48
    %p57 = scmp.eq.s32.totalorder %s16, 0
    %p58 = por %p56, %p57
    %p59 = scmp.ne.s32.totalorder %s47, %s48
    %p60 = scmp.eq.s32.totalorder %s17, 1
    %p61 = por %p59, %p60
    %p63 = scmp.ne.s32.totalorder %s48, %s62
    %p64 = scmp.eq.s32.totalorder %s17, 0
    %p65 = por %p63, %p64
    %s66 = ssub.s32 %s11, %s18
    %p67 = scmp.eq.s32.totalorder %s66, 0
    %s69 = sadd.s32 %s68, 1
    %s70 = scalar_select %p67, %s68, %s69
    %p73 = pneg %p67
    %p74 = scmp.eq.s32.totalorder %s11, 1
    %p75 = por %p73, %p74
    %p76 = scmp.ne.s32.totalorder %s68, %s71
    %p77 = scmp.eq.s32.totalorder %s11, 0
    %p78 = por %p76, %p77
    %p79 = scmp.ne.s32.totalorder %s68, %s71
    %p80 = scmp.eq.s32.totalorder %s16, 1
    %p81 = por %p79, %p80
    %p82 = scmp.ne.s32.totalorder %s71, %s72
    %p83 = scmp.eq.s32.totalorder %s16, 0
    %p84 = por %p82, %p83
    %p85 = scmp.ne.s32.totalorder %s71, %s72
    %p86 = scmp.eq.s32.totalorder %s17, 1
    %p87 = por %p85, %p86
    %p89 = scmp.ne.s32.totalorder %s72, %s88
    %p90 = scmp.eq.s32.totalorder %s17, 0
    %p91 = por %p89, %p90
    %s92 = ssub.s32 %s11, %s18
    %p93 = scmp.eq.s32.totalorder %s92, 0
    %s95 = sadd.s32 %s94, 1
    %s96 = scalar_select %p93, %s94, %s95
    %p99 = pneg %p93
    %p100 = scmp.eq.s32.totalorder %s11, 1
    %p101 = por %p99, %p100
    %p102 = scmp.ne.s32.totalorder %s94, %s97
    %p103 = scmp.eq.s32.totalorder %s11, 0
    %p104 = por %p102, %p103
    %p105 = scmp.ne.s32.totalorder %s94, %s97
    %p106 = scmp.eq.s32.totalorder %s16, 1
    %p107 = por %p105, %p106
    %p108 = scmp.ne.s32.totalorder %s97, %s98
    %p109 = scmp.eq.s32.totalorder %s16, 0
    %p110 = por %p108, %p109
    %p111 = scmp.ne.s32.totalorder %s97, %s98
    %p112 = scmp.eq.s32.totalorder %s17, 1
    %p113 = por %p111, %p112
    %p115 = scmp.ne.s32.totalorder %s98, %s114
    %p116 = scmp.eq.s32.totalorder %s17, 0
    %p117 = por %p115, %p116
    %s118 = ssub.s32 %s11, %s18
    %p119 = scmp.eq.s32.totalorder %s118, 0
    %s121 = sadd.s32 %s120, 1
    %s122 = scalar_select %p119, %s120, %s121
    %p125 = pneg %p119
    %p126 = scmp.eq.s32.totalorder %s11, 1
    %p127 = por %p125, %p126
    %p128 = scmp.ne.s32.totalorder %s120, %s123
    %p129 = scmp.eq.s32.totalorder %s11, 0
    %p130 = por %p128, %p129
    %p131 = scmp.ne.s32.totalorder %s120, %s123
    %p132 = scmp.eq.s32.totalorder %s16, 1
    %p133 = por %p131, %p132
    %p134 = scmp.ne.s32.totalorder %s123, %s124
    %p135 = scmp.eq.s32.totalorder %s16, 0
    %p136 = por %p134, %p135
    %p137 = scmp.ne.s32.totalorder %s123, %s124
    %p138 = scmp.eq.s32.totalorder %s17, 1
    %p139 = por %p137, %p138
    %p141 = scmp.ne.s32.totalorder %s124, %s140
    %p142 = scmp.eq.s32.totalorder %s17, 0
    %p143 = por %p141, %p142
    %p144 = scmp.le.s32.totalorder 1, %s11
    %p145 = scmp.lt.s32.totalorder %s11, 3
    %p146 = pnand %p144, %p145
    %p147 = pneg %p146
    // Predicated region
    $region9: #{unet2d_up_forward.4} parent=5 // pred_check
      _
    $region10: #{unet2d_up_forward.4} parent=5 // pred_check_branch
      %149 = sbr.rel (%p146) target = $region12
    $region11: #{unet2d_up_forward.4} parent=5 // pred_region
      %s150 = ssub.s32 %s11, 1
      // Predicated region
      $region13: #{unet2d_up_forward.4} parent=11 // pred_check
        %p151 = pneg %p58
      $region14: #{unet2d_up_forward.4} parent=11 // pred_check_branch
        %153 = sbr.rel (%p151) target = $region16
      $region15: #{unet2d_up_forward.4} parent=11 // pred_region
        _
      $region16: #{unet2d_up_forward.4} parent=11 // pred_fallthru
        _
    $region12: #{unet2d_up_forward.4} parent=5 // pred_fallthru
      _
    %p154 = scmp.lt.s32.totalorder %s11, 2
    // Predicated region
    $region17: #{unet2d_up_forward.4} parent=5 // pred_check
      %p155 = pneg %p154
    $region18: #{unet2d_up_forward.4} parent=5 // pred_check_branch
      %157 = sbr.rel (%p155) target = $region20
    $region19: #{unet2d_up_forward.4} parent=5 // pred_region
      // Predicated region
      $region21: #{unet2d_up_forward.4} parent=19 // pred_check
        %p158 = pneg %p31
      $region22: #{unet2d_up_forward.4} parent=19 // pred_check_branch
        %160 = sbr.rel (%p158) target = $region24
      $region23: #{unet2d_up_forward.4} parent=19 // pred_region
        %p161 = scmp.lt.s32.totalorder %s11, 1
        %s162 = scalar_select %p161, %s11, 1
        %s163 = smul.addr %s162, 170
        %s164 = smul.addr %s163, 4
        %s165 = scalar_lea.vmem %s0, %s164
      $region24: #{unet2d_up_forward.4} parent=19 // pred_fallthru
        _
    $region20: #{unet2d_up_forward.4} parent=5 // pred_fallthru
      _
    %p166 = scmp.le.s32.totalorder 1, %s11
    %p167 = scmp.lt.s32.totalorder %s11, 3
    %p168 = pnand %p166, %p167
    %p169 = pneg %p168
    // Predicated region
    $region25: #{unet2d_up_forward.4} parent=5 // pred_check
      _
    $region26: #{unet2d_up_forward.4} parent=5 // pred_check_branch
      %171 = sbr.rel (%p168) target = $region28
    $region27: #{unet2d_up_forward.4} parent=5 // pred_region
      %s172 = ssub.s32 %s11, 1
      %p173 = scmp.lt.s32.totalorder %s16, 1
      %s174 = scalar_select %p173, %s16, 1
      %s175 = smul.addr %s174, 170
      %s176 = smul.addr %s175, 4
      %s177 = scalar_lea.vmem %s0, %s176
      %p178 = pneg %p37
      %p179 = pneg %p34
      %p180 = pneg %p58
      %p181 = pneg %p55
      %p182 = pneg %p84
      %p183 = pneg %p81
      %p184 = scmp.lt.s32.totalorder %s16, 1
      %s185 = scalar_select %p184, %s16, 1
      %s186 = smul.addr %s185, 128
      %s187 = smul.addr %s186, 8
      %s188 = scalar_lea.vmem %s2, %s187
      %p189 = pneg %p110
      %p190 = pneg %p107
      %p191 = scmp.lt.s32.totalorder %s16, 1
      %s192 = scalar_select %p191, %s16, 1
      %s193 = scalar_lea.vmem %s3, %s192
      %p194 = pneg %p136
      %p195 = pneg %p133
      %p196 = scmp.lt.s32.totalorder %s16, 1
      %s197 = scalar_select %p196, %s16, 1
      %s198 = scalar_lea.vmem %s4, %s197
      %p199 = scmp.lt.s32.totalorder %s16, 1
      %s200 = scalar_select %p199, %s16, 1
      %s201 = smul.addr %s200, 170
      %s202 = smul.addr %s201, 4
      %s203 = scalar_lea.vmem %s0, %s202
      %p204 = scmp.lt.s32.totalorder %s16, 1
      %s205 = scalar_select %p204, %s16, 1
      %s206 = smul.addr %s205, 128
      %s207 = smul.addr %s206, 8
      %s208 = scalar_lea.vmem %s2, %s207
      %p209 = scmp.lt.s32.totalorder %s16, 1
      %s210 = scalar_select %p209, %s16, 1
      %s211 = scalar_lea.vmem %s3, %s210
      %p212 = scmp.lt.s32.totalorder %s16, 1
      %s213 = scalar_select %p212, %s16, 1
      %s214 = scalar_lea.vmem %s4, %s213
      %v216 = vld [vmem:[%s203] sm:$0xf]
      %v217 = vld [vmem:[%s203 + $0x4] sm:$0xf]
      %v218 = vld [vmem:[%s203 + $0x8] sm:$0xf]
      %v219 = vld [vmem:[%s203 + $0xc] sm:$0xf]
      %v220 = vld [vmem:[%s203 + $0x10] sm:$0x1]
      %v221 = vld [vmem:[%s203 + $0x14] sm:$0xf]
      %v222 = vld [vmem:[%s203 + $0x18] sm:$0xf]
      %v223 = vld [vmem:[%s203 + $0x1c] sm:$0xf]
      %v224 = vld [vmem:[%s203 + $0x20] sm:$0xf]
      %v225 = vld [vmem:[%s203 + $0x24] sm:$0x1]
      %v226 = vld [vmem:[%s203 + $0x28] sm:$0xf]
      %v227 = vld [vmem:[%s203 + $0x2c] sm:$0xf]
      %v228 = vld [vmem:[%s203 + $0x30] sm:$0xf]
      %v229 = vld [vmem:[%s203 + $0x34] sm:$0xf]
      %v230 = vld [vmem:[%s203 + $0x38] sm:$0x1]
      %v231 = vld [vmem:[%s203 + $0x3c] sm:$0xf]
      %v232 = vld [vmem:[%s203 + $0x40] sm:$0xf]
      %v233 = vld [vmem:[%s203 + $0x44] sm:$0xf]
      %v234 = vld [vmem:[%s203 + $0x48] sm:$0xf]
      %v235 = vld [vmem:[%s203 + $0x4c] sm:$0x1]
      %v236 = vld [vmem:[%s203 + $0x50] sm:$0xf]
      %v237 = vld [vmem:[%s203 + $0x54] sm:$0xf]
      %v238 = vld [vmem:[%s203 + $0x58] sm:$0xf]
      %v239 = vld [vmem:[%s203 + $0x5c] sm:$0xf]
      %v240 = vld [vmem:[%s203 + $0x60] sm:$0x1]
      %v241 = vld [vmem:[%s203 + $0x64] sm:$0xf]
      %v242 = vld [vmem:[%s203 + $0x68] sm:$0xf]
      %v243 = vld [vmem:[%s203 + $0x6c] sm:$0xf]
      %v244 = vld [vmem:[%s203 + $0x70] sm:$0xf]
      %v245 = vld [vmem:[%s203 + $0x74] sm:$0x1]
      %v246 = vld [vmem:[%s203 + $0x78] sm:$0xf]
      %v247 = vld [vmem:[%s203 + $0x7c] sm:$0xf]
      %v248 = vld [vmem:[%s203 + $0x80] sm:$0xf]
      %v249 = vld [vmem:[%s203 + $0x84] sm:$0xf]
      %v250 = vld [vmem:[%s203 + $0x88] sm:$0x1]
      %v251 = vld [vmem:[%s203 + $0x8c] sm:$0xf]
      %v252 = vld [vmem:[%s203 + $0x90] sm:$0xf]
      %v253 = vld [vmem:[%s203 + $0x94] sm:$0xf]
      %v254 = vld [vmem:[%s203 + $0x98] sm:$0xf]
      %v255 = vld [vmem:[%s203 + $0x9c] sm:$0x1]
      %v256 = vld [vmem:[%s203 + $0xa0] sm:$0xf]
      %v257 = vld [vmem:[%s203 + $0xa4] sm:$0xf]
      %v258 = vld [vmem:[%s203 + $0xa8] sm:$0xf]
      %v259 = vld [vmem:[%s203 + $0xac] sm:$0xf]
      %v260 = vld [vmem:[%s203 + $0xb0] sm:$0x1]
      %v261 = vld [vmem:[%s203 + $0xb4] sm:$0xf]
      %v262 = vld [vmem:[%s203 + $0xb8] sm:$0xf]
      %v263 = vld [vmem:[%s203 + $0xbc] sm:$0xf]
      %v264 = vld [vmem:[%s203 + $0xc0] sm:$0xf]
      %v265 = vld [vmem:[%s203 + $0xc4] sm:$0x1]
      %v266 = vld [vmem:[%s203 + $0xc8] sm:$0xf]
      %v267 = vld [vmem:[%s203 + $0xcc] sm:$0xf]
      %v268 = vld [vmem:[%s203 + $0xd0] sm:$0xf]
      %v269 = vld [vmem:[%s203 + $0xd4] sm:$0xf]
      %v270 = vld [vmem:[%s203 + $0xd8] sm:$0x1]
      %v271 = vld [vmem:[%s203 + $0xdc] sm:$0xf]
      %v272 = vld [vmem:[%s203 + $0xe0] sm:$0xf]
      %v273 = vld [vmem:[%s203 + $0xe4] sm:$0xf]
      %v274 = vld [vmem:[%s203 + $0xe8] sm:$0xf]
      %v275 = vld [vmem:[%s203 + $0xec] sm:$0x1]
      %v276 = vld [vmem:[%s203 + $0xf0] sm:$0xf]
      %v277 = vld [vmem:[%s203 + $0xf4] sm:$0xf]
      %v278 = vld [vmem:[%s203 + $0xf8] sm:$0xf]
      %v279 = vld [vmem:[%s203 + $0xfc] sm:$0xf]
      %v280 = vld [vmem:[%s203 + $0x100] sm:$0x1]
      %v281 = vld [vmem:[%s203 + $0x104] sm:$0xf]
      %v282 = vld [vmem:[%s203 + $0x108] sm:$0xf]
      %v283 = vld [vmem:[%s203 + $0x10c] sm:$0xf]
      %v284 = vld [vmem:[%s203 + $0x110] sm:$0xf]
      %v285 = vld [vmem:[%s203 + $0x114] sm:$0x1]
      %v286 = vld [vmem:[%s203 + $0x118] sm:$0xf]
      %v287 = vld [vmem:[%s203 + $0x11c] sm:$0xf]
      %v288 = vld [vmem:[%s203 + $0x120] sm:$0xf]
      %v289 = vld [vmem:[%s203 + $0x124] sm:$0xf]
      %v290 = vld [vmem:[%s203 + $0x128] sm:$0x1]
      %v291 = vld [vmem:[%s203 + $0x12c] sm:$0xf]
      %v292 = vld [vmem:[%s203 + $0x130] sm:$0xf]
      %v293 = vld [vmem:[%s203 + $0x134] sm:$0xf]
      %v294 = vld [vmem:[%s203 + $0x138] sm:$0xf]
      %v295 = vld [vmem:[%s203 + $0x13c] sm:$0x1]
      %v296 = vld [vmem:[%s203 + $0x140] sm:$0xf]
      %v297 = vld [vmem:[%s203 + $0x144] sm:$0xf]
      %v298 = vld [vmem:[%s203 + $0x148] sm:$0xf]
      %v299 = vld [vmem:[%s203 + $0x14c] sm:$0xf]
      %v300 = vld [vmem:[%s203 + $0x150] sm:$0x1]
      %v301 = vld [vmem:[%s203 + $0x154] sm:$0xf]
      %v302 = vld [vmem:[%s203 + $0x158] sm:$0xf]
      %v303 = vld [vmem:[%s203 + $0x15c] sm:$0xf]
      %v304 = vld [vmem:[%s203 + $0x160] sm:$0xf]
      %v305 = vld [vmem:[%s203 + $0x164] sm:$0x1]
      %v306 = vld [vmem:[%s203 + $0x168] sm:$0xf]
      %v307 = vld [vmem:[%s203 + $0x16c] sm:$0xf]
      %v308 = vld [vmem:[%s203 + $0x170] sm:$0xf]
      %v309 = vld [vmem:[%s203 + $0x174] sm:$0xf]
      %v310 = vld [vmem:[%s203 + $0x178] sm:$0x1]
      %v311 = vld [vmem:[%s203 + $0x17c] sm:$0xf]
      %v312 = vld [vmem:[%s203 + $0x180] sm:$0xf]
      %v313 = vld [vmem:[%s203 + $0x184] sm:$0xf]
      %v314 = vld [vmem:[%s203 + $0x188] sm:$0xf]
      %v315 = vld [vmem:[%s203 + $0x18c] sm:$0x1]
      %v316 = vld [vmem:[%s203 + $0x190] sm:$0xf]
      %v317 = vld [vmem:[%s203 + $0x194] sm:$0xf]
      %v318 = vld [vmem:[%s203 + $0x198] sm:$0xf]
      %v319 = vld [vmem:[%s203 + $0x19c] sm:$0xf]
      %v320 = vld [vmem:[%s203 + $0x1a0] sm:$0x1]
      %v321 = vld [vmem:[%s203 + $0x1a4] sm:$0xf]
      %v322 = vld [vmem:[%s203 + $0x1a8] sm:$0xf]
      %v323 = vld [vmem:[%s203 + $0x1ac] sm:$0xf]
      %v324 = vld [vmem:[%s203 + $0x1b0] sm:$0xf]
      %v325 = vld [vmem:[%s203 + $0x1b4] sm:$0x1]
      %v326 = vld [vmem:[%s203 + $0x1b8] sm:$0xf]
      %v327 = vld [vmem:[%s203 + $0x1bc] sm:$0xf]
      %v328 = vld [vmem:[%s203 + $0x1c0] sm:$0xf]
      %v329 = vld [vmem:[%s203 + $0x1c4] sm:$0xf]
      %v330 = vld [vmem:[%s203 + $0x1c8] sm:$0x1]
      %v331 = vld [vmem:[%s203 + $0x1cc] sm:$0xf]
      %v332 = vld [vmem:[%s203 + $0x1d0] sm:$0xf]
      %v333 = vld [vmem:[%s203 + $0x1d4] sm:$0xf]
      %v334 = vld [vmem:[%s203 + $0x1d8] sm:$0xf]
      %v335 = vld [vmem:[%s203 + $0x1dc] sm:$0x1]
      %v336 = vld [vmem:[%s203 + $0x1e0] sm:$0xf]
      %v337 = vld [vmem:[%s203 + $0x1e4] sm:$0xf]
      %v338 = vld [vmem:[%s203 + $0x1e8] sm:$0xf]
      %v339 = vld [vmem:[%s203 + $0x1ec] sm:$0xf]
      %v340 = vld [vmem:[%s203 + $0x1f0] sm:$0x1]
      %v341 = vld [vmem:[%s203 + $0x1f4] sm:$0xf]
      %v342 = vld [vmem:[%s203 + $0x1f8] sm:$0xf]
      %v343 = vld [vmem:[%s203 + $0x1fc] sm:$0xf]
      %v344 = vld [vmem:[%s203 + $0x200] sm:$0xf]
      %v345 = vld [vmem:[%s203 + $0x204] sm:$0x1]
      %v346 = vld [vmem:[%s203 + $0x208] sm:$0xf]
      %v347 = vld [vmem:[%s203 + $0x20c] sm:$0xf]
      %v348 = vld [vmem:[%s203 + $0x210] sm:$0xf]
      %v349 = vld [vmem:[%s203 + $0x214] sm:$0xf]
      %v350 = vld [vmem:[%s203 + $0x218] sm:$0x1]
      %v351 = vld [vmem:[%s203 + $0x21c] sm:$0xf]
      %v352 = vld [vmem:[%s203 + $0x220] sm:$0xf]
      %v353 = vld [vmem:[%s203 + $0x224] sm:$0xf]
      %v354 = vld [vmem:[%s203 + $0x228] sm:$0xf]
      %v355 = vld [vmem:[%s203 + $0x22c] sm:$0x1]
      %v356 = vld [vmem:[%s203 + $0x230] sm:$0xf]
      %v357 = vld [vmem:[%s203 + $0x234] sm:$0xf]
      %v358 = vld [vmem:[%s203 + $0x238] sm:$0xf]
      %v359 = vld [vmem:[%s203 + $0x23c] sm:$0xf]
      %v360 = vld [vmem:[%s203 + $0x240] sm:$0x1]
      %v361 = vld [vmem:[%s203 + $0x244] sm:$0xf]
      %v362 = vld [vmem:[%s203 + $0x248] sm:$0xf]
      %v363 = vld [vmem:[%s203 + $0x24c] sm:$0xf]
      %v364 = vld [vmem:[%s203 + $0x250] sm:$0xf]
      %v365 = vld [vmem:[%s203 + $0x254] sm:$0x1]
      %v366 = vld [vmem:[%s203 + $0x258] sm:$0xf]
      %v367 = vld [vmem:[%s203 + $0x25c] sm:$0xf]
      %v368 = vld [vmem:[%s203 + $0x260] sm:$0xf]
      %v369 = vld [vmem:[%s203 + $0x264] sm:$0xf]
      %v370 = vld [vmem:[%s203 + $0x268] sm:$0x1]
      %v371 = vld [vmem:[%s203 + $0x26c] sm:$0xf]
      %v372 = vld [vmem:[%s203 + $0x270] sm:$0xf]
      %v373 = vld [vmem:[%s203 + $0x274] sm:$0xf]
      %v374 = vld [vmem:[%s203 + $0x278] sm:$0xf]
      %v375 = vld [vmem:[%s203 + $0x27c] sm:$0x1]
      %v376 = vld [vmem:[%s203 + $0x280] sm:$0xf]
      %v377 = vld [vmem:[%s203 + $0x284] sm:$0xf]
      %v378 = vld [vmem:[%s203 + $0x288] sm:$0xf]
      %v379 = vld [vmem:[%s203 + $0x28c] sm:$0xf]
      %v380 = vld [vmem:[%s203 + $0x290] sm:$0x1]
      %v381 = vld [vmem:[%s203 + $0x294] sm:$0xf]
      %v382 = vld [vmem:[%s203 + $0x298] sm:$0xf]
      %v383 = vld [vmem:[%s203 + $0x29c] sm:$0xf]
      %v384 = vld [vmem:[%s203 + $0x2a0] sm:$0xf]
      %v385 = vld [vmem:[%s203 + $0x2a4] sm:$0x1]
      %v386 = vld [vmem:[%s1] sm:$0xf]
      %v387 = vld [vmem:[%s1 + $0x4] sm:$0xf]
      %v388 = vld [vmem:[%s1 + $0x8] sm:$0xf]
      %v389 = vld [vmem:[%s1 + $0xc] sm:$0xf]
      %v390 = vld [vmem:[%s1 + $0x10] sm:$0xf]
      %v391 = vld [vmem:[%s1 + $0x14] sm:$0xf]
      %v392 = vld [vmem:[%s1 + $0x18] sm:$0xf]
      %v393 = vld [vmem:[%s1 + $0x1c] sm:$0xf]
      %v394 = vld [vmem:[%s1 + $0x20] sm:$0xf]
      %v395 = vld [vmem:[%s1 + $0x24] sm:$0xf]
      %v396 = vld [vmem:[%s1 + $0x28] sm:$0xf]
      %v397 = vld [vmem:[%s1 + $0x2c] sm:$0xf]
      %v398 = vld [vmem:[%s1 + $0x30] sm:$0xf]
      %v399 = vld [vmem:[%s1 + $0x34] sm:$0xf]
      %v400 = vld [vmem:[%s1 + $0x38] sm:$0xf]
      %v401 = vld [vmem:[%s1 + $0x3c] sm:$0xf]
      %vm402 = vsmask.f32 3328
      %vm403 = vsmask.f32 7440
      %vm404 = vmor %vm402, %vm403
      %v406 = vshrl.u32 %v216, 16
      %v408 = vrot.slane %v406, 4
      %v409 = vshll.u32 %v216, 16
      %v411 = vrot.slane %v409, 5
      %v412 = vor.u32 %v408, %v411
      %v413 = vrot.slane %v412, 4
      %v415 = vshll.u32 %v217, 16
      %v417 = vrot.slane %v415, 5
      %v418 = vsel %vm404, %v413, %v417
      %v419 = vshrl.u32 %v217, 16
      %v421 = vrot.slane %v419, 4
      %v422 = vor.u32 %v421, %v417
      %v423 = vrot.slane %v422, 4
      %v425 = vshll.u32 %v218, 16
      %v427 = vrot.slane %v425, 5
      %v428 = vsel %vm404, %v423, %v427
      %v429 = vshrl.u32 %v218, 16
      %v431 = vrot.slane %v429, 4
      %v432 = vor.u32 %v431, %v427
      %v433 = vrot.slane %v432, 4
      %v435 = vshll.u32 %v219, 16
      %v437 = vrot.slane %v435, 5
      %v438 = vsel %vm404, %v433, %v437
      %v439 = vshrl.u32 %v219, 16
      %v441 = vrot.slane %v439, 4
      %v442 = vor.u32 %v441, %v437
      %v443 = vrot.slane %v442, 4
      %v445 = vshll.u32 %v220, 16
      %v447 = vrot.slane %v445, 5
      %v448 = vsel %vm404, %v443, %v447
      %v450 = vshrl.u32 %v221, 16
      %v452 = vrot.slane %v450, 4
      %v453 = vshll.u32 %v221, 16
      %v455 = vrot.slane %v453, 5
      %v456 = vor.u32 %v452, %v455
      %v457 = vrot.slane %v456, 4
      %v459 = vshll.u32 %v222, 16
      %v461 = vrot.slane %v459, 5
      %v462 = vsel %vm404, %v457, %v461
      %v463 = vshrl.u32 %v222, 16
      %v465 = vrot.slane %v463, 4
      %v466 = vor.u32 %v465, %v461
      %v467 = vrot.slane %v466, 4
      %v469 = vshll.u32 %v223, 16
      %v471 = vrot.slane %v469, 5
      %v472 = vsel %vm404, %v467, %v471
      %v473 = vshrl.u32 %v223, 16
      %v475 = vrot.slane %v473, 4
      %v476 = vor.u32 %v475, %v471
      %v477 = vrot.slane %v476, 4
      %v479 = vshll.u32 %v224, 16
      %v481 = vrot.slane %v479, 5
      %v482 = vsel %vm404, %v477, %v481
      %v483 = vshrl.u32 %v224, 16
      %v485 = vrot.slane %v483, 4
      %v486 = vor.u32 %v485, %v481
      %v487 = vrot.slane %v486, 4
      %v489 = vshll.u32 %v225, 16
      %v491 = vrot.slane %v489, 5
      %v492 = vsel %vm404, %v487, %v491
      %v494 = vshrl.u32 %v226, 16
      %v496 = vrot.slane %v494, 4
      %v497 = vshll.u32 %v226, 16
      %v499 = vrot.slane %v497, 5
      %v500 = vor.u32 %v496, %v499
      %v501 = vrot.slane %v500, 4
      %v503 = vshll.u32 %v227, 16
      %v505 = vrot.slane %v503, 5
      %v506 = vsel %vm404, %v501, %v505
      %v507 = vshrl.u32 %v227, 16
      %v509 = vrot.slane %v507, 4
      %v510 = vor.u32 %v509, %v505
      %v511 = vrot.slane %v510, 4
      %v513 = vshll.u32 %v228, 16
      %v515 = vrot.slane %v513, 5
      %v516 = vsel %vm404, %v511, %v515
      %v517 = vshrl.u32 %v228, 16
      %v519 = vrot.slane %v517, 4
      %v520 = vor.u32 %v519, %v515
      %v521 = vrot.slane %v520, 4
      %v523 = vshll.u32 %v229, 16
      %v525 = vrot.slane %v523, 5
      %v526 = vsel %vm404, %v521, %v525
      %v527 = vshrl.u32 %v229, 16
      %v529 = vrot.slane %v527, 4
      %v530 = vor.u32 %v529, %v525
      %v531 = vrot.slane %v530, 4
      %v533 = vshll.u32 %v230, 16
      %v535 = vrot.slane %v533, 5
      %v536 = vsel %vm404, %v531, %v535
      %v538 = vshrl.u32 %v231, 16
      %v540 = vrot.slane %v538, 4
      %v541 = vshll.u32 %v231, 16
      %v543 = vrot.slane %v541, 5
      %v544 = vor.u32 %v540, %v543
      %v545 = vrot.slane %v544, 4
      %v547 = vshll.u32 %v232, 16
      %v549 = vrot.slane %v547, 5
      %v550 = vsel %vm404, %v545, %v549
      %v551 = vshrl.u32 %v232, 16
      %v553 = vrot.slane %v551, 4
      %v554 = vor.u32 %v553, %v549
      %v555 = vrot.slane %v554, 4
      %v557 = vshll.u32 %v233, 16
      %v559 = vrot.slane %v557, 5
      %v560 = vsel %vm404, %v555, %v559
      %v561 = vshrl.u32 %v233, 16
      %v563 = vrot.slane %v561, 4
      %v564 = vor.u32 %v563, %v559
      %v565 = vrot.slane %v564, 4
      %v567 = vshll.u32 %v234, 16
      %v569 = vrot.slane %v567, 5
      %v570 = vsel %vm404, %v565, %v569
      %v571 = vshrl.u32 %v234, 16
      %v573 = vrot.slane %v571, 4
      %v574 = vor.u32 %v573, %v569
      %v575 = vrot.slane %v574, 4
      %v577 = vshll.u32 %v235, 16
      %v579 = vrot.slane %v577, 5
      %v580 = vsel %vm404, %v575, %v579
      %v582 = vshrl.u32 %v236, 16
      %v584 = vrot.slane %v582, 4
      %v585 = vshll.u32 %v236, 16
      %v587 = vrot.slane %v585, 5
      %v588 = vor.u32 %v584, %v587
      %v589 = vrot.slane %v588, 4
      %v591 = vshll.u32 %v237, 16
      %v593 = vrot.slane %v591, 5
      %v594 = vsel %vm404, %v589, %v593
      %v595 = vshrl.u32 %v237, 16
      %v597 = vrot.slane %v595, 4
      %v598 = vor.u32 %v597, %v593
      %v599 = vrot.slane %v598, 4
      %v601 = vshll.u32 %v238, 16
      %v603 = vrot.slane %v601, 5
      %v604 = vsel %vm404, %v599, %v603
      %v605 = vshrl.u32 %v238, 16
      %v607 = vrot.slane %v605, 4
      %v608 = vor.u32 %v607, %v603
      %v609 = vrot.slane %v608, 4
      %v611 = vshll.u32 %v239, 16
      %v613 = vrot.slane %v611, 5
      %v614 = vsel %vm404, %v609, %v613
      %v615 = vshrl.u32 %v239, 16
      %v617 = vrot.slane %v615, 4
      %v618 = vor.u32 %v617, %v613
      %v619 = vrot.slane %v618, 4
      %v621 = vshll.u32 %v240, 16
      %v623 = vrot.slane %v621, 5
      %v624 = vsel %vm404, %v619, %v623
      %v626 = vshrl.u32 %v241, 16
      %v628 = vrot.slane %v626, 4
      %v629 = vshll.u32 %v241, 16
      %v631 = vrot.slane %v629, 5
      %v632 = vor.u32 %v628, %v631
      %v633 = vrot.slane %v632, 4
      %v635 = vshll.u32 %v242, 16
      %v637 = vrot.slane %v635, 5
      %v638 = vsel %vm404, %v633, %v637
      %v639 = vshrl.u32 %v242, 16
      %v641 = vrot.slane %v639, 4
      %v642 = vor.u32 %v641, %v637
      %v643 = vrot.slane %v642, 4
      %v645 = vshll.u32 %v243, 16
      %v647 = vrot.slane %v645, 5
      %v648 = vsel %vm404, %v643, %v647
      %v649 = vshrl.u32 %v243, 16
      %v651 = vrot.slane %v649, 4
      %v652 = vor.u32 %v651, %v647
      %v653 = vrot.slane %v652, 4
      %v655 = vshll.u32 %v244, 16
      %v657 = vrot.slane %v655, 5
      %v658 = vsel %vm404, %v653, %v657
      %v659 = vshrl.u32 %v244, 16
      %v661 = vrot.slane %v659, 4
      %v662 = vor.u32 %v661, %v657
      %v663 = vrot.slane %v662, 4
      %v665 = vshll.u32 %v245, 16
      %v667 = vrot.slane %v665, 5
      %v668 = vsel %vm404, %v663, %v667
      %v670 = vshrl.u32 %v246, 16
      %v672 = vrot.slane %v670, 4
      %v673 = vshll.u32 %v246, 16
      %v675 = vrot.slane %v673, 5
      %v676 = vor.u32 %v672, %v675
      %v677 = vrot.slane %v676, 4
      %v679 = vshll.u32 %v247, 16
      %v681 = vrot.slane %v679, 5
      %v682 = vsel %vm404, %v677, %v681
      %v683 = vshrl.u32 %v247, 16
      %v685 = vrot.slane %v683, 4
      %v686 = vor.u32 %v685, %v681
      %v687 = vrot.slane %v686, 4
      %v689 = vshll.u32 %v248, 16
      %v691 = vrot.slane %v689, 5
      %v692 = vsel %vm404, %v687, %v691
      %v693 = vshrl.u32 %v248, 16
      %v695 = vrot.slane %v693, 4
      %v696 = vor.u32 %v695, %v691
      %v697 = vrot.slane %v696, 4
      %v699 = vshll.u32 %v249, 16
      %v701 = vrot.slane %v699, 5
      %v702 = vsel %vm404, %v697, %v701
      %v703 = vshrl.u32 %v249, 16
      %v705 = vrot.slane %v703, 4
      %v706 = vor.u32 %v705, %v701
      %v707 = vrot.slane %v706, 4
      %v709 = vshll.u32 %v250, 16
      %v711 = vrot.slane %v709, 5
      %v712 = vsel %vm404, %v707, %v711
      %v714 = vshrl.u32 %v251, 16
      %v716 = vrot.slane %v714, 4
      %v717 = vshll.u32 %v251, 16
      %v719 = vrot.slane %v717, 5
      %v720 = vor.u32 %v716, %v719
      %v721 = vrot.slane %v720, 4
      %v723 = vshll.u32 %v252, 16
      %v725 = vrot.slane %v723, 5
      %v726 = vsel %vm404, %v721, %v725
      %v727 = vshrl.u32 %v252, 16
      %v729 = vrot.slane %v727, 4
      %v730 = vor.u32 %v729, %v725
      %v731 = vrot.slane %v730, 4
      %v733 = vshll.u32 %v253, 16
      %v735 = vrot.slane %v733, 5
      %v736 = vsel %vm404, %v731, %v735
      %v737 = vshrl.u32 %v253, 16
      %v739 = vrot.slane %v737, 4
      %v740 = vor.u32 %v739, %v735
      %v741 = vrot.slane %v740, 4
      %v743 = vshll.u32 %v254, 16
      %v745 = vrot.slane %v743, 5
      %v746 = vsel %vm404, %v741, %v745
      %v747 = vshrl.u32 %v254, 16
      %v749 = vrot.slane %v747, 4
      %v750 = vor.u32 %v749, %v745
      %v751 = vrot.slane %v750, 4
      %v753 = vshll.u32 %v255, 16
      %v755 = vrot.slane %v753, 5
      %v756 = vsel %vm404, %v751, %v755
      %v758 = vshrl.u32 %v256, 16
      %v760 = vrot.slane %v758, 4
      %v761 = vshll.u32 %v256, 16
      %v763 = vrot.slane %v761, 5
      %v764 = vor.u32 %v760, %v763
      %v765 = vrot.slane %v764, 4
      %v767 = vshll.u32 %v257, 16
      %v769 = vrot.slane %v767, 5
      %v770 = vsel %vm404, %v765, %v769
      %v771 = vshrl.u32 %v257, 16
      %v773 = vrot.slane %v771, 4
      %v774 = vor.u32 %v773, %v769
      %v775 = vrot.slane %v774, 4
      %v777 = vshll.u32 %v258, 16
      %v779 = vrot.slane %v777, 5
      %v780 = vsel %vm404, %v775, %v779
      %v781 = vshrl.u32 %v258, 16
      %v783 = vrot.slane %v781, 4
      %v784 = vor.u32 %v783, %v779
      %v785 = vrot.slane %v784, 4
      %v787 = vshll.u32 %v259, 16
      %v789 = vrot.slane %v787, 5
      %v790 = vsel %vm404, %v785, %v789
      %v791 = vshrl.u32 %v259, 16
      %v793 = vrot.slane %v791, 4
      %v794 = vor.u32 %v793, %v789
      %v795 = vrot.slane %v794, 4
      %v797 = vshll.u32 %v260, 16
      %v799 = vrot.slane %v797, 5
      %v800 = vsel %vm404, %v795, %v799
      %v802 = vshrl.u32 %v261, 16
      %v804 = vrot.slane %v802, 4
      %v805 = vshll.u32 %v261, 16
      %v807 = vrot.slane %v805, 5
      %v808 = vor.u32 %v804, %v807
      %v809 = vrot.slane %v808, 4
      %v811 = vshll.u32 %v262, 16
      %v813 = vrot.slane %v811, 5
      %v814 = vsel %vm404, %v809, %v813
      %v815 = vshrl.u32 %v262, 16
      %v817 = vrot.slane %v815, 4
      %v818 = vor.u32 %v817, %v813
      %v819 = vrot.slane %v818, 4
      %v821 = vshll.u32 %v263, 16
      %v823 = vrot.slane %v821, 5
      %v824 = vsel %vm404, %v819, %v823
      %v825 = vshrl.u32 %v263, 16
      %v827 = vrot.slane %v825, 4
      %v828 = vor.u32 %v827, %v823
      %v829 = vrot.slane %v828, 4
      %v831 = vshll.u32 %v264, 16
      %v833 = vrot.slane %v831, 5
      %v834 = vsel %vm404, %v829, %v833
      %v835 = vshrl.u32 %v264, 16
      %v837 = vrot.slane %v835, 4
      %v838 = vor.u32 %v837, %v833
      %v839 = vrot.slane %v838, 4
      %v841 = vshll.u32 %v265, 16
      %v843 = vrot.slane %v841, 5
      %v844 = vsel %vm404, %v839, %v843
      %v846 = vshrl.u32 %v266, 16
      %v848 = vrot.slane %v846, 4
      %v849 = vshll.u32 %v266, 16
      %v851 = vrot.slane %v849, 5
      %v852 = vor.u32 %v848, %v851
      %v853 = vrot.slane %v852, 4
      %v855 = vshll.u32 %v267, 16
      %v857 = vrot.slane %v855, 5
      %v858 = vsel %vm404, %v853, %v857
      %v859 = vshrl.u32 %v267, 16
      %v861 = vrot.slane %v859, 4
      %v862 = vor.u32 %v861, %v857
      %v863 = vrot.slane %v862, 4
      %v865 = vshll.u32 %v268, 16
      %v867 = vrot.slane %v865, 5
      %v868 = vsel %vm404, %v863, %v867
      %v869 = vshrl.u32 %v268, 16
      %v871 = vrot.slane %v869, 4
      %v872 = vor.u32 %v871, %v867
      %v873 = vrot.slane %v872, 4
      %v875 = vshll.u32 %v269, 16
      %v877 = vrot.slane %v875, 5
      %v878 = vsel %vm404, %v873, %v877
      %v879 = vshrl.u32 %v269, 16
      %v881 = vrot.slane %v879, 4
      %v882 = vor.u32 %v881, %v877
      %v883 = vrot.slane %v882, 4
      %v885 = vshll.u32 %v270, 16
      %v887 = vrot.slane %v885, 5
      %v888 = vsel %vm404, %v883, %v887
      %v890 = vshrl.u32 %v271, 16
      %v892 = vrot.slane %v890, 4
      %v893 = vshll.u32 %v271, 16
      %v895 = vrot.slane %v893, 5
      %v896 = vor.u32 %v892, %v895
      %v897 = vrot.slane %v896, 4
      %v899 = vshll.u32 %v272, 16
      %v901 = vrot.slane %v899, 5
      %v902 = vsel %vm404, %v897, %v901
      %v903 = vshrl.u32 %v272, 16
      %v905 = vrot.slane %v903, 4
      %v906 = vor.u32 %v905, %v901
      %v907 = vrot.slane %v906, 4
      %v909 = vshll.u32 %v273, 16
      %v911 = vrot.slane %v909, 5
      %v912 = vsel %vm404, %v907, %v911
      %v913 = vshrl.u32 %v273, 16
      %v915 = vrot.slane %v913, 4
      %v916 = vor.u32 %v915, %v911
      %v917 = vrot.slane %v916, 4
      %v919 = vshll.u32 %v274, 16
      %v921 = vrot.slane %v919, 5
      %v922 = vsel %vm404, %v917, %v921
      %v923 = vshrl.u32 %v274, 16
      %v925 = vrot.slane %v923, 4
      %v926 = vor.u32 %v925, %v921
      %v927 = vrot.slane %v926, 4
      %v929 = vshll.u32 %v275, 16
      %v931 = vrot.slane %v929, 5
      %v932 = vsel %vm404, %v927, %v931
      %v934 = vshrl.u32 %v276, 16
      %v936 = vrot.slane %v934, 4
      %v937 = vshll.u32 %v276, 16
      %v939 = vrot.slane %v937, 5
      %v940 = vor.u32 %v936, %v939
      %v941 = vrot.slane %v940, 4
      %v943 = vshll.u32 %v277, 16
      %v945 = vrot.slane %v943, 5
      %v946 = vsel %vm404, %v941, %v945
      %v947 = vshrl.u32 %v277, 16
      %v949 = vrot.slane %v947, 4
      %v950 = vor.u32 %v949, %v945
      %v951 = vrot.slane %v950, 4
      %v953 = vshll.u32 %v278, 16
      %v955 = vrot.slane %v953, 5
      %v956 = vsel %vm404, %v951, %v955
      %v957 = vshrl.u32 %v278, 16
      %v959 = vrot.slane %v957, 4
      %v960 = vor.u32 %v959, %v955
      %v961 = vrot.slane %v960, 4
      %v963 = vshll.u32 %v279, 16
      %v965 = vrot.slane %v963, 5
      %v966 = vsel %vm404, %v961, %v965
      %v967 = vshrl.u32 %v279, 16
      %v969 = vrot.slane %v967, 4
      %v970 = vor.u32 %v969, %v965
      %v971 = vrot.slane %v970, 4
      %v973 = vshll.u32 %v280, 16
      %v975 = vrot.slane %v973, 5
      %v976 = vsel %vm404, %v971, %v975
      %v978 = vshrl.u32 %v281, 16
      %v980 = vrot.slane %v978, 4
      %v981 = vshll.u32 %v281, 16
      %v983 = vrot.slane %v981, 5
      %v984 = vor.u32 %v980, %v983
      %v985 = vrot.slane %v984, 4
      %v987 = vshll.u32 %v282, 16
      %v989 = vrot.slane %v987, 5
      %v990 = vsel %vm404, %v985, %v989
      %v991 = vshrl.u32 %v282, 16
      %v993 = vrot.slane %v991, 4
      %v994 = vor.u32 %v993, %v989
      %v995 = vrot.slane %v994, 4
      %v997 = vshll.u32 %v283, 16
      %v999 = vrot.slane %v997, 5
      %v1000 = vsel %vm404, %v995, %v999
      %v1001 = vshrl.u32 %v283, 16
      %v1003 = vrot.slane %v1001, 4
      %v1004 = vor.u32 %v1003, %v999
      %v1005 = vrot.slane %v1004, 4
      %v1007 = vshll.u32 %v284, 16
      %v1009 = vrot.slane %v1007, 5
      %v1010 = vsel %vm404, %v1005, %v1009
      %v1011 = vshrl.u32 %v284, 16
      %v1013 = vrot.slane %v1011, 4
      %v1014 = vor.u32 %v1013, %v1009
      %v1015 = vrot.slane %v1014, 4
      %v1017 = vshll.u32 %v285, 16
      %v1019 = vrot.slane %v1017, 5
      %v1020 = vsel %vm404, %v1015, %v1019
      %v1022 = vshrl.u32 %v286, 16
      %v1024 = vrot.slane %v1022, 4
      %v1025 = vshll.u32 %v286, 16
      %v1027 = vrot.slane %v1025, 5
      %v1028 = vor.u32 %v1024, %v1027
      %v1029 = vrot.slane %v1028, 4
      %v1031 = vshll.u32 %v287, 16
      %v1033 = vrot.slane %v1031, 5
      %v1034 = vsel %vm404, %v1029, %v1033
      %v1035 = vshrl.u32 %v287, 16
      %v1037 = vrot.slane %v1035, 4
      %v1038 = vor.u32 %v1037, %v1033
      %v1039 = vrot.slane %v1038, 4
      %v1041 = vshll.u32 %v288, 16
      %v1043 = vrot.slane %v1041, 5
      %v1044 = vsel %vm404, %v1039, %v1043
      %v1045 = vshrl.u32 %v288, 16
      %v1047 = vrot.slane %v1045, 4
      %v1048 = vor.u32 %v1047, %v1043
      %v1049 = vrot.slane %v1048, 4
      %v1051 = vshll.u32 %v289, 16
      %v1053 = vrot.slane %v1051, 5
      %v1054 = vsel %vm404, %v1049, %v1053
      %v1055 = vshrl.u32 %v289, 16
      %v1057 = vrot.slane %v1055, 4
      %v1058 = vor.u32 %v1057, %v1053
      %v1059 = vrot.slane %v1058, 4
      %v1061 = vshll.u32 %v290, 16
      %v1063 = vrot.slane %v1061, 5
      %v1064 = vsel %vm404, %v1059, %v1063
      %v1066 = vshrl.u32 %v291, 16
      %v1068 = vrot.slane %v1066, 4
      %v1069 = vshll.u32 %v291, 16
      %v1071 = vrot.slane %v1069, 5
      %v1072 = vor.u32 %v1068, %v1071
      %v1073 = vrot.slane %v1072, 4
      %v1075 = vshll.u32 %v292, 16
      %v1077 = vrot.slane %v1075, 5
      %v1078 = vsel %vm404, %v1073, %v1077
      %v1079 = vshrl.u32 %v292, 16
      %v1081 = vrot.slane %v1079, 4
      %v1082 = vor.u32 %v1081, %v1077
      %v1083 = vrot.slane %v1082, 4
      %v1085 = vshll.u32 %v293, 16
      %v1087 = vrot.slane %v1085, 5
      %v1088 = vsel %vm404, %v1083, %v1087
      %v1089 = vshrl.u32 %v293, 16
      %v1091 = vrot.slane %v1089, 4
      %v1092 = vor.u32 %v1091, %v1087
      %v1093 = vrot.slane %v1092, 4
      %v1095 = vshll.u32 %v294, 16
      %v1097 = vrot.slane %v1095, 5
      %v1098 = vsel %vm404, %v1093, %v1097
      %v1099 = vshrl.u32 %v294, 16
      %v1101 = vrot.slane %v1099, 4
      %v1102 = vor.u32 %v1101, %v1097
      %v1103 = vrot.slane %v1102, 4
      %v1105 = vshll.u32 %v295, 16
      %v1107 = vrot.slane %v1105, 5
      %v1108 = vsel %vm404, %v1103, %v1107
      %v1110 = vshrl.u32 %v296, 16
      %v1112 = vrot.slane %v1110, 4
      %v1113 = vshll.u32 %v296, 16
      %v1115 = vrot.slane %v1113, 5
      %v1116 = vor.u32 %v1112, %v1115
      %v1117 = vrot.slane %v1116, 4
      %v1119 = vshll.u32 %v297, 16
      %v1121 = vrot.slane %v1119, 5
      %v1122 = vsel %vm404, %v1117, %v1121
      %v1123 = vshrl.u32 %v297, 16
      %v1125 = vrot.slane %v1123, 4
      %v1126 = vor.u32 %v1125, %v1121
      %v1127 = vrot.slane %v1126, 4
      %v1129 = vshll.u32 %v298, 16
      %v1131 = vrot.slane %v1129, 5
      %v1132 = vsel %vm404, %v1127, %v1131
      %v1133 = vshrl.u32 %v298, 16
      %v1135 = vrot.slane %v1133, 4
      %v1136 = vor.u32 %v1135, %v1131
      %v1137 = vrot.slane %v1136, 4
      %v1139 = vshll.u32 %v299, 16
      %v1141 = vrot.slane %v1139, 5
      %v1142 = vsel %vm404, %v1137, %v1141
      %v1143 = vshrl.u32 %v299, 16
      %v1145 = vrot.slane %v1143, 4
      %v1146 = vor.u32 %v1145, %v1141
      %v1147 = vrot.slane %v1146, 4
      %v1149 = vshll.u32 %v300, 16
      %v1151 = vrot.slane %v1149, 5
      %v1152 = vsel %vm404, %v1147, %v1151
      %v1154 = vshrl.u32 %v301, 16
      %v1156 = vrot.slane %v1154, 4
      %v1157 = vshll.u32 %v301, 16
      %v1159 = vrot.slane %v1157, 5
      %v1160 = vor.u32 %v1156, %v1159
      %v1161 = vrot.slane %v1160, 4
      %v1163 = vshll.u32 %v302, 16
      %v1165 = vrot.slane %v1163, 5
      %v1166 = vsel %vm404, %v1161, %v1165
      %v1167 = vshrl.u32 %v302, 16
      %v1169 = vrot.slane %v1167, 4
      %v1170 = vor.u32 %v1169, %v1165
      %v1171 = vrot.slane %v1170, 4
      %v1173 = vshll.u32 %v303, 16
      %v1175 = vrot.slane %v1173, 5
      %v1176 = vsel %vm404, %v1171, %v1175
      %v1177 = vshrl.u32 %v303, 16
      %v1179 = vrot.slane %v1177, 4
      %v1180 = vor.u32 %v1179, %v1175
      %v1181 = vrot.slane %v1180, 4
      %v1183 = vshll.u32 %v304, 16
      %v1185 = vrot.slane %v1183, 5
      %v1186 = vsel %vm404, %v1181, %v1185
      %v1187 = vshrl.u32 %v304, 16
      %v1189 = vrot.slane %v1187, 4
      %v1190 = vor.u32 %v1189, %v1185
      %v1191 = vrot.slane %v1190, 4
      %v1193 = vshll.u32 %v305, 16
      %v1195 = vrot.slane %v1193, 5
      %v1196 = vsel %vm404, %v1191, %v1195
      %v1198 = vshrl.u32 %v306, 16
      %v1200 = vrot.slane %v1198, 4
      %v1201 = vshll.u32 %v306, 16
      %v1203 = vrot.slane %v1201, 5
      %v1204 = vor.u32 %v1200, %v1203
      %v1205 = vrot.slane %v1204, 4
      %v1207 = vshll.u32 %v307, 16
      %v1209 = vrot.slane %v1207, 5
      %v1210 = vsel %vm404, %v1205, %v1209
      %v1211 = vshrl.u32 %v307, 16
      %v1213 = vrot.slane %v1211, 4
      %v1214 = vor.u32 %v1213, %v1209
      %v1215 = vrot.slane %v1214, 4
      %v1217 = vshll.u32 %v308, 16
      %v1219 = vrot.slane %v1217, 5
      %v1220 = vsel %vm404, %v1215, %v1219
      %v1221 = vshrl.u32 %v308, 16
      %v1223 = vrot.slane %v1221, 4
      %v1224 = vor.u32 %v1223, %v1219
      %v1225 = vrot.slane %v1224, 4
      %v1227 = vshll.u32 %v309, 16
      %v1229 = vrot.slane %v1227, 5
      %v1230 = vsel %vm404, %v1225, %v1229
      %v1231 = vshrl.u32 %v309, 16
      %v1233 = vrot.slane %v1231, 4
      %v1234 = vor.u32 %v1233, %v1229
      %v1235 = vrot.slane %v1234, 4
      %v1237 = vshll.u32 %v310, 16
      %v1239 = vrot.slane %v1237, 5
      %v1240 = vsel %vm404, %v1235, %v1239
      %v1242 = vshrl.u32 %v311, 16
      %v1244 = vrot.slane %v1242, 4
      %v1245 = vshll.u32 %v311, 16
      %v1247 = vrot.slane %v1245, 5
      %v1248 = vor.u32 %v1244, %v1247
      %v1249 = vrot.slane %v1248, 4
      %v1251 = vshll.u32 %v312, 16
      %v1253 = vrot.slane %v1251, 5
      %v1254 = vsel %vm404, %v1249, %v1253
      %v1255 = vshrl.u32 %v312, 16
      %v1257 = vrot.slane %v1255, 4
      %v1258 = vor.u32 %v1257, %v1253
      %v1259 = vrot.slane %v1258, 4
      %v1261 = vshll.u32 %v313, 16
      %v1263 = vrot.slane %v1261, 5
      %v1264 = vsel %vm404, %v1259, %v1263
      %v1265 = vshrl.u32 %v313, 16
      %v1267 = vrot.slane %v1265, 4
      %v1268 = vor.u32 %v1267, %v1263
      %v1269 = vrot.slane %v1268, 4
      %v1271 = vshll.u32 %v314, 16
      %v1273 = vrot.slane %v1271, 5
      %v1274 = vsel %vm404, %v1269, %v1273
      %v1275 = vshrl.u32 %v314, 16
      %v1277 = vrot.slane %v1275, 4
      %v1278 = vor.u32 %v1277, %v1273
      %v1279 = vrot.slane %v1278, 4
      %v1281 = vshll.u32 %v315, 16
      %v1283 = vrot.slane %v1281, 5
      %v1284 = vsel %vm404, %v1279, %v1283
      %v1286 = vshrl.u32 %v316, 16
      %v1288 = vrot.slane %v1286, 4
      %v1289 = vshll.u32 %v316, 16
      %v1291 = vrot.slane %v1289, 5
      %v1292 = vor.u32 %v1288, %v1291
      %v1293 = vrot.slane %v1292, 4
      %v1295 = vshll.u32 %v317, 16
      %v1297 = vrot.slane %v1295, 5
      %v1298 = vsel %vm404, %v1293, %v1297
      %v1299 = vshrl.u32 %v317, 16
      %v1301 = vrot.slane %v1299, 4
      %v1302 = vor.u32 %v1301, %v1297
      %v1303 = vrot.slane %v1302, 4
      %v1305 = vshll.u32 %v318, 16
      %v1307 = vrot.slane %v1305, 5
      %v1308 = vsel %vm404, %v1303, %v1307
      %v1309 = vshrl.u32 %v318, 16
      %v1311 = vrot.slane %v1309, 4
      %v1312 = vor.u32 %v1311, %v1307
      %v1313 = vrot.slane %v1312, 4
      %v1315 = vshll.u32 %v319, 16
      %v1317 = vrot.slane %v1315, 5
      %v1318 = vsel %vm404, %v1313, %v1317
      %v1319 = vshrl.u32 %v319, 16
      %v1321 = vrot.slane %v1319, 4
      %v1322 = vor.u32 %v1321, %v1317
      %v1323 = vrot.slane %v1322, 4
      %v1325 = vshll.u32 %v320, 16
      %v1327 = vrot.slane %v1325, 5
      %v1328 = vsel %vm404, %v1323, %v1327
      %v1330 = vshrl.u32 %v321, 16
      %v1332 = vrot.slane %v1330, 4
      %v1333 = vshll.u32 %v321, 16
      %v1335 = vrot.slane %v1333, 5
      %v1336 = vor.u32 %v1332, %v1335
      %v1337 = vrot.slane %v1336, 4
      %v1339 = vshll.u32 %v322, 16
      %v1341 = vrot.slane %v1339, 5
      %v1342 = vsel %vm404, %v1337, %v1341
      %v1343 = vshrl.u32 %v322, 16
      %v1345 = vrot.slane %v1343, 4
      %v1346 = vor.u32 %v1345, %v1341
      %v1347 = vrot.slane %v1346, 4
      %v1349 = vshll.u32 %v323, 16
      %v1351 = vrot.slane %v1349, 5
      %v1352 = vsel %vm404, %v1347, %v1351
      %v1353 = vshrl.u32 %v323, 16
      %v1355 = vrot.slane %v1353, 4
      %v1356 = vor.u32 %v1355, %v1351
      %v1357 = vrot.slane %v1356, 4
      %v1359 = vshll.u32 %v324, 16
      %v1361 = vrot.slane %v1359, 5
      %v1362 = vsel %vm404, %v1357, %v1361
      %v1363 = vshrl.u32 %v324, 16
      %v1365 = vrot.slane %v1363, 4
      %v1366 = vor.u32 %v1365, %v1361
      %v1367 = vrot.slane %v1366, 4
      %v1369 = vshll.u32 %v325, 16
      %v1371 = vrot.slane %v1369, 5
      %v1372 = vsel %vm404, %v1367, %v1371
      %v1374 = vshrl.u32 %v326, 16
      %v1376 = vrot.slane %v1374, 4
      %v1377 = vshll.u32 %v326, 16
      %v1379 = vrot.slane %v1377, 5
      %v1380 = vor.u32 %v1376, %v1379
      %v1381 = vrot.slane %v1380, 4
      %v1383 = vshll.u32 %v327, 16
      %v1385 = vrot.slane %v1383, 5
      %v1386 = vsel %vm404, %v1381, %v1385
      %v1387 = vshrl.u32 %v327, 16
      %v1389 = vrot.slane %v1387, 4
      %v1390 = vor.u32 %v1389, %v1385
      %v1391 = vrot.slane %v1390, 4
      %v1393 = vshll.u32 %v328, 16
      %v1395 = vrot.slane %v1393, 5
      %v1396 = vsel %vm404, %v1391, %v1395
      %v1397 = vshrl.u32 %v328, 16
      %v1399 = vrot.slane %v1397, 4
      %v1400 = vor.u32 %v1399, %v1395
      %v1401 = vrot.slane %v1400, 4
      %v1403 = vshll.u32 %v329, 16
      %v1405 = vrot.slane %v1403, 5
      %v1406 = vsel %vm404, %v1401, %v1405
      %v1407 = vshrl.u32 %v329, 16
      %v1409 = vrot.slane %v1407, 4
      %v1410 = vor.u32 %v1409, %v1405
      %v1411 = vrot.slane %v1410, 4
      %v1413 = vshll.u32 %v330, 16
      %v1415 = vrot.slane %v1413, 5
      %v1416 = vsel %vm404, %v1411, %v1415
      %v1418 = vshrl.u32 %v331, 16
      %v1420 = vrot.slane %v1418, 4
      %v1421 = vshll.u32 %v331, 16
      %v1423 = vrot.slane %v1421, 5
      %v1424 = vor.u32 %v1420, %v1423
      %v1425 = vrot.slane %v1424, 4
      %v1427 = vshll.u32 %v332, 16
      %v1429 = vrot.slane %v1427, 5
      %v1430 = vsel %vm404, %v1425, %v1429
      %v1431 = vshrl.u32 %v332, 16
      %v1433 = vrot.slane %v1431, 4
      %v1434 = vor.u32 %v1433, %v1429
      %v1435 = vrot.slane %v1434, 4
      %v1437 = vshll.u32 %v333, 16
      %v1439 = vrot.slane %v1437, 5
      %v1440 = vsel %vm404, %v1435, %v1439
      %v1441 = vshrl.u32 %v333, 16
      %v1443 = vrot.slane %v1441, 4
      %v1444 = vor.u32 %v1443, %v1439
      %v1445 = vrot.slane %v1444, 4
      %v1447 = vshll.u32 %v334, 16
      %v1449 = vrot.slane %v1447, 5
      %v1450 = vsel %vm404, %v1445, %v1449
      %v1451 = vshrl.u32 %v334, 16
      %v1453 = vrot.slane %v1451, 4
      %v1454 = vor.u32 %v1453, %v1449
      %v1455 = vrot.slane %v1454, 4
      %v1457 = vshll.u32 %v335, 16
      %v1459 = vrot.slane %v1457, 5
      %v1460 = vsel %vm404, %v1455, %v1459
      %v1462 = vshrl.u32 %v336, 16
      %v1464 = vrot.slane %v1462, 4
      %v1465 = vshll.u32 %v336, 16
      %v1467 = vrot.slane %v1465, 5
      %v1468 = vor.u32 %v1464, %v1467
      %v1469 = vrot.slane %v1468, 4
      %v1471 = vshll.u32 %v337, 16
      %v1473 = vrot.slane %v1471, 5
      %v1474 = vsel %vm404, %v1469, %v1473
      %v1475 = vshrl.u32 %v337, 16
      %v1477 = vrot.slane %v1475, 4
      %v1478 = vor.u32 %v1477, %v1473
      %v1479 = vrot.slane %v1478, 4
      %v1481 = vshll.u32 %v338, 16
      %v1483 = vrot.slane %v1481, 5
      %v1484 = vsel %vm404, %v1479, %v1483
      %v1485 = vshrl.u32 %v338, 16
      %v1487 = vrot.slane %v1485, 4
      %v1488 = vor.u32 %v1487, %v1483
      %v1489 = vrot.slane %v1488, 4
      %v1491 = vshll.u32 %v339, 16
      %v1493 = vrot.slane %v1491, 5
      %v1494 = vsel %vm404, %v1489, %v1493
      %v1495 = vshrl.u32 %v339, 16
      %v1497 = vrot.slane %v1495, 4
      %v1498 = vor.u32 %v1497, %v1493
      %v1499 = vrot.slane %v1498, 4
      %v1501 = vshll.u32 %v340, 16
      %v1503 = vrot.slane %v1501, 5
      %v1504 = vsel %vm404, %v1499, %v1503
      %v1506 = vshrl.u32 %v341, 16
      %v1508 = vrot.slane %v1506, 4
      %v1509 = vshll.u32 %v341, 16
      %v1511 = vrot.slane %v1509, 5
      %v1512 = vor.u32 %v1508, %v1511
      %v1513 = vrot.slane %v1512, 4
      %v1515 = vshll.u32 %v342, 16
      %v1517 = vrot.slane %v1515, 5
      %v1518 = vsel %vm404, %v1513, %v1517
      %v1519 = vshrl.u32 %v342, 16
      %v1521 = vrot.slane %v1519, 4
      %v1522 = vor.u32 %v1521, %v1517
      %v1523 = vrot.slane %v1522, 4
      %v1525 = vshll.u32 %v343, 16
      %v1527 = vrot.slane %v1525, 5
      %v1528 = vsel %vm404, %v1523, %v1527
      %v1529 = vshrl.u32 %v343, 16
      %v1531 = vrot.slane %v1529, 4
      %v1532 = vor.u32 %v1531, %v1527
      %v1533 = vrot.slane %v1532, 4
      %v1535 = vshll.u32 %v344, 16
      %v1537 = vrot.slane %v1535, 5
      %v1538 = vsel %vm404, %v1533, %v1537
      %v1539 = vshrl.u32 %v344, 16
      %v1541 = vrot.slane %v1539, 4
      %v1542 = vor.u32 %v1541, %v1537
      %v1543 = vrot.slane %v1542, 4
      %v1545 = vshll.u32 %v345, 16
      %v1547 = vrot.slane %v1545, 5
      %v1548 = vsel %vm404, %v1543, %v1547
      %v1550 = vshrl.u32 %v346, 16
      %v1552 = vrot.slane %v1550, 4
      %v1553 = vshll.u32 %v346, 16
      %v1555 = vrot.slane %v1553, 5
      %v1556 = vor.u32 %v1552, %v1555
      %v1557 = vrot.slane %v1556, 4
      %v1559 = vshll.u32 %v347, 16
      %v1561 = vrot.slane %v1559, 5
      %v1562 = vsel %vm404, %v1557, %v1561
      %v1563 = vshrl.u32 %v347, 16
      %v1565 = vrot.slane %v1563, 4
      %v1566 = vor.u32 %v1565, %v1561
      %v1567 = vrot.slane %v1566, 4
      %v1569 = vshll.u32 %v348, 16
      %v1571 = vrot.slane %v1569, 5
      %v1572 = vsel %vm404, %v1567, %v1571
      %v1573 = vshrl.u32 %v348, 16
      %v1575 = vrot.slane %v1573, 4
      %v1576 = vor.u32 %v1575, %v1571
      %v1577 = vrot.slane %v1576, 4
      %v1579 = vshll.u32 %v349, 16
      %v1581 = vrot.slane %v1579, 5
      %v1582 = vsel %vm404, %v1577, %v1581
      %v1583 = vshrl.u32 %v349, 16
      %v1585 = vrot.slane %v1583, 4
      %v1586 = vor.u32 %v1585, %v1581
      %v1587 = vrot.slane %v1586, 4
      %v1589 = vshll.u32 %v350, 16
      %v1591 = vrot.slane %v1589, 5
      %v1592 = vsel %vm404, %v1587, %v1591
      %v1594 = vshrl.u32 %v351, 16
      %v1596 = vrot.slane %v1594, 4
      %v1597 = vshll.u32 %v351, 16
      %v1599 = vrot.slane %v1597, 5
      %v1600 = vor.u32 %v1596, %v1599
      %v1601 = vrot.slane %v1600, 4
      %v1603 = vshll.u32 %v352, 16
      %v1605 = vrot.slane %v1603, 5
      %v1606 = vsel %vm404, %v1601, %v1605
      %v1607 = vshrl.u32 %v352, 16
      %v1609 = vrot.slane %v1607, 4
      %v1610 = vor.u32 %v1609, %v1605
      %v1611 = vrot.slane %v1610, 4
      %v1613 = vshll.u32 %v353, 16
      %v1615 = vrot.slane %v1613, 5
      %v1616 = vsel %vm404, %v1611, %v1615
      %v1617 = vshrl.u32 %v353, 16
      %v1619 = vrot.slane %v1617, 4
      %v1620 = vor.u32 %v1619, %v1615
      %v1621 = vrot.slane %v1620, 4
      %v1623 = vshll.u32 %v354, 16
      %v1625 = vrot.slane %v1623, 5
      %v1626 = vsel %vm404, %v1621, %v1625
      %v1627 = vshrl.u32 %v354, 16
      %v1629 = vrot.slane %v1627, 4
      %v1630 = vor.u32 %v1629, %v1625
      %v1631 = vrot.slane %v1630, 4
      %v1633 = vshll.u32 %v355, 16
      %v1635 = vrot.slane %v1633, 5
      %v1636 = vsel %vm404, %v1631, %v1635
      %v1638 = vshrl.u32 %v356, 16
      %v1640 = vrot.slane %v1638, 4
      %v1641 = vshll.u32 %v356, 16
      %v1643 = vrot.slane %v1641, 5
      %v1644 = vor.u32 %v1640, %v1643
      %v1645 = vrot.slane %v1644, 4
      %v1647 = vshll.u32 %v357, 16
      %v1649 = vrot.slane %v1647, 5
      %v1650 = vsel %vm404, %v1645, %v1649
      %v1651 = vshrl.u32 %v357, 16
      %v1653 = vrot.slane %v1651, 4
      %v1654 = vor.u32 %v1653, %v1649
      %v1655 = vrot.slane %v1654, 4
      %v1657 = vshll.u32 %v358, 16
      %v1659 = vrot.slane %v1657, 5
      %v1660 = vsel %vm404, %v1655, %v1659
      %v1661 = vshrl.u32 %v358, 16
      %v1663 = vrot.slane %v1661, 4
      %v1664 = vor.u32 %v1663, %v1659
      %v1665 = vrot.slane %v1664, 4
      %v1667 = vshll.u32 %v359, 16
      %v1669 = vrot.slane %v1667, 5
      %v1670 = vsel %vm404, %v1665, %v1669
      %v1671 = vshrl.u32 %v359, 16
      %v1673 = vrot.slane %v1671, 4
      %v1674 = vor.u32 %v1673, %v1669
      %v1675 = vrot.slane %v1674, 4
      %v1677 = vshll.u32 %v360, 16
      %v1679 = vrot.slane %v1677, 5
      %v1680 = vsel %vm404, %v1675, %v1679
      %v1682 = vshrl.u32 %v361, 16
      %v1684 = vrot.slane %v1682, 4
      %v1685 = vshll.u32 %v361, 16
      %v1687 = vrot.slane %v1685, 5
      %v1688 = vor.u32 %v1684, %v1687
      %v1689 = vrot.slane %v1688, 4
      %v1691 = vshll.u32 %v362, 16
      %v1693 = vrot.slane %v1691, 5
      %v1694 = vsel %vm404, %v1689, %v1693
      %v1695 = vshrl.u32 %v362, 16
      %v1697 = vrot.slane %v1695, 4
      %v1698 = vor.u32 %v1697, %v1693
      %v1699 = vrot.slane %v1698, 4
      %v1701 = vshll.u32 %v363, 16
      %v1703 = vrot.slane %v1701, 5
      %v1704 = vsel %vm404, %v1699, %v1703
      %v1705 = vshrl.u32 %v363, 16
      %v1707 = vrot.slane %v1705, 4
      %v1708 = vor.u32 %v1707, %v1703
      %v1709 = vrot.slane %v1708, 4
      %v1711 = vshll.u32 %v364, 16
      %v1713 = vrot.slane %v1711, 5
      %v1714 = vsel %vm404, %v1709, %v1713
      %v1715 = vshrl.u32 %v364, 16
      %v1717 = vrot.slane %v1715, 4
      %v1718 = vor.u32 %v1717, %v1713
      %v1719 = vrot.slane %v1718, 4
      %v1721 = vshll.u32 %v365, 16
      %v1723 = vrot.slane %v1721, 5
      %v1724 = vsel %vm404, %v1719, %v1723
      %v1726 = vshrl.u32 %v366, 16
      %v1728 = vrot.slane %v1726, 4
      %v1729 = vshll.u32 %v366, 16
      %v1731 = vrot.slane %v1729, 5
      %v1732 = vor.u32 %v1728, %v1731
      %v1733 = vrot.slane %v1732, 4
      %v1735 = vshll.u32 %v367, 16
      %v1737 = vrot.slane %v1735, 5
      %v1738 = vsel %vm404, %v1733, %v1737
      %v1739 = vshrl.u32 %v367, 16
      %v1741 = vrot.slane %v1739, 4
      %v1742 = vor.u32 %v1741, %v1737
      %v1743 = vrot.slane %v1742, 4
      %v1745 = vshll.u32 %v368, 16
      %v1747 = vrot.slane %v1745, 5
      %v1748 = vsel %vm404, %v1743, %v1747
      %v1749 = vshrl.u32 %v368, 16
      %v1751 = vrot.slane %v1749, 4
      %v1752 = vor.u32 %v1751, %v1747
      %v1753 = vrot.slane %v1752, 4
      %v1755 = vshll.u32 %v369, 16
      %v1757 = vrot.slane %v1755, 5
      %v1758 = vsel %vm404, %v1753, %v1757
      %v1759 = vshrl.u32 %v369, 16
      %v1761 = vrot.slane %v1759, 4
      %v1762 = vor.u32 %v1761, %v1757
      %v1763 = vrot.slane %v1762, 4
      %v1765 = vshll.u32 %v370, 16
      %v1767 = vrot.slane %v1765, 5
      %v1768 = vsel %vm404, %v1763, %v1767
      %v1770 = vshrl.u32 %v371, 16
      %v1772 = vrot.slane %v1770, 4
      %v1773 = vshll.u32 %v371, 16
      %v1775 = vrot.slane %v1773, 5
      %v1776 = vor.u32 %v1772, %v1775
      %v1777 = vrot.slane %v1776, 4
      %v1779 = vshll.u32 %v372, 16
      %v1781 = vrot.slane %v1779, 5
      %v1782 = vsel %vm404, %v1777, %v1781
      %v1783 = vshrl.u32 %v372, 16
      %v1785 = vrot.slane %v1783, 4
      %v1786 = vor.u32 %v1785, %v1781
      %v1787 = vrot.slane %v1786, 4
      %v1789 = vshll.u32 %v373, 16
      %v1791 = vrot.slane %v1789, 5
      %v1792 = vsel %vm404, %v1787, %v1791
      %v1793 = vshrl.u32 %v373, 16
      %v1795 = vrot.slane %v1793, 4
      %v1796 = vor.u32 %v1795, %v1791
      %v1797 = vrot.slane %v1796, 4
      %v1799 = vshll.u32 %v374, 16
      %v1801 = vrot.slane %v1799, 5
      %v1802 = vsel %vm404, %v1797, %v1801
      %v1803 = vshrl.u32 %v374, 16
      %v1805 = vrot.slane %v1803, 4
      %v1806 = vor.u32 %v1805, %v1801
      %v1807 = vrot.slane %v1806, 4
      %v1809 = vshll.u32 %v375, 16
      %v1811 = vrot.slane %v1809, 5
      %v1812 = vsel %vm404, %v1807, %v1811
      %s1813 = scalar_lea.vmem %s1, 64
      %v1814 = vld [vmem:[%s1813] sm:$0xf]
      %v1815 = vld [vmem:[%s1813 + $0x4] sm:$0xf]
      %v1816 = vld [vmem:[%s1813 + $0x8] sm:$0xf]
      %v1817 = vld [vmem:[%s1813 + $0xc] sm:$0xf]
      %v1818 = vld [vmem:[%s1813 + $0x10] sm:$0xf]
      %v1819 = vld [vmem:[%s1813 + $0x14] sm:$0xf]
      %v1820 = vld [vmem:[%s1813 + $0x18] sm:$0xf]
      %v1821 = vld [vmem:[%s1813 + $0x1c] sm:$0xf]
      %v1822 = vld [vmem:[%s1813 + $0x20] sm:$0xf]
      %v1823 = vld [vmem:[%s1813 + $0x24] sm:$0xf]
      %v1824 = vld [vmem:[%s1813 + $0x28] sm:$0xf]
      %v1825 = vld [vmem:[%s1813 + $0x2c] sm:$0xf]
      %v1826 = vld [vmem:[%s1813 + $0x30] sm:$0xf]
      %v1827 = vld [vmem:[%s1813 + $0x34] sm:$0xf]
      %v1828 = vld [vmem:[%s1813 + $0x38] sm:$0xf]
      %v1829 = vld [vmem:[%s1813 + $0x3c] sm:$0xf]
      %v1830 = vunpack.c.l.b16 %v418
      %v1831 = vunpack.c.l.b16 %v428
      %v1832 = vunpack.c.l.b16 %v438
      %v1833 = vunpack.c.l.b16 %v448
      %v1834 = vunpack.c.l.b16 %v462
      %v1835 = vunpack.c.l.b16 %v472
      %v1836 = vunpack.c.l.b16 %v482
      %v1837 = vunpack.c.l.b16 %v492
      %v1838 = vunpack.c.l.b16 %v506
      %v1839 = vunpack.c.l.b16 %v516
      %v1840 = vunpack.c.l.b16 %v526
      %v1841 = vunpack.c.l.b16 %v536
      %v1842 = vunpack.c.l.b16 %v550
      %v1843 = vunpack.c.l.b16 %v560
      %v1844 = vunpack.c.l.b16 %v570
      %v1845 = vunpack.c.l.b16 %v580
      %v1846 = vunpack.c.l.b16 %v594
      %v1847 = vunpack.c.l.b16 %v604
      %v1848 = vunpack.c.l.b16 %v614
      %v1849 = vunpack.c.l.b16 %v624
      %v1850 = vunpack.c.l.b16 %v638
      %v1851 = vunpack.c.l.b16 %v648
      %v1852 = vunpack.c.l.b16 %v658
      %v1853 = vunpack.c.l.b16 %v668
      %v1854 = vunpack.c.l.b16 %v682
      %v1855 = vunpack.c.l.b16 %v692
      %v1856 = vunpack.c.l.b16 %v702
      %v1857 = vunpack.c.l.b16 %v712
      %v1858 = vunpack.c.l.b16 %v726
      %v1859 = vunpack.c.l.b16 %v736
      %v1860 = vunpack.c.l.b16 %v746
      %v1861 = vunpack.c.l.b16 %v756
      %v1862 = vunpack.c.l.b16 %v770
      %v1863 = vunpack.c.l.b16 %v780
      %v1864 = vunpack.c.l.b16 %v790
      %v1865 = vunpack.c.l.b16 %v800
      %v1866 = vunpack.c.l.b16 %v814
      %v1867 = vunpack.c.l.b16 %v824
      %v1868 = vunpack.c.l.b16 %v834
      %v1869 = vunpack.c.l.b16 %v844
      %v1870 = vunpack.c.l.b16 %v858
      %v1871 = vunpack.c.l.b16 %v868
      %v1872 = vunpack.c.l.b16 %v878
      %v1873 = vunpack.c.l.b16 %v888
      %v1874 = vunpack.c.l.b16 %v902
      %v1875 = vunpack.c.l.b16 %v912
      %v1876 = vunpack.c.l.b16 %v922
      %v1877 = vunpack.c.l.b16 %v932
      %v1878 = vunpack.c.l.b16 %v946
      %v1879 = vunpack.c.l.b16 %v956
      %v1880 = vunpack.c.l.b16 %v966
      %v1881 = vunpack.c.l.b16 %v976
      %v1882 = vunpack.c.l.b16 %v990
      %v1883 = vunpack.c.l.b16 %v1000
      %v1884 = vunpack.c.l.b16 %v1010
      %v1885 = vunpack.c.l.b16 %v1020
      %v1886 = vunpack.c.l.b16 %v1034
      %v1887 = vunpack.c.l.b16 %v1044
      %v1888 = vunpack.c.l.b16 %v1054
      %v1889 = vunpack.c.l.b16 %v1064
      %v1890 = vunpack.c.l.b16 %v1078
      %v1891 = vunpack.c.l.b16 %v1088
      %v1892 = vunpack.c.l.b16 %v1098
      %v1893 = vunpack.c.l.b16 %v1108
      %v1894 = vunpack.c.l.b16 %v1122
      %v1895 = vunpack.c.l.b16 %v1132
      %v1896 = vunpack.c.l.b16 %v1142
      %v1897 = vunpack.c.l.b16 %v1152
      %v1898 = vunpack.c.l.b16 %v1166
      %v1899 = vunpack.c.l.b16 %v1176
      %v1900 = vunpack.c.l.b16 %v1186
      %v1901 = vunpack.c.l.b16 %v1196
      %v1902 = vunpack.c.l.b16 %v1210
      %v1903 = vunpack.c.l.b16 %v1220
      %v1904 = vunpack.c.l.b16 %v1230
      %v1905 = vunpack.c.l.b16 %v1240
      %v1906 = vunpack.c.l.b16 %v1254
      %v1907 = vunpack.c.l.b16 %v1264
      %v1908 = vunpack.c.l.b16 %v1274
      %v1909 = vunpack.c.l.b16 %v1284
      %v1910 = vunpack.c.l.b16 %v1298
      %v1911 = vunpack.c.l.b16 %v1308
      %v1912 = vunpack.c.l.b16 %v1318
      %v1913 = vunpack.c.l.b16 %v1328
      %v1914 = vunpack.c.l.b16 %v1342
      %v1915 = vunpack.c.l.b16 %v1352
      %v1916 = vunpack.c.l.b16 %v1362
      %v1917 = vunpack.c.l.b16 %v1372
      %v1918 = vunpack.c.l.b16 %v1386
      %v1919 = vunpack.c.l.b16 %v1396
      %v1920 = vunpack.c.l.b16 %v1406
      %v1921 = vunpack.c.l.b16 %v1416
      %v1922 = vunpack.c.l.b16 %v1430
      %v1923 = vunpack.c.l.b16 %v1440
      %v1924 = vunpack.c.l.b16 %v1450
      %v1925 = vunpack.c.l.b16 %v1460
      %v1926 = vunpack.c.l.b16 %v1474
      %v1927 = vunpack.c.l.b16 %v1484
      %v1928 = vunpack.c.l.b16 %v1494
      %v1929 = vunpack.c.l.b16 %v1504
      %v1930 = vunpack.c.l.b16 %v1518
      %v1931 = vunpack.c.l.b16 %v1528
      %v1932 = vunpack.c.l.b16 %v1538
      %v1933 = vunpack.c.l.b16 %v1548
      %v1934 = vunpack.c.l.b16 %v1562
      %v1935 = vunpack.c.l.b16 %v1572
      %v1936 = vunpack.c.l.b16 %v1582
      %v1937 = vunpack.c.l.b16 %v1592
      %v1938 = vunpack.c.l.b16 %v1606
      %v1939 = vunpack.c.l.b16 %v1616
      %v1940 = vunpack.c.l.b16 %v1626
      %v1941 = vunpack.c.l.b16 %v1636
      %v1942 = vunpack.c.l.b16 %v1650
      %v1943 = vunpack.c.l.b16 %v1660
      %v1944 = vunpack.c.l.b16 %v1670
      %v1945 = vunpack.c.l.b16 %v1680
      %v1946 = vunpack.c.l.b16 %v1694
      %v1947 = vunpack.c.l.b16 %v1704
      %v1948 = vunpack.c.l.b16 %v1714
      %v1949 = vunpack.c.l.b16 %v1724
      %v1950 = vunpack.c.l.b16 %v1738
      %v1951 = vunpack.c.l.b16 %v1748
      %v1952 = vunpack.c.l.b16 %v1758
      %v1953 = vunpack.c.l.b16 %v1768
      %v1954 = vunpack.c.l.b16 %v1782
      %v1955 = vunpack.c.l.b16 %v1792
      %v1956 = vunpack.c.l.b16 %v1802
      %v1957 = vunpack.c.l.b16 %v1812
      %v1958 = vpack.c.b16 %v1831, %v1830
      %v1959 = vpack.c.b16 %v1833, %v1832
      %v1960 = vpack.c.b16 %v1835, %v1834
      %v1961 = vpack.c.b16 %v1837, %v1836
      %v1962 = vpack.c.b16 %v1839, %v1838
      %v1963 = vpack.c.b16 %v1841, %v1840
      %v1964 = vpack.c.b16 %v1843, %v1842
      %v1965 = vpack.c.b16 %v1845, %v1844
      %v1966 = vpack.c.b16 %v1847, %v1846
      %v1967 = vpack.c.b16 %v1849, %v1848
      %v1968 = vpack.c.b16 %v1851, %v1850
      %v1969 = vpack.c.b16 %v1853, %v1852
      %v1970 = vpack.c.b16 %v1855, %v1854
      %v1971 = vpack.c.b16 %v1857, %v1856
      %v1972 = vpack.c.b16 %v1859, %v1858
      %v1973 = vpack.c.b16 %v1861, %v1860
      %v1974 = vpack.c.b16 %v1863, %v1862
      %v1975 = vpack.c.b16 %v1865, %v1864
      %v1976 = vpack.c.b16 %v1867, %v1866
      %v1977 = vpack.c.b16 %v1869, %v1868
      %v1978 = vpack.c.b16 %v1871, %v1870
      %v1979 = vpack.c.b16 %v1873, %v1872
      %v1980 = vpack.c.b16 %v1875, %v1874
      %v1981 = vpack.c.b16 %v1877, %v1876
      %v1982 = vpack.c.b16 %v1879, %v1878
      %v1983 = vpack.c.b16 %v1881, %v1880
      %v1984 = vpack.c.b16 %v1883, %v1882
      %v1985 = vpack.c.b16 %v1885, %v1884
      %v1986 = vpack.c.b16 %v1887, %v1886
      %v1987 = vpack.c.b16 %v1889, %v1888
      %v1988 = vpack.c.b16 %v1891, %v1890
      %v1989 = vpack.c.b16 %v1893, %v1892
      %v1990 = vpack.c.b16 %v1895, %v1894
      %v1991 = vpack.c.b16 %v1897, %v1896
      %v1992 = vpack.c.b16 %v1899, %v1898
      %v1993 = vpack.c.b16 %v1901, %v1900
      %v1994 = vpack.c.b16 %v1903, %v1902
      %v1995 = vpack.c.b16 %v1905, %v1904
      %v1996 = vpack.c.b16 %v1907, %v1906
      %v1997 = vpack.c.b16 %v1909, %v1908
      %v1998 = vpack.c.b16 %v1911, %v1910
      %v1999 = vpack.c.b16 %v1913, %v1912
      %v2000 = vpack.c.b16 %v1915, %v1914
      %v2001 = vpack.c.b16 %v1917, %v1916
      %v2002 = vpack.c.b16 %v1919, %v1918
      %v2003 = vpack.c.b16 %v1921, %v1920
      %v2004 = vpack.c.b16 %v1923, %v1922
      %v2005 = vpack.c.b16 %v1925, %v1924
      %v2006 = vpack.c.b16 %v1927, %v1926
      %v2007 = vpack.c.b16 %v1929, %v1928
      %v2008 = vpack.c.b16 %v1931, %v1930
      %v2009 = vpack.c.b16 %v1933, %v1932
      %v2010 = vpack.c.b16 %v1935, %v1934
      %v2011 = vpack.c.b16 %v1937, %v1936
      %v2012 = vpack.c.b16 %v1939, %v1938
      %v2013 = vpack.c.b16 %v1941, %v1940
      %v2014 = vpack.c.b16 %v1943, %v1942
      %v2015 = vpack.c.b16 %v1945, %v1944
      %v2016 = vpack.c.b16 %v1947, %v1946
      %v2017 = vpack.c.b16 %v1949, %v1948
      %v2018 = vpack.c.b16 %v1951, %v1950
      %v2019 = vpack.c.b16 %v1953, %v1952
      %v2020 = vpack.c.b16 %v1955, %v1954
      %v2021 = vpack.c.b16 %v1957, %v1956
      %v2102 = vunpack.c.l.b16 %v1814
      %v2103 = vunpack.c.l.b16 %v1815
      %v2104 = vunpack.c.l.b16 %v1816
      %v2105 = vunpack.c.l.b16 %v1817
      %v2106 = vunpack.c.l.b16 %v1818
      %v2107 = vunpack.c.l.b16 %v1819
      %v2108 = vunpack.c.l.b16 %v1820
      %v2109 = vunpack.c.l.b16 %v1821
      %v2110 = vunpack.c.l.b16 %v1822
      %v2111 = vunpack.c.l.b16 %v1823
      %v2112 = vunpack.c.l.b16 %v1824
      %v2113 = vunpack.c.l.b16 %v1825
      %v2114 = vunpack.c.l.b16 %v1826
      %v2115 = vunpack.c.l.b16 %v1827
      %v2116 = vunpack.c.l.b16 %v1828
      %v2117 = vunpack.c.l.b16 %v1829
      %v2118 = vpack.c.b16 %v2103, %v2102
      %v2119 = vpack.c.b16 %v2105, %v2104
      %v2120 = vpack.c.b16 %v2107, %v2106
      %v2121 = vpack.c.b16 %v2109, %v2108
      %v2122 = vpack.c.b16 %v2111, %v2110
      %v2123 = vpack.c.b16 %v2113, %v2112
      %v2124 = vpack.c.b16 %v2115, %v2114
      %v2125 = vpack.c.b16 %v2117, %v2116
      %2134 = vmatprep.subr.bf16.mxu0 0
      %2135 = vmatpush1.bf16.msra.mxu0 %v2125
      %2136 = vmatprep.subr.bf16.mxu0 0
      %2137 = vmatpush1.bf16.msra.mxu0 %v2124
      %2138 = vmatprep.subr.bf16.mxu0 0
      %2139 = vmatpush1.bf16.msra.mxu0 %v2123
      %2140 = vmatprep.subr.bf16.mxu0 0
      %2141 = vmatpush1.bf16.msra.mxu0 %v2122
      %2142 = vmatprep.subr.bf16.mxu0 0
      %2143 = vmatpush1.bf16.msra.mxu0 %v2121
      %2144 = vmatprep.subr.bf16.mxu0 0
      %2145 = vmatpush1.bf16.msra.mxu0 %v2120
      %2146 = vmatprep.subr.bf16.mxu0 0
      %2147 = vmatpush1.bf16.msra.mxu0 %v2119
      %2148 = vmatprep.subr.bf16.mxu0 0
      %2149 = vmatpush1.bf16.msra.mxu0 %v2118
      %2150 = vmatprep.subr.bf16.mxu0 0
      %2151 = vmatpush2.bf16.msra.mxu0 0
      %2152 = vmatprep.subr.bf16.mxu0 0
      %2153 = vmatpush2.bf16.msra.mxu0 0
      %2154 = vmatprep.subr.bf16.mxu0 0
      %2155 = vmatpush2.bf16.msra.mxu0 0
      %2156 = vmatprep.subr.bf16.mxu0 0
      %2157 = vmatpush2.bf16.msra.mxu0 0
      %2158 = vmatprep.subr.bf16.mxu0 0
      %2159 = vmatpush2.bf16.msra.mxu0 0
      %2160 = vmatprep.subr.bf16.mxu0 0
      %2161 = vmatpush2.bf16.msra.mxu0 0
      %2162 = vmatprep.subr.bf16.mxu0 0
      %2163 = vmatpush2.bf16.msra.mxu0 0
      %2164 = vmatprep.subr.bf16.mxu0 0
      %2165 = vmatpush2.bf16.msra.mxu0 0
      %2166 = vmatprep.mubr.bf16.mxu0 0
      %2167 = vmatmul.mubr.bf16.gmra.mxu0 %v1958
      %v2168 = vpop.f32.mrf.mxu0
      %v2169 = vadd.f32 0.0, %v2168
      %v2170 = vpop.f32.mrf.mxu0
      %v2171 = vpop.f32.mrf.mxu0
      %v2172 = vadd.f32 0.0, %v2171
      %v2173 = vpop.f32.mrf.mxu0
      %2174 = vmatprep.mubr.bf16.mxu0 0
      %2175 = vmatmul.mubr.bf16.gmra.mxu0 %v1959
      %v2176 = vpop.f32.mrf.mxu0
      %v2177 = vadd.f32 0.0, %v2176
      %v2178 = vpop.f32.mrf.mxu0
      %v2179 = vpop.f32.mrf.mxu0
      %v2180 = vadd.f32 0.0, %v2179
      %v2181 = vpop.f32.mrf.mxu0
      %2182 = vmatprep.mubr.bf16.mxu0 0
      %2183 = vmatmul.mubr.bf16.gmra.mxu0 %v1960
      %v2184 = vpop.f32.mrf.mxu0
      %v2185 = vadd.f32 0.0, %v2184
      %v2186 = vpop.f32.mrf.mxu0
      %v2187 = vpop.f32.mrf.mxu0
      %v2188 = vadd.f32 0.0, %v2187
      %v2189 = vpop.f32.mrf.mxu0
      %2190 = vmatprep.mubr.bf16.mxu0 0
      %2191 = vmatmul.mubr.bf16.gmra.mxu0 %v1961
      %v2192 = vpop.f32.mrf.mxu0
      %v2193 = vadd.f32 0.0, %v2192
      %v2194 = vpop.f32.mrf.mxu0
      %v2195 = vpop.f32.mrf.mxu0
      %v2196 = vadd.f32 0.0, %v2195
      %v2197 = vpop.f32.mrf.mxu0
      %2198 = vmatprep.mubr.bf16.mxu0 0
      %2199 = vmatmul.mubr.bf16.gmra.mxu0 %v1962
      %v2200 = vpop.f32.mrf.mxu0
      %v2201 = vadd.f32 0.0, %v2200
      %v2202 = vpop.f32.mrf.mxu0
      %v2203 = vpop.f32.mrf.mxu0
      %v2204 = vadd.f32 0.0, %v2203
      %v2205 = vpop.f32.mrf.mxu0
      %2206 = vmatprep.mubr.bf16.mxu0 0
      %2207 = vmatmul.mubr.bf16.gmra.mxu0 %v1963
      %v2208 = vpop.f32.mrf.mxu0
      %v2209 = vadd.f32 0.0, %v2208
      %v2210 = vpop.f32.mrf.mxu0
      %v2211 = vpop.f32.mrf.mxu0
      %v2212 = vadd.f32 0.0, %v2211
      %v2213 = vpop.f32.mrf.mxu0
      %2214 = vmatprep.mubr.bf16.mxu0 0
      %2215 = vmatmul.mubr.bf16.gmra.mxu0 %v1964
      %v2216 = vpop.f32.mrf.mxu0
      %v2217 = vadd.f32 0.0, %v2216
      %v2218 = vpop.f32.mrf.mxu0
      %v2219 = vpop.f32.mrf.mxu0
      %v2220 = vadd.f32 0.0, %v2219
      %v2221 = vpop.f32.mrf.mxu0
      %2222 = vmatprep.mubr.bf16.mxu0 0
      %2223 = vmatmul.mubr.bf16.gmra.mxu0 %v1965
      %v2224 = vpop.f32.mrf.mxu0
      %v2225 = vadd.f32 0.0, %v2224
      %v2226 = vpop.f32.mrf.mxu0
      %v2227 = vpop.f32.mrf.mxu0
      %v2228 = vadd.f32 0.0, %v2227
      %v2229 = vpop.f32.mrf.mxu0
      %2230 = vmatprep.mubr.bf16.mxu0 0
      %2231 = vmatmul.mubr.bf16.gmra.mxu0 %v1966
      %v2232 = vpop.f32.mrf.mxu0
      %v2233 = vadd.f32 0.0, %v2232
      %v2234 = vpop.f32.mrf.mxu0
      %v2235 = vpop.f32.mrf.mxu0
      %v2236 = vadd.f32 0.0, %v2235
      %v2237 = vpop.f32.mrf.mxu0
      %2238 = vmatprep.mubr.bf16.mxu0 0
      %2239 = vmatmul.mubr.bf16.gmra.mxu0 %v1967
      %v2240 = vpop.f32.mrf.mxu0
      %v2241 = vadd.f32 0.0, %v2240
      %v2242 = vpop.f32.mrf.mxu0
      %v2243 = vpop.f32.mrf.mxu0
      %v2244 = vadd.f32 0.0, %v2243
      %v2245 = vpop.f32.mrf.mxu0
      %2246 = vmatprep.mubr.bf16.mxu0 0
      %2247 = vmatmul.mubr.bf16.gmra.mxu0 %v1968
      %v2248 = vpop.f32.mrf.mxu0
      %v2249 = vadd.f32 0.0, %v2248
      %v2250 = vpop.f32.mrf.mxu0
      %v2251 = vpop.f32.mrf.mxu0
      %v2252 = vadd.f32 0.0, %v2251
      %v2253 = vpop.f32.mrf.mxu0
      %2254 = vmatprep.mubr.bf16.mxu0 0
      %2255 = vmatmul.mubr.bf16.gmra.mxu0 %v1969
      %v2256 = vpop.f32.mrf.mxu0
      %v2257 = vadd.f32 0.0, %v2256
      %v2258 = vpop.f32.mrf.mxu0
      %v2259 = vpop.f32.mrf.mxu0
      %v2260 = vadd.f32 0.0, %v2259
      %v2261 = vpop.f32.mrf.mxu0
      %2262 = vmatprep.mubr.bf16.mxu0 0
      %2263 = vmatmul.mubr.bf16.gmra.mxu0 %v1970
      %v2264 = vpop.f32.mrf.mxu0
      %v2265 = vadd.f32 0.0, %v2264
      %v2266 = vpop.f32.mrf.mxu0
      %v2267 = vpop.f32.mrf.mxu0
      %v2268 = vadd.f32 0.0, %v2267
      %v2269 = vpop.f32.mrf.mxu0
      %2270 = vmatprep.mubr.bf16.mxu0 0
      %2271 = vmatmul.mubr.bf16.gmra.mxu0 %v1971
      %v2272 = vpop.f32.mrf.mxu0
      %v2273 = vadd.f32 0.0, %v2272
      %v2274 = vpop.f32.mrf.mxu0
      %v2275 = vpop.f32.mrf.mxu0
      %v2276 = vadd.f32 0.0, %v2275
      %v2277 = vpop.f32.mrf.mxu0
      %2278 = vmatprep.mubr.bf16.mxu0 0
      %2279 = vmatmul.mubr.bf16.gmra.mxu0 %v1972
      %v2280 = vpop.f32.mrf.mxu0
      %v2281 = vadd.f32 0.0, %v2280
      %v2282 = vpop.f32.mrf.mxu0
      %v2283 = vpop.f32.mrf.mxu0
      %v2284 = vadd.f32 0.0, %v2283
      %v2285 = vpop.f32.mrf.mxu0
      %2286 = vmatprep.mubr.bf16.mxu0 0
      %2287 = vmatmul.mubr.bf16.gmra.mxu0 %v1973
      %v2288 = vpop.f32.mrf.mxu0
      %v2289 = vadd.f32 0.0, %v2288
      %v2290 = vpop.f32.mrf.mxu0
      %v2291 = vpop.f32.mrf.mxu0
      %v2292 = vadd.f32 0.0, %v2291
      %v2293 = vpop.f32.mrf.mxu0
      %2294 = vmatprep.mubr.bf16.mxu0 0
      %2295 = vmatmul.mubr.bf16.gmra.mxu0 %v1974
      %v2296 = vpop.f32.mrf.mxu0
      %v2297 = vadd.f32 0.0, %v2296
      %v2298 = vpop.f32.mrf.mxu0
      %v2299 = vpop.f32.mrf.mxu0
      %v2300 = vadd.f32 0.0, %v2299
      %v2301 = vpop.f32.mrf.mxu0
      %2302 = vmatprep.mubr.bf16.mxu0 0
      %2303 = vmatmul.mubr.bf16.gmra.mxu0 %v1975
      %v2304 = vpop.f32.mrf.mxu0
      %v2305 = vadd.f32 0.0, %v2304
      %v2306 = vpop.f32.mrf.mxu0
      %v2307 = vpop.f32.mrf.mxu0
      %v2308 = vadd.f32 0.0, %v2307
      %v2309 = vpop.f32.mrf.mxu0
      %2310 = vmatprep.mubr.bf16.mxu0 0
      %2311 = vmatmul.mubr.bf16.gmra.mxu0 %v1976
      %v2312 = vpop.f32.mrf.mxu0
      %v2313 = vadd.f32 0.0, %v2312
      %v2314 = vpop.f32.mrf.mxu0
      %v2315 = vpop.f32.mrf.mxu0
      %v2316 = vadd.f32 0.0, %v2315
      %v2317 = vpop.f32.mrf.mxu0
      %2318 = vmatprep.mubr.bf16.mxu0 0
      %2319 = vmatmul.mubr.bf16.gmra.mxu0 %v1977
      %v2320 = vpop.f32.mrf.mxu0
      %v2321 = vadd.f32 0.0, %v2320
      %v2322 = vpop.f32.mrf.mxu0
      %v2323 = vpop.f32.mrf.mxu0
      %v2324 = vadd.f32 0.0, %v2323
      %v2325 = vpop.f32.mrf.mxu0
      %2326 = vmatprep.mubr.bf16.mxu0 0
      %2327 = vmatmul.mubr.bf16.gmra.mxu0 %v1978
      %v2328 = vpop.f32.mrf.mxu0
      %v2329 = vadd.f32 0.0, %v2328
      %v2330 = vpop.f32.mrf.mxu0
      %v2331 = vpop.f32.mrf.mxu0
      %v2332 = vadd.f32 0.0, %v2331
      %v2333 = vpop.f32.mrf.mxu0
      %2334 = vmatprep.mubr.bf16.mxu0 0
      %2335 = vmatmul.mubr.bf16.gmra.mxu0 %v1979
      %v2336 = vpop.f32.mrf.mxu0
      %v2337 = vadd.f32 0.0, %v2336
      %v2338 = vpop.f32.mrf.mxu0
      %v2339 = vpop.f32.mrf.mxu0
      %v2340 = vadd.f32 0.0, %v2339
      %v2341 = vpop.f32.mrf.mxu0
      %2342 = vmatprep.mubr.bf16.mxu0 0
      %2343 = vmatmul.mubr.bf16.gmra.mxu0 %v1980
      %v2344 = vpop.f32.mrf.mxu0
      %v2345 = vadd.f32 0.0, %v2344
      %v2346 = vpop.f32.mrf.mxu0
      %v2347 = vpop.f32.mrf.mxu0
      %v2348 = vadd.f32 0.0, %v2347
      %v2349 = vpop.f32.mrf.mxu0
      %2350 = vmatprep.mubr.bf16.mxu0 0
      %2351 = vmatmul.mubr.bf16.gmra.mxu0 %v1981
      %v2352 = vpop.f32.mrf.mxu0
      %v2353 = vadd.f32 0.0, %v2352
      %v2354 = vpop.f32.mrf.mxu0
      %v2355 = vpop.f32.mrf.mxu0
      %v2356 = vadd.f32 0.0, %v2355
      %v2357 = vpop.f32.mrf.mxu0
      %2358 = vmatprep.mubr.bf16.mxu0 0
      %2359 = vmatmul.mubr.bf16.gmra.mxu0 %v1982
      %v2360 = vpop.f32.mrf.mxu0
      %v2361 = vadd.f32 0.0, %v2360
      %v2362 = vpop.f32.mrf.mxu0
      %v2363 = vpop.f32.mrf.mxu0
      %v2364 = vadd.f32 0.0, %v2363
      %v2365 = vpop.f32.mrf.mxu0
      %2366 = vmatprep.mubr.bf16.mxu0 0
      %2367 = vmatmul.mubr.bf16.gmra.mxu0 %v1983
      %v2368 = vpop.f32.mrf.mxu0
      %v2369 = vadd.f32 0.0, %v2368
      %v2370 = vpop.f32.mrf.mxu0
      %v2371 = vpop.f32.mrf.mxu0
      %v2372 = vadd.f32 0.0, %v2371
      %v2373 = vpop.f32.mrf.mxu0
      %2374 = vmatprep.mubr.bf16.mxu0 0
      %2375 = vmatmul.mubr.bf16.gmra.mxu0 %v1984
      %v2376 = vpop.f32.mrf.mxu0
      %v2377 = vadd.f32 0.0, %v2376
      %v2378 = vpop.f32.mrf.mxu0
      %v2379 = vpop.f32.mrf.mxu0
      %v2380 = vadd.f32 0.0, %v2379
      %v2381 = vpop.f32.mrf.mxu0
      %2382 = vmatprep.mubr.bf16.mxu0 0
      %2383 = vmatmul.mubr.bf16.gmra.mxu0 %v1985
      %v2384 = vpop.f32.mrf.mxu0
      %v2385 = vadd.f32 0.0, %v2384
      %v2386 = vpop.f32.mrf.mxu0
      %v2387 = vpop.f32.mrf.mxu0
      %v2388 = vadd.f32 0.0, %v2387
      %v2389 = vpop.f32.mrf.mxu0
      %2390 = vmatprep.mubr.bf16.mxu0 0
      %2391 = vmatmul.mubr.bf16.gmra.mxu0 %v1986
      %v2392 = vpop.f32.mrf.mxu0
      %v2393 = vadd.f32 0.0, %v2392
      %v2394 = vpop.f32.mrf.mxu0
      %v2395 = vpop.f32.mrf.mxu0
      %v2396 = vadd.f32 0.0, %v2395
      %v2397 = vpop.f32.mrf.mxu0
      %2398 = vmatprep.mubr.bf16.mxu0 0
      %2399 = vmatmul.mubr.bf16.gmra.mxu0 %v1987
      %v2400 = vpop.f32.mrf.mxu0
      %v2401 = vadd.f32 0.0, %v2400
      %v2402 = vpop.f32.mrf.mxu0
      %v2403 = vpop.f32.mrf.mxu0
      %v2404 = vadd.f32 0.0, %v2403
      %v2405 = vpop.f32.mrf.mxu0
      %2406 = vmatprep.mubr.bf16.mxu0 0
      %2407 = vmatmul.mubr.bf16.gmra.mxu0 %v1988
      %v2408 = vpop.f32.mrf.mxu0
      %v2409 = vadd.f32 0.0, %v2408
      %v2410 = vpop.f32.mrf.mxu0
      %v2411 = vpop.f32.mrf.mxu0
      %v2412 = vadd.f32 0.0, %v2411
      %v2413 = vpop.f32.mrf.mxu0
      %2414 = vmatprep.mubr.bf16.mxu0 0
      %2415 = vmatmul.mubr.bf16.gmra.mxu0 %v1989
      %v2416 = vpop.f32.mrf.mxu0
      %v2417 = vadd.f32 0.0, %v2416
      %v2418 = vpop.f32.mrf.mxu0
      %v2419 = vpop.f32.mrf.mxu0
      %v2420 = vadd.f32 0.0, %v2419
      %v2421 = vpop.f32.mrf.mxu0
      %2422 = vmatprep.mubr.bf16.mxu0 0
      %2423 = vmatmul.mubr.bf16.gmra.mxu0 %v1990
      %v2424 = vpop.f32.mrf.mxu0
      %v2425 = vadd.f32 0.0, %v2424
      %v2426 = vpop.f32.mrf.mxu0
      %v2427 = vpop.f32.mrf.mxu0
      %v2428 = vadd.f32 0.0, %v2427
      %v2429 = vpop.f32.mrf.mxu0
      %2430 = vmatprep.mubr.bf16.mxu0 0
      %2431 = vmatmul.mubr.bf16.gmra.mxu0 %v1991
      %v2432 = vpop.f32.mrf.mxu0
      %v2433 = vadd.f32 0.0, %v2432
      %v2434 = vpop.f32.mrf.mxu0
      %v2435 = vpop.f32.mrf.mxu0
      %v2436 = vadd.f32 0.0, %v2435
      %v2437 = vpop.f32.mrf.mxu0
      %2438 = vmatprep.mubr.bf16.mxu0 0
      %2439 = vmatmul.mubr.bf16.gmra.mxu0 %v1992
      %v2440 = vpop.f32.mrf.mxu0
      %v2441 = vadd.f32 0.0, %v2440
      %v2442 = vpop.f32.mrf.mxu0
      %v2443 = vpop.f32.mrf.mxu0
      %v2444 = vadd.f32 0.0, %v2443
      %v2445 = vpop.f32.mrf.mxu0
      %2446 = vmatprep.mubr.bf16.mxu0 0
      %2447 = vmatmul.mubr.bf16.gmra.mxu0 %v1993
      %v2448 = vpop.f32.mrf.mxu0
      %v2449 = vadd.f32 0.0, %v2448
      %v2450 = vpop.f32.mrf.mxu0
      %v2451 = vpop.f32.mrf.mxu0
      %v2452 = vadd.f32 0.0, %v2451
      %v2453 = vpop.f32.mrf.mxu0
      %2454 = vmatprep.mubr.bf16.mxu0 0
      %2455 = vmatmul.mubr.bf16.gmra.mxu0 %v1994
      %v2456 = vpop.f32.mrf.mxu0
      %v2457 = vadd.f32 0.0, %v2456
      %v2458 = vpop.f32.mrf.mxu0
      %v2459 = vpop.f32.mrf.mxu0
      %v2460 = vadd.f32 0.0, %v2459
      %v2461 = vpop.f32.mrf.mxu0
      %2462 = vmatprep.mubr.bf16.mxu0 0
      %2463 = vmatmul.mubr.bf16.gmra.mxu0 %v1995
      %v2464 = vpop.f32.mrf.mxu0
      %v2465 = vadd.f32 0.0, %v2464
      %v2466 = vpop.f32.mrf.mxu0
      %v2467 = vpop.f32.mrf.mxu0
      %v2468 = vadd.f32 0.0, %v2467
      %v2469 = vpop.f32.mrf.mxu0
      %2470 = vmatprep.mubr.bf16.mxu0 0
      %2471 = vmatmul.mubr.bf16.gmra.mxu0 %v1996
      %v2472 = vpop.f32.mrf.mxu0
      %v2473 = vadd.f32 0.0, %v2472
      %v2474 = vpop.f32.mrf.mxu0
      %v2475 = vpop.f32.mrf.mxu0
      %v2476 = vadd.f32 0.0, %v2475
      %v2477 = vpop.f32.mrf.mxu0
      %2478 = vmatprep.mubr.bf16.mxu0 0
      %2479 = vmatmul.mubr.bf16.gmra.mxu0 %v1997
      %v2480 = vpop.f32.mrf.mxu0
      %v2481 = vadd.f32 0.0, %v2480
      %v2482 = vpop.f32.mrf.mxu0
      %v2483 = vpop.f32.mrf.mxu0
      %v2484 = vadd.f32 0.0, %v2483
      %v2485 = vpop.f32.mrf.mxu0
      %2486 = vmatprep.mubr.bf16.mxu0 0
      %2487 = vmatmul.mubr.bf16.gmra.mxu0 %v1998
      %v2488 = vpop.f32.mrf.mxu0
      %v2489 = vadd.f32 0.0, %v2488
      %v2490 = vpop.f32.mrf.mxu0
      %v2491 = vpop.f32.mrf.mxu0
      %v2492 = vadd.f32 0.0, %v2491
      %v2493 = vpop.f32.mrf.mxu0
      %2494 = vmatprep.mubr.bf16.mxu0 0
      %2495 = vmatmul.mubr.bf16.gmra.mxu0 %v1999
      %v2496 = vpop.f32.mrf.mxu0
      %v2497 = vadd.f32 0.0, %v2496
      %v2498 = vpop.f32.mrf.mxu0
      %v2499 = vpop.f32.mrf.mxu0
      %v2500 = vadd.f32 0.0, %v2499
      %v2501 = vpop.f32.mrf.mxu0
      %2502 = vmatprep.mubr.bf16.mxu0 0
      %2503 = vmatmul.mubr.bf16.gmra.mxu0 %v2000
      %v2504 = vpop.f32.mrf.mxu0
      %v2505 = vadd.f32 0.0, %v2504
      %v2506 = vpop.f32.mrf.mxu0
      %v2507 = vpop.f32.mrf.mxu0
      %v2508 = vadd.f32 0.0, %v2507
      %v2509 = vpop.f32.mrf.mxu0
      %2510 = vmatprep.mubr.bf16.mxu0 0
      %2511 = vmatmul.mubr.bf16.gmra.mxu0 %v2001
      %v2512 = vpop.f32.mrf.mxu0
      %v2513 = vadd.f32 0.0, %v2512
      %v2514 = vpop.f32.mrf.mxu0
      %v2515 = vpop.f32.mrf.mxu0
      %v2516 = vadd.f32 0.0, %v2515
      %v2517 = vpop.f32.mrf.mxu0
      %2518 = vmatprep.mubr.bf16.mxu0 0
      %2519 = vmatmul.mubr.bf16.gmra.mxu0 %v2002
      %v2520 = vpop.f32.mrf.mxu0
      %v2521 = vadd.f32 0.0, %v2520
      %v2522 = vpop.f32.mrf.mxu0
      %v2523 = vpop.f32.mrf.mxu0
      %v2524 = vadd.f32 0.0, %v2523
      %v2525 = vpop.f32.mrf.mxu0
      %2526 = vmatprep.mubr.bf16.mxu0 0
      %2527 = vmatmul.mubr.bf16.gmra.mxu0 %v2003
      %v2528 = vpop.f32.mrf.mxu0
      %v2529 = vadd.f32 0.0, %v2528
      %v2530 = vpop.f32.mrf.mxu0
      %v2531 = vpop.f32.mrf.mxu0
      %v2532 = vadd.f32 0.0, %v2531
      %v2533 = vpop.f32.mrf.mxu0
      %2534 = vmatprep.mubr.bf16.mxu0 0
      %2535 = vmatmul.mubr.bf16.gmra.mxu0 %v2004
      %v2536 = vpop.f32.mrf.mxu0
      %v2537 = vadd.f32 0.0, %v2536
      %v2538 = vpop.f32.mrf.mxu0
      %v2539 = vpop.f32.mrf.mxu0
      %v2540 = vadd.f32 0.0, %v2539
      %v2541 = vpop.f32.mrf.mxu0
      %2542 = vmatprep.mubr.bf16.mxu0 0
      %2543 = vmatmul.mubr.bf16.gmra.mxu0 %v2005
      %v2544 = vpop.f32.mrf.mxu0
      %v2545 = vadd.f32 0.0, %v2544
      %v2546 = vpop.f32.mrf.mxu0
      %v2547 = vpop.f32.mrf.mxu0
      %v2548 = vadd.f32 0.0, %v2547
      %v2549 = vpop.f32.mrf.mxu0
      %2550 = vmatprep.mubr.bf16.mxu0 0
      %2551 = vmatmul.mubr.bf16.gmra.mxu0 %v2006
      %v2552 = vpop.f32.mrf.mxu0
      %v2553 = vadd.f32 0.0, %v2552
      %v2554 = vpop.f32.mrf.mxu0
      %v2555 = vpop.f32.mrf.mxu0
      %v2556 = vadd.f32 0.0, %v2555
      %v2557 = vpop.f32.mrf.mxu0
      %2558 = vmatprep.mubr.bf16.mxu0 0
      %2559 = vmatmul.mubr.bf16.gmra.mxu0 %v2007
      %v2560 = vpop.f32.mrf.mxu0
      %v2561 = vadd.f32 0.0, %v2560
      %v2562 = vpop.f32.mrf.mxu0
      %v2563 = vpop.f32.mrf.mxu0
      %v2564 = vadd.f32 0.0, %v2563
      %v2565 = vpop.f32.mrf.mxu0
      %2566 = vmatprep.mubr.bf16.mxu0 0
      %2567 = vmatmul.mubr.bf16.gmra.mxu0 %v2008
      %v2568 = vpop.f32.mrf.mxu0
      %v2569 = vadd.f32 0.0, %v2568
      %v2570 = vpop.f32.mrf.mxu0
      %v2571 = vpop.f32.mrf.mxu0
      %v2572 = vadd.f32 0.0, %v2571
      %v2573 = vpop.f32.mrf.mxu0
      %2574 = vmatprep.mubr.bf16.mxu0 0
      %2575 = vmatmul.mubr.bf16.gmra.mxu0 %v2009
      %v2576 = vpop.f32.mrf.mxu0
      %v2577 = vadd.f32 0.0, %v2576
      %v2578 = vpop.f32.mrf.mxu0
      %v2579 = vpop.f32.mrf.mxu0
      %v2580 = vadd.f32 0.0, %v2579
      %v2581 = vpop.f32.mrf.mxu0
      %2582 = vmatprep.mubr.bf16.mxu0 0
      %2583 = vmatmul.mubr.bf16.gmra.mxu0 %v2010
      %v2584 = vpop.f32.mrf.mxu0
      %v2585 = vadd.f32 0.0, %v2584
      %v2586 = vpop.f32.mrf.mxu0
      %v2587 = vpop.f32.mrf.mxu0
      %v2588 = vadd.f32 0.0, %v2587
      %v2589 = vpop.f32.mrf.mxu0
      %2590 = vmatprep.mubr.bf16.mxu0 0
      %2591 = vmatmul.mubr.bf16.gmra.mxu0 %v2011
      %v2592 = vpop.f32.mrf.mxu0
      %v2593 = vadd.f32 0.0, %v2592
      %v2594 = vpop.f32.mrf.mxu0
      %v2595 = vpop.f32.mrf.mxu0
      %v2596 = vadd.f32 0.0, %v2595
      %v2597 = vpop.f32.mrf.mxu0
      %2598 = vmatprep.mubr.bf16.mxu0 0
      %2599 = vmatmul.mubr.bf16.gmra.mxu0 %v2012
      %v2600 = vpop.f32.mrf.mxu0
      %v2601 = vadd.f32 0.0, %v2600
      %v2602 = vpop.f32.mrf.mxu0
      %v2603 = vpop.f32.mrf.mxu0
      %v2604 = vadd.f32 0.0, %v2603
      %v2605 = vpop.f32.mrf.mxu0
      %2606 = vmatprep.mubr.bf16.mxu0 0
      %2607 = vmatmul.mubr.bf16.gmra.mxu0 %v2013
      %v2608 = vpop.f32.mrf.mxu0
      %v2609 = vadd.f32 0.0, %v2608
      %v2610 = vpop.f32.mrf.mxu0
      %v2611 = vpop.f32.mrf.mxu0
      %v2612 = vadd.f32 0.0, %v2611
      %v2613 = vpop.f32.mrf.mxu0
      %2614 = vmatprep.mubr.bf16.mxu0 0
      %2615 = vmatmul.mubr.bf16.gmra.mxu0 %v2014
      %v2616 = vpop.f32.mrf.mxu0
      %v2617 = vadd.f32 0.0, %v2616
      %v2618 = vpop.f32.mrf.mxu0
      %v2619 = vpop.f32.mrf.mxu0
      %v2620 = vadd.f32 0.0, %v2619
      %v2621 = vpop.f32.mrf.mxu0
      %2622 = vmatprep.mubr.bf16.mxu0 0
      %2623 = vmatmul.mubr.bf16.gmra.mxu0 %v2015
      %v2624 = vpop.f32.mrf.mxu0
      %v2625 = vadd.f32 0.0, %v2624
      %v2626 = vpop.f32.mrf.mxu0
      %v2627 = vpop.f32.mrf.mxu0
      %v2628 = vadd.f32 0.0, %v2627
      %v2629 = vpop.f32.mrf.mxu0
      %2630 = vmatprep.mubr.bf16.mxu0 0
      %2631 = vmatmul.mubr.bf16.gmra.mxu0 %v2016
      %v2632 = vpop.f32.mrf.mxu0
      %v2633 = vadd.f32 0.0, %v2632
      %v2634 = vpop.f32.mrf.mxu0
      %v2635 = vpop.f32.mrf.mxu0
      %v2636 = vadd.f32 0.0, %v2635
      %v2637 = vpop.f32.mrf.mxu0
      %2638 = vmatprep.mubr.bf16.mxu0 0
      %2639 = vmatmul.mubr.bf16.gmra.mxu0 %v2017
      %v2640 = vpop.f32.mrf.mxu0
      %v2641 = vadd.f32 0.0, %v2640
      %v2642 = vpop.f32.mrf.mxu0
      %v2643 = vpop.f32.mrf.mxu0
      %v2644 = vadd.f32 0.0, %v2643
      %v2645 = vpop.f32.mrf.mxu0
      %2646 = vmatprep.mubr.bf16.mxu0 0
      %2647 = vmatmul.mubr.bf16.gmra.mxu0 %v2018
      %v2648 = vpop.f32.mrf.mxu0
      %v2649 = vadd.f32 0.0, %v2648
      %v2650 = vpop.f32.mrf.mxu0
      %v2651 = vpop.f32.mrf.mxu0
      %v2652 = vadd.f32 0.0, %v2651
      %v2653 = vpop.f32.mrf.mxu0
      %2654 = vmatprep.mubr.bf16.mxu0 0
      %2655 = vmatmul.mubr.bf16.gmra.mxu0 %v2019
      %v2656 = vpop.f32.mrf.mxu0
      %v2657 = vadd.f32 0.0, %v2656
      %v2658 = vpop.f32.mrf.mxu0
      %v2659 = vpop.f32.mrf.mxu0
      %v2660 = vadd.f32 0.0, %v2659
      %v2661 = vpop.f32.mrf.mxu0
      %2662 = vmatprep.mubr.bf16.mxu0 0
      %2663 = vmatmul.mubr.bf16.gmra.mxu0 %v2020
      %v2664 = vpop.f32.mrf.mxu0
      %v2665 = vadd.f32 0.0, %v2664
      %v2666 = vpop.f32.mrf.mxu0
      %v2667 = vpop.f32.mrf.mxu0
      %v2668 = vadd.f32 0.0, %v2667
      %v2669 = vpop.f32.mrf.mxu0
      %2670 = vmatprep.mubr.bf16.mxu0 0
      %2671 = vmatmul.mubr.bf16.gmra.mxu0 %v2021
      %v2672 = vpop.f32.mrf.mxu0
      %v2673 = vadd.f32 0.0, %v2672
      %v2674 = vpop.f32.mrf.mxu0
      %v2675 = vpop.f32.mrf.mxu0
      %v2676 = vadd.f32 0.0, %v2675
      %v2677 = vpop.f32.mrf.mxu0
      %2678 = vdwg.mxu0
      %v2807 = vunpack.c.l.b16 %v216
      %v2808 = vunpack.c.l.b16 %v217
      %v2809 = vunpack.c.l.b16 %v218
      %v2810 = vunpack.c.l.b16 %v219
      %v2811 = vunpack.c.l.b16 %v221
      %v2812 = vunpack.c.l.b16 %v222
      %v2813 = vunpack.c.l.b16 %v223
      %v2814 = vunpack.c.l.b16 %v224
      %v2815 = vunpack.c.l.b16 %v226
      %v2816 = vunpack.c.l.b16 %v227
      %v2817 = vunpack.c.l.b16 %v228
      %v2818 = vunpack.c.l.b16 %v229
      %v2819 = vunpack.c.l.b16 %v231
      %v2820 = vunpack.c.l.b16 %v232
      %v2821 = vunpack.c.l.b16 %v233
      %v2822 = vunpack.c.l.b16 %v234
      %v2823 = vunpack.c.l.b16 %v236
      %v2824 = vunpack.c.l.b16 %v237
      %v2825 = vunpack.c.l.b16 %v238
      %v2826 = vunpack.c.l.b16 %v239
      %v2827 = vunpack.c.l.b16 %v241
      %v2828 = vunpack.c.l.b16 %v242
      %v2829 = vunpack.c.l.b16 %v243
      %v2830 = vunpack.c.l.b16 %v244
      %v2831 = vunpack.c.l.b16 %v246
      %v2832 = vunpack.c.l.b16 %v247
      %v2833 = vunpack.c.l.b16 %v248
      %v2834 = vunpack.c.l.b16 %v249
      %v2835 = vunpack.c.l.b16 %v251
      %v2836 = vunpack.c.l.b16 %v252
      %v2837 = vunpack.c.l.b16 %v253
      %v2838 = vunpack.c.l.b16 %v254
      %v2839 = vunpack.c.l.b16 %v256
      %v2840 = vunpack.c.l.b16 %v257
      %v2841 = vunpack.c.l.b16 %v258
      %v2842 = vunpack.c.l.b16 %v259
      %v2843 = vunpack.c.l.b16 %v261
      %v2844 = vunpack.c.l.b16 %v262
      %v2845 = vunpack.c.l.b16 %v263
      %v2846 = vunpack.c.l.b16 %v264
      %v2847 = vunpack.c.l.b16 %v266
      %v2848 = vunpack.c.l.b16 %v267
      %v2849 = vunpack.c.l.b16 %v268
      %v2850 = vunpack.c.l.b16 %v269
      %v2851 = vunpack.c.l.b16 %v271
      %v2852 = vunpack.c.l.b16 %v272
      %v2853 = vunpack.c.l.b16 %v273
      %v2854 = vunpack.c.l.b16 %v274
      %v2855 = vunpack.c.l.b16 %v276
      %v2856 = vunpack.c.l.b16 %v277
      %v2857 = vunpack.c.l.b16 %v278
      %v2858 = vunpack.c.l.b16 %v279
      %v2859 = vunpack.c.l.b16 %v281
      %v2860 = vunpack.c.l.b16 %v282
      %v2861 = vunpack.c.l.b16 %v283
      %v2862 = vunpack.c.l.b16 %v284
      %v2863 = vunpack.c.l.b16 %v286
      %v2864 = vunpack.c.l.b16 %v287
      %v2865 = vunpack.c.l.b16 %v288
      %v2866 = vunpack.c.l.b16 %v289
      %v2867 = vunpack.c.l.b16 %v291
      %v2868 = vunpack.c.l.b16 %v292
      %v2869 = vunpack.c.l.b16 %v293
      %v2870 = vunpack.c.l.b16 %v294
      %v2871 = vunpack.c.l.b16 %v296
      %v2872 = vunpack.c.l.b16 %v297
      %v2873 = vunpack.c.l.b16 %v298
      %v2874 = vunpack.c.l.b16 %v299
      %v2875 = vunpack.c.l.b16 %v301
      %v2876 = vunpack.c.l.b16 %v302
      %v2877 = vunpack.c.l.b16 %v303
      %v2878 = vunpack.c.l.b16 %v304
      %v2879 = vunpack.c.l.b16 %v306
      %v2880 = vunpack.c.l.b16 %v307
      %v2881 = vunpack.c.l.b16 %v308
      %v2882 = vunpack.c.l.b16 %v309
      %v2883 = vunpack.c.l.b16 %v311
      %v2884 = vunpack.c.l.b16 %v312
      %v2885 = vunpack.c.l.b16 %v313
      %v2886 = vunpack.c.l.b16 %v314
      %v2887 = vunpack.c.l.b16 %v316
      %v2888 = vunpack.c.l.b16 %v317
      %v2889 = vunpack.c.l.b16 %v318
      %v2890 = vunpack.c.l.b16 %v319
      %v2891 = vunpack.c.l.b16 %v321
      %v2892 = vunpack.c.l.b16 %v322
      %v2893 = vunpack.c.l.b16 %v323
      %v2894 = vunpack.c.l.b16 %v324
      %v2895 = vunpack.c.l.b16 %v326
      %v2896 = vunpack.c.l.b16 %v327
      %v2897 = vunpack.c.l.b16 %v328
      %v2898 = vunpack.c.l.b16 %v329
      %v2899 = vunpack.c.l.b16 %v331
      %v2900 = vunpack.c.l.b16 %v332
      %v2901 = vunpack.c.l.b16 %v333
      %v2902 = vunpack.c.l.b16 %v334
      %v2903 = vunpack.c.l.b16 %v336
      %v2904 = vunpack.c.l.b16 %v337
      %v2905 = vunpack.c.l.b16 %v338
      %v2906 = vunpack.c.l.b16 %v339
      %v2907 = vunpack.c.l.b16 %v341
      %v2908 = vunpack.c.l.b16 %v342
      %v2909 = vunpack.c.l.b16 %v343
      %v2910 = vunpack.c.l.b16 %v344
      %v2911 = vunpack.c.l.b16 %v346
      %v2912 = vunpack.c.l.b16 %v347
      %v2913 = vunpack.c.l.b16 %v348
      %v2914 = vunpack.c.l.b16 %v349
      %v2915 = vunpack.c.l.b16 %v351
      %v2916 = vunpack.c.l.b16 %v352
      %v2917 = vunpack.c.l.b16 %v353
      %v2918 = vunpack.c.l.b16 %v354
      %v2919 = vunpack.c.l.b16 %v356
      %v2920 = vunpack.c.l.b16 %v357
      %v2921 = vunpack.c.l.b16 %v358
      %v2922 = vunpack.c.l.b16 %v359
      %v2923 = vunpack.c.l.b16 %v361
      %v2924 = vunpack.c.l.b16 %v362
      %v2925 = vunpack.c.l.b16 %v363
      %v2926 = vunpack.c.l.b16 %v364
      %v2927 = vunpack.c.l.b16 %v366
      %v2928 = vunpack.c.l.b16 %v367
      %v2929 = vunpack.c.l.b16 %v368
      %v2930 = vunpack.c.l.b16 %v369
      %v2931 = vunpack.c.l.b16 %v371
      %v2932 = vunpack.c.l.b16 %v372
      %v2933 = vunpack.c.l.b16 %v373
      %v2934 = vunpack.c.l.b16 %v374
      %v2935 = vpack.c.b16 %v2808, %v2807
      %v2936 = vpack.c.b16 %v2810, %v2809
      %v2937 = vpack.c.b16 %v2812, %v2811
      %v2938 = vpack.c.b16 %v2814, %v2813
      %v2939 = vpack.c.b16 %v2816, %v2815
      %v2940 = vpack.c.b16 %v2818, %v2817
      %v2941 = vpack.c.b16 %v2820, %v2819
      %v2942 = vpack.c.b16 %v2822, %v2821
      %v2943 = vpack.c.b16 %v2824, %v2823
      %v2944 = vpack.c.b16 %v2826, %v2825
      %v2945 = vpack.c.b16 %v2828, %v2827
      %v2946 = vpack.c.b16 %v2830, %v2829
      %v2947 = vpack.c.b16 %v2832, %v2831
      %v2948 = vpack.c.b16 %v2834, %v2833
      %v2949 = vpack.c.b16 %v2836, %v2835
      %v2950 = vpack.c.b16 %v2838, %v2837
      %v2951 = vpack.c.b16 %v2840, %v2839
      %v2952 = vpack.c.b16 %v2842, %v2841
      %v2953 = vpack.c.b16 %v2844, %v2843
      %v2954 = vpack.c.b16 %v2846, %v2845
      %v2955 = vpack.c.b16 %v2848, %v2847
      %v2956 = vpack.c.b16 %v2850, %v2849
      %v2957 = vpack.c.b16 %v2852, %v2851
      %v2958 = vpack.c.b16 %v2854, %v2853
      %v2959 = vpack.c.b16 %v2856, %v2855
      %v2960 = vpack.c.b16 %v2858, %v2857
      %v2961 = vpack.c.b16 %v2860, %v2859
      %v2962 = vpack.c.b16 %v2862, %v2861
      %v2963 = vpack.c.b16 %v2864, %v2863
      %v2964 = vpack.c.b16 %v2866, %v2865
      %v2965 = vpack.c.b16 %v2868, %v2867
      %v2966 = vpack.c.b16 %v2870, %v2869
      %v2967 = vpack.c.b16 %v2872, %v2871
      %v2968 = vpack.c.b16 %v2874, %v2873
      %v2969 = vpack.c.b16 %v2876, %v2875
      %v2970 = vpack.c.b16 %v2878, %v2877
      %v2971 = vpack.c.b16 %v2880, %v2879
      %v2972 = vpack.c.b16 %v2882, %v2881
      %v2973 = vpack.c.b16 %v2884, %v2883
      %v2974 = vpack.c.b16 %v2886, %v2885
      %v2975 = vpack.c.b16 %v2888, %v2887
      %v2976 = vpack.c.b16 %v2890, %v2889
      %v2977 = vpack.c.b16 %v2892, %v2891
      %v2978 = vpack.c.b16 %v2894, %v2893
      %v2979 = vpack.c.b16 %v2896, %v2895
      %v2980 = vpack.c.b16 %v2898, %v2897
      %v2981 = vpack.c.b16 %v2900, %v2899
      %v2982 = vpack.c.b16 %v2902, %v2901
      %v2983 = vpack.c.b16 %v2904, %v2903
      %v2984 = vpack.c.b16 %v2906, %v2905
      %v2985 = vpack.c.b16 %v2908, %v2907
      %v2986 = vpack.c.b16 %v2910, %v2909
      %v2987 = vpack.c.b16 %v2912, %v2911
      %v2988 = vpack.c.b16 %v2914, %v2913
      %v2989 = vpack.c.b16 %v2916, %v2915
      %v2990 = vpack.c.b16 %v2918, %v2917
      %v2991 = vpack.c.b16 %v2920, %v2919
      %v2992 = vpack.c.b16 %v2922, %v2921
      %v2993 = vpack.c.b16 %v2924, %v2923
      %v2994 = vpack.c.b16 %v2926, %v2925
      %v2995 = vpack.c.b16 %v2928, %v2927
      %v2996 = vpack.c.b16 %v2930, %v2929
      %v2997 = vpack.c.b16 %v2932, %v2931
      %v2998 = vpack.c.b16 %v2934, %v2933
      %v3079 = vunpack.c.l.b16 %v386
      %v3080 = vunpack.c.l.b16 %v387
      %v3081 = vunpack.c.l.b16 %v388
      %v3082 = vunpack.c.l.b16 %v389
      %v3083 = vunpack.c.l.b16 %v390
      %v3084 = vunpack.c.l.b16 %v391
      %v3085 = vunpack.c.l.b16 %v392
      %v3086 = vunpack.c.l.b16 %v393
      %v3087 = vunpack.c.l.b16 %v394
      %v3088 = vunpack.c.l.b16 %v395
      %v3089 = vunpack.c.l.b16 %v396
      %v3090 = vunpack.c.l.b16 %v397
      %v3091 = vunpack.c.l.b16 %v398
      %v3092 = vunpack.c.l.b16 %v399
      %v3093 = vunpack.c.l.b16 %v400
      %v3094 = vunpack.c.l.b16 %v401
      %v3095 = vpack.c.b16 %v3080, %v3079
      %v3096 = vpack.c.b16 %v3082, %v3081
      %v3097 = vpack.c.b16 %v3084, %v3083
      %v3098 = vpack.c.b16 %v3086, %v3085
      %v3099 = vpack.c.b16 %v3088, %v3087
      %v3100 = vpack.c.b16 %v3090, %v3089
      %v3101 = vpack.c.b16 %v3092, %v3091
      %v3102 = vpack.c.b16 %v3094, %v3093
      %3111 = vmatprep.subr.bf16.mxu0 0
      %3112 = vmatpush1.bf16.msra.mxu0 %v3102
      %3113 = vmatprep.subr.bf16.mxu0 0
      %3114 = vmatpush1.bf16.msra.mxu0 %v3101
      %3115 = vmatprep.subr.bf16.mxu0 0
      %3116 = vmatpush1.bf16.msra.mxu0 %v3100
      %3117 = vmatprep.subr.bf16.mxu0 0
      %3118 = vmatpush1.bf16.msra.mxu0 %v3099
      %3119 = vmatprep.subr.bf16.mxu0 0
      %3120 = vmatpush1.bf16.msra.mxu0 %v3098
      %3121 = vmatprep.subr.bf16.mxu0 0
      %3122 = vmatpush1.bf16.msra.mxu0 %v3097
      %3123 = vmatprep.subr.bf16.mxu0 0
      %3124 = vmatpush1.bf16.msra.mxu0 %v3096
      %3125 = vmatprep.subr.bf16.mxu0 0
      %3126 = vmatpush1.bf16.msra.mxu0 %v3095
      %3127 = vmatprep.subr.bf16.mxu0 0
      %3128 = vmatpush2.bf16.msra.mxu0 0
      %3129 = vmatprep.subr.bf16.mxu0 0
      %3130 = vmatpush2.bf16.msra.mxu0 0
      %3131 = vmatprep.subr.bf16.mxu0 0
      %3132 = vmatpush2.bf16.msra.mxu0 0
      %3133 = vmatprep.subr.bf16.mxu0 0
      %3134 = vmatpush2.bf16.msra.mxu0 0
      %3135 = vmatprep.subr.bf16.mxu0 0
      %3136 = vmatpush2.bf16.msra.mxu0 0
      %3137 = vmatprep.subr.bf16.mxu0 0
      %3138 = vmatpush2.bf16.msra.mxu0 0
      %3139 = vmatprep.subr.bf16.mxu0 0
      %3140 = vmatpush2.bf16.msra.mxu0 0
      %3141 = vmatprep.subr.bf16.mxu0 0
      %3142 = vmatpush2.bf16.msra.mxu0 0
      %3143 = vmatprep.mubr.bf16.mxu0 0
      %3144 = vmatmul.mubr.bf16.gmra.mxu0 %v2935
      %v3145 = vpop.f32.mrf.mxu0
      %v3146 = vadd.f32 %v2169, %v3145
      %v3147 = vpop.f32.mrf.mxu0
      %v3148 = vpop.f32.mrf.mxu0
      %v3149 = vadd.f32 %v2172, %v3148
      %v3150 = vpop.f32.mrf.mxu0
      %3151 = vmatprep.mubr.bf16.mxu0 0
      %3152 = vmatmul.mubr.bf16.gmra.mxu0 %v2936
      %v3153 = vpop.f32.mrf.mxu0
      %v3154 = vadd.f32 %v2177, %v3153
      %v3155 = vpop.f32.mrf.mxu0
      %v3156 = vpop.f32.mrf.mxu0
      %v3157 = vadd.f32 %v2180, %v3156
      %v3158 = vpop.f32.mrf.mxu0
      %3159 = vmatprep.mubr.bf16.mxu0 0
      %3160 = vmatmul.mubr.bf16.gmra.mxu0 %v2937
      %v3161 = vpop.f32.mrf.mxu0
      %v3162 = vadd.f32 %v2185, %v3161
      %v3163 = vpop.f32.mrf.mxu0
      %v3164 = vpop.f32.mrf.mxu0
      %v3165 = vadd.f32 %v2188, %v3164
      %v3166 = vpop.f32.mrf.mxu0
      %3167 = vmatprep.mubr.bf16.mxu0 0
      %3168 = vmatmul.mubr.bf16.gmra.mxu0 %v2938
      %v3169 = vpop.f32.mrf.mxu0
      %v3170 = vadd.f32 %v2193, %v3169
      %v3171 = vpop.f32.mrf.mxu0
      %v3172 = vpop.f32.mrf.mxu0
      %v3173 = vadd.f32 %v2196, %v3172
      %v3174 = vpop.f32.mrf.mxu0
      %3175 = vmatprep.mubr.bf16.mxu0 0
      %3176 = vmatmul.mubr.bf16.gmra.mxu0 %v2939
      %v3177 = vpop.f32.mrf.mxu0
      %v3178 = vadd.f32 %v2201, %v3177
      %v3179 = vpop.f32.mrf.mxu0
      %v3180 = vpop.f32.mrf.mxu0
      %v3181 = vadd.f32 %v2204, %v3180
      %v3182 = vpop.f32.mrf.mxu0
      %3183 = vmatprep.mubr.bf16.mxu0 0
      %3184 = vmatmul.mubr.bf16.gmra.mxu0 %v2940
      %v3185 = vpop.f32.mrf.mxu0
      %v3186 = vadd.f32 %v2209, %v3185
      %v3187 = vpop.f32.mrf.mxu0
      %v3188 = vpop.f32.mrf.mxu0
      %v3189 = vadd.f32 %v2212, %v3188
      %v3190 = vpop.f32.mrf.mxu0
      %3191 = vmatprep.mubr.bf16.mxu0 0
      %3192 = vmatmul.mubr.bf16.gmra.mxu0 %v2941
      %v3193 = vpop.f32.mrf.mxu0
      %v3194 = vadd.f32 %v2217, %v3193
      %v3195 = vpop.f32.mrf.mxu0
      %v3196 = vpop.f32.mrf.mxu0
      %v3197 = vadd.f32 %v2220, %v3196
      %v3198 = vpop.f32.mrf.mxu0
      %3199 = vmatprep.mubr.bf16.mxu0 0
      %3200 = vmatmul.mubr.bf16.gmra.mxu0 %v2942
      %v3201 = vpop.f32.mrf.mxu0
      %v3202 = vadd.f32 %v2225, %v3201
      %v3203 = vpop.f32.mrf.mxu0
      %v3204 = vpop.f32.mrf.mxu0
      %v3205 = vadd.f32 %v2228, %v3204
      %v3206 = vpop.f32.mrf.mxu0
      %3207 = vmatprep.mubr.bf16.mxu0 0
      %3208 = vmatmul.mubr.bf16.gmra.mxu0 %v2943
      %v3209 = vpop.f32.mrf.mxu0
      %v3210 = vadd.f32 %v2233, %v3209
      %v3211 = vpop.f32.mrf.mxu0
      %v3212 = vpop.f32.mrf.mxu0
      %v3213 = vadd.f32 %v2236, %v3212
      %v3214 = vpop.f32.mrf.mxu0
      %3215 = vmatprep.mubr.bf16.mxu0 0
      %3216 = vmatmul.mubr.bf16.gmra.mxu0 %v2944
      %v3217 = vpop.f32.mrf.mxu0
      %v3218 = vadd.f32 %v2241, %v3217
      %v3219 = vpop.f32.mrf.mxu0
      %v3220 = vpop.f32.mrf.mxu0
      %v3221 = vadd.f32 %v2244, %v3220
      %v3222 = vpop.f32.mrf.mxu0
      %3223 = vmatprep.mubr.bf16.mxu0 0
      %3224 = vmatmul.mubr.bf16.gmra.mxu0 %v2945
      %v3225 = vpop.f32.mrf.mxu0
      %v3226 = vadd.f32 %v2249, %v3225
      %v3227 = vpop.f32.mrf.mxu0
      %v3228 = vpop.f32.mrf.mxu0
      %v3229 = vadd.f32 %v2252, %v3228
      %v3230 = vpop.f32.mrf.mxu0
      %3231 = vmatprep.mubr.bf16.mxu0 0
      %3232 = vmatmul.mubr.bf16.gmra.mxu0 %v2946
      %v3233 = vpop.f32.mrf.mxu0
      %v3234 = vadd.f32 %v2257, %v3233
      %v3235 = vpop.f32.mrf.mxu0
      %v3236 = vpop.f32.mrf.mxu0
      %v3237 = vadd.f32 %v2260, %v3236
      %v3238 = vpop.f32.mrf.mxu0
      %3239 = vmatprep.mubr.bf16.mxu0 0
      %3240 = vmatmul.mubr.bf16.gmra.mxu0 %v2947
      %v3241 = vpop.f32.mrf.mxu0
      %v3242 = vadd.f32 %v2265, %v3241
      %v3243 = vpop.f32.mrf.mxu0
      %v3244 = vpop.f32.mrf.mxu0
      %v3245 = vadd.f32 %v2268, %v3244
      %v3246 = vpop.f32.mrf.mxu0
      %3247 = vmatprep.mubr.bf16.mxu0 0
      %3248 = vmatmul.mubr.bf16.gmra.mxu0 %v2948
      %v3249 = vpop.f32.mrf.mxu0
      %v3250 = vadd.f32 %v2273, %v3249
      %v3251 = vpop.f32.mrf.mxu0
      %v3252 = vpop.f32.mrf.mxu0
      %v3253 = vadd.f32 %v2276, %v3252
      %v3254 = vpop.f32.mrf.mxu0
      %3255 = vmatprep.mubr.bf16.mxu0 0
      %3256 = vmatmul.mubr.bf16.gmra.mxu0 %v2949
      %v3257 = vpop.f32.mrf.mxu0
      %v3258 = vadd.f32 %v2281, %v3257
      %v3259 = vpop.f32.mrf.mxu0
      %v3260 = vpop.f32.mrf.mxu0
      %v3261 = vadd.f32 %v2284, %v3260
      %v3262 = vpop.f32.mrf.mxu0
      %3263 = vmatprep.mubr.bf16.mxu0 0
      %3264 = vmatmul.mubr.bf16.gmra.mxu0 %v2950
      %v3265 = vpop.f32.mrf.mxu0
      %v3266 = vadd.f32 %v2289, %v3265
      %v3267 = vpop.f32.mrf.mxu0
      %v3268 = vpop.f32.mrf.mxu0
      %v3269 = vadd.f32 %v2292, %v3268
      %v3270 = vpop.f32.mrf.mxu0
      %3271 = vmatprep.mubr.bf16.mxu0 0
      %3272 = vmatmul.mubr.bf16.gmra.mxu0 %v2951
      %v3273 = vpop.f32.mrf.mxu0
      %v3274 = vadd.f32 %v2297, %v3273
      %v3275 = vpop.f32.mrf.mxu0
      %v3276 = vpop.f32.mrf.mxu0
      %v3277 = vadd.f32 %v2300, %v3276
      %v3278 = vpop.f32.mrf.mxu0
      %3279 = vmatprep.mubr.bf16.mxu0 0
      %3280 = vmatmul.mubr.bf16.gmra.mxu0 %v2952
      %v3281 = vpop.f32.mrf.mxu0
      %v3282 = vadd.f32 %v2305, %v3281
      %v3283 = vpop.f32.mrf.mxu0
      %v3284 = vpop.f32.mrf.mxu0
      %v3285 = vadd.f32 %v2308, %v3284
      %v3286 = vpop.f32.mrf.mxu0
      %3287 = vmatprep.mubr.bf16.mxu0 0
      %3288 = vmatmul.mubr.bf16.gmra.mxu0 %v2953
      %v3289 = vpop.f32.mrf.mxu0
      %v3290 = vadd.f32 %v2313, %v3289
      %v3291 = vpop.f32.mrf.mxu0
      %v3292 = vpop.f32.mrf.mxu0
      %v3293 = vadd.f32 %v2316, %v3292
      %v3294 = vpop.f32.mrf.mxu0
      %3295 = vmatprep.mubr.bf16.mxu0 0
      %3296 = vmatmul.mubr.bf16.gmra.mxu0 %v2954
      %v3297 = vpop.f32.mrf.mxu0
      %v3298 = vadd.f32 %v2321, %v3297
      %v3299 = vpop.f32.mrf.mxu0
      %v3300 = vpop.f32.mrf.mxu0
      %v3301 = vadd.f32 %v2324, %v3300
      %v3302 = vpop.f32.mrf.mxu0
      %3303 = vmatprep.mubr.bf16.mxu0 0
      %3304 = vmatmul.mubr.bf16.gmra.mxu0 %v2955
      %v3305 = vpop.f32.mrf.mxu0
      %v3306 = vadd.f32 %v2329, %v3305
      %v3307 = vpop.f32.mrf.mxu0
      %v3308 = vpop.f32.mrf.mxu0
      %v3309 = vadd.f32 %v2332, %v3308
      %v3310 = vpop.f32.mrf.mxu0
      %3311 = vmatprep.mubr.bf16.mxu0 0
      %3312 = vmatmul.mubr.bf16.gmra.mxu0 %v2956
      %v3313 = vpop.f32.mrf.mxu0
      %v3314 = vadd.f32 %v2337, %v3313
      %v3315 = vpop.f32.mrf.mxu0
      %v3316 = vpop.f32.mrf.mxu0
      %v3317 = vadd.f32 %v2340, %v3316
      %v3318 = vpop.f32.mrf.mxu0
      %3319 = vmatprep.mubr.bf16.mxu0 0
      %3320 = vmatmul.mubr.bf16.gmra.mxu0 %v2957
      %v3321 = vpop.f32.mrf.mxu0
      %v3322 = vadd.f32 %v2345, %v3321
      %v3323 = vpop.f32.mrf.mxu0
      %v3324 = vpop.f32.mrf.mxu0
      %v3325 = vadd.f32 %v2348, %v3324
      %v3326 = vpop.f32.mrf.mxu0
      %3327 = vmatprep.mubr.bf16.mxu0 0
      %3328 = vmatmul.mubr.bf16.gmra.mxu0 %v2958
      %v3329 = vpop.f32.mrf.mxu0
      %v3330 = vadd.f32 %v2353, %v3329
      %v3331 = vpop.f32.mrf.mxu0
      %v3332 = vpop.f32.mrf.mxu0
      %v3333 = vadd.f32 %v2356, %v3332
      %v3334 = vpop.f32.mrf.mxu0
      %3335 = vmatprep.mubr.bf16.mxu0 0
      %3336 = vmatmul.mubr.bf16.gmra.mxu0 %v2959
      %v3337 = vpop.f32.mrf.mxu0
      %v3338 = vadd.f32 %v2361, %v3337
      %v3339 = vpop.f32.mrf.mxu0
      %v3340 = vpop.f32.mrf.mxu0
      %v3341 = vadd.f32 %v2364, %v3340
      %v3342 = vpop.f32.mrf.mxu0
      %3343 = vmatprep.mubr.bf16.mxu0 0
      %3344 = vmatmul.mubr.bf16.gmra.mxu0 %v2960
      %v3345 = vpop.f32.mrf.mxu0
      %v3346 = vadd.f32 %v2369, %v3345
      %v3347 = vpop.f32.mrf.mxu0
      %v3348 = vpop.f32.mrf.mxu0
      %v3349 = vadd.f32 %v2372, %v3348
      %v3350 = vpop.f32.mrf.mxu0
      %3351 = vmatprep.mubr.bf16.mxu0 0
      %3352 = vmatmul.mubr.bf16.gmra.mxu0 %v2961
      %v3353 = vpop.f32.mrf.mxu0
      %v3354 = vadd.f32 %v2377, %v3353
      %v3355 = vpop.f32.mrf.mxu0
      %v3356 = vpop.f32.mrf.mxu0
      %v3357 = vadd.f32 %v2380, %v3356
      %v3358 = vpop.f32.mrf.mxu0
      %3359 = vmatprep.mubr.bf16.mxu0 0
      %3360 = vmatmul.mubr.bf16.gmra.mxu0 %v2962
      %v3361 = vpop.f32.mrf.mxu0
      %v3362 = vadd.f32 %v2385, %v3361
      %v3363 = vpop.f32.mrf.mxu0
      %v3364 = vpop.f32.mrf.mxu0
      %v3365 = vadd.f32 %v2388, %v3364
      %v3366 = vpop.f32.mrf.mxu0
      %3367 = vmatprep.mubr.bf16.mxu0 0
      %3368 = vmatmul.mubr.bf16.gmra.mxu0 %v2963
      %v3369 = vpop.f32.mrf.mxu0
      %v3370 = vadd.f32 %v2393, %v3369
      %v3371 = vpop.f32.mrf.mxu0
      %v3372 = vpop.f32.mrf.mxu0
      %v3373 = vadd.f32 %v2396, %v3372
      %v3374 = vpop.f32.mrf.mxu0
      %3375 = vmatprep.mubr.bf16.mxu0 0
      %3376 = vmatmul.mubr.bf16.gmra.mxu0 %v2964
      %v3377 = vpop.f32.mrf.mxu0
      %v3378 = vadd.f32 %v2401, %v3377
      %v3379 = vpop.f32.mrf.mxu0
      %v3380 = vpop.f32.mrf.mxu0
      %v3381 = vadd.f32 %v2404, %v3380
      %v3382 = vpop.f32.mrf.mxu0
      %3383 = vmatprep.mubr.bf16.mxu0 0
      %3384 = vmatmul.mubr.bf16.gmra.mxu0 %v2965
      %v3385 = vpop.f32.mrf.mxu0
      %v3386 = vadd.f32 %v2409, %v3385
      %v3387 = vpop.f32.mrf.mxu0
      %v3388 = vpop.f32.mrf.mxu0
      %v3389 = vadd.f32 %v2412, %v3388
      %v3390 = vpop.f32.mrf.mxu0
      %3391 = vmatprep.mubr.bf16.mxu0 0
      %3392 = vmatmul.mubr.bf16.gmra.mxu0 %v2966
      %v3393 = vpop.f32.mrf.mxu0
      %v3394 = vadd.f32 %v2417, %v3393
      %v3395 = vpop.f32.mrf.mxu0
      %v3396 = vpop.f32.mrf.mxu0
      %v3397 = vadd.f32 %v2420, %v3396
      %v3398 = vpop.f32.mrf.mxu0
      %3399 = vmatprep.mubr.bf16.mxu0 0
      %3400 = vmatmul.mubr.bf16.gmra.mxu0 %v2967
      %v3401 = vpop.f32.mrf.mxu0
      %v3402 = vadd.f32 %v2425, %v3401
      %v3403 = vpop.f32.mrf.mxu0
      %v3404 = vpop.f32.mrf.mxu0
      %v3405 = vadd.f32 %v2428, %v3404
      %v3406 = vpop.f32.mrf.mxu0
      %3407 = vmatprep.mubr.bf16.mxu0 0
      %3408 = vmatmul.mubr.bf16.gmra.mxu0 %v2968
      %v3409 = vpop.f32.mrf.mxu0
      %v3410 = vadd.f32 %v2433, %v3409
      %v3411 = vpop.f32.mrf.mxu0
      %v3412 = vpop.f32.mrf.mxu0
      %v3413 = vadd.f32 %v2436, %v3412
      %v3414 = vpop.f32.mrf.mxu0
      %3415 = vmatprep.mubr.bf16.mxu0 0
      %3416 = vmatmul.mubr.bf16.gmra.mxu0 %v2969
      %v3417 = vpop.f32.mrf.mxu0
      %v3418 = vadd.f32 %v2441, %v3417
      %v3419 = vpop.f32.mrf.mxu0
      %v3420 = vpop.f32.mrf.mxu0
      %v3421 = vadd.f32 %v2444, %v3420
      %v3422 = vpop.f32.mrf.mxu0
      %3423 = vmatprep.mubr.bf16.mxu0 0
      %3424 = vmatmul.mubr.bf16.gmra.mxu0 %v2970
      %v3425 = vpop.f32.mrf.mxu0
      %v3426 = vadd.f32 %v2449, %v3425
      %v3427 = vpop.f32.mrf.mxu0
      %v3428 = vpop.f32.mrf.mxu0
      %v3429 = vadd.f32 %v2452, %v3428
      %v3430 = vpop.f32.mrf.mxu0
      %3431 = vmatprep.mubr.bf16.mxu0 0
      %3432 = vmatmul.mubr.bf16.gmra.mxu0 %v2971
      %v3433 = vpop.f32.mrf.mxu0
      %v3434 = vadd.f32 %v2457, %v3433
      %v3435 = vpop.f32.mrf.mxu0
      %v3436 = vpop.f32.mrf.mxu0
      %v3437 = vadd.f32 %v2460, %v3436
      %v3438 = vpop.f32.mrf.mxu0
      %3439 = vmatprep.mubr.bf16.mxu0 0
      %3440 = vmatmul.mubr.bf16.gmra.mxu0 %v2972
      %v3441 = vpop.f32.mrf.mxu0
      %v3442 = vadd.f32 %v2465, %v3441
      %v3443 = vpop.f32.mrf.mxu0
      %v3444 = vpop.f32.mrf.mxu0
      %v3445 = vadd.f32 %v2468, %v3444
      %v3446 = vpop.f32.mrf.mxu0
      %3447 = vmatprep.mubr.bf16.mxu0 0
      %3448 = vmatmul.mubr.bf16.gmra.mxu0 %v2973
      %v3449 = vpop.f32.mrf.mxu0
      %v3450 = vadd.f32 %v2473, %v3449
      %v3451 = vpop.f32.mrf.mxu0
      %v3452 = vpop.f32.mrf.mxu0
      %v3453 = vadd.f32 %v2476, %v3452
      %v3454 = vpop.f32.mrf.mxu0
      %3455 = vmatprep.mubr.bf16.mxu0 0
      %3456 = vmatmul.mubr.bf16.gmra.mxu0 %v2974
      %v3457 = vpop.f32.mrf.mxu0
      %v3458 = vadd.f32 %v2481, %v3457
      %v3459 = vpop.f32.mrf.mxu0
      %v3460 = vpop.f32.mrf.mxu0
      %v3461 = vadd.f32 %v2484, %v3460
      %v3462 = vpop.f32.mrf.mxu0
      %3463 = vmatprep.mubr.bf16.mxu0 0
      %3464 = vmatmul.mubr.bf16.gmra.mxu0 %v2975
      %v3465 = vpop.f32.mrf.mxu0
      %v3466 = vadd.f32 %v2489, %v3465
      %v3467 = vpop.f32.mrf.mxu0
      %v3468 = vpop.f32.mrf.mxu0
      %v3469 = vadd.f32 %v2492, %v3468
      %v3470 = vpop.f32.mrf.mxu0
      %3471 = vmatprep.mubr.bf16.mxu0 0
      %3472 = vmatmul.mubr.bf16.gmra.mxu0 %v2976
      %v3473 = vpop.f32.mrf.mxu0
      %v3474 = vadd.f32 %v2497, %v3473
      %v3475 = vpop.f32.mrf.mxu0
      %v3476 = vpop.f32.mrf.mxu0
      %v3477 = vadd.f32 %v2500, %v3476
      %v3478 = vpop.f32.mrf.mxu0
      %3479 = vmatprep.mubr.bf16.mxu0 0
      %3480 = vmatmul.mubr.bf16.gmra.mxu0 %v2977
      %v3481 = vpop.f32.mrf.mxu0
      %v3482 = vadd.f32 %v2505, %v3481
      %v3483 = vpop.f32.mrf.mxu0
      %v3484 = vpop.f32.mrf.mxu0
      %v3485 = vadd.f32 %v2508, %v3484
      %v3486 = vpop.f32.mrf.mxu0
      %3487 = vmatprep.mubr.bf16.mxu0 0
      %3488 = vmatmul.mubr.bf16.gmra.mxu0 %v2978
      %v3489 = vpop.f32.mrf.mxu0
      %v3490 = vadd.f32 %v2513, %v3489
      %v3491 = vpop.f32.mrf.mxu0
      %v3492 = vpop.f32.mrf.mxu0
      %v3493 = vadd.f32 %v2516, %v3492
      %v3494 = vpop.f32.mrf.mxu0
      %3495 = vmatprep.mubr.bf16.mxu0 0
      %3496 = vmatmul.mubr.bf16.gmra.mxu0 %v2979
      %v3497 = vpop.f32.mrf.mxu0
      %v3498 = vadd.f32 %v2521, %v3497
      %v3499 = vpop.f32.mrf.mxu0
      %v3500 = vpop.f32.mrf.mxu0
      %v3501 = vadd.f32 %v2524, %v3500
      %v3502 = vpop.f32.mrf.mxu0
      %3503 = vmatprep.mubr.bf16.mxu0 0
      %3504 = vmatmul.mubr.bf16.gmra.mxu0 %v2980
      %v3505 = vpop.f32.mrf.mxu0
      %v3506 = vadd.f32 %v2529, %v3505
      %v3507 = vpop.f32.mrf.mxu0
      %v3508 = vpop.f32.mrf.mxu0
      %v3509 = vadd.f32 %v2532, %v3508
      %v3510 = vpop.f32.mrf.mxu0
      %3511 = vmatprep.mubr.bf16.mxu0 0
      %3512 = vmatmul.mubr.bf16.gmra.mxu0 %v2981
      %v3513 = vpop.f32.mrf.mxu0
      %v3514 = vadd.f32 %v2537, %v3513
      %v3515 = vpop.f32.mrf.mxu0
      %v3516 = vpop.f32.mrf.mxu0
      %v3517 = vadd.f32 %v2540, %v3516
      %v3518 = vpop.f32.mrf.mxu0
      %3519 = vmatprep.mubr.bf16.mxu0 0
      %3520 = vmatmul.mubr.bf16.gmra.mxu0 %v2982
      %v3521 = vpop.f32.mrf.mxu0
      %v3522 = vadd.f32 %v2545, %v3521
      %v3523 = vpop.f32.mrf.mxu0
      %v3524 = vpop.f32.mrf.mxu0
      %v3525 = vadd.f32 %v2548, %v3524
      %v3526 = vpop.f32.mrf.mxu0
      %3527 = vmatprep.mubr.bf16.mxu0 0
      %3528 = vmatmul.mubr.bf16.gmra.mxu0 %v2983
      %v3529 = vpop.f32.mrf.mxu0
      %v3530 = vadd.f32 %v2553, %v3529
      %v3531 = vpop.f32.mrf.mxu0
      %v3532 = vpop.f32.mrf.mxu0
      %v3533 = vadd.f32 %v2556, %v3532
      %v3534 = vpop.f32.mrf.mxu0
      %3535 = vmatprep.mubr.bf16.mxu0 0
      %3536 = vmatmul.mubr.bf16.gmra.mxu0 %v2984
      %v3537 = vpop.f32.mrf.mxu0
      %v3538 = vadd.f32 %v2561, %v3537
      %v3539 = vpop.f32.mrf.mxu0
      %v3540 = vpop.f32.mrf.mxu0
      %v3541 = vadd.f32 %v2564, %v3540
      %v3542 = vpop.f32.mrf.mxu0
      %3543 = vmatprep.mubr.bf16.mxu0 0
      %3544 = vmatmul.mubr.bf16.gmra.mxu0 %v2985
      %v3545 = vpop.f32.mrf.mxu0
      %v3546 = vadd.f32 %v2569, %v3545
      %v3547 = vpop.f32.mrf.mxu0
      %v3548 = vpop.f32.mrf.mxu0
      %v3549 = vadd.f32 %v2572, %v3548
      %v3550 = vpop.f32.mrf.mxu0
      %3551 = vmatprep.mubr.bf16.mxu0 0
      %3552 = vmatmul.mubr.bf16.gmra.mxu0 %v2986
      %v3553 = vpop.f32.mrf.mxu0
      %v3554 = vadd.f32 %v2577, %v3553
      %v3555 = vpop.f32.mrf.mxu0
      %v3556 = vpop.f32.mrf.mxu0
      %v3557 = vadd.f32 %v2580, %v3556
      %v3558 = vpop.f32.mrf.mxu0
      %3559 = vmatprep.mubr.bf16.mxu0 0
      %3560 = vmatmul.mubr.bf16.gmra.mxu0 %v2987
      %v3561 = vpop.f32.mrf.mxu0
      %v3562 = vadd.f32 %v2585, %v3561
      %v3563 = vpop.f32.mrf.mxu0
      %v3564 = vpop.f32.mrf.mxu0
      %v3565 = vadd.f32 %v2588, %v3564
      %v3566 = vpop.f32.mrf.mxu0
      %3567 = vmatprep.mubr.bf16.mxu0 0
      %3568 = vmatmul.mubr.bf16.gmra.mxu0 %v2988
      %v3569 = vpop.f32.mrf.mxu0
      %v3570 = vadd.f32 %v2593, %v3569
      %v3571 = vpop.f32.mrf.mxu0
      %v3572 = vpop.f32.mrf.mxu0
      %v3573 = vadd.f32 %v2596, %v3572
      %v3574 = vpop.f32.mrf.mxu0
      %3575 = vmatprep.mubr.bf16.mxu0 0
      %3576 = vmatmul.mubr.bf16.gmra.mxu0 %v2989
      %v3577 = vpop.f32.mrf.mxu0
      %v3578 = vadd.f32 %v2601, %v3577
      %v3579 = vpop.f32.mrf.mxu0
      %v3580 = vpop.f32.mrf.mxu0
      %v3581 = vadd.f32 %v2604, %v3580
      %v3582 = vpop.f32.mrf.mxu0
      %3583 = vmatprep.mubr.bf16.mxu0 0
      %3584 = vmatmul.mubr.bf16.gmra.mxu0 %v2990
      %v3585 = vpop.f32.mrf.mxu0
      %v3586 = vadd.f32 %v2609, %v3585
      %v3587 = vpop.f32.mrf.mxu0
      %v3588 = vpop.f32.mrf.mxu0
      %v3589 = vadd.f32 %v2612, %v3588
      %v3590 = vpop.f32.mrf.mxu0
      %3591 = vmatprep.mubr.bf16.mxu0 0
      %3592 = vmatmul.mubr.bf16.gmra.mxu0 %v2991
      %v3593 = vpop.f32.mrf.mxu0
      %v3594 = vadd.f32 %v2617, %v3593
      %v3595 = vpop.f32.mrf.mxu0
      %v3596 = vpop.f32.mrf.mxu0
      %v3597 = vadd.f32 %v2620, %v3596
      %v3598 = vpop.f32.mrf.mxu0
      %3599 = vmatprep.mubr.bf16.mxu0 0
      %3600 = vmatmul.mubr.bf16.gmra.mxu0 %v2992
      %v3601 = vpop.f32.mrf.mxu0
      %v3602 = vadd.f32 %v2625, %v3601
      %v3603 = vpop.f32.mrf.mxu0
      %v3604 = vpop.f32.mrf.mxu0
      %v3605 = vadd.f32 %v2628, %v3604
      %v3606 = vpop.f32.mrf.mxu0
      %3607 = vmatprep.mubr.bf16.mxu0 0
      %3608 = vmatmul.mubr.bf16.gmra.mxu0 %v2993
      %v3609 = vpop.f32.mrf.mxu0
      %v3610 = vadd.f32 %v2633, %v3609
      %v3611 = vpop.f32.mrf.mxu0
      %v3612 = vpop.f32.mrf.mxu0
      %v3613 = vadd.f32 %v2636, %v3612
      %v3614 = vpop.f32.mrf.mxu0
      %3615 = vmatprep.mubr.bf16.mxu0 0
      %3616 = vmatmul.mubr.bf16.gmra.mxu0 %v2994
      %v3617 = vpop.f32.mrf.mxu0
      %v3618 = vadd.f32 %v2641, %v3617
      %v3619 = vpop.f32.mrf.mxu0
      %v3620 = vpop.f32.mrf.mxu0
      %v3621 = vadd.f32 %v2644, %v3620
      %v3622 = vpop.f32.mrf.mxu0
      %3623 = vmatprep.mubr.bf16.mxu0 0
      %3624 = vmatmul.mubr.bf16.gmra.mxu0 %v2995
      %v3625 = vpop.f32.mrf.mxu0
      %v3626 = vadd.f32 %v2649, %v3625
      %v3627 = vpop.f32.mrf.mxu0
      %v3628 = vpop.f32.mrf.mxu0
      %v3629 = vadd.f32 %v2652, %v3628
      %v3630 = vpop.f32.mrf.mxu0
      %3631 = vmatprep.mubr.bf16.mxu0 0
      %3632 = vmatmul.mubr.bf16.gmra.mxu0 %v2996
      %v3633 = vpop.f32.mrf.mxu0
      %v3634 = vadd.f32 %v2657, %v3633
      %v3635 = vpop.f32.mrf.mxu0
      %v3636 = vpop.f32.mrf.mxu0
      %v3637 = vadd.f32 %v2660, %v3636
      %v3638 = vpop.f32.mrf.mxu0
      %3639 = vmatprep.mubr.bf16.mxu0 0
      %3640 = vmatmul.mubr.bf16.gmra.mxu0 %v2997
      %v3641 = vpop.f32.mrf.mxu0
      %v3642 = vadd.f32 %v2665, %v3641
      %v3643 = vpop.f32.mrf.mxu0
      %v3644 = vpop.f32.mrf.mxu0
      %v3645 = vadd.f32 %v2668, %v3644
      %v3646 = vpop.f32.mrf.mxu0
      %3647 = vmatprep.mubr.bf16.mxu0 0
      %3648 = vmatmul.mubr.bf16.gmra.mxu0 %v2998
      %v3649 = vpop.f32.mrf.mxu0
      %v3650 = vadd.f32 %v2673, %v3649
      %v3651 = vpop.f32.mrf.mxu0
      %v3652 = vpop.f32.mrf.mxu0
      %v3653 = vadd.f32 %v2676, %v3652
      %v3654 = vpop.f32.mrf.mxu0
      %3655 = vdwg.mxu0
      %vm3688 = vcmask 1042432
      %vm3689 = vcmask 1046532
      %vm3690 = vmor %vm3688, %vm3689
      %v3691 = vrot.slane %v216, 5
      %v3692 = vrot.slane %v3691, 4
      %v3693 = vrot.slane %v217, 5
      %v3694 = vsel %vm3690, %v3692, %v3693
      %v3695 = vrot.slane %v3693, 4
      %v3696 = vrot.slane %v218, 5
      %v3697 = vsel %vm3690, %v3695, %v3696
      %v3698 = vrot.slane %v3696, 4
      %v3699 = vrot.slane %v219, 5
      %v3700 = vsel %vm3690, %v3698, %v3699
      %v3701 = vrot.slane %v3699, 4
      %v3702 = vrot.slane %v220, 5
      %v3703 = vsel %vm3690, %v3701, %v3702
      %v3704 = vrot.slane %v221, 5
      %v3705 = vrot.slane %v3704, 4
      %v3706 = vrot.slane %v222, 5
      %v3707 = vsel %vm3690, %v3705, %v3706
      %v3708 = vrot.slane %v3706, 4
      %v3709 = vrot.slane %v223, 5
      %v3710 = vsel %vm3690, %v3708, %v3709
      %v3711 = vrot.slane %v3709, 4
      %v3712 = vrot.slane %v224, 5
      %v3713 = vsel %vm3690, %v3711, %v3712
      %v3714 = vrot.slane %v3712, 4
      %v3715 = vrot.slane %v225, 5
      %v3716 = vsel %vm3690, %v3714, %v3715
      %v3717 = vrot.slane %v226, 5
      %v3718 = vrot.slane %v3717, 4
      %v3719 = vrot.slane %v227, 5
      %v3720 = vsel %vm3690, %v3718, %v3719
      %v3721 = vrot.slane %v3719, 4
      %v3722 = vrot.slane %v228, 5
      %v3723 = vsel %vm3690, %v3721, %v3722
      %v3724 = vrot.slane %v3722, 4
      %v3725 = vrot.slane %v229, 5
      %v3726 = vsel %vm3690, %v3724, %v3725
      %v3727 = vrot.slane %v3725, 4
      %v3728 = vrot.slane %v230, 5
      %v3729 = vsel %vm3690, %v3727, %v3728
      %v3730 = vrot.slane %v231, 5
      %v3731 = vrot.slane %v3730, 4
      %v3732 = vrot.slane %v232, 5
      %v3733 = vsel %vm3690, %v3731, %v3732
      %v3734 = vrot.slane %v3732, 4
      %v3735 = vrot.slane %v233, 5
      %v3736 = vsel %vm3690, %v3734, %v3735
      %v3737 = vrot.slane %v3735, 4
      %v3738 = vrot.slane %v234, 5
      %v3739 = vsel %vm3690, %v3737, %v3738
      %v3740 = vrot.slane %v3738, 4
      %v3741 = vrot.slane %v235, 5
      %v3742 = vsel %vm3690, %v3740, %v3741
      %v3743 = vrot.slane %v236, 5
      %v3744 = vrot.slane %v3743, 4
      %v3745 = vrot.slane %v237, 5
      %v3746 = vsel %vm3690, %v3744, %v3745
      %v3747 = vrot.slane %v3745, 4
      %v3748 = vrot.slane %v238, 5
      %v3749 = vsel %vm3690, %v3747, %v3748
      %v3750 = vrot.slane %v3748, 4
      %v3751 = vrot.slane %v239, 5
      %v3752 = vsel %vm3690, %v3750, %v3751
      %v3753 = vrot.slane %v3751, 4
      %v3754 = vrot.slane %v240, 5
      %v3755 = vsel %vm3690, %v3753, %v3754
      %v3756 = vrot.slane %v241, 5
      %v3757 = vrot.slane %v3756, 4
      %v3758 = vrot.slane %v242, 5
      %v3759 = vsel %vm3690, %v3757, %v3758
      %v3760 = vrot.slane %v3758, 4
      %v3761 = vrot.slane %v243, 5
      %v3762 = vsel %vm3690, %v3760, %v3761
      %v3763 = vrot.slane %v3761, 4
      %v3764 = vrot.slane %v244, 5
      %v3765 = vsel %vm3690, %v3763, %v3764
      %v3766 = vrot.slane %v3764, 4
      %v3767 = vrot.slane %v245, 5
      %v3768 = vsel %vm3690, %v3766, %v3767
      %v3769 = vrot.slane %v246, 5
      %v3770 = vrot.slane %v3769, 4
      %v3771 = vrot.slane %v247, 5
      %v3772 = vsel %vm3690, %v3770, %v3771
      %v3773 = vrot.slane %v3771, 4
      %v3774 = vrot.slane %v248, 5
      %v3775 = vsel %vm3690, %v3773, %v3774
      %v3776 = vrot.slane %v3774, 4
      %v3777 = vrot.slane %v249, 5
      %v3778 = vsel %vm3690, %v3776, %v3777
      %v3779 = vrot.slane %v3777, 4
      %v3780 = vrot.slane %v250, 5
      %v3781 = vsel %vm3690, %v3779, %v3780
      %v3782 = vrot.slane %v251, 5
      %v3783 = vrot.slane %v3782, 4
      %v3784 = vrot.slane %v252, 5
      %v3785 = vsel %vm3690, %v3783, %v3784
      %v3786 = vrot.slane %v3784, 4
      %v3787 = vrot.slane %v253, 5
      %v3788 = vsel %vm3690, %v3786, %v3787
      %v3789 = vrot.slane %v3787, 4
      %v3790 = vrot.slane %v254, 5
      %v3791 = vsel %vm3690, %v3789, %v3790
      %v3792 = vrot.slane %v3790, 4
      %v3793 = vrot.slane %v255, 5
      %v3794 = vsel %vm3690, %v3792, %v3793
      %v3795 = vrot.slane %v256, 5
      %v3796 = vrot.slane %v3795, 4
      %v3797 = vrot.slane %v257, 5
      %v3798 = vsel %vm3690, %v3796, %v3797
      %v3799 = vrot.slane %v3797, 4
      %v3800 = vrot.slane %v258, 5
      %v3801 = vsel %vm3690, %v3799, %v3800
      %v3802 = vrot.slane %v3800, 4
      %v3803 = vrot.slane %v259, 5
      %v3804 = vsel %vm3690, %v3802, %v3803
      %v3805 = vrot.slane %v3803, 4
      %v3806 = vrot.slane %v260, 5
      %v3807 = vsel %vm3690, %v3805, %v3806
      %v3808 = vrot.slane %v261, 5
      %v3809 = vrot.slane %v3808, 4
      %v3810 = vrot.slane %v262, 5
      %v3811 = vsel %vm3690, %v3809, %v3810
      %v3812 = vrot.slane %v3810, 4
      %v3813 = vrot.slane %v263, 5
      %v3814 = vsel %vm3690, %v3812, %v3813
      %v3815 = vrot.slane %v3813, 4
      %v3816 = vrot.slane %v264, 5
      %v3817 = vsel %vm3690, %v3815, %v3816
      %v3818 = vrot.slane %v3816, 4
      %v3819 = vrot.slane %v265, 5
      %v3820 = vsel %vm3690, %v3818, %v3819
      %v3821 = vrot.slane %v266, 5
      %v3822 = vrot.slane %v3821, 4
      %v3823 = vrot.slane %v267, 5
      %v3824 = vsel %vm3690, %v3822, %v3823
      %v3825 = vrot.slane %v3823, 4
      %v3826 = vrot.slane %v268, 5
      %v3827 = vsel %vm3690, %v3825, %v3826
      %v3828 = vrot.slane %v3826, 4
      %v3829 = vrot.slane %v269, 5
      %v3830 = vsel %vm3690, %v3828, %v3829
      %v3831 = vrot.slane %v3829, 4
      %v3832 = vrot.slane %v270, 5
      %v3833 = vsel %vm3690, %v3831, %v3832
      %v3834 = vrot.slane %v271, 5
      %v3835 = vrot.slane %v3834, 4
      %v3836 = vrot.slane %v272, 5
      %v3837 = vsel %vm3690, %v3835, %v3836
      %v3838 = vrot.slane %v3836, 4
      %v3839 = vrot.slane %v273, 5
      %v3840 = vsel %vm3690, %v3838, %v3839
      %v3841 = vrot.slane %v3839, 4
      %v3842 = vrot.slane %v274, 5
      %v3843 = vsel %vm3690, %v3841, %v3842
      %v3844 = vrot.slane %v3842, 4
      %v3845 = vrot.slane %v275, 5
      %v3846 = vsel %vm3690, %v3844, %v3845
      %v3847 = vrot.slane %v276, 5
      %v3848 = vrot.slane %v3847, 4
      %v3849 = vrot.slane %v277, 5
      %v3850 = vsel %vm3690, %v3848, %v3849
      %v3851 = vrot.slane %v3849, 4
      %v3852 = vrot.slane %v278, 5
      %v3853 = vsel %vm3690, %v3851, %v3852
      %v3854 = vrot.slane %v3852, 4
      %v3855 = vrot.slane %v279, 5
      %v3856 = vsel %vm3690, %v3854, %v3855
      %v3857 = vrot.slane %v3855, 4
      %v3858 = vrot.slane %v280, 5
      %v3859 = vsel %vm3690, %v3857, %v3858
      %v3860 = vrot.slane %v281, 5
      %v3861 = vrot.slane %v3860, 4
      %v3862 = vrot.slane %v282, 5
      %v3863 = vsel %vm3690, %v3861, %v3862
      %v3864 = vrot.slane %v3862, 4
      %v3865 = vrot.slane %v283, 5
      %v3866 = vsel %vm3690, %v3864, %v3865
      %v3867 = vrot.slane %v3865, 4
      %v3868 = vrot.slane %v284, 5
      %v3869 = vsel %vm3690, %v3867, %v3868
      %v3870 = vrot.slane %v3868, 4
      %v3871 = vrot.slane %v285, 5
      %v3872 = vsel %vm3690, %v3870, %v3871
      %v3873 = vrot.slane %v286, 5
      %v3874 = vrot.slane %v3873, 4
      %v3875 = vrot.slane %v287, 5
      %v3876 = vsel %vm3690, %v3874, %v3875
      %v3877 = vrot.slane %v3875, 4
      %v3878 = vrot.slane %v288, 5
      %v3879 = vsel %vm3690, %v3877, %v3878
      %v3880 = vrot.slane %v3878, 4
      %v3881 = vrot.slane %v289, 5
      %v3882 = vsel %vm3690, %v3880, %v3881
      %v3883 = vrot.slane %v3881, 4
      %v3884 = vrot.slane %v290, 5
      %v3885 = vsel %vm3690, %v3883, %v3884
      %v3886 = vrot.slane %v291, 5
      %v3887 = vrot.slane %v3886, 4
      %v3888 = vrot.slane %v292, 5
      %v3889 = vsel %vm3690, %v3887, %v3888
      %v3890 = vrot.slane %v3888, 4
      %v3891 = vrot.slane %v293, 5
      %v3892 = vsel %vm3690, %v3890, %v3891
      %v3893 = vrot.slane %v3891, 4
      %v3894 = vrot.slane %v294, 5
      %v3895 = vsel %vm3690, %v3893, %v3894
      %v3896 = vrot.slane %v3894, 4
      %v3897 = vrot.slane %v295, 5
      %v3898 = vsel %vm3690, %v3896, %v3897
      %v3899 = vrot.slane %v296, 5
      %v3900 = vrot.slane %v3899, 4
      %v3901 = vrot.slane %v297, 5
      %v3902 = vsel %vm3690, %v3900, %v3901
      %v3903 = vrot.slane %v3901, 4
      %v3904 = vrot.slane %v298, 5
      %v3905 = vsel %vm3690, %v3903, %v3904
      %v3906 = vrot.slane %v3904, 4
      %v3907 = vrot.slane %v299, 5
      %v3908 = vsel %vm3690, %v3906, %v3907
      %v3909 = vrot.slane %v3907, 4
      %v3910 = vrot.slane %v300, 5
      %v3911 = vsel %vm3690, %v3909, %v3910
      %v3912 = vrot.slane %v301, 5
      %v3913 = vrot.slane %v3912, 4
      %v3914 = vrot.slane %v302, 5
      %v3915 = vsel %vm3690, %v3913, %v3914
      %v3916 = vrot.slane %v3914, 4
      %v3917 = vrot.slane %v303, 5
      %v3918 = vsel %vm3690, %v3916, %v3917
      %v3919 = vrot.slane %v3917, 4
      %v3920 = vrot.slane %v304, 5
      %v3921 = vsel %vm3690, %v3919, %v3920
      %v3922 = vrot.slane %v3920, 4
      %v3923 = vrot.slane %v305, 5
      %v3924 = vsel %vm3690, %v3922, %v3923
      %v3925 = vrot.slane %v306, 5
      %v3926 = vrot.slane %v3925, 4
      %v3927 = vrot.slane %v307, 5
      %v3928 = vsel %vm3690, %v3926, %v3927
      %v3929 = vrot.slane %v3927, 4
      %v3930 = vrot.slane %v308, 5
      %v3931 = vsel %vm3690, %v3929, %v3930
      %v3932 = vrot.slane %v3930, 4
      %v3933 = vrot.slane %v309, 5
      %v3934 = vsel %vm3690, %v3932, %v3933
      %v3935 = vrot.slane %v3933, 4
      %v3936 = vrot.slane %v310, 5
      %v3937 = vsel %vm3690, %v3935, %v3936
      %v3938 = vrot.slane %v311, 5
      %v3939 = vrot.slane %v3938, 4
      %v3940 = vrot.slane %v312, 5
      %v3941 = vsel %vm3690, %v3939, %v3940
      %v3942 = vrot.slane %v3940, 4
      %v3943 = vrot.slane %v313, 5
      %v3944 = vsel %vm3690, %v3942, %v3943
      %v3945 = vrot.slane %v3943, 4
      %v3946 = vrot.slane %v314, 5
      %v3947 = vsel %vm3690, %v3945, %v3946
      %v3948 = vrot.slane %v3946, 4
      %v3949 = vrot.slane %v315, 5
      %v3950 = vsel %vm3690, %v3948, %v3949
      %v3951 = vrot.slane %v316, 5
      %v3952 = vrot.slane %v3951, 4
      %v3953 = vrot.slane %v317, 5
      %v3954 = vsel %vm3690, %v3952, %v3953
      %v3955 = vrot.slane %v3953, 4
      %v3956 = vrot.slane %v318, 5
      %v3957 = vsel %vm3690, %v3955, %v3956
      %v3958 = vrot.slane %v3956, 4
      %v3959 = vrot.slane %v319, 5
      %v3960 = vsel %vm3690, %v3958, %v3959
      %v3961 = vrot.slane %v3959, 4
      %v3962 = vrot.slane %v320, 5
      %v3963 = vsel %vm3690, %v3961, %v3962
      %v3964 = vrot.slane %v321, 5
      %v3965 = vrot.slane %v3964, 4
      %v3966 = vrot.slane %v322, 5
      %v3967 = vsel %vm3690, %v3965, %v3966
      %v3968 = vrot.slane %v3966, 4
      %v3969 = vrot.slane %v323, 5
      %v3970 = vsel %vm3690, %v3968, %v3969
      %v3971 = vrot.slane %v3969, 4
      %v3972 = vrot.slane %v324, 5
      %v3973 = vsel %vm3690, %v3971, %v3972
      %v3974 = vrot.slane %v3972, 4
      %v3975 = vrot.slane %v325, 5
      %v3976 = vsel %vm3690, %v3974, %v3975
      %v3977 = vrot.slane %v326, 5
      %v3978 = vrot.slane %v3977, 4
      %v3979 = vrot.slane %v327, 5
      %v3980 = vsel %vm3690, %v3978, %v3979
      %v3981 = vrot.slane %v3979, 4
      %v3982 = vrot.slane %v328, 5
      %v3983 = vsel %vm3690, %v3981, %v3982
      %v3984 = vrot.slane %v3982, 4
      %v3985 = vrot.slane %v329, 5
      %v3986 = vsel %vm3690, %v3984, %v3985
      %v3987 = vrot.slane %v3985, 4
      %v3988 = vrot.slane %v330, 5
      %v3989 = vsel %vm3690, %v3987, %v3988
      %v3990 = vrot.slane %v331, 5
      %v3991 = vrot.slane %v3990, 4
      %v3992 = vrot.slane %v332, 5
      %v3993 = vsel %vm3690, %v3991, %v3992
      %v3994 = vrot.slane %v3992, 4
      %v3995 = vrot.slane %v333, 5
      %v3996 = vsel %vm3690, %v3994, %v3995
      %v3997 = vrot.slane %v3995, 4
      %v3998 = vrot.slane %v334, 5
      %v3999 = vsel %vm3690, %v3997, %v3998
      %v4000 = vrot.slane %v3998, 4
      %v4001 = vrot.slane %v335, 5
      %v4002 = vsel %vm3690, %v4000, %v4001
      %v4003 = vrot.slane %v336, 5
      %v4004 = vrot.slane %v4003, 4
      %v4005 = vrot.slane %v337, 5
      %v4006 = vsel %vm3690, %v4004, %v4005
      %v4007 = vrot.slane %v4005, 4
      %v4008 = vrot.slane %v338, 5
      %v4009 = vsel %vm3690, %v4007, %v4008
      %v4010 = vrot.slane %v4008, 4
      %v4011 = vrot.slane %v339, 5
      %v4012 = vsel %vm3690, %v4010, %v4011
      %v4013 = vrot.slane %v4011, 4
      %v4014 = vrot.slane %v340, 5
      %v4015 = vsel %vm3690, %v4013, %v4014
      %v4016 = vrot.slane %v341, 5
      %v4017 = vrot.slane %v4016, 4
      %v4018 = vrot.slane %v342, 5
      %v4019 = vsel %vm3690, %v4017, %v4018
      %v4020 = vrot.slane %v4018, 4
      %v4021 = vrot.slane %v343, 5
      %v4022 = vsel %vm3690, %v4020, %v4021
      %v4023 = vrot.slane %v4021, 4
      %v4024 = vrot.slane %v344, 5
      %v4025 = vsel %vm3690, %v4023, %v4024
      %v4026 = vrot.slane %v4024, 4
      %v4027 = vrot.slane %v345, 5
      %v4028 = vsel %vm3690, %v4026, %v4027
      %v4029 = vrot.slane %v346, 5
      %v4030 = vrot.slane %v4029, 4
      %v4031 = vrot.slane %v347, 5
      %v4032 = vsel %vm3690, %v4030, %v4031
      %v4033 = vrot.slane %v4031, 4
      %v4034 = vrot.slane %v348, 5
      %v4035 = vsel %vm3690, %v4033, %v4034
      %v4036 = vrot.slane %v4034, 4
      %v4037 = vrot.slane %v349, 5
      %v4038 = vsel %vm3690, %v4036, %v4037
      %v4039 = vrot.slane %v4037, 4
      %v4040 = vrot.slane %v350, 5
      %v4041 = vsel %vm3690, %v4039, %v4040
      %v4042 = vrot.slane %v351, 5
      %v4043 = vrot.slane %v4042, 4
      %v4044 = vrot.slane %v352, 5
      %v4045 = vsel %vm3690, %v4043, %v4044
      %v4046 = vrot.slane %v4044, 4
      %v4047 = vrot.slane %v353, 5
      %v4048 = vsel %vm3690, %v4046, %v4047
      %v4049 = vrot.slane %v4047, 4
      %v4050 = vrot.slane %v354, 5
      %v4051 = vsel %vm3690, %v4049, %v4050
      %v4052 = vrot.slane %v4050, 4
      %v4053 = vrot.slane %v355, 5
      %v4054 = vsel %vm3690, %v4052, %v4053
      %v4055 = vrot.slane %v356, 5
      %v4056 = vrot.slane %v4055, 4
      %v4057 = vrot.slane %v357, 5
      %v4058 = vsel %vm3690, %v4056, %v4057
      %v4059 = vrot.slane %v4057, 4
      %v4060 = vrot.slane %v358, 5
      %v4061 = vsel %vm3690, %v4059, %v4060
      %v4062 = vrot.slane %v4060, 4
      %v4063 = vrot.slane %v359, 5
      %v4064 = vsel %vm3690, %v4062, %v4063
      %v4065 = vrot.slane %v4063, 4
      %v4066 = vrot.slane %v360, 5
      %v4067 = vsel %vm3690, %v4065, %v4066
      %v4068 = vrot.slane %v361, 5
      %v4069 = vrot.slane %v4068, 4
      %v4070 = vrot.slane %v362, 5
      %v4071 = vsel %vm3690, %v4069, %v4070
      %v4072 = vrot.slane %v4070, 4
      %v4073 = vrot.slane %v363, 5
      %v4074 = vsel %vm3690, %v4072, %v4073
      %v4075 = vrot.slane %v4073, 4
      %v4076 = vrot.slane %v364, 5
      %v4077 = vsel %vm3690, %v4075, %v4076
      %v4078 = vrot.slane %v4076, 4
      %v4079 = vrot.slane %v365, 5
      %v4080 = vsel %vm3690, %v4078, %v4079
      %v4081 = vrot.slane %v366, 5
      %v4082 = vrot.slane %v4081, 4
      %v4083 = vrot.slane %v367, 5
      %v4084 = vsel %vm3690, %v4082, %v4083
      %v4085 = vrot.slane %v4083, 4
      %v4086 = vrot.slane %v368, 5
      %v4087 = vsel %vm3690, %v4085, %v4086
      %v4088 = vrot.slane %v4086, 4
      %v4089 = vrot.slane %v369, 5
      %v4090 = vsel %vm3690, %v4088, %v4089
      %v4091 = vrot.slane %v4089, 4
      %v4092 = vrot.slane %v370, 5
      %v4093 = vsel %vm3690, %v4091, %v4092
      %v4094 = vrot.slane %v371, 5
      %v4095 = vrot.slane %v4094, 4
      %v4096 = vrot.slane %v372, 5
      %v4097 = vsel %vm3690, %v4095, %v4096
      %v4098 = vrot.slane %v4096, 4
      %v4099 = vrot.slane %v373, 5
      %v4100 = vsel %vm3690, %v4098, %v4099
      %v4101 = vrot.slane %v4099, 4
      %v4102 = vrot.slane %v374, 5
      %v4103 = vsel %vm3690, %v4101, %v4102
      %v4104 = vrot.slane %v4102, 4
      %v4105 = vrot.slane %v375, 5
      %v4106 = vsel %vm3690, %v4104, %v4105
      %s4107 = scalar_lea.vmem %s1, 128
      %v4108 = vld [vmem:[%s4107] sm:$0xf]
      %v4109 = vld [vmem:[%s4107 + $0x4] sm:$0xf]
      %v4110 = vld [vmem:[%s4107 + $0x8] sm:$0xf]
      %v4111 = vld [vmem:[%s4107 + $0xc] sm:$0xf]
      %v4112 = vld [vmem:[%s4107 + $0x10] sm:$0xf]
      %v4113 = vld [vmem:[%s4107 + $0x14] sm:$0xf]
      %v4114 = vld [vmem:[%s4107 + $0x18] sm:$0xf]
      %v4115 = vld [vmem:[%s4107 + $0x1c] sm:$0xf]
      %v4116 = vld [vmem:[%s4107 + $0x20] sm:$0xf]
      %v4117 = vld [vmem:[%s4107 + $0x24] sm:$0xf]
      %v4118 = vld [vmem:[%s4107 + $0x28] sm:$0xf]
      %v4119 = vld [vmem:[%s4107 + $0x2c] sm:$0xf]
      %v4120 = vld [vmem:[%s4107 + $0x30] sm:$0xf]
      %v4121 = vld [vmem:[%s4107 + $0x34] sm:$0xf]
      %v4122 = vld [vmem:[%s4107 + $0x38] sm:$0xf]
      %v4123 = vld [vmem:[%s4107 + $0x3c] sm:$0xf]
      %v4124 = vunpack.c.l.b16 %v3694
      %v4125 = vunpack.c.l.b16 %v3697
      %v4126 = vunpack.c.l.b16 %v3700
      %v4127 = vunpack.c.l.b16 %v3703
      %v4128 = vunpack.c.l.b16 %v3707
      %v4129 = vunpack.c.l.b16 %v3710
      %v4130 = vunpack.c.l.b16 %v3713
      %v4131 = vunpack.c.l.b16 %v3716
      %v4132 = vunpack.c.l.b16 %v3720
      %v4133 = vunpack.c.l.b16 %v3723
      %v4134 = vunpack.c.l.b16 %v3726
      %v4135 = vunpack.c.l.b16 %v3729
      %v4136 = vunpack.c.l.b16 %v3733
      %v4137 = vunpack.c.l.b16 %v3736
      %v4138 = vunpack.c.l.b16 %v3739
      %v4139 = vunpack.c.l.b16 %v3742
      %v4140 = vunpack.c.l.b16 %v3746
      %v4141 = vunpack.c.l.b16 %v3749
      %v4142 = vunpack.c.l.b16 %v3752
      %v4143 = vunpack.c.l.b16 %v3755
      %v4144 = vunpack.c.l.b16 %v3759
      %v4145 = vunpack.c.l.b16 %v3762
      %v4146 = vunpack.c.l.b16 %v3765
      %v4147 = vunpack.c.l.b16 %v3768
      %v4148 = vunpack.c.l.b16 %v3772
      %v4149 = vunpack.c.l.b16 %v3775
      %v4150 = vunpack.c.l.b16 %v3778
      %v4151 = vunpack.c.l.b16 %v3781
      %v4152 = vunpack.c.l.b16 %v3785
      %v4153 = vunpack.c.l.b16 %v3788
      %v4154 = vunpack.c.l.b16 %v3791
      %v4155 = vunpack.c.l.b16 %v3794
      %v4156 = vunpack.c.l.b16 %v3798
      %v4157 = vunpack.c.l.b16 %v3801
      %v4158 = vunpack.c.l.b16 %v3804
      %v4159 = vunpack.c.l.b16 %v3807
      %v4160 = vunpack.c.l.b16 %v3811
      %v4161 = vunpack.c.l.b16 %v3814
      %v4162 = vunpack.c.l.b16 %v3817
      %v4163 = vunpack.c.l.b16 %v3820
      %v4164 = vunpack.c.l.b16 %v3824
      %v4165 = vunpack.c.l.b16 %v3827
      %v4166 = vunpack.c.l.b16 %v3830
      %v4167 = vunpack.c.l.b16 %v3833
      %v4168 = vunpack.c.l.b16 %v3837
      %v4169 = vunpack.c.l.b16 %v3840
      %v4170 = vunpack.c.l.b16 %v3843
      %v4171 = vunpack.c.l.b16 %v3846
      %v4172 = vunpack.c.l.b16 %v3850
      %v4173 = vunpack.c.l.b16 %v3853
      %v4174 = vunpack.c.l.b16 %v3856
      %v4175 = vunpack.c.l.b16 %v3859
      %v4176 = vunpack.c.l.b16 %v3863
      %v4177 = vunpack.c.l.b16 %v3866
      %v4178 = vunpack.c.l.b16 %v3869
      %v4179 = vunpack.c.l.b16 %v3872
      %v4180 = vunpack.c.l.b16 %v3876
      %v4181 = vunpack.c.l.b16 %v3879
      %v4182 = vunpack.c.l.b16 %v3882
      %v4183 = vunpack.c.l.b16 %v3885
      %v4184 = vunpack.c.l.b16 %v3889
      %v4185 = vunpack.c.l.b16 %v3892
      %v4186 = vunpack.c.l.b16 %v3895
      %v4187 = vunpack.c.l.b16 %v3898
      %v4188 = vunpack.c.l.b16 %v3902
      %v4189 = vunpack.c.l.b16 %v3905
      %v4190 = vunpack.c.l.b16 %v3908
      %v4191 = vunpack.c.l.b16 %v3911
      %v4192 = vunpack.c.l.b16 %v3915
      %v4193 = vunpack.c.l.b16 %v3918
      %v4194 = vunpack.c.l.b16 %v3921
      %v4195 = vunpack.c.l.b16 %v3924
      %v4196 = vunpack.c.l.b16 %v3928
      %v4197 = vunpack.c.l.b16 %v3931
      %v4198 = vunpack.c.l.b16 %v3934
      %v4199 = vunpack.c.l.b16 %v3937
      %v4200 = vunpack.c.l.b16 %v3941
      %v4201 = vunpack.c.l.b16 %v3944
      %v4202 = vunpack.c.l.b16 %v3947
      %v4203 = vunpack.c.l.b16 %v3950
      %v4204 = vunpack.c.l.b16 %v3954
      %v4205 = vunpack.c.l.b16 %v3957
      %v4206 = vunpack.c.l.b16 %v3960
      %v4207 = vunpack.c.l.b16 %v3963
      %v4208 = vunpack.c.l.b16 %v3967
      %v4209 = vunpack.c.l.b16 %v3970
      %v4210 = vunpack.c.l.b16 %v3973
      %v4211 = vunpack.c.l.b16 %v3976
      %v4212 = vunpack.c.l.b16 %v3980
      %v4213 = vunpack.c.l.b16 %v3983
      %v4214 = vunpack.c.l.b16 %v3986
      %v4215 = vunpack.c.l.b16 %v3989
      %v4216 = vunpack.c.l.b16 %v3993
      %v4217 = vunpack.c.l.b16 %v3996
      %v4218 = vunpack.c.l.b16 %v3999
      %v4219 = vunpack.c.l.b16 %v4002
      %v4220 = vunpack.c.l.b16 %v4006
      %v4221 = vunpack.c.l.b16 %v4009
      %v4222 = vunpack.c.l.b16 %v4012
      %v4223 = vunpack.c.l.b16 %v4015
      %v4224 = vunpack.c.l.b16 %v4019
      %v4225 = vunpack.c.l.b16 %v4022
      %v4226 = vunpack.c.l.b16 %v4025
      %v4227 = vunpack.c.l.b16 %v4028
      %v4228 = vunpack.c.l.b16 %v4032
      %v4229 = vunpack.c.l.b16 %v4035
      %v4230 = vunpack.c.l.b16 %v4038
      %v4231 = vunpack.c.l.b16 %v4041
      %v4232 = vunpack.c.l.b16 %v4045
      %v4233 = vunpack.c.l.b16 %v4048
      %v4234 = vunpack.c.l.b16 %v4051
      %v4235 = vunpack.c.l.b16 %v4054
      %v4236 = vunpack.c.l.b16 %v4058
      %v4237 = vunpack.c.l.b16 %v4061
      %v4238 = vunpack.c.l.b16 %v4064
      %v4239 = vunpack.c.l.b16 %v4067
      %v4240 = vunpack.c.l.b16 %v4071
      %v4241 = vunpack.c.l.b16 %v4074
      %v4242 = vunpack.c.l.b16 %v4077
      %v4243 = vunpack.c.l.b16 %v4080
      %v4244 = vunpack.c.l.b16 %v4084
      %v4245 = vunpack.c.l.b16 %v4087
      %v4246 = vunpack.c.l.b16 %v4090
      %v4247 = vunpack.c.l.b16 %v4093
      %v4248 = vunpack.c.l.b16 %v4097
      %v4249 = vunpack.c.l.b16 %v4100
      %v4250 = vunpack.c.l.b16 %v4103
      %v4251 = vunpack.c.l.b16 %v4106
      %v4252 = vpack.c.b16 %v4125, %v4124
      %v4253 = vpack.c.b16 %v4127, %v4126
      %v4254 = vpack.c.b16 %v4129, %v4128
      %v4255 = vpack.c.b16 %v4131, %v4130
      %v4256 = vpack.c.b16 %v4133, %v4132
      %v4257 = vpack.c.b16 %v4135, %v4134
      %v4258 = vpack.c.b16 %v4137, %v4136
      %v4259 = vpack.c.b16 %v4139, %v4138
      %v4260 = vpack.c.b16 %v4141, %v4140
      %v4261 = vpack.c.b16 %v4143, %v4142
      %v4262 = vpack.c.b16 %v4145, %v4144
      %v4263 = vpack.c.b16 %v4147, %v4146
      %v4264 = vpack.c.b16 %v4149, %v4148
      %v4265 = vpack.c.b16 %v4151, %v4150
      %v4266 = vpack.c.b16 %v4153, %v4152
      %v4267 = vpack.c.b16 %v4155, %v4154
      %v4268 = vpack.c.b16 %v4157, %v4156
      %v4269 = vpack.c.b16 %v4159, %v4158
      %v4270 = vpack.c.b16 %v4161, %v4160
      %v4271 = vpack.c.b16 %v4163, %v4162
      %v4272 = vpack.c.b16 %v4165, %v4164
      %v4273 = vpack.c.b16 %v4167, %v4166
      %v4274 = vpack.c.b16 %v4169, %v4168
      %v4275 = vpack.c.b16 %v4171, %v4170
      %v4276 = vpack.c.b16 %v4173, %v4172
      %v4277 = vpack.c.b16 %v4175, %v4174
      %v4278 = vpack.c.b16 %v4177, %v4176
      %v4279 = vpack.c.b16 %v4179, %v4178
      %v4280 = vpack.c.b16 %v4181, %v4180
      %v4281 = vpack.c.b16 %v4183, %v4182
      %v4282 = vpack.c.b16 %v4185, %v4184
      %v4283 = vpack.c.b16 %v4187, %v4186
      %v4284 = vpack.c.b16 %v4189, %v4188
      %v4285 = vpack.c.b16 %v4191, %v4190
      %v4286 = vpack.c.b16 %v4193, %v4192
      %v4287 = vpack.c.b16 %v4195, %v4194
      %v4288 = vpack.c.b16 %v4197, %v4196
      %v4289 = vpack.c.b16 %v4199, %v4198
      %v4290 = vpack.c.b16 %v4201, %v4200
      %v4291 = vpack.c.b16 %v4203, %v4202
      %v4292 = vpack.c.b16 %v4205, %v4204
      %v4293 = vpack.c.b16 %v4207, %v4206
      %v4294 = vpack.c.b16 %v4209, %v4208
      %v4295 = vpack.c.b16 %v4211, %v4210
      %v4296 = vpack.c.b16 %v4213, %v4212
      %v4297 = vpack.c.b16 %v4215, %v4214
      %v4298 = vpack.c.b16 %v4217, %v4216
      %v4299 = vpack.c.b16 %v4219, %v4218
      %v4300 = vpack.c.b16 %v4221, %v4220
      %v4301 = vpack.c.b16 %v4223, %v4222
      %v4302 = vpack.c.b16 %v4225, %v4224
      %v4303 = vpack.c.b16 %v4227, %v4226
      %v4304 = vpack.c.b16 %v4229, %v4228
      %v4305 = vpack.c.b16 %v4231, %v4230
      %v4306 = vpack.c.b16 %v4233, %v4232
      %v4307 = vpack.c.b16 %v4235, %v4234
      %v4308 = vpack.c.b16 %v4237, %v4236
      %v4309 = vpack.c.b16 %v4239, %v4238
      %v4310 = vpack.c.b16 %v4241, %v4240
      %v4311 = vpack.c.b16 %v4243, %v4242
      %v4312 = vpack.c.b16 %v4245, %v4244
      %v4313 = vpack.c.b16 %v4247, %v4246
      %v4314 = vpack.c.b16 %v4249, %v4248
      %v4315 = vpack.c.b16 %v4251, %v4250
      %v4396 = vunpack.c.l.b16 %v4108
      %v4397 = vunpack.c.l.b16 %v4109
      %v4398 = vunpack.c.l.b16 %v4110
      %v4399 = vunpack.c.l.b16 %v4111
      %v4400 = vunpack.c.l.b16 %v4112
      %v4401 = vunpack.c.l.b16 %v4113
      %v4402 = vunpack.c.l.b16 %v4114
      %v4403 = vunpack.c.l.b16 %v4115
      %v4404 = vunpack.c.l.b16 %v4116
      %v4405 = vunpack.c.l.b16 %v4117
      %v4406 = vunpack.c.l.b16 %v4118
      %v4407 = vunpack.c.l.b16 %v4119
      %v4408 = vunpack.c.l.b16 %v4120
      %v4409 = vunpack.c.l.b16 %v4121
      %v4410 = vunpack.c.l.b16 %v4122
      %v4411 = vunpack.c.l.b16 %v4123
      %v4412 = vpack.c.b16 %v4397, %v4396
      %v4413 = vpack.c.b16 %v4399, %v4398
      %v4414 = vpack.c.b16 %v4401, %v4400
      %v4415 = vpack.c.b16 %v4403, %v4402
      %v4416 = vpack.c.b16 %v4405, %v4404
      %v4417 = vpack.c.b16 %v4407, %v4406
      %v4418 = vpack.c.b16 %v4409, %v4408
      %v4419 = vpack.c.b16 %v4411, %v4410
      %4428 = vmatprep.subr.bf16.mxu0 0
      %4429 = vmatpush1.bf16.msra.mxu0 %v4419
      %4430 = vmatprep.subr.bf16.mxu0 0
      %4431 = vmatpush1.bf16.msra.mxu0 %v4418
      %4432 = vmatprep.subr.bf16.mxu0 0
      %4433 = vmatpush1.bf16.msra.mxu0 %v4417
      %4434 = vmatprep.subr.bf16.mxu0 0
      %4435 = vmatpush1.bf16.msra.mxu0 %v4416
      %4436 = vmatprep.subr.bf16.mxu0 0
      %4437 = vmatpush1.bf16.msra.mxu0 %v4415
      %4438 = vmatprep.subr.bf16.mxu0 0
      %4439 = vmatpush1.bf16.msra.mxu0 %v4414
      %4440 = vmatprep.subr.bf16.mxu0 0
      %4441 = vmatpush1.bf16.msra.mxu0 %v4413
      %4442 = vmatprep.subr.bf16.mxu0 0
      %4443 = vmatpush1.bf16.msra.mxu0 %v4412
      %4444 = vmatprep.subr.bf16.mxu0 0
      %4445 = vmatpush2.bf16.msra.mxu0 0
      %4446 = vmatprep.subr.bf16.mxu0 0
      %4447 = vmatpush2.bf16.msra.mxu0 0
      %4448 = vmatprep.subr.bf16.mxu0 0
      %4449 = vmatpush2.bf16.msra.mxu0 0
      %4450 = vmatprep.subr.bf16.mxu0 0
      %4451 = vmatpush2.bf16.msra.mxu0 0
      %4452 = vmatprep.subr.bf16.mxu0 0
      %4453 = vmatpush2.bf16.msra.mxu0 0
      %4454 = vmatprep.subr.bf16.mxu0 0
      %4455 = vmatpush2.bf16.msra.mxu0 0
      %4456 = vmatprep.subr.bf16.mxu0 0
      %4457 = vmatpush2.bf16.msra.mxu0 0
      %4458 = vmatprep.subr.bf16.mxu0 0
      %4459 = vmatpush2.bf16.msra.mxu0 0
      %4460 = vmatprep.mubr.bf16.mxu0 0
      %4461 = vmatmul.mubr.bf16.gmra.mxu0 %v4252
      %v4462 = vpop.f32.mrf.mxu0
      %v4463 = vadd.f32 0.0, %v4462
      %v4464 = vpop.f32.mrf.mxu0
      %v4465 = vpop.f32.mrf.mxu0
      %v4466 = vadd.f32 0.0, %v4465
      %v4467 = vpop.f32.mrf.mxu0
      %4468 = vmatprep.mubr.bf16.mxu0 0
      %4469 = vmatmul.mubr.bf16.gmra.mxu0 %v4253
      %v4470 = vpop.f32.mrf.mxu0
      %v4471 = vadd.f32 0.0, %v4470
      %v4472 = vpop.f32.mrf.mxu0
      %v4473 = vpop.f32.mrf.mxu0
      %v4474 = vadd.f32 0.0, %v4473
      %v4475 = vpop.f32.mrf.mxu0
      %4476 = vmatprep.mubr.bf16.mxu0 0
      %4477 = vmatmul.mubr.bf16.gmra.mxu0 %v4254
      %v4478 = vpop.f32.mrf.mxu0
      %v4479 = vadd.f32 0.0, %v4478
      %v4480 = vpop.f32.mrf.mxu0
      %v4481 = vpop.f32.mrf.mxu0
      %v4482 = vadd.f32 0.0, %v4481
      %v4483 = vpop.f32.mrf.mxu0
      %4484 = vmatprep.mubr.bf16.mxu0 0
      %4485 = vmatmul.mubr.bf16.gmra.mxu0 %v4255
      %v4486 = vpop.f32.mrf.mxu0
      %v4487 = vadd.f32 0.0, %v4486
      %v4488 = vpop.f32.mrf.mxu0
      %v4489 = vpop.f32.mrf.mxu0
      %v4490 = vadd.f32 0.0, %v4489
      %v4491 = vpop.f32.mrf.mxu0
      %4492 = vmatprep.mubr.bf16.mxu0 0
      %4493 = vmatmul.mubr.bf16.gmra.mxu0 %v4256
      %v4494 = vpop.f32.mrf.mxu0
      %v4495 = vadd.f32 0.0, %v4494
      %v4496 = vpop.f32.mrf.mxu0
      %v4497 = vpop.f32.mrf.mxu0
      %v4498 = vadd.f32 0.0, %v4497
      %v4499 = vpop.f32.mrf.mxu0
      %4500 = vmatprep.mubr.bf16.mxu0 0
      %4501 = vmatmul.mubr.bf16.gmra.mxu0 %v4257
      %v4502 = vpop.f32.mrf.mxu0
      %v4503 = vadd.f32 0.0, %v4502
      %v4504 = vpop.f32.mrf.mxu0
      %v4505 = vpop.f32.mrf.mxu0
      %v4506 = vadd.f32 0.0, %v4505
      %v4507 = vpop.f32.mrf.mxu0
      %4508 = vmatprep.mubr.bf16.mxu0 0
      %4509 = vmatmul.mubr.bf16.gmra.mxu0 %v4258
      %v4510 = vpop.f32.mrf.mxu0
      %v4511 = vadd.f32 0.0, %v4510
      %v4512 = vpop.f32.mrf.mxu0
      %v4513 = vpop.f32.mrf.mxu0
      %v4514 = vadd.f32 0.0, %v4513
      %v4515 = vpop.f32.mrf.mxu0
      %4516 = vmatprep.mubr.bf16.mxu0 0
      %4517 = vmatmul.mubr.bf16.gmra.mxu0 %v4259
      %v4518 = vpop.f32.mrf.mxu0
      %v4519 = vadd.f32 0.0, %v4518
      %v4520 = vpop.f32.mrf.mxu0
      %v4521 = vpop.f32.mrf.mxu0
      %v4522 = vadd.f32 0.0, %v4521
      %v4523 = vpop.f32.mrf.mxu0
      %4524 = vmatprep.mubr.bf16.mxu0 0
      %4525 = vmatmul.mubr.bf16.gmra.mxu0 %v4260
      %v4526 = vpop.f32.mrf.mxu0
      %v4527 = vadd.f32 0.0, %v4526
      %v4528 = vpop.f32.mrf.mxu0
      %v4529 = vpop.f32.mrf.mxu0
      %v4530 = vadd.f32 0.0, %v4529
      %v4531 = vpop.f32.mrf.mxu0
      %4532 = vmatprep.mubr.bf16.mxu0 0
      %4533 = vmatmul.mubr.bf16.gmra.mxu0 %v4261
      %v4534 = vpop.f32.mrf.mxu0
      %v4535 = vadd.f32 0.0, %v4534
      %v4536 = vpop.f32.mrf.mxu0
      %v4537 = vpop.f32.mrf.mxu0
      %v4538 = vadd.f32 0.0, %v4537
      %v4539 = vpop.f32.mrf.mxu0
      %4540 = vmatprep.mubr.bf16.mxu0 0
      %4541 = vmatmul.mubr.bf16.gmra.mxu0 %v4262
      %v4542 = vpop.f32.mrf.mxu0
      %v4543 = vadd.f32 0.0, %v4542
      %v4544 = vpop.f32.mrf.mxu0
      %v4545 = vpop.f32.mrf.mxu0
      %v4546 = vadd.f32 0.0, %v4545
      %v4547 = vpop.f32.mrf.mxu0
      %4548 = vmatprep.mubr.bf16.mxu0 0
      %4549 = vmatmul.mubr.bf16.gmra.mxu0 %v4263
      %v4550 = vpop.f32.mrf.mxu0
      %v4551 = vadd.f32 0.0, %v4550
      %v4552 = vpop.f32.mrf.mxu0
      %v4553 = vpop.f32.mrf.mxu0
      %v4554 = vadd.f32 0.0, %v4553
      %v4555 = vpop.f32.mrf.mxu0
      %4556 = vmatprep.mubr.bf16.mxu0 0
      %4557 = vmatmul.mubr.bf16.gmra.mxu0 %v4264
      %v4558 = vpop.f32.mrf.mxu0
      %v4559 = vadd.f32 0.0, %v4558
      %v4560 = vpop.f32.mrf.mxu0
      %v4561 = vpop.f32.mrf.mxu0
      %v4562 = vadd.f32 0.0, %v4561
      %v4563 = vpop.f32.mrf.mxu0
      %4564 = vmatprep.mubr.bf16.mxu0 0
      %4565 = vmatmul.mubr.bf16.gmra.mxu0 %v4265
      %v4566 = vpop.f32.mrf.mxu0
      %v4567 = vadd.f32 0.0, %v4566
      %v4568 = vpop.f32.mrf.mxu0
      %v4569 = vpop.f32.mrf.mxu0
      %v4570 = vadd.f32 0.0, %v4569
      %v4571 = vpop.f32.mrf.mxu0
      %4572 = vmatprep.mubr.bf16.mxu0 0
      %4573 = vmatmul.mubr.bf16.gmra.mxu0 %v4266
      %v4574 = vpop.f32.mrf.mxu0
      %v4575 = vadd.f32 0.0, %v4574
      %v4576 = vpop.f32.mrf.mxu0
      %v4577 = vpop.f32.mrf.mxu0
      %v4578 = vadd.f32 0.0, %v4577
      %v4579 = vpop.f32.mrf.mxu0
      %4580 = vmatprep.mubr.bf16.mxu0 0
      %4581 = vmatmul.mubr.bf16.gmra.mxu0 %v4267
      %v4582 = vpop.f32.mrf.mxu0
      %v4583 = vadd.f32 0.0, %v4582
      %v4584 = vpop.f32.mrf.mxu0
      %v4585 = vpop.f32.mrf.mxu0
      %v4586 = vadd.f32 0.0, %v4585
      %v4587 = vpop.f32.mrf.mxu0
      %4588 = vmatprep.mubr.bf16.mxu0 0
      %4589 = vmatmul.mubr.bf16.gmra.mxu0 %v4268
      %v4590 = vpop.f32.mrf.mxu0
      %v4591 = vadd.f32 0.0, %v4590
      %v4592 = vpop.f32.mrf.mxu0
      %v4593 = vpop.f32.mrf.mxu0
      %v4594 = vadd.f32 0.0, %v4593
      %v4595 = vpop.f32.mrf.mxu0
      %4596 = vmatprep.mubr.bf16.mxu0 0
      %4597 = vmatmul.mubr.bf16.gmra.mxu0 %v4269
      %v4598 = vpop.f32.mrf.mxu0
      %v4599 = vadd.f32 0.0, %v4598
      %v4600 = vpop.f32.mrf.mxu0
      %v4601 = vpop.f32.mrf.mxu0
      %v4602 = vadd.f32 0.0, %v4601
      %v4603 = vpop.f32.mrf.mxu0
      %4604 = vmatprep.mubr.bf16.mxu0 0
      %4605 = vmatmul.mubr.bf16.gmra.mxu0 %v4270
      %v4606 = vpop.f32.mrf.mxu0
      %v4607 = vadd.f32 0.0, %v4606
      %v4608 = vpop.f32.mrf.mxu0
      %v4609 = vpop.f32.mrf.mxu0
      %v4610 = vadd.f32 0.0, %v4609
      %v4611 = vpop.f32.mrf.mxu0
      %4612 = vmatprep.mubr.bf16.mxu0 0
      %4613 = vmatmul.mubr.bf16.gmra.mxu0 %v4271
      %v4614 = vpop.f32.mrf.mxu0
      %v4615 = vadd.f32 0.0, %v4614
      %v4616 = vpop.f32.mrf.mxu0
      %v4617 = vpop.f32.mrf.mxu0
      %v4618 = vadd.f32 0.0, %v4617
      %v4619 = vpop.f32.mrf.mxu0
      %4620 = vmatprep.mubr.bf16.mxu0 0
      %4621 = vmatmul.mubr.bf16.gmra.mxu0 %v4272
      %v4622 = vpop.f32.mrf.mxu0
      %v4623 = vadd.f32 0.0, %v4622
      %v4624 = vpop.f32.mrf.mxu0
      %v4625 = vpop.f32.mrf.mxu0
      %v4626 = vadd.f32 0.0, %v4625
      %v4627 = vpop.f32.mrf.mxu0
      %4628 = vmatprep.mubr.bf16.mxu0 0
      %4629 = vmatmul.mubr.bf16.gmra.mxu0 %v4273
      %v4630 = vpop.f32.mrf.mxu0
      %v4631 = vadd.f32 0.0, %v4630
      %v4632 = vpop.f32.mrf.mxu0
      %v4633 = vpop.f32.mrf.mxu0
      %v4634 = vadd.f32 0.0, %v4633
      %v4635 = vpop.f32.mrf.mxu0
      %4636 = vmatprep.mubr.bf16.mxu0 0
      %4637 = vmatmul.mubr.bf16.gmra.mxu0 %v4274
      %v4638 = vpop.f32.mrf.mxu0
      %v4639 = vadd.f32 0.0, %v4638
      %v4640 = vpop.f32.mrf.mxu0
      %v4641 = vpop.f32.mrf.mxu0
      %v4642 = vadd.f32 0.0, %v4641
      %v4643 = vpop.f32.mrf.mxu0
      %4644 = vmatprep.mubr.bf16.mxu0 0
      %4645 = vmatmul.mubr.bf16.gmra.mxu0 %v4275
      %v4646 = vpop.f32.mrf.mxu0
      %v4647 = vadd.f32 0.0, %v4646
      %v4648 = vpop.f32.mrf.mxu0
      %v4649 = vpop.f32.mrf.mxu0
      %v4650 = vadd.f32 0.0, %v4649
      %v4651 = vpop.f32.mrf.mxu0
      %4652 = vmatprep.mubr.bf16.mxu0 0
      %4653 = vmatmul.mubr.bf16.gmra.mxu0 %v4276
      %v4654 = vpop.f32.mrf.mxu0
      %v4655 = vadd.f32 0.0, %v4654
      %v4656 = vpop.f32.mrf.mxu0
      %v4657 = vpop.f32.mrf.mxu0
      %v4658 = vadd.f32 0.0, %v4657
      %v4659 = vpop.f32.mrf.mxu0
      %4660 = vmatprep.mubr.bf16.mxu0 0
      %4661 = vmatmul.mubr.bf16.gmra.mxu0 %v4277
      %v4662 = vpop.f32.mrf.mxu0
      %v4663 = vadd.f32 0.0, %v4662
      %v4664 = vpop.f32.mrf.mxu0
      %v4665 = vpop.f32.mrf.mxu0
      %v4666 = vadd.f32 0.0, %v4665
      %v4667 = vpop.f32.mrf.mxu0
      %4668 = vmatprep.mubr.bf16.mxu0 0
      %4669 = vmatmul.mubr.bf16.gmra.mxu0 %v4278
      %v4670 = vpop.f32.mrf.mxu0
      %v4671 = vadd.f32 0.0, %v4670
      %v4672 = vpop.f32.mrf.mxu0
      %v4673 = vpop.f32.mrf.mxu0
      %v4674 = vadd.f32 0.0, %v4673
      %v4675 = vpop.f32.mrf.mxu0
      %4676 = vmatprep.mubr.bf16.mxu0 0
      %4677 = vmatmul.mubr.bf16.gmra.mxu0 %v4279
      %v4678 = vpop.f32.mrf.mxu0
      %v4679 = vadd.f32 0.0, %v4678
      %v4680 = vpop.f32.mrf.mxu0
      %v4681 = vpop.f32.mrf.mxu0
      %v4682 = vadd.f32 0.0, %v4681
      %v4683 = vpop.f32.mrf.mxu0
      %4684 = vmatprep.mubr.bf16.mxu0 0
      %4685 = vmatmul.mubr.bf16.gmra.mxu0 %v4280
      %v4686 = vpop.f32.mrf.mxu0
      %v4687 = vadd.f32 0.0, %v4686
      %v4688 = vpop.f32.mrf.mxu0
      %v4689 = vpop.f32.mrf.mxu0
      %v4690 = vadd.f32 0.0, %v4689
      %v4691 = vpop.f32.mrf.mxu0
      %4692 = vmatprep.mubr.bf16.mxu0 0
      %4693 = vmatmul.mubr.bf16.gmra.mxu0 %v4281
      %v4694 = vpop.f32.mrf.mxu0
      %v4695 = vadd.f32 0.0, %v4694
      %v4696 = vpop.f32.mrf.mxu0
      %v4697 = vpop.f32.mrf.mxu0
      %v4698 = vadd.f32 0.0, %v4697
      %v4699 = vpop.f32.mrf.mxu0
      %4700 = vmatprep.mubr.bf16.mxu0 0
      %4701 = vmatmul.mubr.bf16.gmra.mxu0 %v4282
      %v4702 = vpop.f32.mrf.mxu0
      %v4703 = vadd.f32 0.0, %v4702
      %v4704 = vpop.f32.mrf.mxu0
      %v4705 = vpop.f32.mrf.mxu0
      %v4706 = vadd.f32 0.0, %v4705
      %v4707 = vpop.f32.mrf.mxu0
      %4708 = vmatprep.mubr.bf16.mxu0 0
      %4709 = vmatmul.mubr.bf16.gmra.mxu0 %v4283
      %v4710 = vpop.f32.mrf.mxu0
      %v4711 = vadd.f32 0.0, %v4710
      %v4712 = vpop.f32.mrf.mxu0
      %v4713 = vpop.f32.mrf.mxu0
      %v4714 = vadd.f32 0.0, %v4713
      %v4715 = vpop.f32.mrf.mxu0
      %4716 = vmatprep.mubr.bf16.mxu0 0
      %4717 = vmatmul.mubr.bf16.gmra.mxu0 %v4284
      %v4718 = vpop.f32.mrf.mxu0
      %v4719 = vadd.f32 0.0, %v4718
      %v4720 = vpop.f32.mrf.mxu0
      %v4721 = vpop.f32.mrf.mxu0
      %v4722 = vadd.f32 0.0, %v4721
      %v4723 = vpop.f32.mrf.mxu0
      %4724 = vmatprep.mubr.bf16.mxu0 0
      %4725 = vmatmul.mubr.bf16.gmra.mxu0 %v4285
      %v4726 = vpop.f32.mrf.mxu0
      %v4727 = vadd.f32 0.0, %v4726
      %v4728 = vpop.f32.mrf.mxu0
      %v4729 = vpop.f32.mrf.mxu0
      %v4730 = vadd.f32 0.0, %v4729
      %v4731 = vpop.f32.mrf.mxu0
      %4732 = vmatprep.mubr.bf16.mxu0 0
      %4733 = vmatmul.mubr.bf16.gmra.mxu0 %v4286
      %v4734 = vpop.f32.mrf.mxu0
      %v4735 = vadd.f32 0.0, %v4734
      %v4736 = vpop.f32.mrf.mxu0
      %v4737 = vpop.f32.mrf.mxu0
      %v4738 = vadd.f32 0.0, %v4737
      %v4739 = vpop.f32.mrf.mxu0
      %4740 = vmatprep.mubr.bf16.mxu0 0
      %4741 = vmatmul.mubr.bf16.gmra.mxu0 %v4287
      %v4742 = vpop.f32.mrf.mxu0
      %v4743 = vadd.f32 0.0, %v4742
      %v4744 = vpop.f32.mrf.mxu0
      %v4745 = vpop.f32.mrf.mxu0
      %v4746 = vadd.f32 0.0, %v4745
      %v4747 = vpop.f32.mrf.mxu0
      %4748 = vmatprep.mubr.bf16.mxu0 0
      %4749 = vmatmul.mubr.bf16.gmra.mxu0 %v4288
      %v4750 = vpop.f32.mrf.mxu0
      %v4751 = vadd.f32 0.0, %v4750
      %v4752 = vpop.f32.mrf.mxu0
      %v4753 = vpop.f32.mrf.mxu0
      %v4754 = vadd.f32 0.0, %v4753
      %v4755 = vpop.f32.mrf.mxu0
      %4756 = vmatprep.mubr.bf16.mxu0 0
      %4757 = vmatmul.mubr.bf16.gmra.mxu0 %v4289
      %v4758 = vpop.f32.mrf.mxu0
      %v4759 = vadd.f32 0.0, %v4758
      %v4760 = vpop.f32.mrf.mxu0
      %v4761 = vpop.f32.mrf.mxu0
      %v4762 = vadd.f32 0.0, %v4761
      %v4763 = vpop.f32.mrf.mxu0
      %4764 = vmatprep.mubr.bf16.mxu0 0
      %4765 = vmatmul.mubr.bf16.gmra.mxu0 %v4290
      %v4766 = vpop.f32.mrf.mxu0
      %v4767 = vadd.f32 0.0, %v4766
      %v4768 = vpop.f32.mrf.mxu0
      %v4769 = vpop.f32.mrf.mxu0
      %v4770 = vadd.f32 0.0, %v4769
      %v4771 = vpop.f32.mrf.mxu0
      %4772 = vmatprep.mubr.bf16.mxu0 0
      %4773 = vmatmul.mubr.bf16.gmra.mxu0 %v4291
      %v4774 = vpop.f32.mrf.mxu0
      %v4775 = vadd.f32 0.0, %v4774
      %v4776 = vpop.f32.mrf.mxu0
      %v4777 = vpop.f32.mrf.mxu0
      %v4778 = vadd.f32 0.0, %v4777
      %v4779 = vpop.f32.mrf.mxu0
      %4780 = vmatprep.mubr.bf16.mxu0 0
      %4781 = vmatmul.mubr.bf16.gmra.mxu0 %v4292
      %v4782 = vpop.f32.mrf.mxu0
      %v4783 = vadd.f32 0.0, %v4782
      %v4784 = vpop.f32.mrf.mxu0
      %v4785 = vpop.f32.mrf.mxu0
      %v4786 = vadd.f32 0.0, %v4785
      %v4787 = vpop.f32.mrf.mxu0
      %4788 = vmatprep.mubr.bf16.mxu0 0
      %4789 = vmatmul.mubr.bf16.gmra.mxu0 %v4293
      %v4790 = vpop.f32.mrf.mxu0
      %v4791 = vadd.f32 0.0, %v4790
      %v4792 = vpop.f32.mrf.mxu0
      %v4793 = vpop.f32.mrf.mxu0
      %v4794 = vadd.f32 0.0, %v4793
      %v4795 = vpop.f32.mrf.mxu0
      %4796 = vmatprep.mubr.bf16.mxu0 0
      %4797 = vmatmul.mubr.bf16.gmra.mxu0 %v4294
      %v4798 = vpop.f32.mrf.mxu0
      %v4799 = vadd.f32 0.0, %v4798
      %v4800 = vpop.f32.mrf.mxu0
      %v4801 = vpop.f32.mrf.mxu0
      %v4802 = vadd.f32 0.0, %v4801
      %v4803 = vpop.f32.mrf.mxu0
      %4804 = vmatprep.mubr.bf16.mxu0 0
      %4805 = vmatmul.mubr.bf16.gmra.mxu0 %v4295
      %v4806 = vpop.f32.mrf.mxu0
      %v4807 = vadd.f32 0.0, %v4806
      %v4808 = vpop.f32.mrf.mxu0
      %v4809 = vpop.f32.mrf.mxu0
      %v4810 = vadd.f32 0.0, %v4809
      %v4811 = vpop.f32.mrf.mxu0
      %4812 = vmatprep.mubr.bf16.mxu0 0
      %4813 = vmatmul.mubr.bf16.gmra.mxu0 %v4296
      %v4814 = vpop.f32.mrf.mxu0
      %v4815 = vadd.f32 0.0, %v4814
      %v4816 = vpop.f32.mrf.mxu0
      %v4817 = vpop.f32.mrf.mxu0
      %v4818 = vadd.f32 0.0, %v4817
      %v4819 = vpop.f32.mrf.mxu0
      %4820 = vmatprep.mubr.bf16.mxu0 0
      %4821 = vmatmul.mubr.bf16.gmra.mxu0 %v4297
      %v4822 = vpop.f32.mrf.mxu0
      %v4823 = vadd.f32 0.0, %v4822
      %v4824 = vpop.f32.mrf.mxu0
      %v4825 = vpop.f32.mrf.mxu0
      %v4826 = vadd.f32 0.0, %v4825
      %v4827 = vpop.f32.mrf.mxu0
      %4828 = vmatprep.mubr.bf16.mxu0 0
      %4829 = vmatmul.mubr.bf16.gmra.mxu0 %v4298
      %v4830 = vpop.f32.mrf.mxu0
      %v4831 = vadd.f32 0.0, %v4830
      %v4832 = vpop.f32.mrf.mxu0
      %v4833 = vpop.f32.mrf.mxu0
      %v4834 = vadd.f32 0.0, %v4833
      %v4835 = vpop.f32.mrf.mxu0
      %4836 = vmatprep.mubr.bf16.mxu0 0
      %4837 = vmatmul.mubr.bf16.gmra.mxu0 %v4299
      %v4838 = vpop.f32.mrf.mxu0
      %v4839 = vadd.f32 0.0, %v4838
      %v4840 = vpop.f32.mrf.mxu0
      %v4841 = vpop.f32.mrf.mxu0
      %v4842 = vadd.f32 0.0, %v4841
      %v4843 = vpop.f32.mrf.mxu0
      %4844 = vmatprep.mubr.bf16.mxu0 0
      %4845 = vmatmul.mubr.bf16.gmra.mxu0 %v4300
      %v4846 = vpop.f32.mrf.mxu0
      %v4847 = vadd.f32 0.0, %v4846
      %v4848 = vpop.f32.mrf.mxu0
      %v4849 = vpop.f32.mrf.mxu0
      %v4850 = vadd.f32 0.0, %v4849
      %v4851 = vpop.f32.mrf.mxu0
      %4852 = vmatprep.mubr.bf16.mxu0 0
      %4853 = vmatmul.mubr.bf16.gmra.mxu0 %v4301
      %v4854 = vpop.f32.mrf.mxu0
      %v4855 = vadd.f32 0.0, %v4854
      %v4856 = vpop.f32.mrf.mxu0
      %v4857 = vpop.f32.mrf.mxu0
      %v4858 = vadd.f32 0.0, %v4857
      %v4859 = vpop.f32.mrf.mxu0
      %4860 = vmatprep.mubr.bf16.mxu0 0
      %4861 = vmatmul.mubr.bf16.gmra.mxu0 %v4302
      %v4862 = vpop.f32.mrf.mxu0
      %v4863 = vadd.f32 0.0, %v4862
      %v4864 = vpop.f32.mrf.mxu0
      %v4865 = vpop.f32.mrf.mxu0
      %v4866 = vadd.f32 0.0, %v4865
      %v4867 = vpop.f32.mrf.mxu0
      %4868 = vmatprep.mubr.bf16.mxu0 0
      %4869 = vmatmul.mubr.bf16.gmra.mxu0 %v4303
      %v4870 = vpop.f32.mrf.mxu0
      %v4871 = vadd.f32 0.0, %v4870
      %v4872 = vpop.f32.mrf.mxu0
      %v4873 = vpop.f32.mrf.mxu0
      %v4874 = vadd.f32 0.0, %v4873
      %v4875 = vpop.f32.mrf.mxu0
      %4876 = vmatprep.mubr.bf16.mxu0 0
      %4877 = vmatmul.mubr.bf16.gmra.mxu0 %v4304
      %v4878 = vpop.f32.mrf.mxu0
      %v4879 = vadd.f32 0.0, %v4878
      %v4880 = vpop.f32.mrf.mxu0
      %v4881 = vpop.f32.mrf.mxu0
      %v4882 = vadd.f32 0.0, %v4881
      %v4883 = vpop.f32.mrf.mxu0
      %4884 = vmatprep.mubr.bf16.mxu0 0
      %4885 = vmatmul.mubr.bf16.gmra.mxu0 %v4305
      %v4886 = vpop.f32.mrf.mxu0
      %v4887 = vadd.f32 0.0, %v4886
      %v4888 = vpop.f32.mrf.mxu0
      %v4889 = vpop.f32.mrf.mxu0
      %v4890 = vadd.f32 0.0, %v4889
      %v4891 = vpop.f32.mrf.mxu0
      %4892 = vmatprep.mubr.bf16.mxu0 0
      %4893 = vmatmul.mubr.bf16.gmra.mxu0 %v4306
      %v4894 = vpop.f32.mrf.mxu0
      %v4895 = vadd.f32 0.0, %v4894
      %v4896 = vpop.f32.mrf.mxu0
      %v4897 = vpop.f32.mrf.mxu0
      %v4898 = vadd.f32 0.0, %v4897
      %v4899 = vpop.f32.mrf.mxu0
      %4900 = vmatprep.mubr.bf16.mxu0 0
      %4901 = vmatmul.mubr.bf16.gmra.mxu0 %v4307
      %v4902 = vpop.f32.mrf.mxu0
      %v4903 = vadd.f32 0.0, %v4902
      %v4904 = vpop.f32.mrf.mxu0
      %v4905 = vpop.f32.mrf.mxu0
      %v4906 = vadd.f32 0.0, %v4905
      %v4907 = vpop.f32.mrf.mxu0
      %4908 = vmatprep.mubr.bf16.mxu0 0
      %4909 = vmatmul.mubr.bf16.gmra.mxu0 %v4308
      %v4910 = vpop.f32.mrf.mxu0
      %v4911 = vadd.f32 0.0, %v4910
      %v4912 = vpop.f32.mrf.mxu0
      %v4913 = vpop.f32.mrf.mxu0
      %v4914 = vadd.f32 0.0, %v4913
      %v4915 = vpop.f32.mrf.mxu0
      %4916 = vmatprep.mubr.bf16.mxu0 0
      %4917 = vmatmul.mubr.bf16.gmra.mxu0 %v4309
      %v4918 = vpop.f32.mrf.mxu0
      %v4919 = vadd.f32 0.0, %v4918
      %v4920 = vpop.f32.mrf.mxu0
      %v4921 = vpop.f32.mrf.mxu0
      %v4922 = vadd.f32 0.0, %v4921
      %v4923 = vpop.f32.mrf.mxu0
      %4924 = vmatprep.mubr.bf16.mxu0 0
      %4925 = vmatmul.mubr.bf16.gmra.mxu0 %v4310
      %v4926 = vpop.f32.mrf.mxu0
      %v4927 = vadd.f32 0.0, %v4926
      %v4928 = vpop.f32.mrf.mxu0
      %v4929 = vpop.f32.mrf.mxu0
      %v4930 = vadd.f32 0.0, %v4929
      %v4931 = vpop.f32.mrf.mxu0
      %4932 = vmatprep.mubr.bf16.mxu0 0
      %4933 = vmatmul.mubr.bf16.gmra.mxu0 %v4311
      %v4934 = vpop.f32.mrf.mxu0
      %v4935 = vadd.f32 0.0, %v4934
      %v4936 = vpop.f32.mrf.mxu0
      %v4937 = vpop.f32.mrf.mxu0
      %v4938 = vadd.f32 0.0, %v4937
      %v4939 = vpop.f32.mrf.mxu0
      %4940 = vmatprep.mubr.bf16.mxu0 0
      %4941 = vmatmul.mubr.bf16.gmra.mxu0 %v4312
      %v4942 = vpop.f32.mrf.mxu0
      %v4943 = vadd.f32 0.0, %v4942
      %v4944 = vpop.f32.mrf.mxu0
      %v4945 = vpop.f32.mrf.mxu0
      %v4946 = vadd.f32 0.0, %v4945
      %v4947 = vpop.f32.mrf.mxu0
      %4948 = vmatprep.mubr.bf16.mxu0 0
      %4949 = vmatmul.mubr.bf16.gmra.mxu0 %v4313
      %v4950 = vpop.f32.mrf.mxu0
      %v4951 = vadd.f32 0.0, %v4950
      %v4952 = vpop.f32.mrf.mxu0
      %v4953 = vpop.f32.mrf.mxu0
      %v4954 = vadd.f32 0.0, %v4953
      %v4955 = vpop.f32.mrf.mxu0
      %4956 = vmatprep.mubr.bf16.mxu0 0
      %4957 = vmatmul.mubr.bf16.gmra.mxu0 %v4314
      %v4958 = vpop.f32.mrf.mxu0
      %v4959 = vadd.f32 0.0, %v4958
      %v4960 = vpop.f32.mrf.mxu0
      %v4961 = vpop.f32.mrf.mxu0
      %v4962 = vadd.f32 0.0, %v4961
      %v4963 = vpop.f32.mrf.mxu0
      %4964 = vmatprep.mubr.bf16.mxu0 0
      %4965 = vmatmul.mubr.bf16.gmra.mxu0 %v4315
      %v4966 = vpop.f32.mrf.mxu0
      %v4967 = vadd.f32 0.0, %v4966
      %v4968 = vpop.f32.mrf.mxu0
      %v4969 = vpop.f32.mrf.mxu0
      %v4970 = vadd.f32 0.0, %v4969
      %v4971 = vpop.f32.mrf.mxu0
      %4972 = vdwg.mxu0
      %v4973 = vadd.f32 %v3146, %v4463
      %v4974 = vadd.f32 %v3149, %v4466
      %v4975 = vadd.f32 %v3154, %v4471
      %v4976 = vadd.f32 %v3157, %v4474
      %v4977 = vadd.f32 %v3162, %v4479
      %v4978 = vadd.f32 %v3165, %v4482
      %v4979 = vadd.f32 %v3170, %v4487
      %v4980 = vadd.f32 %v3173, %v4490
      %v4981 = vadd.f32 %v3178, %v4495
      %v4982 = vadd.f32 %v3181, %v4498
      %v4983 = vadd.f32 %v3186, %v4503
      %v4984 = vadd.f32 %v3189, %v4506
      %v4985 = vadd.f32 %v3194, %v4511
      %v4986 = vadd.f32 %v3197, %v4514
      %v4987 = vadd.f32 %v3202, %v4519
      %v4988 = vadd.f32 %v3205, %v4522
      %v4989 = vadd.f32 %v3210, %v4527
      %v4990 = vadd.f32 %v3213, %v4530
      %v4991 = vadd.f32 %v3218, %v4535
      %v4992 = vadd.f32 %v3221, %v4538
      %v4993 = vadd.f32 %v3226, %v4543
      %v4994 = vadd.f32 %v3229, %v4546
      %v4995 = vadd.f32 %v3234, %v4551
      %v4996 = vadd.f32 %v3237, %v4554
      %v4997 = vadd.f32 %v3242, %v4559
      %v4998 = vadd.f32 %v3245, %v4562
      %v4999 = vadd.f32 %v3250, %v4567
      %v5000 = vadd.f32 %v3253, %v4570
      %v5001 = vadd.f32 %v3258, %v4575
      %v5002 = vadd.f32 %v3261, %v4578
      %v5003 = vadd.f32 %v3266, %v4583
      %v5004 = vadd.f32 %v3269, %v4586
      %v5005 = vadd.f32 %v3274, %v4591
      %v5006 = vadd.f32 %v3277, %v4594
      %v5007 = vadd.f32 %v3282, %v4599
      %v5008 = vadd.f32 %v3285, %v4602
      %v5009 = vadd.f32 %v3290, %v4607
      %v5010 = vadd.f32 %v3293, %v4610
      %v5011 = vadd.f32 %v3298, %v4615
      %v5012 = vadd.f32 %v3301, %v4618
      %v5013 = vadd.f32 %v3306, %v4623
      %v5014 = vadd.f32 %v3309, %v4626
      %v5015 = vadd.f32 %v3314, %v4631
      %v5016 = vadd.f32 %v3317, %v4634
      %v5017 = vadd.f32 %v3322, %v4639
      %v5018 = vadd.f32 %v3325, %v4642
      %v5019 = vadd.f32 %v3330, %v4647
      %v5020 = vadd.f32 %v3333, %v4650
      %v5021 = vadd.f32 %v3338, %v4655
      %v5022 = vadd.f32 %v3341, %v4658
      %v5023 = vadd.f32 %v3346, %v4663
      %v5024 = vadd.f32 %v3349, %v4666
      %v5025 = vadd.f32 %v3354, %v4671
      %v5026 = vadd.f32 %v3357, %v4674
      %v5027 = vadd.f32 %v3362, %v4679
      %v5028 = vadd.f32 %v3365, %v4682
      %v5029 = vadd.f32 %v3370, %v4687
      %v5030 = vadd.f32 %v3373, %v4690
      %v5031 = vadd.f32 %v3378, %v4695
      %v5032 = vadd.f32 %v3381, %v4698
      %v5033 = vadd.f32 %v3386, %v4703
      %v5034 = vadd.f32 %v3389, %v4706
      %v5035 = vadd.f32 %v3394, %v4711
      %v5036 = vadd.f32 %v3397, %v4714
      %v5037 = vadd.f32 %v3402, %v4719
      %v5038 = vadd.f32 %v3405, %v4722
      %v5039 = vadd.f32 %v3410, %v4727
      %v5040 = vadd.f32 %v3413, %v4730
      %v5041 = vadd.f32 %v3418, %v4735
      %v5042 = vadd.f32 %v3421, %v4738
      %v5043 = vadd.f32 %v3426, %v4743
      %v5044 = vadd.f32 %v3429, %v4746
      %v5045 = vadd.f32 %v3434, %v4751
      %v5046 = vadd.f32 %v3437, %v4754
      %v5047 = vadd.f32 %v3442, %v4759
      %v5048 = vadd.f32 %v3445, %v4762
      %v5049 = vadd.f32 %v3450, %v4767
      %v5050 = vadd.f32 %v3453, %v4770
      %v5051 = vadd.f32 %v3458, %v4775
      %v5052 = vadd.f32 %v3461, %v4778
      %v5053 = vadd.f32 %v3466, %v4783
      %v5054 = vadd.f32 %v3469, %v4786
      %v5055 = vadd.f32 %v3474, %v4791
      %v5056 = vadd.f32 %v3477, %v4794
      %v5057 = vadd.f32 %v3482, %v4799
      %v5058 = vadd.f32 %v3485, %v4802
      %v5059 = vadd.f32 %v3490, %v4807
      %v5060 = vadd.f32 %v3493, %v4810
      %v5061 = vadd.f32 %v3498, %v4815
      %v5062 = vadd.f32 %v3501, %v4818
      %v5063 = vadd.f32 %v3506, %v4823
      %v5064 = vadd.f32 %v3509, %v4826
      %v5065 = vadd.f32 %v3514, %v4831
      %v5066 = vadd.f32 %v3517, %v4834
      %v5067 = vadd.f32 %v3522, %v4839
      %v5068 = vadd.f32 %v3525, %v4842
      %v5069 = vadd.f32 %v3530, %v4847
      %v5070 = vadd.f32 %v3533, %v4850
      %v5071 = vadd.f32 %v3538, %v4855
      %v5072 = vadd.f32 %v3541, %v4858
      %v5073 = vadd.f32 %v3546, %v4863
      %v5074 = vadd.f32 %v3549, %v4866
      %v5075 = vadd.f32 %v3554, %v4871
      %v5076 = vadd.f32 %v3557, %v4874
      %v5077 = vadd.f32 %v3562, %v4879
      %v5078 = vadd.f32 %v3565, %v4882
      %v5079 = vadd.f32 %v3570, %v4887
      %v5080 = vadd.f32 %v3573, %v4890
      %v5081 = vadd.f32 %v3578, %v4895
      %v5082 = vadd.f32 %v3581, %v4898
      %v5083 = vadd.f32 %v3586, %v4903
      %v5084 = vadd.f32 %v3589, %v4906
      %v5085 = vadd.f32 %v3594, %v4911
      %v5086 = vadd.f32 %v3597, %v4914
      %v5087 = vadd.f32 %v3602, %v4919
      %v5088 = vadd.f32 %v3605, %v4922
      %v5089 = vadd.f32 %v3610, %v4927
      %v5090 = vadd.f32 %v3613, %v4930
      %v5091 = vadd.f32 %v3618, %v4935
      %v5092 = vadd.f32 %v3621, %v4938
      %v5093 = vadd.f32 %v3626, %v4943
      %v5094 = vadd.f32 %v3629, %v4946
      %v5095 = vadd.f32 %v3634, %v4951
      %v5096 = vadd.f32 %v3637, %v4954
      %v5097 = vadd.f32 %v3642, %v4959
      %v5098 = vadd.f32 %v3645, %v4962
      %v5099 = vadd.f32 %v3650, %v4967
      %v5100 = vadd.f32 %v3653, %v4970
      %s5101 = scalar_lea.vmem %s1, 192
      %v5102 = vld [vmem:[%s5101] sm:$0xf]
      %v5103 = vld [vmem:[%s5101 + $0x4] sm:$0xf]
      %v5104 = vld [vmem:[%s5101 + $0x8] sm:$0xf]
      %v5105 = vld [vmem:[%s5101 + $0xc] sm:$0xf]
      %v5106 = vld [vmem:[%s5101 + $0x10] sm:$0xf]
      %v5107 = vld [vmem:[%s5101 + $0x14] sm:$0xf]
      %v5108 = vld [vmem:[%s5101 + $0x18] sm:$0xf]
      %v5109 = vld [vmem:[%s5101 + $0x1c] sm:$0xf]
      %v5110 = vld [vmem:[%s5101 + $0x20] sm:$0xf]
      %v5111 = vld [vmem:[%s5101 + $0x24] sm:$0xf]
      %v5112 = vld [vmem:[%s5101 + $0x28] sm:$0xf]
      %v5113 = vld [vmem:[%s5101 + $0x2c] sm:$0xf]
      %v5114 = vld [vmem:[%s5101 + $0x30] sm:$0xf]
      %v5115 = vld [vmem:[%s5101 + $0x34] sm:$0xf]
      %v5116 = vld [vmem:[%s5101 + $0x38] sm:$0xf]
      %v5117 = vld [vmem:[%s5101 + $0x3c] sm:$0xf]
      %v5122 = vunpack.c.l.b16 %v376
      %v5123 = vunpack.c.l.b16 %v377
      %v5124 = vunpack.c.l.b16 %v378
      %v5125 = vunpack.c.l.b16 %v379
      %v5126 = vpack.c.b16 %v5123, %v5122
      %v5127 = vpack.c.b16 %v5125, %v5124
      %v5146 = vunpack.c.l.b16 %v5102
      %v5147 = vunpack.c.l.b16 %v5103
      %v5148 = vunpack.c.l.b16 %v5104
      %v5149 = vunpack.c.l.b16 %v5105
      %v5150 = vunpack.c.l.b16 %v5106
      %v5151 = vunpack.c.l.b16 %v5107
      %v5152 = vunpack.c.l.b16 %v5108
      %v5153 = vunpack.c.l.b16 %v5109
      %v5154 = vunpack.c.l.b16 %v5110
      %v5155 = vunpack.c.l.b16 %v5111
      %v5156 = vunpack.c.l.b16 %v5112
      %v5157 = vunpack.c.l.b16 %v5113
      %v5158 = vunpack.c.l.b16 %v5114
      %v5159 = vunpack.c.l.b16 %v5115
      %v5160 = vunpack.c.l.b16 %v5116
      %v5161 = vunpack.c.l.b16 %v5117
      %v5162 = vpack.c.b16 %v5147, %v5146
      %v5163 = vpack.c.b16 %v5149, %v5148
      %v5164 = vpack.c.b16 %v5151, %v5150
      %v5165 = vpack.c.b16 %v5153, %v5152
      %v5166 = vpack.c.b16 %v5155, %v5154
      %v5167 = vpack.c.b16 %v5157, %v5156
      %v5168 = vpack.c.b16 %v5159, %v5158
      %v5169 = vpack.c.b16 %v5161, %v5160
      %5178 = vmatprep.subr.bf16.mxu0 0
      %5179 = vmatpush1.bf16.msra.mxu0 %v5169
      %5180 = vmatprep.subr.bf16.mxu0 0
      %5181 = vmatpush1.bf16.msra.mxu0 %v5168
      %5182 = vmatprep.subr.bf16.mxu0 0
      %5183 = vmatpush1.bf16.msra.mxu0 %v5167
      %5184 = vmatprep.subr.bf16.mxu0 0
      %5185 = vmatpush1.bf16.msra.mxu0 %v5166
      %5186 = vmatprep.subr.bf16.mxu0 0
      %5187 = vmatpush1.bf16.msra.mxu0 %v5165
      %5188 = vmatprep.subr.bf16.mxu0 0
      %5189 = vmatpush1.bf16.msra.mxu0 %v5164
      %5190 = vmatprep.subr.bf16.mxu0 0
      %5191 = vmatpush1.bf16.msra.mxu0 %v5163
      %5192 = vmatprep.subr.bf16.mxu0 0
      %5193 = vmatpush1.bf16.msra.mxu0 %v5162
      %5194 = vmatprep.subr.bf16.mxu0 0
      %5195 = vmatpush2.bf16.msra.mxu0 0
      %5196 = vmatprep.subr.bf16.mxu0 0
      %5197 = vmatpush2.bf16.msra.mxu0 0
      %5198 = vmatprep.subr.bf16.mxu0 0
      %5199 = vmatpush2.bf16.msra.mxu0 0
      %5200 = vmatprep.subr.bf16.mxu0 0
      %5201 = vmatpush2.bf16.msra.mxu0 0
      %5202 = vmatprep.subr.bf16.mxu0 0
      %5203 = vmatpush2.bf16.msra.mxu0 0
      %5204 = vmatprep.subr.bf16.mxu0 0
      %5205 = vmatpush2.bf16.msra.mxu0 0
      %5206 = vmatprep.subr.bf16.mxu0 0
      %5207 = vmatpush2.bf16.msra.mxu0 0
      %5208 = vmatprep.subr.bf16.mxu0 0
      %5209 = vmatpush2.bf16.msra.mxu0 0
      %5210 = vmatprep.mubr.bf16.mxu0 0
      %5211 = vmatmul.mubr.bf16.gmra.mxu0 %v2937
      %v5212 = vpop.f32.mrf.mxu0
      %v5213 = vadd.f32 0.0, %v5212
      %v5214 = vpop.f32.mrf.mxu0
      %v5215 = vpop.f32.mrf.mxu0
      %v5216 = vadd.f32 0.0, %v5215
      %v5217 = vpop.f32.mrf.mxu0
      %5218 = vmatprep.mubr.bf16.mxu0 0
      %5219 = vmatmul.mubr.bf16.gmra.mxu0 %v2938
      %v5220 = vpop.f32.mrf.mxu0
      %v5221 = vadd.f32 0.0, %v5220
      %v5222 = vpop.f32.mrf.mxu0
      %v5223 = vpop.f32.mrf.mxu0
      %v5224 = vadd.f32 0.0, %v5223
      %v5225 = vpop.f32.mrf.mxu0
      %5226 = vmatprep.mubr.bf16.mxu0 0
      %5227 = vmatmul.mubr.bf16.gmra.mxu0 %v2939
      %v5228 = vpop.f32.mrf.mxu0
      %v5229 = vadd.f32 0.0, %v5228
      %v5230 = vpop.f32.mrf.mxu0
      %v5231 = vpop.f32.mrf.mxu0
      %v5232 = vadd.f32 0.0, %v5231
      %v5233 = vpop.f32.mrf.mxu0
      %5234 = vmatprep.mubr.bf16.mxu0 0
      %5235 = vmatmul.mubr.bf16.gmra.mxu0 %v2940
      %v5236 = vpop.f32.mrf.mxu0
      %v5237 = vadd.f32 0.0, %v5236
      %v5238 = vpop.f32.mrf.mxu0
      %v5239 = vpop.f32.mrf.mxu0
      %v5240 = vadd.f32 0.0, %v5239
      %v5241 = vpop.f32.mrf.mxu0
      %5242 = vmatprep.mubr.bf16.mxu0 0
      %5243 = vmatmul.mubr.bf16.gmra.mxu0 %v2941
      %v5244 = vpop.f32.mrf.mxu0
      %v5245 = vadd.f32 0.0, %v5244
      %v5246 = vpop.f32.mrf.mxu0
      %v5247 = vpop.f32.mrf.mxu0
      %v5248 = vadd.f32 0.0, %v5247
      %v5249 = vpop.f32.mrf.mxu0
      %5250 = vmatprep.mubr.bf16.mxu0 0
      %5251 = vmatmul.mubr.bf16.gmra.mxu0 %v2942
      %v5252 = vpop.f32.mrf.mxu0
      %v5253 = vadd.f32 0.0, %v5252
      %v5254 = vpop.f32.mrf.mxu0
      %v5255 = vpop.f32.mrf.mxu0
      %v5256 = vadd.f32 0.0, %v5255
      %v5257 = vpop.f32.mrf.mxu0
      %5258 = vmatprep.mubr.bf16.mxu0 0
      %5259 = vmatmul.mubr.bf16.gmra.mxu0 %v2943
      %v5260 = vpop.f32.mrf.mxu0
      %v5261 = vadd.f32 0.0, %v5260
      %v5262 = vpop.f32.mrf.mxu0
      %v5263 = vpop.f32.mrf.mxu0
      %v5264 = vadd.f32 0.0, %v5263
      %v5265 = vpop.f32.mrf.mxu0
      %5266 = vmatprep.mubr.bf16.mxu0 0
      %5267 = vmatmul.mubr.bf16.gmra.mxu0 %v2944
      %v5268 = vpop.f32.mrf.mxu0
      %v5269 = vadd.f32 0.0, %v5268
      %v5270 = vpop.f32.mrf.mxu0
      %v5271 = vpop.f32.mrf.mxu0
      %v5272 = vadd.f32 0.0, %v5271
      %v5273 = vpop.f32.mrf.mxu0
      %5274 = vmatprep.mubr.bf16.mxu0 0
      %5275 = vmatmul.mubr.bf16.gmra.mxu0 %v2945
      %v5276 = vpop.f32.mrf.mxu0
      %v5277 = vadd.f32 0.0, %v5276
      %v5278 = vpop.f32.mrf.mxu0
      %v5279 = vpop.f32.mrf.mxu0
      %v5280 = vadd.f32 0.0, %v5279
      %v5281 = vpop.f32.mrf.mxu0
      %5282 = vmatprep.mubr.bf16.mxu0 0
      %5283 = vmatmul.mubr.bf16.gmra.mxu0 %v2946
      %v5284 = vpop.f32.mrf.mxu0
      %v5285 = vadd.f32 0.0, %v5284
      %v5286 = vpop.f32.mrf.mxu0
      %v5287 = vpop.f32.mrf.mxu0
      %v5288 = vadd.f32 0.0, %v5287
      %v5289 = vpop.f32.mrf.mxu0
      %5290 = vmatprep.mubr.bf16.mxu0 0
      %5291 = vmatmul.mubr.bf16.gmra.mxu0 %v2947
      %v5292 = vpop.f32.mrf.mxu0
      %v5293 = vadd.f32 0.0, %v5292
      %v5294 = vpop.f32.mrf.mxu0
      %v5295 = vpop.f32.mrf.mxu0
      %v5296 = vadd.f32 0.0, %v5295
      %v5297 = vpop.f32.mrf.mxu0
      %5298 = vmatprep.mubr.bf16.mxu0 0
      %5299 = vmatmul.mubr.bf16.gmra.mxu0 %v2948
      %v5300 = vpop.f32.mrf.mxu0
      %v5301 = vadd.f32 0.0, %v5300
      %v5302 = vpop.f32.mrf.mxu0
      %v5303 = vpop.f32.mrf.mxu0
      %v5304 = vadd.f32 0.0, %v5303
      %v5305 = vpop.f32.mrf.mxu0
      %5306 = vmatprep.mubr.bf16.mxu0 0
      %5307 = vmatmul.mubr.bf16.gmra.mxu0 %v2949
      %v5308 = vpop.f32.mrf.mxu0
      %v5309 = vadd.f32 0.0, %v5308
      %v5310 = vpop.f32.mrf.mxu0
      %v5311 = vpop.f32.mrf.mxu0
      %v5312 = vadd.f32 0.0, %v5311
      %v5313 = vpop.f32.mrf.mxu0
      %5314 = vmatprep.mubr.bf16.mxu0 0
      %5315 = vmatmul.mubr.bf16.gmra.mxu0 %v2950
      %v5316 = vpop.f32.mrf.mxu0
      %v5317 = vadd.f32 0.0, %v5316
      %v5318 = vpop.f32.mrf.mxu0
      %v5319 = vpop.f32.mrf.mxu0
      %v5320 = vadd.f32 0.0, %v5319
      %v5321 = vpop.f32.mrf.mxu0
      %5322 = vmatprep.mubr.bf16.mxu0 0
      %5323 = vmatmul.mubr.bf16.gmra.mxu0 %v2951
      %v5324 = vpop.f32.mrf.mxu0
      %v5325 = vadd.f32 0.0, %v5324
      %v5326 = vpop.f32.mrf.mxu0
      %v5327 = vpop.f32.mrf.mxu0
      %v5328 = vadd.f32 0.0, %v5327
      %v5329 = vpop.f32.mrf.mxu0
      %5330 = vmatprep.mubr.bf16.mxu0 0
      %5331 = vmatmul.mubr.bf16.gmra.mxu0 %v2952
      %v5332 = vpop.f32.mrf.mxu0
      %v5333 = vadd.f32 0.0, %v5332
      %v5334 = vpop.f32.mrf.mxu0
      %v5335 = vpop.f32.mrf.mxu0
      %v5336 = vadd.f32 0.0, %v5335
      %v5337 = vpop.f32.mrf.mxu0
      %5338 = vmatprep.mubr.bf16.mxu0 0
      %5339 = vmatmul.mubr.bf16.gmra.mxu0 %v2953
      %v5340 = vpop.f32.mrf.mxu0
      %v5341 = vadd.f32 0.0, %v5340
      %v5342 = vpop.f32.mrf.mxu0
      %v5343 = vpop.f32.mrf.mxu0
      %v5344 = vadd.f32 0.0, %v5343
      %v5345 = vpop.f32.mrf.mxu0
      %5346 = vmatprep.mubr.bf16.mxu0 0
      %5347 = vmatmul.mubr.bf16.gmra.mxu0 %v2954
      %v5348 = vpop.f32.mrf.mxu0
      %v5349 = vadd.f32 0.0, %v5348
      %v5350 = vpop.f32.mrf.mxu0
      %v5351 = vpop.f32.mrf.mxu0
      %v5352 = vadd.f32 0.0, %v5351
      %v5353 = vpop.f32.mrf.mxu0
      %5354 = vmatprep.mubr.bf16.mxu0 0
      %5355 = vmatmul.mubr.bf16.gmra.mxu0 %v2955
      %v5356 = vpop.f32.mrf.mxu0
      %v5357 = vadd.f32 0.0, %v5356
      %v5358 = vpop.f32.mrf.mxu0
      %v5359 = vpop.f32.mrf.mxu0
      %v5360 = vadd.f32 0.0, %v5359
      %v5361 = vpop.f32.mrf.mxu0
      %5362 = vmatprep.mubr.bf16.mxu0 0
      %5363 = vmatmul.mubr.bf16.gmra.mxu0 %v2956
      %v5364 = vpop.f32.mrf.mxu0
      %v5365 = vadd.f32 0.0, %v5364
      %v5366 = vpop.f32.mrf.mxu0
      %v5367 = vpop.f32.mrf.mxu0
      %v5368 = vadd.f32 0.0, %v5367
      %v5369 = vpop.f32.mrf.mxu0
      %5370 = vmatprep.mubr.bf16.mxu0 0
      %5371 = vmatmul.mubr.bf16.gmra.mxu0 %v2957
      %v5372 = vpop.f32.mrf.mxu0
      %v5373 = vadd.f32 0.0, %v5372
      %v5374 = vpop.f32.mrf.mxu0
      %v5375 = vpop.f32.mrf.mxu0
      %v5376 = vadd.f32 0.0, %v5375
      %v5377 = vpop.f32.mrf.mxu0
      %5378 = vmatprep.mubr.bf16.mxu0 0
      %5379 = vmatmul.mubr.bf16.gmra.mxu0 %v2958
      %v5380 = vpop.f32.mrf.mxu0
      %v5381 = vadd.f32 0.0, %v5380
      %v5382 = vpop.f32.mrf.mxu0
      %v5383 = vpop.f32.mrf.mxu0
      %v5384 = vadd.f32 0.0, %v5383
      %v5385 = vpop.f32.mrf.mxu0
      %5386 = vmatprep.mubr.bf16.mxu0 0
      %5387 = vmatmul.mubr.bf16.gmra.mxu0 %v2959
      %v5388 = vpop.f32.mrf.mxu0
      %v5389 = vadd.f32 0.0, %v5388
      %v5390 = vpop.f32.mrf.mxu0
      %v5391 = vpop.f32.mrf.mxu0
      %v5392 = vadd.f32 0.0, %v5391
      %v5393 = vpop.f32.mrf.mxu0
      %5394 = vmatprep.mubr.bf16.mxu0 0
      %5395 = vmatmul.mubr.bf16.gmra.mxu0 %v2960
      %v5396 = vpop.f32.mrf.mxu0
      %v5397 = vadd.f32 0.0, %v5396
      %v5398 = vpop.f32.mrf.mxu0
      %v5399 = vpop.f32.mrf.mxu0
      %v5400 = vadd.f32 0.0, %v5399
      %v5401 = vpop.f32.mrf.mxu0
      %5402 = vmatprep.mubr.bf16.mxu0 0
      %5403 = vmatmul.mubr.bf16.gmra.mxu0 %v2961
      %v5404 = vpop.f32.mrf.mxu0
      %v5405 = vadd.f32 0.0, %v5404
      %v5406 = vpop.f32.mrf.mxu0
      %v5407 = vpop.f32.mrf.mxu0
      %v5408 = vadd.f32 0.0, %v5407
      %v5409 = vpop.f32.mrf.mxu0
      %5410 = vmatprep.mubr.bf16.mxu0 0
      %5411 = vmatmul.mubr.bf16.gmra.mxu0 %v2962
      %v5412 = vpop.f32.mrf.mxu0
      %v5413 = vadd.f32 0.0, %v5412
      %v5414 = vpop.f32.mrf.mxu0
      %v5415 = vpop.f32.mrf.mxu0
      %v5416 = vadd.f32 0.0, %v5415
      %v5417 = vpop.f32.mrf.mxu0
      %5418 = vmatprep.mubr.bf16.mxu0 0
      %5419 = vmatmul.mubr.bf16.gmra.mxu0 %v2963
      %v5420 = vpop.f32.mrf.mxu0
      %v5421 = vadd.f32 0.0, %v5420
      %v5422 = vpop.f32.mrf.mxu0
      %v5423 = vpop.f32.mrf.mxu0
      %v5424 = vadd.f32 0.0, %v5423
      %v5425 = vpop.f32.mrf.mxu0
      %5426 = vmatprep.mubr.bf16.mxu0 0
      %5427 = vmatmul.mubr.bf16.gmra.mxu0 %v2964
      %v5428 = vpop.f32.mrf.mxu0
      %v5429 = vadd.f32 0.0, %v5428
      %v5430 = vpop.f32.mrf.mxu0
      %v5431 = vpop.f32.mrf.mxu0
      %v5432 = vadd.f32 0.0, %v5431
      %v5433 = vpop.f32.mrf.mxu0
      %5434 = vmatprep.mubr.bf16.mxu0 0
      %5435 = vmatmul.mubr.bf16.gmra.mxu0 %v2965
      %v5436 = vpop.f32.mrf.mxu0
      %v5437 = vadd.f32 0.0, %v5436
      %v5438 = vpop.f32.mrf.mxu0
      %v5439 = vpop.f32.mrf.mxu0
      %v5440 = vadd.f32 0.0, %v5439
      %v5441 = vpop.f32.mrf.mxu0
      %5442 = vmatprep.mubr.bf16.mxu0 0
      %5443 = vmatmul.mubr.bf16.gmra.mxu0 %v2966
      %v5444 = vpop.f32.mrf.mxu0
      %v5445 = vadd.f32 0.0, %v5444
      %v5446 = vpop.f32.mrf.mxu0
      %v5447 = vpop.f32.mrf.mxu0
      %v5448 = vadd.f32 0.0, %v5447
      %v5449 = vpop.f32.mrf.mxu0
      %5450 = vmatprep.mubr.bf16.mxu0 0
      %5451 = vmatmul.mubr.bf16.gmra.mxu0 %v2967
      %v5452 = vpop.f32.mrf.mxu0
      %v5453 = vadd.f32 0.0, %v5452
      %v5454 = vpop.f32.mrf.mxu0
      %v5455 = vpop.f32.mrf.mxu0
      %v5456 = vadd.f32 0.0, %v5455
      %v5457 = vpop.f32.mrf.mxu0
      %5458 = vmatprep.mubr.bf16.mxu0 0
      %5459 = vmatmul.mubr.bf16.gmra.mxu0 %v2968
      %v5460 = vpop.f32.mrf.mxu0
      %v5461 = vadd.f32 0.0, %v5460
      %v5462 = vpop.f32.mrf.mxu0
      %v5463 = vpop.f32.mrf.mxu0
      %v5464 = vadd.f32 0.0, %v5463
      %v5465 = vpop.f32.mrf.mxu0
      %5466 = vmatprep.mubr.bf16.mxu0 0
      %5467 = vmatmul.mubr.bf16.gmra.mxu0 %v2969
      %v5468 = vpop.f32.mrf.mxu0
      %v5469 = vadd.f32 0.0, %v5468
      %v5470 = vpop.f32.mrf.mxu0
      %v5471 = vpop.f32.mrf.mxu0
      %v5472 = vadd.f32 0.0, %v5471
      %v5473 = vpop.f32.mrf.mxu0
      %5474 = vmatprep.mubr.bf16.mxu0 0
      %5475 = vmatmul.mubr.bf16.gmra.mxu0 %v2970
      %v5476 = vpop.f32.mrf.mxu0
      %v5477 = vadd.f32 0.0, %v5476
      %v5478 = vpop.f32.mrf.mxu0
      %v5479 = vpop.f32.mrf.mxu0
      %v5480 = vadd.f32 0.0, %v5479
      %v5481 = vpop.f32.mrf.mxu0
      %5482 = vmatprep.mubr.bf16.mxu0 0
      %5483 = vmatmul.mubr.bf16.gmra.mxu0 %v2971
      %v5484 = vpop.f32.mrf.mxu0
      %v5485 = vadd.f32 0.0, %v5484
      %v5486 = vpop.f32.mrf.mxu0
      %v5487 = vpop.f32.mrf.mxu0
      %v5488 = vadd.f32 0.0, %v5487
      %v5489 = vpop.f32.mrf.mxu0
      %5490 = vmatprep.mubr.bf16.mxu0 0
      %5491 = vmatmul.mubr.bf16.gmra.mxu0 %v2972
      %v5492 = vpop.f32.mrf.mxu0
      %v5493 = vadd.f32 0.0, %v5492
      %v5494 = vpop.f32.mrf.mxu0
      %v5495 = vpop.f32.mrf.mxu0
      %v5496 = vadd.f32 0.0, %v5495
      %v5497 = vpop.f32.mrf.mxu0
      %5498 = vmatprep.mubr.bf16.mxu0 0
      %5499 = vmatmul.mubr.bf16.gmra.mxu0 %v2973
      %v5500 = vpop.f32.mrf.mxu0
      %v5501 = vadd.f32 0.0, %v5500
      %v5502 = vpop.f32.mrf.mxu0
      %v5503 = vpop.f32.mrf.mxu0
      %v5504 = vadd.f32 0.0, %v5503
      %v5505 = vpop.f32.mrf.mxu0
      %5506 = vmatprep.mubr.bf16.mxu0 0
      %5507 = vmatmul.mubr.bf16.gmra.mxu0 %v2974
      %v5508 = vpop.f32.mrf.mxu0
      %v5509 = vadd.f32 0.0, %v5508
      %v5510 = vpop.f32.mrf.mxu0
      %v5511 = vpop.f32.mrf.mxu0
      %v5512 = vadd.f32 0.0, %v5511
      %v5513 = vpop.f32.mrf.mxu0
      %5514 = vmatprep.mubr.bf16.mxu0 0
      %5515 = vmatmul.mubr.bf16.gmra.mxu0 %v2975
      %v5516 = vpop.f32.mrf.mxu0
      %v5517 = vadd.f32 0.0, %v5516
      %v5518 = vpop.f32.mrf.mxu0
      %v5519 = vpop.f32.mrf.mxu0
      %v5520 = vadd.f32 0.0, %v5519
      %v5521 = vpop.f32.mrf.mxu0
      %5522 = vmatprep.mubr.bf16.mxu0 0
      %5523 = vmatmul.mubr.bf16.gmra.mxu0 %v2976
      %v5524 = vpop.f32.mrf.mxu0
      %v5525 = vadd.f32 0.0, %v5524
      %v5526 = vpop.f32.mrf.mxu0
      %v5527 = vpop.f32.mrf.mxu0
      %v5528 = vadd.f32 0.0, %v5527
      %v5529 = vpop.f32.mrf.mxu0
      %5530 = vmatprep.mubr.bf16.mxu0 0
      %5531 = vmatmul.mubr.bf16.gmra.mxu0 %v2977
      %v5532 = vpop.f32.mrf.mxu0
      %v5533 = vadd.f32 0.0, %v5532
      %v5534 = vpop.f32.mrf.mxu0
      %v5535 = vpop.f32.mrf.mxu0
      %v5536 = vadd.f32 0.0, %v5535
      %v5537 = vpop.f32.mrf.mxu0
      %5538 = vmatprep.mubr.bf16.mxu0 0
      %5539 = vmatmul.mubr.bf16.gmra.mxu0 %v2978
      %v5540 = vpop.f32.mrf.mxu0
      %v5541 = vadd.f32 0.0, %v5540
      %v5542 = vpop.f32.mrf.mxu0
      %v5543 = vpop.f32.mrf.mxu0
      %v5544 = vadd.f32 0.0, %v5543
      %v5545 = vpop.f32.mrf.mxu0
      %5546 = vmatprep.mubr.bf16.mxu0 0
      %5547 = vmatmul.mubr.bf16.gmra.mxu0 %v2979
      %v5548 = vpop.f32.mrf.mxu0
      %v5549 = vadd.f32 0.0, %v5548
      %v5550 = vpop.f32.mrf.mxu0
      %v5551 = vpop.f32.mrf.mxu0
      %v5552 = vadd.f32 0.0, %v5551
      %v5553 = vpop.f32.mrf.mxu0
      %5554 = vmatprep.mubr.bf16.mxu0 0
      %5555 = vmatmul.mubr.bf16.gmra.mxu0 %v2980
      %v5556 = vpop.f32.mrf.mxu0
      %v5557 = vadd.f32 0.0, %v5556
      %v5558 = vpop.f32.mrf.mxu0
      %v5559 = vpop.f32.mrf.mxu0
      %v5560 = vadd.f32 0.0, %v5559
      %v5561 = vpop.f32.mrf.mxu0
      %5562 = vmatprep.mubr.bf16.mxu0 0
      %5563 = vmatmul.mubr.bf16.gmra.mxu0 %v2981
      %v5564 = vpop.f32.mrf.mxu0
      %v5565 = vadd.f32 0.0, %v5564
      %v5566 = vpop.f32.mrf.mxu0
      %v5567 = vpop.f32.mrf.mxu0
      %v5568 = vadd.f32 0.0, %v5567
      %v5569 = vpop.f32.mrf.mxu0
      %5570 = vmatprep.mubr.bf16.mxu0 0
      %5571 = vmatmul.mubr.bf16.gmra.mxu0 %v2982
      %v5572 = vpop.f32.mrf.mxu0
      %v5573 = vadd.f32 0.0, %v5572
      %v5574 = vpop.f32.mrf.mxu0
      %v5575 = vpop.f32.mrf.mxu0
      %v5576 = vadd.f32 0.0, %v5575
      %v5577 = vpop.f32.mrf.mxu0
      %5578 = vmatprep.mubr.bf16.mxu0 0
      %5579 = vmatmul.mubr.bf16.gmra.mxu0 %v2983
      %v5580 = vpop.f32.mrf.mxu0
      %v5581 = vadd.f32 0.0, %v5580
      %v5582 = vpop.f32.mrf.mxu0
      %v5583 = vpop.f32.mrf.mxu0
      %v5584 = vadd.f32 0.0, %v5583
      %v5585 = vpop.f32.mrf.mxu0
      %5586 = vmatprep.mubr.bf16.mxu0 0
      %5587 = vmatmul.mubr.bf16.gmra.mxu0 %v2984
      %v5588 = vpop.f32.mrf.mxu0
      %v5589 = vadd.f32 0.0, %v5588
      %v5590 = vpop.f32.mrf.mxu0
      %v5591 = vpop.f32.mrf.mxu0
      %v5592 = vadd.f32 0.0, %v5591
      %v5593 = vpop.f32.mrf.mxu0
      %5594 = vmatprep.mubr.bf16.mxu0 0
      %5595 = vmatmul.mubr.bf16.gmra.mxu0 %v2985
      %v5596 = vpop.f32.mrf.mxu0
      %v5597 = vadd.f32 0.0, %v5596
      %v5598 = vpop.f32.mrf.mxu0
      %v5599 = vpop.f32.mrf.mxu0
      %v5600 = vadd.f32 0.0, %v5599
      %v5601 = vpop.f32.mrf.mxu0
      %5602 = vmatprep.mubr.bf16.mxu0 0
      %5603 = vmatmul.mubr.bf16.gmra.mxu0 %v2986
      %v5604 = vpop.f32.mrf.mxu0
      %v5605 = vadd.f32 0.0, %v5604
      %v5606 = vpop.f32.mrf.mxu0
      %v5607 = vpop.f32.mrf.mxu0
      %v5608 = vadd.f32 0.0, %v5607
      %v5609 = vpop.f32.mrf.mxu0
      %5610 = vmatprep.mubr.bf16.mxu0 0
      %5611 = vmatmul.mubr.bf16.gmra.mxu0 %v2987
      %v5612 = vpop.f32.mrf.mxu0
      %v5613 = vadd.f32 0.0, %v5612
      %v5614 = vpop.f32.mrf.mxu0
      %v5615 = vpop.f32.mrf.mxu0
      %v5616 = vadd.f32 0.0, %v5615
      %v5617 = vpop.f32.mrf.mxu0
      %5618 = vmatprep.mubr.bf16.mxu0 0
      %5619 = vmatmul.mubr.bf16.gmra.mxu0 %v2988
      %v5620 = vpop.f32.mrf.mxu0
      %v5621 = vadd.f32 0.0, %v5620
      %v5622 = vpop.f32.mrf.mxu0
      %v5623 = vpop.f32.mrf.mxu0
      %v5624 = vadd.f32 0.0, %v5623
      %v5625 = vpop.f32.mrf.mxu0
      %5626 = vmatprep.mubr.bf16.mxu0 0
      %5627 = vmatmul.mubr.bf16.gmra.mxu0 %v2989
      %v5628 = vpop.f32.mrf.mxu0
      %v5629 = vadd.f32 0.0, %v5628
      %v5630 = vpop.f32.mrf.mxu0
      %v5631 = vpop.f32.mrf.mxu0
      %v5632 = vadd.f32 0.0, %v5631
      %v5633 = vpop.f32.mrf.mxu0
      %5634 = vmatprep.mubr.bf16.mxu0 0
      %5635 = vmatmul.mubr.bf16.gmra.mxu0 %v2990
      %v5636 = vpop.f32.mrf.mxu0
      %v5637 = vadd.f32 0.0, %v5636
      %v5638 = vpop.f32.mrf.mxu0
      %v5639 = vpop.f32.mrf.mxu0
      %v5640 = vadd.f32 0.0, %v5639
      %v5641 = vpop.f32.mrf.mxu0
      %5642 = vmatprep.mubr.bf16.mxu0 0
      %5643 = vmatmul.mubr.bf16.gmra.mxu0 %v2991
      %v5644 = vpop.f32.mrf.mxu0
      %v5645 = vadd.f32 0.0, %v5644
      %v5646 = vpop.f32.mrf.mxu0
      %v5647 = vpop.f32.mrf.mxu0
      %v5648 = vadd.f32 0.0, %v5647
      %v5649 = vpop.f32.mrf.mxu0
      %5650 = vmatprep.mubr.bf16.mxu0 0
      %5651 = vmatmul.mubr.bf16.gmra.mxu0 %v2992
      %v5652 = vpop.f32.mrf.mxu0
      %v5653 = vadd.f32 0.0, %v5652
      %v5654 = vpop.f32.mrf.mxu0
      %v5655 = vpop.f32.mrf.mxu0
      %v5656 = vadd.f32 0.0, %v5655
      %v5657 = vpop.f32.mrf.mxu0
      %5658 = vmatprep.mubr.bf16.mxu0 0
      %5659 = vmatmul.mubr.bf16.gmra.mxu0 %v2993
      %v5660 = vpop.f32.mrf.mxu0
      %v5661 = vadd.f32 0.0, %v5660
      %v5662 = vpop.f32.mrf.mxu0
      %v5663 = vpop.f32.mrf.mxu0
      %v5664 = vadd.f32 0.0, %v5663
      %v5665 = vpop.f32.mrf.mxu0
      %5666 = vmatprep.mubr.bf16.mxu0 0
      %5667 = vmatmul.mubr.bf16.gmra.mxu0 %v2994
      %v5668 = vpop.f32.mrf.mxu0
      %v5669 = vadd.f32 0.0, %v5668
      %v5670 = vpop.f32.mrf.mxu0
      %v5671 = vpop.f32.mrf.mxu0
      %v5672 = vadd.f32 0.0, %v5671
      %v5673 = vpop.f32.mrf.mxu0
      %5674 = vmatprep.mubr.bf16.mxu0 0
      %5675 = vmatmul.mubr.bf16.gmra.mxu0 %v2995
      %v5676 = vpop.f32.mrf.mxu0
      %v5677 = vadd.f32 0.0, %v5676
      %v5678 = vpop.f32.mrf.mxu0
      %v5679 = vpop.f32.mrf.mxu0
      %v5680 = vadd.f32 0.0, %v5679
      %v5681 = vpop.f32.mrf.mxu0
      %5682 = vmatprep.mubr.bf16.mxu0 0
      %5683 = vmatmul.mubr.bf16.gmra.mxu0 %v2996
      %v5684 = vpop.f32.mrf.mxu0
      %v5685 = vadd.f32 0.0, %v5684
      %v5686 = vpop.f32.mrf.mxu0
      %v5687 = vpop.f32.mrf.mxu0
      %v5688 = vadd.f32 0.0, %v5687
      %v5689 = vpop.f32.mrf.mxu0
      %5690 = vmatprep.mubr.bf16.mxu0 0
      %5691 = vmatmul.mubr.bf16.gmra.mxu0 %v2997
      %v5692 = vpop.f32.mrf.mxu0
      %v5693 = vadd.f32 0.0, %v5692
      %v5694 = vpop.f32.mrf.mxu0
      %v5695 = vpop.f32.mrf.mxu0
      %v5696 = vadd.f32 0.0, %v5695
      %v5697 = vpop.f32.mrf.mxu0
      %5698 = vmatprep.mubr.bf16.mxu0 0
      %5699 = vmatmul.mubr.bf16.gmra.mxu0 %v2998
      %v5700 = vpop.f32.mrf.mxu0
      %v5701 = vadd.f32 0.0, %v5700
      %v5702 = vpop.f32.mrf.mxu0
      %v5703 = vpop.f32.mrf.mxu0
      %v5704 = vadd.f32 0.0, %v5703
      %v5705 = vpop.f32.mrf.mxu0
      %5706 = vmatprep.mubr.bf16.mxu0 0
      %5707 = vmatmul.mubr.bf16.gmra.mxu0 %v5126
      %v5708 = vpop.f32.mrf.mxu0
      %v5709 = vadd.f32 0.0, %v5708
      %v5710 = vpop.f32.mrf.mxu0
      %v5711 = vpop.f32.mrf.mxu0
      %v5712 = vadd.f32 0.0, %v5711
      %v5713 = vpop.f32.mrf.mxu0
      %5714 = vmatprep.mubr.bf16.mxu0 0
      %5715 = vmatmul.mubr.bf16.gmra.mxu0 %v5127
      %v5716 = vpop.f32.mrf.mxu0
      %v5717 = vadd.f32 0.0, %v5716
      %v5718 = vpop.f32.mrf.mxu0
      %v5719 = vpop.f32.mrf.mxu0
      %v5720 = vadd.f32 0.0, %v5719
      %v5721 = vpop.f32.mrf.mxu0
      %5722 = vdwg.mxu0
      %v5723 = vadd.f32 %v4973, %v5213
      %v5724 = vadd.f32 %v4974, %v5216
      %v5725 = vadd.f32 %v4975, %v5221
      %v5726 = vadd.f32 %v4976, %v5224
      %v5727 = vadd.f32 %v4977, %v5229
      %v5728 = vadd.f32 %v4978, %v5232
      %v5729 = vadd.f32 %v4979, %v5237
      %v5730 = vadd.f32 %v4980, %v5240
      %v5731 = vadd.f32 %v4981, %v5245
      %v5732 = vadd.f32 %v4982, %v5248
      %v5733 = vadd.f32 %v4983, %v5253
      %v5734 = vadd.f32 %v4984, %v5256
      %v5735 = vadd.f32 %v4985, %v5261
      %v5736 = vadd.f32 %v4986, %v5264
      %v5737 = vadd.f32 %v4987, %v5269
      %v5738 = vadd.f32 %v4988, %v5272
      %v5739 = vadd.f32 %v4989, %v5277
      %v5740 = vadd.f32 %v4990, %v5280
      %v5741 = vadd.f32 %v4991, %v5285
      %v5742 = vadd.f32 %v4992, %v5288
      %v5743 = vadd.f32 %v4993, %v5293
      %v5744 = vadd.f32 %v4994, %v5296
      %v5745 = vadd.f32 %v4995, %v5301
      %v5746 = vadd.f32 %v4996, %v5304
      %v5747 = vadd.f32 %v4997, %v5309
      %v5748 = vadd.f32 %v4998, %v5312
      %v5749 = vadd.f32 %v4999, %v5317
      %v5750 = vadd.f32 %v5000, %v5320
      %v5751 = vadd.f32 %v5001, %v5325
      %v5752 = vadd.f32 %v5002, %v5328
      %v5753 = vadd.f32 %v5003, %v5333
      %v5754 = vadd.f32 %v5004, %v5336
      %v5755 = vadd.f32 %v5005, %v5341
      %v5756 = vadd.f32 %v5006, %v5344
      %v5757 = vadd.f32 %v5007, %v5349
      %v5758 = vadd.f32 %v5008, %v5352
      %v5759 = vadd.f32 %v5009, %v5357
      %v5760 = vadd.f32 %v5010, %v5360
      %v5761 = vadd.f32 %v5011, %v5365
      %v5762 = vadd.f32 %v5012, %v5368
      %v5763 = vadd.f32 %v5013, %v5373
      %v5764 = vadd.f32 %v5014, %v5376
      %v5765 = vadd.f32 %v5015, %v5381
      %v5766 = vadd.f32 %v5016, %v5384
      %v5767 = vadd.f32 %v5017, %v5389
      %v5768 = vadd.f32 %v5018, %v5392
      %v5769 = vadd.f32 %v5019, %v5397
      %v5770 = vadd.f32 %v5020, %v5400
      %v5771 = vadd.f32 %v5021, %v5405
      %v5772 = vadd.f32 %v5022, %v5408
      %v5773 = vadd.f32 %v5023, %v5413
      %v5774 = vadd.f32 %v5024, %v5416
      %v5775 = vadd.f32 %v5025, %v5421
      %v5776 = vadd.f32 %v5026, %v5424
      %v5777 = vadd.f32 %v5027, %v5429
      %v5778 = vadd.f32 %v5028, %v5432
      %v5779 = vadd.f32 %v5029, %v5437
      %v5780 = vadd.f32 %v5030, %v5440
      %v5781 = vadd.f32 %v5031, %v5445
      %v5782 = vadd.f32 %v5032, %v5448
      %v5783 = vadd.f32 %v5033, %v5453
      %v5784 = vadd.f32 %v5034, %v5456
      %v5785 = vadd.f32 %v5035, %v5461
      %v5786 = vadd.f32 %v5036, %v5464
      %v5787 = vadd.f32 %v5037, %v5469
      %v5788 = vadd.f32 %v5038, %v5472
      %v5789 = vadd.f32 %v5039, %v5477
      %v5790 = vadd.f32 %v5040, %v5480
      %v5791 = vadd.f32 %v5041, %v5485
      %v5792 = vadd.f32 %v5042, %v5488
      %v5793 = vadd.f32 %v5043, %v5493
      %v5794 = vadd.f32 %v5044, %v5496
      %v5795 = vadd.f32 %v5045, %v5501
      %v5796 = vadd.f32 %v5046, %v5504
      %v5797 = vadd.f32 %v5047, %v5509
      %v5798 = vadd.f32 %v5048, %v5512
      %v5799 = vadd.f32 %v5049, %v5517
      %v5800 = vadd.f32 %v5050, %v5520
      %v5801 = vadd.f32 %v5051, %v5525
      %v5802 = vadd.f32 %v5052, %v5528
      %v5803 = vadd.f32 %v5053, %v5533
      %v5804 = vadd.f32 %v5054, %v5536
      %v5805 = vadd.f32 %v5055, %v5541
      %v5806 = vadd.f32 %v5056, %v5544
      %v5807 = vadd.f32 %v5057, %v5549
      %v5808 = vadd.f32 %v5058, %v5552
      %v5809 = vadd.f32 %v5059, %v5557
      %v5810 = vadd.f32 %v5060, %v5560
      %v5811 = vadd.f32 %v5061, %v5565
      %v5812 = vadd.f32 %v5062, %v5568
      %v5813 = vadd.f32 %v5063, %v5573
      %v5814 = vadd.f32 %v5064, %v5576
      %v5815 = vadd.f32 %v5065, %v5581
      %v5816 = vadd.f32 %v5066, %v5584
      %v5817 = vadd.f32 %v5067, %v5589
      %v5818 = vadd.f32 %v5068, %v5592
      %v5819 = vadd.f32 %v5069, %v5597
      %v5820 = vadd.f32 %v5070, %v5600
      %v5821 = vadd.f32 %v5071, %v5605
      %v5822 = vadd.f32 %v5072, %v5608
      %v5823 = vadd.f32 %v5073, %v5613
      %v5824 = vadd.f32 %v5074, %v5616
      %v5825 = vadd.f32 %v5075, %v5621
      %v5826 = vadd.f32 %v5076, %v5624
      %v5827 = vadd.f32 %v5077, %v5629
      %v5828 = vadd.f32 %v5078, %v5632
      %v5829 = vadd.f32 %v5079, %v5637
      %v5830 = vadd.f32 %v5080, %v5640
      %v5831 = vadd.f32 %v5081, %v5645
      %v5832 = vadd.f32 %v5082, %v5648
      %v5833 = vadd.f32 %v5083, %v5653
      %v5834 = vadd.f32 %v5084, %v5656
      %v5835 = vadd.f32 %v5085, %v5661
      %v5836 = vadd.f32 %v5086, %v5664
      %v5837 = vadd.f32 %v5087, %v5669
      %v5838 = vadd.f32 %v5088, %v5672
      %v5839 = vadd.f32 %v5089, %v5677
      %v5840 = vadd.f32 %v5090, %v5680
      %v5841 = vadd.f32 %v5091, %v5685
      %v5842 = vadd.f32 %v5092, %v5688
      %v5843 = vadd.f32 %v5093, %v5693
      %v5844 = vadd.f32 %v5094, %v5696
      %v5845 = vadd.f32 %v5095, %v5701
      %v5846 = vadd.f32 %v5096, %v5704
      %v5847 = vadd.f32 %v5097, %v5709
      %v5848 = vadd.f32 %v5098, %v5712
      %v5849 = vadd.f32 %v5099, %v5717
      %v5850 = vadd.f32 %v5100, %v5720
      %v5852 = vshrl.u32 %v376, 16
      %v5854 = vrot.slane %v5852, 4
      %v5855 = vshll.u32 %v376, 16
      %v5857 = vrot.slane %v5855, 5
      %v5858 = vor.u32 %v5854, %v5857
      %v5859 = vrot.slane %v5858, 4
      %v5861 = vshll.u32 %v377, 16
      %v5863 = vrot.slane %v5861, 5
      %v5864 = vsel %vm404, %v5859, %v5863
      %v5865 = vshrl.u32 %v377, 16
      %v5867 = vrot.slane %v5865, 4
      %v5868 = vor.u32 %v5867, %v5863
      %v5869 = vrot.slane %v5868, 4
      %v5871 = vshll.u32 %v378, 16
      %v5873 = vrot.slane %v5871, 5
      %v5874 = vsel %vm404, %v5869, %v5873
      %v5875 = vshrl.u32 %v378, 16
      %v5877 = vrot.slane %v5875, 4
      %v5878 = vor.u32 %v5877, %v5873
      %v5879 = vrot.slane %v5878, 4
      %v5881 = vshll.u32 %v379, 16
      %v5883 = vrot.slane %v5881, 5
      %v5884 = vsel %vm404, %v5879, %v5883
      %v5885 = vshrl.u32 %v379, 16
      %v5887 = vrot.slane %v5885, 4
      %v5888 = vor.u32 %v5887, %v5883
      %v5889 = vrot.slane %v5888, 4
      %v5891 = vshll.u32 %v380, 16
      %v5893 = vrot.slane %v5891, 5
      %v5894 = vsel %vm404, %v5889, %v5893
      %s5895 = scalar_lea.vmem %s1, 256
      %v5896 = vld [vmem:[%s5895] sm:$0xf]
      %v5897 = vld [vmem:[%s5895 + $0x4] sm:$0xf]
      %v5898 = vld [vmem:[%s5895 + $0x8] sm:$0xf]
      %v5899 = vld [vmem:[%s5895 + $0xc] sm:$0xf]
      %v5900 = vld [vmem:[%s5895 + $0x10] sm:$0xf]
      %v5901 = vld [vmem:[%s5895 + $0x14] sm:$0xf]
      %v5902 = vld [vmem:[%s5895 + $0x18] sm:$0xf]
      %v5903 = vld [vmem:[%s5895 + $0x1c] sm:$0xf]
      %v5904 = vld [vmem:[%s5895 + $0x20] sm:$0xf]
      %v5905 = vld [vmem:[%s5895 + $0x24] sm:$0xf]
      %v5906 = vld [vmem:[%s5895 + $0x28] sm:$0xf]
      %v5907 = vld [vmem:[%s5895 + $0x2c] sm:$0xf]
      %v5908 = vld [vmem:[%s5895 + $0x30] sm:$0xf]
      %v5909 = vld [vmem:[%s5895 + $0x34] sm:$0xf]
      %v5910 = vld [vmem:[%s5895 + $0x38] sm:$0xf]
      %v5911 = vld [vmem:[%s5895 + $0x3c] sm:$0xf]
      %v5912 = vunpack.c.l.b16 %v5864
      %v5913 = vunpack.c.l.b16 %v5874
      %v5914 = vunpack.c.l.b16 %v5884
      %v5915 = vunpack.c.l.b16 %v5894
      %v5916 = vpack.c.b16 %v5913, %v5912
      %v5917 = vpack.c.b16 %v5915, %v5914
      %v5936 = vunpack.c.l.b16 %v5896
      %v5937 = vunpack.c.l.b16 %v5897
      %v5938 = vunpack.c.l.b16 %v5898
      %v5939 = vunpack.c.l.b16 %v5899
      %v5940 = vunpack.c.l.b16 %v5900
      %v5941 = vunpack.c.l.b16 %v5901
      %v5942 = vunpack.c.l.b16 %v5902
      %v5943 = vunpack.c.l.b16 %v5903
      %v5944 = vunpack.c.l.b16 %v5904
      %v5945 = vunpack.c.l.b16 %v5905
      %v5946 = vunpack.c.l.b16 %v5906
      %v5947 = vunpack.c.l.b16 %v5907
      %v5948 = vunpack.c.l.b16 %v5908
      %v5949 = vunpack.c.l.b16 %v5909
      %v5950 = vunpack.c.l.b16 %v5910
      %v5951 = vunpack.c.l.b16 %v5911
      %v5952 = vpack.c.b16 %v5937, %v5936
      %v5953 = vpack.c.b16 %v5939, %v5938
      %v5954 = vpack.c.b16 %v5941, %v5940
      %v5955 = vpack.c.b16 %v5943, %v5942
      %v5956 = vpack.c.b16 %v5945, %v5944
      %v5957 = vpack.c.b16 %v5947, %v5946
      %v5958 = vpack.c.b16 %v5949, %v5948
      %v5959 = vpack.c.b16 %v5951, %v5950
      %5968 = vmatprep.subr.bf16.mxu0 0
      %5969 = vmatpush1.bf16.msra.mxu0 %v5959
      %5970 = vmatprep.subr.bf16.mxu0 0
      %5971 = vmatpush1.bf16.msra.mxu0 %v5958
      %5972 = vmatprep.subr.bf16.mxu0 0
      %5973 = vmatpush1.bf16.msra.mxu0 %v5957
      %5974 = vmatprep.subr.bf16.mxu0 0
      %5975 = vmatpush1.bf16.msra.mxu0 %v5956
      %5976 = vmatprep.subr.bf16.mxu0 0
      %5977 = vmatpush1.bf16.msra.mxu0 %v5955
      %5978 = vmatprep.subr.bf16.mxu0 0
      %5979 = vmatpush1.bf16.msra.mxu0 %v5954
      %5980 = vmatprep.subr.bf16.mxu0 0
      %5981 = vmatpush1.bf16.msra.mxu0 %v5953
      %5982 = vmatprep.subr.bf16.mxu0 0
      %5983 = vmatpush1.bf16.msra.mxu0 %v5952
      %5984 = vmatprep.subr.bf16.mxu0 0
      %5985 = vmatpush2.bf16.msra.mxu0 0
      %5986 = vmatprep.subr.bf16.mxu0 0
      %5987 = vmatpush2.bf16.msra.mxu0 0
      %5988 = vmatprep.subr.bf16.mxu0 0
      %5989 = vmatpush2.bf16.msra.mxu0 0
      %5990 = vmatprep.subr.bf16.mxu0 0
      %5991 = vmatpush2.bf16.msra.mxu0 0
      %5992 = vmatprep.subr.bf16.mxu0 0
      %5993 = vmatpush2.bf16.msra.mxu0 0
      %5994 = vmatprep.subr.bf16.mxu0 0
      %5995 = vmatpush2.bf16.msra.mxu0 0
      %5996 = vmatprep.subr.bf16.mxu0 0
      %5997 = vmatpush2.bf16.msra.mxu0 0
      %5998 = vmatprep.subr.bf16.mxu0 0
      %5999 = vmatpush2.bf16.msra.mxu0 0
      %6000 = vmatprep.mubr.bf16.mxu0 0
      %6001 = vmatmul.mubr.bf16.gmra.mxu0 %v1960
      %v6002 = vpop.f32.mrf.mxu0
      %v6003 = vadd.f32 0.0, %v6002
      %v6004 = vpop.f32.mrf.mxu0
      %v6005 = vpop.f32.mrf.mxu0
      %v6006 = vadd.f32 0.0, %v6005
      %v6007 = vpop.f32.mrf.mxu0
      %6008 = vmatprep.mubr.bf16.mxu0 0
      %6009 = vmatmul.mubr.bf16.gmra.mxu0 %v1961
      %v6010 = vpop.f32.mrf.mxu0
      %v6011 = vadd.f32 0.0, %v6010
      %v6012 = vpop.f32.mrf.mxu0
      %v6013 = vpop.f32.mrf.mxu0
      %v6014 = vadd.f32 0.0, %v6013
      %v6015 = vpop.f32.mrf.mxu0
      %6016 = vmatprep.mubr.bf16.mxu0 0
      %6017 = vmatmul.mubr.bf16.gmra.mxu0 %v1962
      %v6018 = vpop.f32.mrf.mxu0
      %v6019 = vadd.f32 0.0, %v6018
      %v6020 = vpop.f32.mrf.mxu0
      %v6021 = vpop.f32.mrf.mxu0
      %v6022 = vadd.f32 0.0, %v6021
      %v6023 = vpop.f32.mrf.mxu0
      %6024 = vmatprep.mubr.bf16.mxu0 0
      %6025 = vmatmul.mubr.bf16.gmra.mxu0 %v1963
      %v6026 = vpop.f32.mrf.mxu0
      %v6027 = vadd.f32 0.0, %v6026
      %v6028 = vpop.f32.mrf.mxu0
      %v6029 = vpop.f32.mrf.mxu0
      %v6030 = vadd.f32 0.0, %v6029
      %v6031 = vpop.f32.mrf.mxu0
      %6032 = vmatprep.mubr.bf16.mxu0 0
      %6033 = vmatmul.mubr.bf16.gmra.mxu0 %v1964
      %v6034 = vpop.f32.mrf.mxu0
      %v6035 = vadd.f32 0.0, %v6034
      %v6036 = vpop.f32.mrf.mxu0
      %v6037 = vpop.f32.mrf.mxu0
      %v6038 = vadd.f32 0.0, %v6037
      %v6039 = vpop.f32.mrf.mxu0
      %6040 = vmatprep.mubr.bf16.mxu0 0
      %6041 = vmatmul.mubr.bf16.gmra.mxu0 %v1965
      %v6042 = vpop.f32.mrf.mxu0
      %v6043 = vadd.f32 0.0, %v6042
      %v6044 = vpop.f32.mrf.mxu0
      %v6045 = vpop.f32.mrf.mxu0
      %v6046 = vadd.f32 0.0, %v6045
      %v6047 = vpop.f32.mrf.mxu0
      %6048 = vmatprep.mubr.bf16.mxu0 0
      %6049 = vmatmul.mubr.bf16.gmra.mxu0 %v1966
      %v6050 = vpop.f32.mrf.mxu0
      %v6051 = vadd.f32 0.0, %v6050
      %v6052 = vpop.f32.mrf.mxu0
      %v6053 = vpop.f32.mrf.mxu0
      %v6054 = vadd.f32 0.0, %v6053
      %v6055 = vpop.f32.mrf.mxu0
      %6056 = vmatprep.mubr.bf16.mxu0 0
      %6057 = vmatmul.mubr.bf16.gmra.mxu0 %v1967
      %v6058 = vpop.f32.mrf.mxu0
      %v6059 = vadd.f32 0.0, %v6058
      %v6060 = vpop.f32.mrf.mxu0
      %v6061 = vpop.f32.mrf.mxu0
      %v6062 = vadd.f32 0.0, %v6061
      %v6063 = vpop.f32.mrf.mxu0
      %6064 = vmatprep.mubr.bf16.mxu0 0
      %6065 = vmatmul.mubr.bf16.gmra.mxu0 %v1968
      %v6066 = vpop.f32.mrf.mxu0
      %v6067 = vadd.f32 0.0, %v6066
      %v6068 = vpop.f32.mrf.mxu0
      %v6069 = vpop.f32.mrf.mxu0
      %v6070 = vadd.f32 0.0, %v6069
      %v6071 = vpop.f32.mrf.mxu0
      %6072 = vmatprep.mubr.bf16.mxu0 0
      %6073 = vmatmul.mubr.bf16.gmra.mxu0 %v1969
      %v6074 = vpop.f32.mrf.mxu0
      %v6075 = vadd.f32 0.0, %v6074
      %v6076 = vpop.f32.mrf.mxu0
      %v6077 = vpop.f32.mrf.mxu0
      %v6078 = vadd.f32 0.0, %v6077
      %v6079 = vpop.f32.mrf.mxu0
      %6080 = vmatprep.mubr.bf16.mxu0 0
      %6081 = vmatmul.mubr.bf16.gmra.mxu0 %v1970
      %v6082 = vpop.f32.mrf.mxu0
      %v6083 = vadd.f32 0.0, %v6082
      %v6084 = vpop.f32.mrf.mxu0
      %v6085 = vpop.f32.mrf.mxu0
      %v6086 = vadd.f32 0.0, %v6085
      %v6087 = vpop.f32.mrf.mxu0
      %6088 = vmatprep.mubr.bf16.mxu0 0
      %6089 = vmatmul.mubr.bf16.gmra.mxu0 %v1971
      %v6090 = vpop.f32.mrf.mxu0
      %v6091 = vadd.f32 0.0, %v6090
      %v6092 = vpop.f32.mrf.mxu0
      %v6093 = vpop.f32.mrf.mxu0
      %v6094 = vadd.f32 0.0, %v6093
      %v6095 = vpop.f32.mrf.mxu0
      %6096 = vmatprep.mubr.bf16.mxu0 0
      %6097 = vmatmul.mubr.bf16.gmra.mxu0 %v1972
      %v6098 = vpop.f32.mrf.mxu0
      %v6099 = vadd.f32 0.0, %v6098
      %v6100 = vpop.f32.mrf.mxu0
      %v6101 = vpop.f32.mrf.mxu0
      %v6102 = vadd.f32 0.0, %v6101
      %v6103 = vpop.f32.mrf.mxu0
      %6104 = vmatprep.mubr.bf16.mxu0 0
      %6105 = vmatmul.mubr.bf16.gmra.mxu0 %v1973
      %v6106 = vpop.f32.mrf.mxu0
      %v6107 = vadd.f32 0.0, %v6106
      %v6108 = vpop.f32.mrf.mxu0
      %v6109 = vpop.f32.mrf.mxu0
      %v6110 = vadd.f32 0.0, %v6109
      %v6111 = vpop.f32.mrf.mxu0
      %6112 = vmatprep.mubr.bf16.mxu0 0
      %6113 = vmatmul.mubr.bf16.gmra.mxu0 %v1974
      %v6114 = vpop.f32.mrf.mxu0
      %v6115 = vadd.f32 0.0, %v6114
      %v6116 = vpop.f32.mrf.mxu0
      %v6117 = vpop.f32.mrf.mxu0
      %v6118 = vadd.f32 0.0, %v6117
      %v6119 = vpop.f32.mrf.mxu0
      %6120 = vmatprep.mubr.bf16.mxu0 0
      %6121 = vmatmul.mubr.bf16.gmra.mxu0 %v1975
      %v6122 = vpop.f32.mrf.mxu0
      %v6123 = vadd.f32 0.0, %v6122
      %v6124 = vpop.f32.mrf.mxu0
      %v6125 = vpop.f32.mrf.mxu0
      %v6126 = vadd.f32 0.0, %v6125
      %v6127 = vpop.f32.mrf.mxu0
      %6128 = vmatprep.mubr.bf16.mxu0 0
      %6129 = vmatmul.mubr.bf16.gmra.mxu0 %v1976
      %v6130 = vpop.f32.mrf.mxu0
      %v6131 = vadd.f32 0.0, %v6130
      %v6132 = vpop.f32.mrf.mxu0
      %v6133 = vpop.f32.mrf.mxu0
      %v6134 = vadd.f32 0.0, %v6133
      %v6135 = vpop.f32.mrf.mxu0
      %6136 = vmatprep.mubr.bf16.mxu0 0
      %6137 = vmatmul.mubr.bf16.gmra.mxu0 %v1977
      %v6138 = vpop.f32.mrf.mxu0
      %v6139 = vadd.f32 0.0, %v6138
      %v6140 = vpop.f32.mrf.mxu0
      %v6141 = vpop.f32.mrf.mxu0
      %v6142 = vadd.f32 0.0, %v6141
      %v6143 = vpop.f32.mrf.mxu0
      %6144 = vmatprep.mubr.bf16.mxu0 0
      %6145 = vmatmul.mubr.bf16.gmra.mxu0 %v1978
      %v6146 = vpop.f32.mrf.mxu0
      %v6147 = vadd.f32 0.0, %v6146
      %v6148 = vpop.f32.mrf.mxu0
      %v6149 = vpop.f32.mrf.mxu0
      %v6150 = vadd.f32 0.0, %v6149
      %v6151 = vpop.f32.mrf.mxu0
      %6152 = vmatprep.mubr.bf16.mxu0 0
      %6153 = vmatmul.mubr.bf16.gmra.mxu0 %v1979
      %v6154 = vpop.f32.mrf.mxu0
      %v6155 = vadd.f32 0.0, %v6154
      %v6156 = vpop.f32.mrf.mxu0
      %v6157 = vpop.f32.mrf.mxu0
      %v6158 = vadd.f32 0.0, %v6157
      %v6159 = vpop.f32.mrf.mxu0
      %6160 = vmatprep.mubr.bf16.mxu0 0
      %6161 = vmatmul.mubr.bf16.gmra.mxu0 %v1980
      %v6162 = vpop.f32.mrf.mxu0
      %v6163 = vadd.f32 0.0, %v6162
      %v6164 = vpop.f32.mrf.mxu0
      %v6165 = vpop.f32.mrf.mxu0
      %v6166 = vadd.f32 0.0, %v6165
      %v6167 = vpop.f32.mrf.mxu0
      %6168 = vmatprep.mubr.bf16.mxu0 0
      %6169 = vmatmul.mubr.bf16.gmra.mxu0 %v1981
      %v6170 = vpop.f32.mrf.mxu0
      %v6171 = vadd.f32 0.0, %v6170
      %v6172 = vpop.f32.mrf.mxu0
      %v6173 = vpop.f32.mrf.mxu0
      %v6174 = vadd.f32 0.0, %v6173
      %v6175 = vpop.f32.mrf.mxu0
      %6176 = vmatprep.mubr.bf16.mxu0 0
      %6177 = vmatmul.mubr.bf16.gmra.mxu0 %v1982
      %v6178 = vpop.f32.mrf.mxu0
      %v6179 = vadd.f32 0.0, %v6178
      %v6180 = vpop.f32.mrf.mxu0
      %v6181 = vpop.f32.mrf.mxu0
      %v6182 = vadd.f32 0.0, %v6181
      %v6183 = vpop.f32.mrf.mxu0
      %6184 = vmatprep.mubr.bf16.mxu0 0
      %6185 = vmatmul.mubr.bf16.gmra.mxu0 %v1983
      %v6186 = vpop.f32.mrf.mxu0
      %v6187 = vadd.f32 0.0, %v6186
      %v6188 = vpop.f32.mrf.mxu0
      %v6189 = vpop.f32.mrf.mxu0
      %v6190 = vadd.f32 0.0, %v6189
      %v6191 = vpop.f32.mrf.mxu0
      %6192 = vmatprep.mubr.bf16.mxu0 0
      %6193 = vmatmul.mubr.bf16.gmra.mxu0 %v1984
      %v6194 = vpop.f32.mrf.mxu0
      %v6195 = vadd.f32 0.0, %v6194
      %v6196 = vpop.f32.mrf.mxu0
      %v6197 = vpop.f32.mrf.mxu0
      %v6198 = vadd.f32 0.0, %v6197
      %v6199 = vpop.f32.mrf.mxu0
      %6200 = vmatprep.mubr.bf16.mxu0 0
      %6201 = vmatmul.mubr.bf16.gmra.mxu0 %v1985
      %v6202 = vpop.f32.mrf.mxu0
      %v6203 = vadd.f32 0.0, %v6202
      %v6204 = vpop.f32.mrf.mxu0
      %v6205 = vpop.f32.mrf.mxu0
      %v6206 = vadd.f32 0.0, %v6205
      %v6207 = vpop.f32.mrf.mxu0
      %6208 = vmatprep.mubr.bf16.mxu0 0
      %6209 = vmatmul.mubr.bf16.gmra.mxu0 %v1986
      %v6210 = vpop.f32.mrf.mxu0
      %v6211 = vadd.f32 0.0, %v6210
      %v6212 = vpop.f32.mrf.mxu0
      %v6213 = vpop.f32.mrf.mxu0
      %v6214 = vadd.f32 0.0, %v6213
      %v6215 = vpop.f32.mrf.mxu0
      %6216 = vmatprep.mubr.bf16.mxu0 0
      %6217 = vmatmul.mubr.bf16.gmra.mxu0 %v1987
      %v6218 = vpop.f32.mrf.mxu0
      %v6219 = vadd.f32 0.0, %v6218
      %v6220 = vpop.f32.mrf.mxu0
      %v6221 = vpop.f32.mrf.mxu0
      %v6222 = vadd.f32 0.0, %v6221
      %v6223 = vpop.f32.mrf.mxu0
      %6224 = vmatprep.mubr.bf16.mxu0 0
      %6225 = vmatmul.mubr.bf16.gmra.mxu0 %v1988
      %v6226 = vpop.f32.mrf.mxu0
      %v6227 = vadd.f32 0.0, %v6226
      %v6228 = vpop.f32.mrf.mxu0
      %v6229 = vpop.f32.mrf.mxu0
      %v6230 = vadd.f32 0.0, %v6229
      %v6231 = vpop.f32.mrf.mxu0
      %6232 = vmatprep.mubr.bf16.mxu0 0
      %6233 = vmatmul.mubr.bf16.gmra.mxu0 %v1989
      %v6234 = vpop.f32.mrf.mxu0
      %v6235 = vadd.f32 0.0, %v6234
      %v6236 = vpop.f32.mrf.mxu0
      %v6237 = vpop.f32.mrf.mxu0
      %v6238 = vadd.f32 0.0, %v6237
      %v6239 = vpop.f32.mrf.mxu0
      %6240 = vmatprep.mubr.bf16.mxu0 0
      %6241 = vmatmul.mubr.bf16.gmra.mxu0 %v1990
      %v6242 = vpop.f32.mrf.mxu0
      %v6243 = vadd.f32 0.0, %v6242
      %v6244 = vpop.f32.mrf.mxu0
      %v6245 = vpop.f32.mrf.mxu0
      %v6246 = vadd.f32 0.0, %v6245
      %v6247 = vpop.f32.mrf.mxu0
      %6248 = vmatprep.mubr.bf16.mxu0 0
      %6249 = vmatmul.mubr.bf16.gmra.mxu0 %v1991
      %v6250 = vpop.f32.mrf.mxu0
      %v6251 = vadd.f32 0.0, %v6250
      %v6252 = vpop.f32.mrf.mxu0
      %v6253 = vpop.f32.mrf.mxu0
      %v6254 = vadd.f32 0.0, %v6253
      %v6255 = vpop.f32.mrf.mxu0
      %6256 = vmatprep.mubr.bf16.mxu0 0
      %6257 = vmatmul.mubr.bf16.gmra.mxu0 %v1992
      %v6258 = vpop.f32.mrf.mxu0
      %v6259 = vadd.f32 0.0, %v6258
      %v6260 = vpop.f32.mrf.mxu0
      %v6261 = vpop.f32.mrf.mxu0
      %v6262 = vadd.f32 0.0, %v6261
      %v6263 = vpop.f32.mrf.mxu0
      %6264 = vmatprep.mubr.bf16.mxu0 0
      %6265 = vmatmul.mubr.bf16.gmra.mxu0 %v1993
      %v6266 = vpop.f32.mrf.mxu0
      %v6267 = vadd.f32 0.0, %v6266
      %v6268 = vpop.f32.mrf.mxu0
      %v6269 = vpop.f32.mrf.mxu0
      %v6270 = vadd.f32 0.0, %v6269
      %v6271 = vpop.f32.mrf.mxu0
      %6272 = vmatprep.mubr.bf16.mxu0 0
      %6273 = vmatmul.mubr.bf16.gmra.mxu0 %v1994
      %v6274 = vpop.f32.mrf.mxu0
      %v6275 = vadd.f32 0.0, %v6274
      %v6276 = vpop.f32.mrf.mxu0
      %v6277 = vpop.f32.mrf.mxu0
      %v6278 = vadd.f32 0.0, %v6277
      %v6279 = vpop.f32.mrf.mxu0
      %6280 = vmatprep.mubr.bf16.mxu0 0
      %6281 = vmatmul.mubr.bf16.gmra.mxu0 %v1995
      %v6282 = vpop.f32.mrf.mxu0
      %v6283 = vadd.f32 0.0, %v6282
      %v6284 = vpop.f32.mrf.mxu0
      %v6285 = vpop.f32.mrf.mxu0
      %v6286 = vadd.f32 0.0, %v6285
      %v6287 = vpop.f32.mrf.mxu0
      %6288 = vmatprep.mubr.bf16.mxu0 0
      %6289 = vmatmul.mubr.bf16.gmra.mxu0 %v1996
      %v6290 = vpop.f32.mrf.mxu0
      %v6291 = vadd.f32 0.0, %v6290
      %v6292 = vpop.f32.mrf.mxu0
      %v6293 = vpop.f32.mrf.mxu0
      %v6294 = vadd.f32 0.0, %v6293
      %v6295 = vpop.f32.mrf.mxu0
      %6296 = vmatprep.mubr.bf16.mxu0 0
      %6297 = vmatmul.mubr.bf16.gmra.mxu0 %v1997
      %v6298 = vpop.f32.mrf.mxu0
      %v6299 = vadd.f32 0.0, %v6298
      %v6300 = vpop.f32.mrf.mxu0
      %v6301 = vpop.f32.mrf.mxu0
      %v6302 = vadd.f32 0.0, %v6301
      %v6303 = vpop.f32.mrf.mxu0
      %6304 = vmatprep.mubr.bf16.mxu0 0
      %6305 = vmatmul.mubr.bf16.gmra.mxu0 %v1998
      %v6306 = vpop.f32.mrf.mxu0
      %v6307 = vadd.f32 0.0, %v6306
      %v6308 = vpop.f32.mrf.mxu0
      %v6309 = vpop.f32.mrf.mxu0
      %v6310 = vadd.f32 0.0, %v6309
      %v6311 = vpop.f32.mrf.mxu0
      %6312 = vmatprep.mubr.bf16.mxu0 0
      %6313 = vmatmul.mubr.bf16.gmra.mxu0 %v1999
      %v6314 = vpop.f32.mrf.mxu0
      %v6315 = vadd.f32 0.0, %v6314
      %v6316 = vpop.f32.mrf.mxu0
      %v6317 = vpop.f32.mrf.mxu0
      %v6318 = vadd.f32 0.0, %v6317
      %v6319 = vpop.f32.mrf.mxu0
      %6320 = vmatprep.mubr.bf16.mxu0 0
      %6321 = vmatmul.mubr.bf16.gmra.mxu0 %v2000
      %v6322 = vpop.f32.mrf.mxu0
      %v6323 = vadd.f32 0.0, %v6322
      %v6324 = vpop.f32.mrf.mxu0
      %v6325 = vpop.f32.mrf.mxu0
      %v6326 = vadd.f32 0.0, %v6325
      %v6327 = vpop.f32.mrf.mxu0
      %6328 = vmatprep.mubr.bf16.mxu0 0
      %6329 = vmatmul.mubr.bf16.gmra.mxu0 %v2001
      %v6330 = vpop.f32.mrf.mxu0
      %v6331 = vadd.f32 0.0, %v6330
      %v6332 = vpop.f32.mrf.mxu0
      %v6333 = vpop.f32.mrf.mxu0
      %v6334 = vadd.f32 0.0, %v6333
      %v6335 = vpop.f32.mrf.mxu0
      %6336 = vmatprep.mubr.bf16.mxu0 0
      %6337 = vmatmul.mubr.bf16.gmra.mxu0 %v2002
      %v6338 = vpop.f32.mrf.mxu0
      %v6339 = vadd.f32 0.0, %v6338
      %v6340 = vpop.f32.mrf.mxu0
      %v6341 = vpop.f32.mrf.mxu0
      %v6342 = vadd.f32 0.0, %v6341
      %v6343 = vpop.f32.mrf.mxu0
      %6344 = vmatprep.mubr.bf16.mxu0 0
      %6345 = vmatmul.mubr.bf16.gmra.mxu0 %v2003
      %v6346 = vpop.f32.mrf.mxu0
      %v6347 = vadd.f32 0.0, %v6346
      %v6348 = vpop.f32.mrf.mxu0
      %v6349 = vpop.f32.mrf.mxu0
      %v6350 = vadd.f32 0.0, %v6349
      %v6351 = vpop.f32.mrf.mxu0
      %6352 = vmatprep.mubr.bf16.mxu0 0
      %6353 = vmatmul.mubr.bf16.gmra.mxu0 %v2004
      %v6354 = vpop.f32.mrf.mxu0
      %v6355 = vadd.f32 0.0, %v6354
      %v6356 = vpop.f32.mrf.mxu0
      %v6357 = vpop.f32.mrf.mxu0
      %v6358 = vadd.f32 0.0, %v6357
      %v6359 = vpop.f32.mrf.mxu0
      %6360 = vmatprep.mubr.bf16.mxu0 0
      %6361 = vmatmul.mubr.bf16.gmra.mxu0 %v2005
      %v6362 = vpop.f32.mrf.mxu0
      %v6363 = vadd.f32 0.0, %v6362
      %v6364 = vpop.f32.mrf.mxu0
      %v6365 = vpop.f32.mrf.mxu0
      %v6366 = vadd.f32 0.0, %v6365
      %v6367 = vpop.f32.mrf.mxu0
      %6368 = vmatprep.mubr.bf16.mxu0 0
      %6369 = vmatmul.mubr.bf16.gmra.mxu0 %v2006
      %v6370 = vpop.f32.mrf.mxu0
      %v6371 = vadd.f32 0.0, %v6370
      %v6372 = vpop.f32.mrf.mxu0
      %v6373 = vpop.f32.mrf.mxu0
      %v6374 = vadd.f32 0.0, %v6373
      %v6375 = vpop.f32.mrf.mxu0
      %6376 = vmatprep.mubr.bf16.mxu0 0
      %6377 = vmatmul.mubr.bf16.gmra.mxu0 %v2007
      %v6378 = vpop.f32.mrf.mxu0
      %v6379 = vadd.f32 0.0, %v6378
      %v6380 = vpop.f32.mrf.mxu0
      %v6381 = vpop.f32.mrf.mxu0
      %v6382 = vadd.f32 0.0, %v6381
      %v6383 = vpop.f32.mrf.mxu0
      %6384 = vmatprep.mubr.bf16.mxu0 0
      %6385 = vmatmul.mubr.bf16.gmra.mxu0 %v2008
      %v6386 = vpop.f32.mrf.mxu0
      %v6387 = vadd.f32 0.0, %v6386
      %v6388 = vpop.f32.mrf.mxu0
      %v6389 = vpop.f32.mrf.mxu0
      %v6390 = vadd.f32 0.0, %v6389
      %v6391 = vpop.f32.mrf.mxu0
      %6392 = vmatprep.mubr.bf16.mxu0 0
      %6393 = vmatmul.mubr.bf16.gmra.mxu0 %v2009
      %v6394 = vpop.f32.mrf.mxu0
      %v6395 = vadd.f32 0.0, %v6394
      %v6396 = vpop.f32.mrf.mxu0
      %v6397 = vpop.f32.mrf.mxu0
      %v6398 = vadd.f32 0.0, %v6397
      %v6399 = vpop.f32.mrf.mxu0
      %6400 = vmatprep.mubr.bf16.mxu0 0
      %6401 = vmatmul.mubr.bf16.gmra.mxu0 %v2010
      %v6402 = vpop.f32.mrf.mxu0
      %v6403 = vadd.f32 0.0, %v6402
      %v6404 = vpop.f32.mrf.mxu0
      %v6405 = vpop.f32.mrf.mxu0
      %v6406 = vadd.f32 0.0, %v6405
      %v6407 = vpop.f32.mrf.mxu0
      %6408 = vmatprep.mubr.bf16.mxu0 0
      %6409 = vmatmul.mubr.bf16.gmra.mxu0 %v2011
      %v6410 = vpop.f32.mrf.mxu0
      %v6411 = vadd.f32 0.0, %v6410
      %v6412 = vpop.f32.mrf.mxu0
      %v6413 = vpop.f32.mrf.mxu0
      %v6414 = vadd.f32 0.0, %v6413
      %v6415 = vpop.f32.mrf.mxu0
      %6416 = vmatprep.mubr.bf16.mxu0 0
      %6417 = vmatmul.mubr.bf16.gmra.mxu0 %v2012
      %v6418 = vpop.f32.mrf.mxu0
      %v6419 = vadd.f32 0.0, %v6418
      %v6420 = vpop.f32.mrf.mxu0
      %v6421 = vpop.f32.mrf.mxu0
      %v6422 = vadd.f32 0.0, %v6421
      %v6423 = vpop.f32.mrf.mxu0
      %6424 = vmatprep.mubr.bf16.mxu0 0
      %6425 = vmatmul.mubr.bf16.gmra.mxu0 %v2013
      %v6426 = vpop.f32.mrf.mxu0
      %v6427 = vadd.f32 0.0, %v6426
      %v6428 = vpop.f32.mrf.mxu0
      %v6429 = vpop.f32.mrf.mxu0
      %v6430 = vadd.f32 0.0, %v6429
      %v6431 = vpop.f32.mrf.mxu0
      %6432 = vmatprep.mubr.bf16.mxu0 0
      %6433 = vmatmul.mubr.bf16.gmra.mxu0 %v2014
      %v6434 = vpop.f32.mrf.mxu0
      %v6435 = vadd.f32 0.0, %v6434
      %v6436 = vpop.f32.mrf.mxu0
      %v6437 = vpop.f32.mrf.mxu0
      %v6438 = vadd.f32 0.0, %v6437
      %v6439 = vpop.f32.mrf.mxu0
      %6440 = vmatprep.mubr.bf16.mxu0 0
      %6441 = vmatmul.mubr.bf16.gmra.mxu0 %v2015
      %v6442 = vpop.f32.mrf.mxu0
      %v6443 = vadd.f32 0.0, %v6442
      %v6444 = vpop.f32.mrf.mxu0
      %v6445 = vpop.f32.mrf.mxu0
      %v6446 = vadd.f32 0.0, %v6445
      %v6447 = vpop.f32.mrf.mxu0
      %6448 = vmatprep.mubr.bf16.mxu0 0
      %6449 = vmatmul.mubr.bf16.gmra.mxu0 %v2016
      %v6450 = vpop.f32.mrf.mxu0
      %v6451 = vadd.f32 0.0, %v6450
      %v6452 = vpop.f32.mrf.mxu0
      %v6453 = vpop.f32.mrf.mxu0
      %v6454 = vadd.f32 0.0, %v6453
      %v6455 = vpop.f32.mrf.mxu0
      %6456 = vmatprep.mubr.bf16.mxu0 0
      %6457 = vmatmul.mubr.bf16.gmra.mxu0 %v2017
      %v6458 = vpop.f32.mrf.mxu0
      %v6459 = vadd.f32 0.0, %v6458
      %v6460 = vpop.f32.mrf.mxu0
      %v6461 = vpop.f32.mrf.mxu0
      %v6462 = vadd.f32 0.0, %v6461
      %v6463 = vpop.f32.mrf.mxu0
      %6464 = vmatprep.mubr.bf16.mxu0 0
      %6465 = vmatmul.mubr.bf16.gmra.mxu0 %v2018
      %v6466 = vpop.f32.mrf.mxu0
      %v6467 = vadd.f32 0.0, %v6466
      %v6468 = vpop.f32.mrf.mxu0
      %v6469 = vpop.f32.mrf.mxu0
      %v6470 = vadd.f32 0.0, %v6469
      %v6471 = vpop.f32.mrf.mxu0
      %6472 = vmatprep.mubr.bf16.mxu0 0
      %6473 = vmatmul.mubr.bf16.gmra.mxu0 %v2019
      %v6474 = vpop.f32.mrf.mxu0
      %v6475 = vadd.f32 0.0, %v6474
      %v6476 = vpop.f32.mrf.mxu0
      %v6477 = vpop.f32.mrf.mxu0
      %v6478 = vadd.f32 0.0, %v6477
      %v6479 = vpop.f32.mrf.mxu0
      %6480 = vmatprep.mubr.bf16.mxu0 0
      %6481 = vmatmul.mubr.bf16.gmra.mxu0 %v2020
      %v6482 = vpop.f32.mrf.mxu0
      %v6483 = vadd.f32 0.0, %v6482
      %v6484 = vpop.f32.mrf.mxu0
      %v6485 = vpop.f32.mrf.mxu0
      %v6486 = vadd.f32 0.0, %v6485
      %v6487 = vpop.f32.mrf.mxu0
      %6488 = vmatprep.mubr.bf16.mxu0 0
      %6489 = vmatmul.mubr.bf16.gmra.mxu0 %v2021
      %v6490 = vpop.f32.mrf.mxu0
      %v6491 = vadd.f32 0.0, %v6490
      %v6492 = vpop.f32.mrf.mxu0
      %v6493 = vpop.f32.mrf.mxu0
      %v6494 = vadd.f32 0.0, %v6493
      %v6495 = vpop.f32.mrf.mxu0
      %6496 = vmatprep.mubr.bf16.mxu0 0
      %6497 = vmatmul.mubr.bf16.gmra.mxu0 %v5916
      %v6498 = vpop.f32.mrf.mxu0
      %v6499 = vadd.f32 0.0, %v6498
      %v6500 = vpop.f32.mrf.mxu0
      %v6501 = vpop.f32.mrf.mxu0
      %v6502 = vadd.f32 0.0, %v6501
      %v6503 = vpop.f32.mrf.mxu0
      %6504 = vmatprep.mubr.bf16.mxu0 0
      %6505 = vmatmul.mubr.bf16.gmra.mxu0 %v5917
      %v6506 = vpop.f32.mrf.mxu0
      %v6507 = vadd.f32 0.0, %v6506
      %v6508 = vpop.f32.mrf.mxu0
      %v6509 = vpop.f32.mrf.mxu0
      %v6510 = vadd.f32 0.0, %v6509
      %v6511 = vpop.f32.mrf.mxu0
      %6512 = vdwg.mxu0
      %v6513 = vadd.f32 %v5723, %v6003
      %v6514 = vadd.f32 %v5724, %v6006
      %v6515 = vadd.f32 %v5725, %v6011
      %v6516 = vadd.f32 %v5726, %v6014
      %v6517 = vadd.f32 %v5727, %v6019
      %v6518 = vadd.f32 %v5728, %v6022
      %v6519 = vadd.f32 %v5729, %v6027
      %v6520 = vadd.f32 %v5730, %v6030
      %v6521 = vadd.f32 %v5731, %v6035
      %v6522 = vadd.f32 %v5732, %v6038
      %v6523 = vadd.f32 %v5733, %v6043
      %v6524 = vadd.f32 %v5734, %v6046
      %v6525 = vadd.f32 %v5735, %v6051
      %v6526 = vadd.f32 %v5736, %v6054
      %v6527 = vadd.f32 %v5737, %v6059
      %v6528 = vadd.f32 %v5738, %v6062
      %v6529 = vadd.f32 %v5739, %v6067
      %v6530 = vadd.f32 %v5740, %v6070
      %v6531 = vadd.f32 %v5741, %v6075
      %v6532 = vadd.f32 %v5742, %v6078
      %v6533 = vadd.f32 %v5743, %v6083
      %v6534 = vadd.f32 %v5744, %v6086
      %v6535 = vadd.f32 %v5745, %v6091
      %v6536 = vadd.f32 %v5746, %v6094
      %v6537 = vadd.f32 %v5747, %v6099
      %v6538 = vadd.f32 %v5748, %v6102
      %v6539 = vadd.f32 %v5749, %v6107
      %v6540 = vadd.f32 %v5750, %v6110
      %v6541 = vadd.f32 %v5751, %v6115
      %v6542 = vadd.f32 %v5752, %v6118
      %v6543 = vadd.f32 %v5753, %v6123
      %v6544 = vadd.f32 %v5754, %v6126
      %v6545 = vadd.f32 %v5755, %v6131
      %v6546 = vadd.f32 %v5756, %v6134
      %v6547 = vadd.f32 %v5757, %v6139
      %v6548 = vadd.f32 %v5758, %v6142
      %v6549 = vadd.f32 %v5759, %v6147
      %v6550 = vadd.f32 %v5760, %v6150
      %v6551 = vadd.f32 %v5761, %v6155
      %v6552 = vadd.f32 %v5762, %v6158
      %v6553 = vadd.f32 %v5763, %v6163
      %v6554 = vadd.f32 %v5764, %v6166
      %v6555 = vadd.f32 %v5765, %v6171
      %v6556 = vadd.f32 %v5766, %v6174
      %v6557 = vadd.f32 %v5767, %v6179
      %v6558 = vadd.f32 %v5768, %v6182
      %v6559 = vadd.f32 %v5769, %v6187
      %v6560 = vadd.f32 %v5770, %v6190
      %v6561 = vadd.f32 %v5771, %v6195
      %v6562 = vadd.f32 %v5772, %v6198
      %v6563 = vadd.f32 %v5773, %v6203
      %v6564 = vadd.f32 %v5774, %v6206
      %v6565 = vadd.f32 %v5775, %v6211
      %v6566 = vadd.f32 %v5776, %v6214
      %v6567 = vadd.f32 %v5777, %v6219
      %v6568 = vadd.f32 %v5778, %v6222
      %v6569 = vadd.f32 %v5779, %v6227
      %v6570 = vadd.f32 %v5780, %v6230
      %v6571 = vadd.f32 %v5781, %v6235
      %v6572 = vadd.f32 %v5782, %v6238
      %v6573 = vadd.f32 %v5783, %v6243
      %v6574 = vadd.f32 %v5784, %v6246
      %v6575 = vadd.f32 %v5785, %v6251
      %v6576 = vadd.f32 %v5786, %v6254
      %v6577 = vadd.f32 %v5787, %v6259
      %v6578 = vadd.f32 %v5788, %v6262
      %v6579 = vadd.f32 %v5789, %v6267
      %v6580 = vadd.f32 %v5790, %v6270
      %v6581 = vadd.f32 %v5791, %v6275
      %v6582 = vadd.f32 %v5792, %v6278
      %v6583 = vadd.f32 %v5793, %v6283
      %v6584 = vadd.f32 %v5794, %v6286
      %v6585 = vadd.f32 %v5795, %v6291
      %v6586 = vadd.f32 %v5796, %v6294
      %v6587 = vadd.f32 %v5797, %v6299
      %v6588 = vadd.f32 %v5798, %v6302
      %v6589 = vadd.f32 %v5799, %v6307
      %v6590 = vadd.f32 %v5800, %v6310
      %v6591 = vadd.f32 %v5801, %v6315
      %v6592 = vadd.f32 %v5802, %v6318
      %v6593 = vadd.f32 %v5803, %v6323
      %v6594 = vadd.f32 %v5804, %v6326
      %v6595 = vadd.f32 %v5805, %v6331
      %v6596 = vadd.f32 %v5806, %v6334
      %v6597 = vadd.f32 %v5807, %v6339
      %v6598 = vadd.f32 %v5808, %v6342
      %v6599 = vadd.f32 %v5809, %v6347
      %v6600 = vadd.f32 %v5810, %v6350
      %v6601 = vadd.f32 %v5811, %v6355
      %v6602 = vadd.f32 %v5812, %v6358
      %v6603 = vadd.f32 %v5813, %v6363
      %v6604 = vadd.f32 %v5814, %v6366
      %v6605 = vadd.f32 %v5815, %v6371
      %v6606 = vadd.f32 %v5816, %v6374
      %v6607 = vadd.f32 %v5817, %v6379
      %v6608 = vadd.f32 %v5818, %v6382
      %v6609 = vadd.f32 %v5819, %v6387
      %v6610 = vadd.f32 %v5820, %v6390
      %v6611 = vadd.f32 %v5821, %v6395
      %v6612 = vadd.f32 %v5822, %v6398
      %v6613 = vadd.f32 %v5823, %v6403
      %v6614 = vadd.f32 %v5824, %v6406
      %v6615 = vadd.f32 %v5825, %v6411
      %v6616 = vadd.f32 %v5826, %v6414
      %v6617 = vadd.f32 %v5827, %v6419
      %v6618 = vadd.f32 %v5828, %v6422
      %v6619 = vadd.f32 %v5829, %v6427
      %v6620 = vadd.f32 %v5830, %v6430
      %v6621 = vadd.f32 %v5831, %v6435
      %v6622 = vadd.f32 %v5832, %v6438
      %v6623 = vadd.f32 %v5833, %v6443
      %v6624 = vadd.f32 %v5834, %v6446
      %v6625 = vadd.f32 %v5835, %v6451
      %v6626 = vadd.f32 %v5836, %v6454
      %v6627 = vadd.f32 %v5837, %v6459
      %v6628 = vadd.f32 %v5838, %v6462
      %v6629 = vadd.f32 %v5839, %v6467
      %v6630 = vadd.f32 %v5840, %v6470
      %v6631 = vadd.f32 %v5841, %v6475
      %v6632 = vadd.f32 %v5842, %v6478
      %v6633 = vadd.f32 %v5843, %v6483
      %v6634 = vadd.f32 %v5844, %v6486
      %v6635 = vadd.f32 %v5845, %v6491
      %v6636 = vadd.f32 %v5846, %v6494
      %v6637 = vadd.f32 %v5847, %v6499
      %v6638 = vadd.f32 %v5848, %v6502
      %v6639 = vadd.f32 %v5849, %v6507
      %v6640 = vadd.f32 %v5850, %v6510
      %v6642 = vrot.slane %v376, 5
      %v6643 = vrot.slane %v6642, 4
      %v6644 = vrot.slane %v377, 5
      %v6645 = vsel %vm3690, %v6643, %v6644
      %v6646 = vrot.slane %v6644, 4
      %v6647 = vrot.slane %v378, 5
      %v6648 = vsel %vm3690, %v6646, %v6647
      %v6649 = vrot.slane %v6647, 4
      %v6650 = vrot.slane %v379, 5
      %v6651 = vsel %vm3690, %v6649, %v6650
      %v6652 = vrot.slane %v6650, 4
      %v6653 = vrot.slane %v380, 5
      %v6654 = vsel %vm3690, %v6652, %v6653
      %s6655 = scalar_lea.vmem %s1, 320
      %v6656 = vld [vmem:[%s6655] sm:$0xf]
      %v6657 = vld [vmem:[%s6655 + $0x4] sm:$0xf]
      %v6658 = vld [vmem:[%s6655 + $0x8] sm:$0xf]
      %v6659 = vld [vmem:[%s6655 + $0xc] sm:$0xf]
      %v6660 = vld [vmem:[%s6655 + $0x10] sm:$0xf]
      %v6661 = vld [vmem:[%s6655 + $0x14] sm:$0xf]
      %v6662 = vld [vmem:[%s6655 + $0x18] sm:$0xf]
      %v6663 = vld [vmem:[%s6655 + $0x1c] sm:$0xf]
      %v6664 = vld [vmem:[%s6655 + $0x20] sm:$0xf]
      %v6665 = vld [vmem:[%s6655 + $0x24] sm:$0xf]
      %v6666 = vld [vmem:[%s6655 + $0x28] sm:$0xf]
      %v6667 = vld [vmem:[%s6655 + $0x2c] sm:$0xf]
      %v6668 = vld [vmem:[%s6655 + $0x30] sm:$0xf]
      %v6669 = vld [vmem:[%s6655 + $0x34] sm:$0xf]
      %v6670 = vld [vmem:[%s6655 + $0x38] sm:$0xf]
      %v6671 = vld [vmem:[%s6655 + $0x3c] sm:$0xf]
      %v6672 = vunpack.c.l.b16 %v6645
      %v6673 = vunpack.c.l.b16 %v6648
      %v6674 = vunpack.c.l.b16 %v6651
      %v6675 = vunpack.c.l.b16 %v6654
      %v6676 = vpack.c.b16 %v6673, %v6672
      %v6677 = vpack.c.b16 %v6675, %v6674
      %v6696 = vunpack.c.l.b16 %v6656
      %v6697 = vunpack.c.l.b16 %v6657
      %v6698 = vunpack.c.l.b16 %v6658
      %v6699 = vunpack.c.l.b16 %v6659
      %v6700 = vunpack.c.l.b16 %v6660
      %v6701 = vunpack.c.l.b16 %v6661
      %v6702 = vunpack.c.l.b16 %v6662
      %v6703 = vunpack.c.l.b16 %v6663
      %v6704 = vunpack.c.l.b16 %v6664
      %v6705 = vunpack.c.l.b16 %v6665
      %v6706 = vunpack.c.l.b16 %v6666
      %v6707 = vunpack.c.l.b16 %v6667
      %v6708 = vunpack.c.l.b16 %v6668
      %v6709 = vunpack.c.l.b16 %v6669
      %v6710 = vunpack.c.l.b16 %v6670
      %v6711 = vunpack.c.l.b16 %v6671
      %v6712 = vpack.c.b16 %v6697, %v6696
      %v6713 = vpack.c.b16 %v6699, %v6698
      %v6714 = vpack.c.b16 %v6701, %v6700
      %v6715 = vpack.c.b16 %v6703, %v6702
      %v6716 = vpack.c.b16 %v6705, %v6704
      %v6717 = vpack.c.b16 %v6707, %v6706
      %v6718 = vpack.c.b16 %v6709, %v6708
      %v6719 = vpack.c.b16 %v6711, %v6710
      %6728 = vmatprep.subr.bf16.mxu0 0
      %6729 = vmatpush1.bf16.msra.mxu0 %v6719
      %6730 = vmatprep.subr.bf16.mxu0 0
      %6731 = vmatpush1.bf16.msra.mxu0 %v6718
      %6732 = vmatprep.subr.bf16.mxu0 0
      %6733 = vmatpush1.bf16.msra.mxu0 %v6717
      %6734 = vmatprep.subr.bf16.mxu0 0
      %6735 = vmatpush1.bf16.msra.mxu0 %v6716
      %6736 = vmatprep.subr.bf16.mxu0 0
      %6737 = vmatpush1.bf16.msra.mxu0 %v6715
      %6738 = vmatprep.subr.bf16.mxu0 0
      %6739 = vmatpush1.bf16.msra.mxu0 %v6714
      %6740 = vmatprep.subr.bf16.mxu0 0
      %6741 = vmatpush1.bf16.msra.mxu0 %v6713
      %6742 = vmatprep.subr.bf16.mxu0 0
      %6743 = vmatpush1.bf16.msra.mxu0 %v6712
      %6744 = vmatprep.subr.bf16.mxu0 0
      %6745 = vmatpush2.bf16.msra.mxu0 0
      %6746 = vmatprep.subr.bf16.mxu0 0
      %6747 = vmatpush2.bf16.msra.mxu0 0
      %6748 = vmatprep.subr.bf16.mxu0 0
      %6749 = vmatpush2.bf16.msra.mxu0 0
      %6750 = vmatprep.subr.bf16.mxu0 0
      %6751 = vmatpush2.bf16.msra.mxu0 0
      %6752 = vmatprep.subr.bf16.mxu0 0
      %6753 = vmatpush2.bf16.msra.mxu0 0
      %6754 = vmatprep.subr.bf16.mxu0 0
      %6755 = vmatpush2.bf16.msra.mxu0 0
      %6756 = vmatprep.subr.bf16.mxu0 0
      %6757 = vmatpush2.bf16.msra.mxu0 0
      %6758 = vmatprep.subr.bf16.mxu0 0
      %6759 = vmatpush2.bf16.msra.mxu0 0
      %6760 = vmatprep.mubr.bf16.mxu0 0
      %6761 = vmatmul.mubr.bf16.gmra.mxu0 %v4254
      %v6762 = vpop.f32.mrf.mxu0
      %v6763 = vadd.f32 0.0, %v6762
      %v6764 = vpop.f32.mrf.mxu0
      %v6765 = vpop.f32.mrf.mxu0
      %v6766 = vadd.f32 0.0, %v6765
      %v6767 = vpop.f32.mrf.mxu0
      %6768 = vmatprep.mubr.bf16.mxu0 0
      %6769 = vmatmul.mubr.bf16.gmra.mxu0 %v4255
      %v6770 = vpop.f32.mrf.mxu0
      %v6771 = vadd.f32 0.0, %v6770
      %v6772 = vpop.f32.mrf.mxu0
      %v6773 = vpop.f32.mrf.mxu0
      %v6774 = vadd.f32 0.0, %v6773
      %v6775 = vpop.f32.mrf.mxu0
      %6776 = vmatprep.mubr.bf16.mxu0 0
      %6777 = vmatmul.mubr.bf16.gmra.mxu0 %v4256
      %v6778 = vpop.f32.mrf.mxu0
      %v6779 = vadd.f32 0.0, %v6778
      %v6780 = vpop.f32.mrf.mxu0
      %v6781 = vpop.f32.mrf.mxu0
      %v6782 = vadd.f32 0.0, %v6781
      %v6783 = vpop.f32.mrf.mxu0
      %6784 = vmatprep.mubr.bf16.mxu0 0
      %6785 = vmatmul.mubr.bf16.gmra.mxu0 %v4257
      %v6786 = vpop.f32.mrf.mxu0
      %v6787 = vadd.f32 0.0, %v6786
      %v6788 = vpop.f32.mrf.mxu0
      %v6789 = vpop.f32.mrf.mxu0
      %v6790 = vadd.f32 0.0, %v6789
      %v6791 = vpop.f32.mrf.mxu0
      %6792 = vmatprep.mubr.bf16.mxu0 0
      %6793 = vmatmul.mubr.bf16.gmra.mxu0 %v4258
      %v6794 = vpop.f32.mrf.mxu0
      %v6795 = vadd.f32 0.0, %v6794
      %v6796 = vpop.f32.mrf.mxu0
      %v6797 = vpop.f32.mrf.mxu0
      %v6798 = vadd.f32 0.0, %v6797
      %v6799 = vpop.f32.mrf.mxu0
      %6800 = vmatprep.mubr.bf16.mxu0 0
      %6801 = vmatmul.mubr.bf16.gmra.mxu0 %v4259
      %v6802 = vpop.f32.mrf.mxu0
      %v6803 = vadd.f32 0.0, %v6802
      %v6804 = vpop.f32.mrf.mxu0
      %v6805 = vpop.f32.mrf.mxu0
      %v6806 = vadd.f32 0.0, %v6805
      %v6807 = vpop.f32.mrf.mxu0
      %6808 = vmatprep.mubr.bf16.mxu0 0
      %6809 = vmatmul.mubr.bf16.gmra.mxu0 %v4260
      %v6810 = vpop.f32.mrf.mxu0
      %v6811 = vadd.f32 0.0, %v6810
      %v6812 = vpop.f32.mrf.mxu0
      %v6813 = vpop.f32.mrf.mxu0
      %v6814 = vadd.f32 0.0, %v6813
      %v6815 = vpop.f32.mrf.mxu0
      %6816 = vmatprep.mubr.bf16.mxu0 0
      %6817 = vmatmul.mubr.bf16.gmra.mxu0 %v4261
      %v6818 = vpop.f32.mrf.mxu0
      %v6819 = vadd.f32 0.0, %v6818
      %v6820 = vpop.f32.mrf.mxu0
      %v6821 = vpop.f32.mrf.mxu0
      %v6822 = vadd.f32 0.0, %v6821
      %v6823 = vpop.f32.mrf.mxu0
      %6824 = vmatprep.mubr.bf16.mxu0 0
      %6825 = vmatmul.mubr.bf16.gmra.mxu0 %v4262
      %v6826 = vpop.f32.mrf.mxu0
      %v6827 = vadd.f32 0.0, %v6826
      %v6828 = vpop.f32.mrf.mxu0
      %v6829 = vpop.f32.mrf.mxu0
      %v6830 = vadd.f32 0.0, %v6829
      %v6831 = vpop.f32.mrf.mxu0
      %6832 = vmatprep.mubr.bf16.mxu0 0
      %6833 = vmatmul.mubr.bf16.gmra.mxu0 %v4263
      %v6834 = vpop.f32.mrf.mxu0
      %v6835 = vadd.f32 0.0, %v6834
      %v6836 = vpop.f32.mrf.mxu0
      %v6837 = vpop.f32.mrf.mxu0
      %v6838 = vadd.f32 0.0, %v6837
      %v6839 = vpop.f32.mrf.mxu0
      %6840 = vmatprep.mubr.bf16.mxu0 0
      %6841 = vmatmul.mubr.bf16.gmra.mxu0 %v4264
      %v6842 = vpop.f32.mrf.mxu0
      %v6843 = vadd.f32 0.0, %v6842
      %v6844 = vpop.f32.mrf.mxu0
      %v6845 = vpop.f32.mrf.mxu0
      %v6846 = vadd.f32 0.0, %v6845
      %v6847 = vpop.f32.mrf.mxu0
      %6848 = vmatprep.mubr.bf16.mxu0 0
      %6849 = vmatmul.mubr.bf16.gmra.mxu0 %v4265
      %v6850 = vpop.f32.mrf.mxu0
      %v6851 = vadd.f32 0.0, %v6850
      %v6852 = vpop.f32.mrf.mxu0
      %v6853 = vpop.f32.mrf.mxu0
      %v6854 = vadd.f32 0.0, %v6853
      %v6855 = vpop.f32.mrf.mxu0
      %6856 = vmatprep.mubr.bf16.mxu0 0
      %6857 = vmatmul.mubr.bf16.gmra.mxu0 %v4266
      %v6858 = vpop.f32.mrf.mxu0
      %v6859 = vadd.f32 0.0, %v6858
      %v6860 = vpop.f32.mrf.mxu0
      %v6861 = vpop.f32.mrf.mxu0
      %v6862 = vadd.f32 0.0, %v6861
      %v6863 = vpop.f32.mrf.mxu0
      %6864 = vmatprep.mubr.bf16.mxu0 0
      %6865 = vmatmul.mubr.bf16.gmra.mxu0 %v4267
      %v6866 = vpop.f32.mrf.mxu0
      %v6867 = vadd.f32 0.0, %v6866
      %v6868 = vpop.f32.mrf.mxu0
      %v6869 = vpop.f32.mrf.mxu0
      %v6870 = vadd.f32 0.0, %v6869
      %v6871 = vpop.f32.mrf.mxu0
      %6872 = vmatprep.mubr.bf16.mxu0 0
      %6873 = vmatmul.mubr.bf16.gmra.mxu0 %v4268
      %v6874 = vpop.f32.mrf.mxu0
      %v6875 = vadd.f32 0.0, %v6874
      %v6876 = vpop.f32.mrf.mxu0
      %v6877 = vpop.f32.mrf.mxu0
      %v6878 = vadd.f32 0.0, %v6877
      %v6879 = vpop.f32.mrf.mxu0
      %6880 = vmatprep.mubr.bf16.mxu0 0
      %6881 = vmatmul.mubr.bf16.gmra.mxu0 %v4269
      %v6882 = vpop.f32.mrf.mxu0
      %v6883 = vadd.f32 0.0, %v6882
      %v6884 = vpop.f32.mrf.mxu0
      %v6885 = vpop.f32.mrf.mxu0
      %v6886 = vadd.f32 0.0, %v6885
      %v6887 = vpop.f32.mrf.mxu0
      %6888 = vmatprep.mubr.bf16.mxu0 0
      %6889 = vmatmul.mubr.bf16.gmra.mxu0 %v4270
      %v6890 = vpop.f32.mrf.mxu0
      %v6891 = vadd.f32 0.0, %v6890
      %v6892 = vpop.f32.mrf.mxu0
      %v6893 = vpop.f32.mrf.mxu0
      %v6894 = vadd.f32 0.0, %v6893
      %v6895 = vpop.f32.mrf.mxu0
      %6896 = vmatprep.mubr.bf16.mxu0 0
      %6897 = vmatmul.mubr.bf16.gmra.mxu0 %v4271
      %v6898 = vpop.f32.mrf.mxu0
      %v6899 = vadd.f32 0.0, %v6898
      %v6900 = vpop.f32.mrf.mxu0
      %v6901 = vpop.f32.mrf.mxu0
      %v6902 = vadd.f32 0.0, %v6901
      %v6903 = vpop.f32.mrf.mxu0
      %6904 = vmatprep.mubr.bf16.mxu0 0
      %6905 = vmatmul.mubr.bf16.gmra.mxu0 %v4272
      %v6906 = vpop.f32.mrf.mxu0
      %v6907 = vadd.f32 0.0, %v6906
      %v6908 = vpop.f32.mrf.mxu0
      %v6909 = vpop.f32.mrf.mxu0
      %v6910 = vadd.f32 0.0, %v6909
      %v6911 = vpop.f32.mrf.mxu0
      %6912 = vmatprep.mubr.bf16.mxu0 0
      %6913 = vmatmul.mubr.bf16.gmra.mxu0 %v4273
      %v6914 = vpop.f32.mrf.mxu0
      %v6915 = vadd.f32 0.0, %v6914
      %v6916 = vpop.f32.mrf.mxu0
      %v6917 = vpop.f32.mrf.mxu0
      %v6918 = vadd.f32 0.0, %v6917
      %v6919 = vpop.f32.mrf.mxu0
      %6920 = vmatprep.mubr.bf16.mxu0 0
      %6921 = vmatmul.mubr.bf16.gmra.mxu0 %v4274
      %v6922 = vpop.f32.mrf.mxu0
      %v6923 = vadd.f32 0.0, %v6922
      %v6924 = vpop.f32.mrf.mxu0
      %v6925 = vpop.f32.mrf.mxu0
      %v6926 = vadd.f32 0.0, %v6925
      %v6927 = vpop.f32.mrf.mxu0
      %6928 = vmatprep.mubr.bf16.mxu0 0
      %6929 = vmatmul.mubr.bf16.gmra.mxu0 %v4275
      %v6930 = vpop.f32.mrf.mxu0
      %v6931 = vadd.f32 0.0, %v6930
      %v6932 = vpop.f32.mrf.mxu0
      %v6933 = vpop.f32.mrf.mxu0
      %v6934 = vadd.f32 0.0, %v6933
      %v6935 = vpop.f32.mrf.mxu0
      %6936 = vmatprep.mubr.bf16.mxu0 0
      %6937 = vmatmul.mubr.bf16.gmra.mxu0 %v4276
      %v6938 = vpop.f32.mrf.mxu0
      %v6939 = vadd.f32 0.0, %v6938
      %v6940 = vpop.f32.mrf.mxu0
      %v6941 = vpop.f32.mrf.mxu0
      %v6942 = vadd.f32 0.0, %v6941
      %v6943 = vpop.f32.mrf.mxu0
      %6944 = vmatprep.mubr.bf16.mxu0 0
      %6945 = vmatmul.mubr.bf16.gmra.mxu0 %v4277
      %v6946 = vpop.f32.mrf.mxu0
      %v6947 = vadd.f32 0.0, %v6946
      %v6948 = vpop.f32.mrf.mxu0
      %v6949 = vpop.f32.mrf.mxu0
      %v6950 = vadd.f32 0.0, %v6949
      %v6951 = vpop.f32.mrf.mxu0
      %6952 = vmatprep.mubr.bf16.mxu0 0
      %6953 = vmatmul.mubr.bf16.gmra.mxu0 %v4278
      %v6954 = vpop.f32.mrf.mxu0
      %v6955 = vadd.f32 0.0, %v6954
      %v6956 = vpop.f32.mrf.mxu0
      %v6957 = vpop.f32.mrf.mxu0
      %v6958 = vadd.f32 0.0, %v6957
      %v6959 = vpop.f32.mrf.mxu0
      %6960 = vmatprep.mubr.bf16.mxu0 0
      %6961 = vmatmul.mubr.bf16.gmra.mxu0 %v4279
      %v6962 = vpop.f32.mrf.mxu0
      %v6963 = vadd.f32 0.0, %v6962
      %v6964 = vpop.f32.mrf.mxu0
      %v6965 = vpop.f32.mrf.mxu0
      %v6966 = vadd.f32 0.0, %v6965
      %v6967 = vpop.f32.mrf.mxu0
      %6968 = vmatprep.mubr.bf16.mxu0 0
      %6969 = vmatmul.mubr.bf16.gmra.mxu0 %v4280
      %v6970 = vpop.f32.mrf.mxu0
      %v6971 = vadd.f32 0.0, %v6970
      %v6972 = vpop.f32.mrf.mxu0
      %v6973 = vpop.f32.mrf.mxu0
      %v6974 = vadd.f32 0.0, %v6973
      %v6975 = vpop.f32.mrf.mxu0
      %6976 = vmatprep.mubr.bf16.mxu0 0
      %6977 = vmatmul.mubr.bf16.gmra.mxu0 %v4281
      %v6978 = vpop.f32.mrf.mxu0
      %v6979 = vadd.f32 0.0, %v6978
      %v6980 = vpop.f32.mrf.mxu0
      %v6981 = vpop.f32.mrf.mxu0
      %v6982 = vadd.f32 0.0, %v6981
      %v6983 = vpop.f32.mrf.mxu0
      %6984 = vmatprep.mubr.bf16.mxu0 0
      %6985 = vmatmul.mubr.bf16.gmra.mxu0 %v4282
      %v6986 = vpop.f32.mrf.mxu0
      %v6987 = vadd.f32 0.0, %v6986
      %v6988 = vpop.f32.mrf.mxu0
      %v6989 = vpop.f32.mrf.mxu0
      %v6990 = vadd.f32 0.0, %v6989
      %v6991 = vpop.f32.mrf.mxu0
      %6992 = vmatprep.mubr.bf16.mxu0 0
      %6993 = vmatmul.mubr.bf16.gmra.mxu0 %v4283
      %v6994 = vpop.f32.mrf.mxu0
      %v6995 = vadd.f32 0.0, %v6994
      %v6996 = vpop.f32.mrf.mxu0
      %v6997 = vpop.f32.mrf.mxu0
      %v6998 = vadd.f32 0.0, %v6997
      %v6999 = vpop.f32.mrf.mxu0
      %7000 = vmatprep.mubr.bf16.mxu0 0
      %7001 = vmatmul.mubr.bf16.gmra.mxu0 %v4284
      %v7002 = vpop.f32.mrf.mxu0
      %v7003 = vadd.f32 0.0, %v7002
      %v7004 = vpop.f32.mrf.mxu0
      %v7005 = vpop.f32.mrf.mxu0
      %v7006 = vadd.f32 0.0, %v7005
      %v7007 = vpop.f32.mrf.mxu0
      %7008 = vmatprep.mubr.bf16.mxu0 0
      %7009 = vmatmul.mubr.bf16.gmra.mxu0 %v4285
      %v7010 = vpop.f32.mrf.mxu0
      %v7011 = vadd.f32 0.0, %v7010
      %v7012 = vpop.f32.mrf.mxu0
      %v7013 = vpop.f32.mrf.mxu0
      %v7014 = vadd.f32 0.0, %v7013
      %v7015 = vpop.f32.mrf.mxu0
      %7016 = vmatprep.mubr.bf16.mxu0 0
      %7017 = vmatmul.mubr.bf16.gmra.mxu0 %v4286
      %v7018 = vpop.f32.mrf.mxu0
      %v7019 = vadd.f32 0.0, %v7018
      %v7020 = vpop.f32.mrf.mxu0
      %v7021 = vpop.f32.mrf.mxu0
      %v7022 = vadd.f32 0.0, %v7021
      %v7023 = vpop.f32.mrf.mxu0
      %7024 = vmatprep.mubr.bf16.mxu0 0
      %7025 = vmatmul.mubr.bf16.gmra.mxu0 %v4287
      %v7026 = vpop.f32.mrf.mxu0
      %v7027 = vadd.f32 0.0, %v7026
      %v7028 = vpop.f32.mrf.mxu0
      %v7029 = vpop.f32.mrf.mxu0
      %v7030 = vadd.f32 0.0, %v7029
      %v7031 = vpop.f32.mrf.mxu0
      %7032 = vmatprep.mubr.bf16.mxu0 0
      %7033 = vmatmul.mubr.bf16.gmra.mxu0 %v4288
      %v7034 = vpop.f32.mrf.mxu0
      %v7035 = vadd.f32 0.0, %v7034
      %v7036 = vpop.f32.mrf.mxu0
      %v7037 = vpop.f32.mrf.mxu0
      %v7038 = vadd.f32 0.0, %v7037
      %v7039 = vpop.f32.mrf.mxu0
      %7040 = vmatprep.mubr.bf16.mxu0 0
      %7041 = vmatmul.mubr.bf16.gmra.mxu0 %v4289
      %v7042 = vpop.f32.mrf.mxu0
      %v7043 = vadd.f32 0.0, %v7042
      %v7044 = vpop.f32.mrf.mxu0
      %v7045 = vpop.f32.mrf.mxu0
      %v7046 = vadd.f32 0.0, %v7045
      %v7047 = vpop.f32.mrf.mxu0
      %7048 = vmatprep.mubr.bf16.mxu0 0
      %7049 = vmatmul.mubr.bf16.gmra.mxu0 %v4290
      %v7050 = vpop.f32.mrf.mxu0
      %v7051 = vadd.f32 0.0, %v7050
      %v7052 = vpop.f32.mrf.mxu0
      %v7053 = vpop.f32.mrf.mxu0
      %v7054 = vadd.f32 0.0, %v7053
      %v7055 = vpop.f32.mrf.mxu0
      %7056 = vmatprep.mubr.bf16.mxu0 0
      %7057 = vmatmul.mubr.bf16.gmra.mxu0 %v4291
      %v7058 = vpop.f32.mrf.mxu0
      %v7059 = vadd.f32 0.0, %v7058
      %v7060 = vpop.f32.mrf.mxu0
      %v7061 = vpop.f32.mrf.mxu0
      %v7062 = vadd.f32 0.0, %v7061
      %v7063 = vpop.f32.mrf.mxu0
      %7064 = vmatprep.mubr.bf16.mxu0 0
      %7065 = vmatmul.mubr.bf16.gmra.mxu0 %v4292
      %v7066 = vpop.f32.mrf.mxu0
      %v7067 = vadd.f32 0.0, %v7066
      %v7068 = vpop.f32.mrf.mxu0
      %v7069 = vpop.f32.mrf.mxu0
      %v7070 = vadd.f32 0.0, %v7069
      %v7071 = vpop.f32.mrf.mxu0
      %7072 = vmatprep.mubr.bf16.mxu0 0
      %7073 = vmatmul.mubr.bf16.gmra.mxu0 %v4293
      %v7074 = vpop.f32.mrf.mxu0
      %v7075 = vadd.f32 0.0, %v7074
      %v7076 = vpop.f32.mrf.mxu0
      %v7077 = vpop.f32.mrf.mxu0
      %v7078 = vadd.f32 0.0, %v7077
      %v7079 = vpop.f32.mrf.mxu0
      %7080 = vmatprep.mubr.bf16.mxu0 0
      %7081 = vmatmul.mubr.bf16.gmra.mxu0 %v4294
      %v7082 = vpop.f32.mrf.mxu0
      %v7083 = vadd.f32 0.0, %v7082
      %v7084 = vpop.f32.mrf.mxu0
      %v7085 = vpop.f32.mrf.mxu0
      %v7086 = vadd.f32 0.0, %v7085
      %v7087 = vpop.f32.mrf.mxu0
      %7088 = vmatprep.mubr.bf16.mxu0 0
      %7089 = vmatmul.mubr.bf16.gmra.mxu0 %v4295
      %v7090 = vpop.f32.mrf.mxu0
      %v7091 = vadd.f32 0.0, %v7090
      %v7092 = vpop.f32.mrf.mxu0
      %v7093 = vpop.f32.mrf.mxu0
      %v7094 = vadd.f32 0.0, %v7093
      %v7095 = vpop.f32.mrf.mxu0
      %7096 = vmatprep.mubr.bf16.mxu0 0
      %7097 = vmatmul.mubr.bf16.gmra.mxu0 %v4296
      %v7098 = vpop.f32.mrf.mxu0
      %v7099 = vadd.f32 0.0, %v7098
      %v7100 = vpop.f32.mrf.mxu0
      %v7101 = vpop.f32.mrf.mxu0
      %v7102 = vadd.f32 0.0, %v7101
      %v7103 = vpop.f32.mrf.mxu0
      %7104 = vmatprep.mubr.bf16.mxu0 0
      %7105 = vmatmul.mubr.bf16.gmra.mxu0 %v4297
      %v7106 = vpop.f32.mrf.mxu0
      %v7107 = vadd.f32 0.0, %v7106
      %v7108 = vpop.f32.mrf.mxu0
      %v7109 = vpop.f32.mrf.mxu0
      %v7110 = vadd.f32 0.0, %v7109
      %v7111 = vpop.f32.mrf.mxu0
      %7112 = vmatprep.mubr.bf16.mxu0 0
      %7113 = vmatmul.mubr.bf16.gmra.mxu0 %v4298
      %v7114 = vpop.f32.mrf.mxu0
      %v7115 = vadd.f32 0.0, %v7114
      %v7116 = vpop.f32.mrf.mxu0
      %v7117 = vpop.f32.mrf.mxu0
      %v7118 = vadd.f32 0.0, %v7117
      %v7119 = vpop.f32.mrf.mxu0
      %7120 = vmatprep.mubr.bf16.mxu0 0
      %7121 = vmatmul.mubr.bf16.gmra.mxu0 %v4299
      %v7122 = vpop.f32.mrf.mxu0
      %v7123 = vadd.f32 0.0, %v7122
      %v7124 = vpop.f32.mrf.mxu0
      %v7125 = vpop.f32.mrf.mxu0
      %v7126 = vadd.f32 0.0, %v7125
      %v7127 = vpop.f32.mrf.mxu0
      %7128 = vmatprep.mubr.bf16.mxu0 0
      %7129 = vmatmul.mubr.bf16.gmra.mxu0 %v4300
      %v7130 = vpop.f32.mrf.mxu0
      %v7131 = vadd.f32 0.0, %v7130
      %v7132 = vpop.f32.mrf.mxu0
      %v7133 = vpop.f32.mrf.mxu0
      %v7134 = vadd.f32 0.0, %v7133
      %v7135 = vpop.f32.mrf.mxu0
      %7136 = vmatprep.mubr.bf16.mxu0 0
      %7137 = vmatmul.mubr.bf16.gmra.mxu0 %v4301
      %v7138 = vpop.f32.mrf.mxu0
      %v7139 = vadd.f32 0.0, %v7138
      %v7140 = vpop.f32.mrf.mxu0
      %v7141 = vpop.f32.mrf.mxu0
      %v7142 = vadd.f32 0.0, %v7141
      %v7143 = vpop.f32.mrf.mxu0
      %7144 = vmatprep.mubr.bf16.mxu0 0
      %7145 = vmatmul.mubr.bf16.gmra.mxu0 %v4302
      %v7146 = vpop.f32.mrf.mxu0
      %v7147 = vadd.f32 0.0, %v7146
      %v7148 = vpop.f32.mrf.mxu0
      %v7149 = vpop.f32.mrf.mxu0
      %v7150 = vadd.f32 0.0, %v7149
      %v7151 = vpop.f32.mrf.mxu0
      %7152 = vmatprep.mubr.bf16.mxu0 0
      %7153 = vmatmul.mubr.bf16.gmra.mxu0 %v4303
      %v7154 = vpop.f32.mrf.mxu0
      %v7155 = vadd.f32 0.0, %v7154
      %v7156 = vpop.f32.mrf.mxu0
      %v7157 = vpop.f32.mrf.mxu0
      %v7158 = vadd.f32 0.0, %v7157
      %v7159 = vpop.f32.mrf.mxu0
      %7160 = vmatprep.mubr.bf16.mxu0 0
      %7161 = vmatmul.mubr.bf16.gmra.mxu0 %v4304
      %v7162 = vpop.f32.mrf.mxu0
      %v7163 = vadd.f32 0.0, %v7162
      %v7164 = vpop.f32.mrf.mxu0
      %v7165 = vpop.f32.mrf.mxu0
      %v7166 = vadd.f32 0.0, %v7165
      %v7167 = vpop.f32.mrf.mxu0
      %7168 = vmatprep.mubr.bf16.mxu0 0
      %7169 = vmatmul.mubr.bf16.gmra.mxu0 %v4305
      %v7170 = vpop.f32.mrf.mxu0
      %v7171 = vadd.f32 0.0, %v7170
      %v7172 = vpop.f32.mrf.mxu0
      %v7173 = vpop.f32.mrf.mxu0
      %v7174 = vadd.f32 0.0, %v7173
      %v7175 = vpop.f32.mrf.mxu0
      %7176 = vmatprep.mubr.bf16.mxu0 0
      %7177 = vmatmul.mubr.bf16.gmra.mxu0 %v4306
      %v7178 = vpop.f32.mrf.mxu0
      %v7179 = vadd.f32 0.0, %v7178
      %v7180 = vpop.f32.mrf.mxu0
      %v7181 = vpop.f32.mrf.mxu0
      %v7182 = vadd.f32 0.0, %v7181
      %v7183 = vpop.f32.mrf.mxu0
      %7184 = vmatprep.mubr.bf16.mxu0 0
      %7185 = vmatmul.mubr.bf16.gmra.mxu0 %v4307
      %v7186 = vpop.f32.mrf.mxu0
      %v7187 = vadd.f32 0.0, %v7186
      %v7188 = vpop.f32.mrf.mxu0
      %v7189 = vpop.f32.mrf.mxu0
      %v7190 = vadd.f32 0.0, %v7189
      %v7191 = vpop.f32.mrf.mxu0
      %7192 = vmatprep.mubr.bf16.mxu0 0
      %7193 = vmatmul.mubr.bf16.gmra.mxu0 %v4308
      %v7194 = vpop.f32.mrf.mxu0
      %v7195 = vadd.f32 0.0, %v7194
      %v7196 = vpop.f32.mrf.mxu0
      %v7197 = vpop.f32.mrf.mxu0
      %v7198 = vadd.f32 0.0, %v7197
      %v7199 = vpop.f32.mrf.mxu0
      %7200 = vmatprep.mubr.bf16.mxu0 0
      %7201 = vmatmul.mubr.bf16.gmra.mxu0 %v4309
      %v7202 = vpop.f32.mrf.mxu0
      %v7203 = vadd.f32 0.0, %v7202
      %v7204 = vpop.f32.mrf.mxu0
      %v7205 = vpop.f32.mrf.mxu0
      %v7206 = vadd.f32 0.0, %v7205
      %v7207 = vpop.f32.mrf.mxu0
      %7208 = vmatprep.mubr.bf16.mxu0 0
      %7209 = vmatmul.mubr.bf16.gmra.mxu0 %v4310
      %v7210 = vpop.f32.mrf.mxu0
      %v7211 = vadd.f32 0.0, %v7210
      %v7212 = vpop.f32.mrf.mxu0
      %v7213 = vpop.f32.mrf.mxu0
      %v7214 = vadd.f32 0.0, %v7213
      %v7215 = vpop.f32.mrf.mxu0
      %7216 = vmatprep.mubr.bf16.mxu0 0
      %7217 = vmatmul.mubr.bf16.gmra.mxu0 %v4311
      %v7218 = vpop.f32.mrf.mxu0
      %v7219 = vadd.f32 0.0, %v7218
      %v7220 = vpop.f32.mrf.mxu0
      %v7221 = vpop.f32.mrf.mxu0
      %v7222 = vadd.f32 0.0, %v7221
      %v7223 = vpop.f32.mrf.mxu0
      %7224 = vmatprep.mubr.bf16.mxu0 0
      %7225 = vmatmul.mubr.bf16.gmra.mxu0 %v4312
      %v7226 = vpop.f32.mrf.mxu0
      %v7227 = vadd.f32 0.0, %v7226
      %v7228 = vpop.f32.mrf.mxu0
      %v7229 = vpop.f32.mrf.mxu0
      %v7230 = vadd.f32 0.0, %v7229
      %v7231 = vpop.f32.mrf.mxu0
      %7232 = vmatprep.mubr.bf16.mxu0 0
      %7233 = vmatmul.mubr.bf16.gmra.mxu0 %v4313
      %v7234 = vpop.f32.mrf.mxu0
      %v7235 = vadd.f32 0.0, %v7234
      %v7236 = vpop.f32.mrf.mxu0
      %v7237 = vpop.f32.mrf.mxu0
      %v7238 = vadd.f32 0.0, %v7237
      %v7239 = vpop.f32.mrf.mxu0
      %7240 = vmatprep.mubr.bf16.mxu0 0
      %7241 = vmatmul.mubr.bf16.gmra.mxu0 %v4314
      %v7242 = vpop.f32.mrf.mxu0
      %v7243 = vadd.f32 0.0, %v7242
      %v7244 = vpop.f32.mrf.mxu0
      %v7245 = vpop.f32.mrf.mxu0
      %v7246 = vadd.f32 0.0, %v7245
      %v7247 = vpop.f32.mrf.mxu0
      %7248 = vmatprep.mubr.bf16.mxu0 0
      %7249 = vmatmul.mubr.bf16.gmra.mxu0 %v4315
      %v7250 = vpop.f32.mrf.mxu0
      %v7251 = vadd.f32 0.0, %v7250
      %v7252 = vpop.f32.mrf.mxu0
      %v7253 = vpop.f32.mrf.mxu0
      %v7254 = vadd.f32 0.0, %v7253
      %v7255 = vpop.f32.mrf.mxu0
      %7256 = vmatprep.mubr.bf16.mxu0 0
      %7257 = vmatmul.mubr.bf16.gmra.mxu0 %v6676
      %v7258 = vpop.f32.mrf.mxu0
      %v7259 = vadd.f32 0.0, %v7258
      %v7260 = vpop.f32.mrf.mxu0
      %v7261 = vpop.f32.mrf.mxu0
      %v7262 = vadd.f32 0.0, %v7261
      %v7263 = vpop.f32.mrf.mxu0
      %7264 = vmatprep.mubr.bf16.mxu0 0
      %7265 = vmatmul.mubr.bf16.gmra.mxu0 %v6677
      %v7266 = vpop.f32.mrf.mxu0
      %v7267 = vadd.f32 0.0, %v7266
      %v7268 = vpop.f32.mrf.mxu0
      %v7269 = vpop.f32.mrf.mxu0
      %v7270 = vadd.f32 0.0, %v7269
      %v7271 = vpop.f32.mrf.mxu0
      %7272 = vdwg.mxu0
      %v7273 = vadd.f32 %v6513, %v6763
      %v7274 = vadd.f32 %v6514, %v6766
      %v7275 = vadd.f32 %v6515, %v6771
      %v7276 = vadd.f32 %v6516, %v6774
      %v7277 = vadd.f32 %v6517, %v6779
      %v7278 = vadd.f32 %v6518, %v6782
      %v7279 = vadd.f32 %v6519, %v6787
      %v7280 = vadd.f32 %v6520, %v6790
      %v7281 = vadd.f32 %v6521, %v6795
      %v7282 = vadd.f32 %v6522, %v6798
      %v7283 = vadd.f32 %v6523, %v6803
      %v7284 = vadd.f32 %v6524, %v6806
      %v7285 = vadd.f32 %v6525, %v6811
      %v7286 = vadd.f32 %v6526, %v6814
      %v7287 = vadd.f32 %v6527, %v6819
      %v7288 = vadd.f32 %v6528, %v6822
      %v7289 = vadd.f32 %v6529, %v6827
      %v7290 = vadd.f32 %v6530, %v6830
      %v7291 = vadd.f32 %v6531, %v6835
      %v7292 = vadd.f32 %v6532, %v6838
      %v7293 = vadd.f32 %v6533, %v6843
      %v7294 = vadd.f32 %v6534, %v6846
      %v7295 = vadd.f32 %v6535, %v6851
      %v7296 = vadd.f32 %v6536, %v6854
      %v7297 = vadd.f32 %v6537, %v6859
      %v7298 = vadd.f32 %v6538, %v6862
      %v7299 = vadd.f32 %v6539, %v6867
      %v7300 = vadd.f32 %v6540, %v6870
      %v7301 = vadd.f32 %v6541, %v6875
      %v7302 = vadd.f32 %v6542, %v6878
      %v7303 = vadd.f32 %v6543, %v6883
      %v7304 = vadd.f32 %v6544, %v6886
      %v7305 = vadd.f32 %v6545, %v6891
      %v7306 = vadd.f32 %v6546, %v6894
      %v7307 = vadd.f32 %v6547, %v6899
      %v7308 = vadd.f32 %v6548, %v6902
      %v7309 = vadd.f32 %v6549, %v6907
      %v7310 = vadd.f32 %v6550, %v6910
      %v7311 = vadd.f32 %v6551, %v6915
      %v7312 = vadd.f32 %v6552, %v6918
      %v7313 = vadd.f32 %v6553, %v6923
      %v7314 = vadd.f32 %v6554, %v6926
      %v7315 = vadd.f32 %v6555, %v6931
      %v7316 = vadd.f32 %v6556, %v6934
      %v7317 = vadd.f32 %v6557, %v6939
      %v7318 = vadd.f32 %v6558, %v6942
      %v7319 = vadd.f32 %v6559, %v6947
      %v7320 = vadd.f32 %v6560, %v6950
      %v7321 = vadd.f32 %v6561, %v6955
      %v7322 = vadd.f32 %v6562, %v6958
      %v7323 = vadd.f32 %v6563, %v6963
      %v7324 = vadd.f32 %v6564, %v6966
      %v7325 = vadd.f32 %v6565, %v6971
      %v7326 = vadd.f32 %v6566, %v6974
      %v7327 = vadd.f32 %v6567, %v6979
      %v7328 = vadd.f32 %v6568, %v6982
      %v7329 = vadd.f32 %v6569, %v6987
      %v7330 = vadd.f32 %v6570, %v6990
      %v7331 = vadd.f32 %v6571, %v6995
      %v7332 = vadd.f32 %v6572, %v6998
      %v7333 = vadd.f32 %v6573, %v7003
      %v7334 = vadd.f32 %v6574, %v7006
      %v7335 = vadd.f32 %v6575, %v7011
      %v7336 = vadd.f32 %v6576, %v7014
      %v7337 = vadd.f32 %v6577, %v7019
      %v7338 = vadd.f32 %v6578, %v7022
      %v7339 = vadd.f32 %v6579, %v7027
      %v7340 = vadd.f32 %v6580, %v7030
      %v7341 = vadd.f32 %v6581, %v7035
      %v7342 = vadd.f32 %v6582, %v7038
      %v7343 = vadd.f32 %v6583, %v7043
      %v7344 = vadd.f32 %v6584, %v7046
      %v7345 = vadd.f32 %v6585, %v7051
      %v7346 = vadd.f32 %v6586, %v7054
      %v7347 = vadd.f32 %v6587, %v7059
      %v7348 = vadd.f32 %v6588, %v7062
      %v7349 = vadd.f32 %v6589, %v7067
      %v7350 = vadd.f32 %v6590, %v7070
      %v7351 = vadd.f32 %v6591, %v7075
      %v7352 = vadd.f32 %v6592, %v7078
      %v7353 = vadd.f32 %v6593, %v7083
      %v7354 = vadd.f32 %v6594, %v7086
      %v7355 = vadd.f32 %v6595, %v7091
      %v7356 = vadd.f32 %v6596, %v7094
      %v7357 = vadd.f32 %v6597, %v7099
      %v7358 = vadd.f32 %v6598, %v7102
      %v7359 = vadd.f32 %v6599, %v7107
      %v7360 = vadd.f32 %v6600, %v7110
      %v7361 = vadd.f32 %v6601, %v7115
      %v7362 = vadd.f32 %v6602, %v7118
      %v7363 = vadd.f32 %v6603, %v7123
      %v7364 = vadd.f32 %v6604, %v7126
      %v7365 = vadd.f32 %v6605, %v7131
      %v7366 = vadd.f32 %v6606, %v7134
      %v7367 = vadd.f32 %v6607, %v7139
      %v7368 = vadd.f32 %v6608, %v7142
      %v7369 = vadd.f32 %v6609, %v7147
      %v7370 = vadd.f32 %v6610, %v7150
      %v7371 = vadd.f32 %v6611, %v7155
      %v7372 = vadd.f32 %v6612, %v7158
      %v7373 = vadd.f32 %v6613, %v7163
      %v7374 = vadd.f32 %v6614, %v7166
      %v7375 = vadd.f32 %v6615, %v7171
      %v7376 = vadd.f32 %v6616, %v7174
      %v7377 = vadd.f32 %v6617, %v7179
      %v7378 = vadd.f32 %v6618, %v7182
      %v7379 = vadd.f32 %v6619, %v7187
      %v7380 = vadd.f32 %v6620, %v7190
      %v7381 = vadd.f32 %v6621, %v7195
      %v7382 = vadd.f32 %v6622, %v7198
      %v7383 = vadd.f32 %v6623, %v7203
      %v7384 = vadd.f32 %v6624, %v7206
      %v7385 = vadd.f32 %v6625, %v7211
      %v7386 = vadd.f32 %v6626, %v7214
      %v7387 = vadd.f32 %v6627, %v7219
      %v7388 = vadd.f32 %v6628, %v7222
      %v7389 = vadd.f32 %v6629, %v7227
      %v7390 = vadd.f32 %v6630, %v7230
      %v7391 = vadd.f32 %v6631, %v7235
      %v7392 = vadd.f32 %v6632, %v7238
      %v7393 = vadd.f32 %v6633, %v7243
      %v7394 = vadd.f32 %v6634, %v7246
      %v7395 = vadd.f32 %v6635, %v7251
      %v7396 = vadd.f32 %v6636, %v7254
      %v7397 = vadd.f32 %v6637, %v7259
      %v7398 = vadd.f32 %v6638, %v7262
      %v7399 = vadd.f32 %v6639, %v7267
      %v7400 = vadd.f32 %v6640, %v7270
      %s7401 = scalar_lea.vmem %s1, 384
      %v7402 = vld [vmem:[%s7401] sm:$0xf]
      %v7403 = vld [vmem:[%s7401 + $0x4] sm:$0xf]
      %v7404 = vld [vmem:[%s7401 + $0x8] sm:$0xf]
      %v7405 = vld [vmem:[%s7401 + $0xc] sm:$0xf]
      %v7406 = vld [vmem:[%s7401 + $0x10] sm:$0xf]
      %v7407 = vld [vmem:[%s7401 + $0x14] sm:$0xf]
      %v7408 = vld [vmem:[%s7401 + $0x18] sm:$0xf]
      %v7409 = vld [vmem:[%s7401 + $0x1c] sm:$0xf]
      %v7410 = vld [vmem:[%s7401 + $0x20] sm:$0xf]
      %v7411 = vld [vmem:[%s7401 + $0x24] sm:$0xf]
      %v7412 = vld [vmem:[%s7401 + $0x28] sm:$0xf]
      %v7413 = vld [vmem:[%s7401 + $0x2c] sm:$0xf]
      %v7414 = vld [vmem:[%s7401 + $0x30] sm:$0xf]
      %v7415 = vld [vmem:[%s7401 + $0x34] sm:$0xf]
      %v7416 = vld [vmem:[%s7401 + $0x38] sm:$0xf]
      %v7417 = vld [vmem:[%s7401 + $0x3c] sm:$0xf]
      %v7422 = vunpack.c.l.b16 %v381
      %v7423 = vunpack.c.l.b16 %v382
      %v7424 = vunpack.c.l.b16 %v383
      %v7425 = vunpack.c.l.b16 %v384
      %v7426 = vpack.c.b16 %v7423, %v7422
      %v7427 = vpack.c.b16 %v7425, %v7424
      %v7446 = vunpack.c.l.b16 %v7402
      %v7447 = vunpack.c.l.b16 %v7403
      %v7448 = vunpack.c.l.b16 %v7404
      %v7449 = vunpack.c.l.b16 %v7405
      %v7450 = vunpack.c.l.b16 %v7406
      %v7451 = vunpack.c.l.b16 %v7407
      %v7452 = vunpack.c.l.b16 %v7408
      %v7453 = vunpack.c.l.b16 %v7409
      %v7454 = vunpack.c.l.b16 %v7410
      %v7455 = vunpack.c.l.b16 %v7411
      %v7456 = vunpack.c.l.b16 %v7412
      %v7457 = vunpack.c.l.b16 %v7413
      %v7458 = vunpack.c.l.b16 %v7414
      %v7459 = vunpack.c.l.b16 %v7415
      %v7460 = vunpack.c.l.b16 %v7416
      %v7461 = vunpack.c.l.b16 %v7417
      %v7462 = vpack.c.b16 %v7447, %v7446
      %v7463 = vpack.c.b16 %v7449, %v7448
      %v7464 = vpack.c.b16 %v7451, %v7450
      %v7465 = vpack.c.b16 %v7453, %v7452
      %v7466 = vpack.c.b16 %v7455, %v7454
      %v7467 = vpack.c.b16 %v7457, %v7456
      %v7468 = vpack.c.b16 %v7459, %v7458
      %v7469 = vpack.c.b16 %v7461, %v7460
      %7478 = vmatprep.subr.bf16.mxu0 0
      %7479 = vmatpush1.bf16.msra.mxu0 %v7469
      %7480 = vmatprep.subr.bf16.mxu0 0
      %7481 = vmatpush1.bf16.msra.mxu0 %v7468
      %7482 = vmatprep.subr.bf16.mxu0 0
      %7483 = vmatpush1.bf16.msra.mxu0 %v7467
      %7484 = vmatprep.subr.bf16.mxu0 0
      %7485 = vmatpush1.bf16.msra.mxu0 %v7466
      %7486 = vmatprep.subr.bf16.mxu0 0
      %7487 = vmatpush1.bf16.msra.mxu0 %v7465
      %7488 = vmatprep.subr.bf16.mxu0 0
      %7489 = vmatpush1.bf16.msra.mxu0 %v7464
      %7490 = vmatprep.subr.bf16.mxu0 0
      %7491 = vmatpush1.bf16.msra.mxu0 %v7463
      %7492 = vmatprep.subr.bf16.mxu0 0
      %7493 = vmatpush1.bf16.msra.mxu0 %v7462
      %7494 = vmatprep.subr.bf16.mxu0 0
      %7495 = vmatpush2.bf16.msra.mxu0 0
      %7496 = vmatprep.subr.bf16.mxu0 0
      %7497 = vmatpush2.bf16.msra.mxu0 0
      %7498 = vmatprep.subr.bf16.mxu0 0
      %7499 = vmatpush2.bf16.msra.mxu0 0
      %7500 = vmatprep.subr.bf16.mxu0 0
      %7501 = vmatpush2.bf16.msra.mxu0 0
      %7502 = vmatprep.subr.bf16.mxu0 0
      %7503 = vmatpush2.bf16.msra.mxu0 0
      %7504 = vmatprep.subr.bf16.mxu0 0
      %7505 = vmatpush2.bf16.msra.mxu0 0
      %7506 = vmatprep.subr.bf16.mxu0 0
      %7507 = vmatpush2.bf16.msra.mxu0 0
      %7508 = vmatprep.subr.bf16.mxu0 0
      %7509 = vmatpush2.bf16.msra.mxu0 0
      %7510 = vmatprep.mubr.bf16.mxu0 0
      %7511 = vmatmul.mubr.bf16.gmra.mxu0 %v2939
      %v7512 = vpop.f32.mrf.mxu0
      %v7513 = vadd.f32 0.0, %v7512
      %v7514 = vpop.f32.mrf.mxu0
      %v7515 = vpop.f32.mrf.mxu0
      %v7516 = vadd.f32 0.0, %v7515
      %v7517 = vpop.f32.mrf.mxu0
      %7518 = vmatprep.mubr.bf16.mxu0 0
      %7519 = vmatmul.mubr.bf16.gmra.mxu0 %v2940
      %v7520 = vpop.f32.mrf.mxu0
      %v7521 = vadd.f32 0.0, %v7520
      %v7522 = vpop.f32.mrf.mxu0
      %v7523 = vpop.f32.mrf.mxu0
      %v7524 = vadd.f32 0.0, %v7523
      %v7525 = vpop.f32.mrf.mxu0
      %7526 = vmatprep.mubr.bf16.mxu0 0
      %7527 = vmatmul.mubr.bf16.gmra.mxu0 %v2941
      %v7528 = vpop.f32.mrf.mxu0
      %v7529 = vadd.f32 0.0, %v7528
      %v7530 = vpop.f32.mrf.mxu0
      %v7531 = vpop.f32.mrf.mxu0
      %v7532 = vadd.f32 0.0, %v7531
      %v7533 = vpop.f32.mrf.mxu0
      %7534 = vmatprep.mubr.bf16.mxu0 0
      %7535 = vmatmul.mubr.bf16.gmra.mxu0 %v2942
      %v7536 = vpop.f32.mrf.mxu0
      %v7537 = vadd.f32 0.0, %v7536
      %v7538 = vpop.f32.mrf.mxu0
      %v7539 = vpop.f32.mrf.mxu0
      %v7540 = vadd.f32 0.0, %v7539
      %v7541 = vpop.f32.mrf.mxu0
      %7542 = vmatprep.mubr.bf16.mxu0 0
      %7543 = vmatmul.mubr.bf16.gmra.mxu0 %v2943
      %v7544 = vpop.f32.mrf.mxu0
      %v7545 = vadd.f32 0.0, %v7544
      %v7546 = vpop.f32.mrf.mxu0
      %v7547 = vpop.f32.mrf.mxu0
      %v7548 = vadd.f32 0.0, %v7547
      %v7549 = vpop.f32.mrf.mxu0
      %7550 = vmatprep.mubr.bf16.mxu0 0
      %7551 = vmatmul.mubr.bf16.gmra.mxu0 %v2944
      %v7552 = vpop.f32.mrf.mxu0
      %v7553 = vadd.f32 0.0, %v7552
      %v7554 = vpop.f32.mrf.mxu0
      %v7555 = vpop.f32.mrf.mxu0
      %v7556 = vadd.f32 0.0, %v7555
      %v7557 = vpop.f32.mrf.mxu0
      %7558 = vmatprep.mubr.bf16.mxu0 0
      %7559 = vmatmul.mubr.bf16.gmra.mxu0 %v2945
      %v7560 = vpop.f32.mrf.mxu0
      %v7561 = vadd.f32 0.0, %v7560
      %v7562 = vpop.f32.mrf.mxu0
      %v7563 = vpop.f32.mrf.mxu0
      %v7564 = vadd.f32 0.0, %v7563
      %v7565 = vpop.f32.mrf.mxu0
      %7566 = vmatprep.mubr.bf16.mxu0 0
      %7567 = vmatmul.mubr.bf16.gmra.mxu0 %v2946
      %v7568 = vpop.f32.mrf.mxu0
      %v7569 = vadd.f32 0.0, %v7568
      %v7570 = vpop.f32.mrf.mxu0
      %v7571 = vpop.f32.mrf.mxu0
      %v7572 = vadd.f32 0.0, %v7571
      %v7573 = vpop.f32.mrf.mxu0
      %7574 = vmatprep.mubr.bf16.mxu0 0
      %7575 = vmatmul.mubr.bf16.gmra.mxu0 %v2947
      %v7576 = vpop.f32.mrf.mxu0
      %v7577 = vadd.f32 0.0, %v7576
      %v7578 = vpop.f32.mrf.mxu0
      %v7579 = vpop.f32.mrf.mxu0
      %v7580 = vadd.f32 0.0, %v7579
      %v7581 = vpop.f32.mrf.mxu0
      %7582 = vmatprep.mubr.bf16.mxu0 0
      %7583 = vmatmul.mubr.bf16.gmra.mxu0 %v2948
      %v7584 = vpop.f32.mrf.mxu0
      %v7585 = vadd.f32 0.0, %v7584
      %v7586 = vpop.f32.mrf.mxu0
      %v7587 = vpop.f32.mrf.mxu0
      %v7588 = vadd.f32 0.0, %v7587
      %v7589 = vpop.f32.mrf.mxu0
      %7590 = vmatprep.mubr.bf16.mxu0 0
      %7591 = vmatmul.mubr.bf16.gmra.mxu0 %v2949
      %v7592 = vpop.f32.mrf.mxu0
      %v7593 = vadd.f32 0.0, %v7592
      %v7594 = vpop.f32.mrf.mxu0
      %v7595 = vpop.f32.mrf.mxu0
      %v7596 = vadd.f32 0.0, %v7595
      %v7597 = vpop.f32.mrf.mxu0
      %7598 = vmatprep.mubr.bf16.mxu0 0
      %7599 = vmatmul.mubr.bf16.gmra.mxu0 %v2950
      %v7600 = vpop.f32.mrf.mxu0
      %v7601 = vadd.f32 0.0, %v7600
      %v7602 = vpop.f32.mrf.mxu0
      %v7603 = vpop.f32.mrf.mxu0
      %v7604 = vadd.f32 0.0, %v7603
      %v7605 = vpop.f32.mrf.mxu0
      %7606 = vmatprep.mubr.bf16.mxu0 0
      %7607 = vmatmul.mubr.bf16.gmra.mxu0 %v2951
      %v7608 = vpop.f32.mrf.mxu0
      %v7609 = vadd.f32 0.0, %v7608
      %v7610 = vpop.f32.mrf.mxu0
      %v7611 = vpop.f32.mrf.mxu0
      %v7612 = vadd.f32 0.0, %v7611
      %v7613 = vpop.f32.mrf.mxu0
      %7614 = vmatprep.mubr.bf16.mxu0 0
      %7615 = vmatmul.mubr.bf16.gmra.mxu0 %v2952
      %v7616 = vpop.f32.mrf.mxu0
      %v7617 = vadd.f32 0.0, %v7616
      %v7618 = vpop.f32.mrf.mxu0
      %v7619 = vpop.f32.mrf.mxu0
      %v7620 = vadd.f32 0.0, %v7619
      %v7621 = vpop.f32.mrf.mxu0
      %7622 = vmatprep.mubr.bf16.mxu0 0
      %7623 = vmatmul.mubr.bf16.gmra.mxu0 %v2953
      %v7624 = vpop.f32.mrf.mxu0
      %v7625 = vadd.f32 0.0, %v7624
      %v7626 = vpop.f32.mrf.mxu0
      %v7627 = vpop.f32.mrf.mxu0
      %v7628 = vadd.f32 0.0, %v7627
      %v7629 = vpop.f32.mrf.mxu0
      %7630 = vmatprep.mubr.bf16.mxu0 0
      %7631 = vmatmul.mubr.bf16.gmra.mxu0 %v2954
      %v7632 = vpop.f32.mrf.mxu0
      %v7633 = vadd.f32 0.0, %v7632
      %v7634 = vpop.f32.mrf.mxu0
      %v7635 = vpop.f32.mrf.mxu0
      %v7636 = vadd.f32 0.0, %v7635
      %v7637 = vpop.f32.mrf.mxu0
      %7638 = vmatprep.mubr.bf16.mxu0 0
      %7639 = vmatmul.mubr.bf16.gmra.mxu0 %v2955
      %v7640 = vpop.f32.mrf.mxu0
      %v7641 = vadd.f32 0.0, %v7640
      %v7642 = vpop.f32.mrf.mxu0
      %v7643 = vpop.f32.mrf.mxu0
      %v7644 = vadd.f32 0.0, %v7643
      %v7645 = vpop.f32.mrf.mxu0
      %7646 = vmatprep.mubr.bf16.mxu0 0
      %7647 = vmatmul.mubr.bf16.gmra.mxu0 %v2956
      %v7648 = vpop.f32.mrf.mxu0
      %v7649 = vadd.f32 0.0, %v7648
      %v7650 = vpop.f32.mrf.mxu0
      %v7651 = vpop.f32.mrf.mxu0
      %v7652 = vadd.f32 0.0, %v7651
      %v7653 = vpop.f32.mrf.mxu0
      %7654 = vmatprep.mubr.bf16.mxu0 0
      %7655 = vmatmul.mubr.bf16.gmra.mxu0 %v2957
      %v7656 = vpop.f32.mrf.mxu0
      %v7657 = vadd.f32 0.0, %v7656
      %v7658 = vpop.f32.mrf.mxu0
      %v7659 = vpop.f32.mrf.mxu0
      %v7660 = vadd.f32 0.0, %v7659
      %v7661 = vpop.f32.mrf.mxu0
      %7662 = vmatprep.mubr.bf16.mxu0 0
      %7663 = vmatmul.mubr.bf16.gmra.mxu0 %v2958
      %v7664 = vpop.f32.mrf.mxu0
      %v7665 = vadd.f32 0.0, %v7664
      %v7666 = vpop.f32.mrf.mxu0
      %v7667 = vpop.f32.mrf.mxu0
      %v7668 = vadd.f32 0.0, %v7667
      %v7669 = vpop.f32.mrf.mxu0
      %7670 = vmatprep.mubr.bf16.mxu0 0
      %7671 = vmatmul.mubr.bf16.gmra.mxu0 %v2959
      %v7672 = vpop.f32.mrf.mxu0
      %v7673 = vadd.f32 0.0, %v7672
      %v7674 = vpop.f32.mrf.mxu0
      %v7675 = vpop.f32.mrf.mxu0
      %v7676 = vadd.f32 0.0, %v7675
      %v7677 = vpop.f32.mrf.mxu0
      %7678 = vmatprep.mubr.bf16.mxu0 0
      %7679 = vmatmul.mubr.bf16.gmra.mxu0 %v2960
      %v7680 = vpop.f32.mrf.mxu0
      %v7681 = vadd.f32 0.0, %v7680
      %v7682 = vpop.f32.mrf.mxu0
      %v7683 = vpop.f32.mrf.mxu0
      %v7684 = vadd.f32 0.0, %v7683
      %v7685 = vpop.f32.mrf.mxu0
      %7686 = vmatprep.mubr.bf16.mxu0 0
      %7687 = vmatmul.mubr.bf16.gmra.mxu0 %v2961
      %v7688 = vpop.f32.mrf.mxu0
      %v7689 = vadd.f32 0.0, %v7688
      %v7690 = vpop.f32.mrf.mxu0
      %v7691 = vpop.f32.mrf.mxu0
      %v7692 = vadd.f32 0.0, %v7691
      %v7693 = vpop.f32.mrf.mxu0
      %7694 = vmatprep.mubr.bf16.mxu0 0
      %7695 = vmatmul.mubr.bf16.gmra.mxu0 %v2962
      %v7696 = vpop.f32.mrf.mxu0
      %v7697 = vadd.f32 0.0, %v7696
      %v7698 = vpop.f32.mrf.mxu0
      %v7699 = vpop.f32.mrf.mxu0
      %v7700 = vadd.f32 0.0, %v7699
      %v7701 = vpop.f32.mrf.mxu0
      %7702 = vmatprep.mubr.bf16.mxu0 0
      %7703 = vmatmul.mubr.bf16.gmra.mxu0 %v2963
      %v7704 = vpop.f32.mrf.mxu0
      %v7705 = vadd.f32 0.0, %v7704
      %v7706 = vpop.f32.mrf.mxu0
      %v7707 = vpop.f32.mrf.mxu0
      %v7708 = vadd.f32 0.0, %v7707
      %v7709 = vpop.f32.mrf.mxu0
      %7710 = vmatprep.mubr.bf16.mxu0 0
      %7711 = vmatmul.mubr.bf16.gmra.mxu0 %v2964
      %v7712 = vpop.f32.mrf.mxu0
      %v7713 = vadd.f32 0.0, %v7712
      %v7714 = vpop.f32.mrf.mxu0
      %v7715 = vpop.f32.mrf.mxu0
      %v7716 = vadd.f32 0.0, %v7715
      %v7717 = vpop.f32.mrf.mxu0
      %7718 = vmatprep.mubr.bf16.mxu0 0
      %7719 = vmatmul.mubr.bf16.gmra.mxu0 %v2965
      %v7720 = vpop.f32.mrf.mxu0
      %v7721 = vadd.f32 0.0, %v7720
      %v7722 = vpop.f32.mrf.mxu0
      %v7723 = vpop.f32.mrf.mxu0
      %v7724 = vadd.f32 0.0, %v7723
      %v7725 = vpop.f32.mrf.mxu0
      %7726 = vmatprep.mubr.bf16.mxu0 0
      %7727 = vmatmul.mubr.bf16.gmra.mxu0 %v2966
      %v7728 = vpop.f32.mrf.mxu0
      %v7729 = vadd.f32 0.0, %v7728
      %v7730 = vpop.f32.mrf.mxu0
      %v7731 = vpop.f32.mrf.mxu0
      %v7732 = vadd.f32 0.0, %v7731
      %v7733 = vpop.f32.mrf.mxu0
      %7734 = vmatprep.mubr.bf16.mxu0 0
      %7735 = vmatmul.mubr.bf16.gmra.mxu0 %v2967
      %v7736 = vpop.f32.mrf.mxu0
      %v7737 = vadd.f32 0.0, %v7736
      %v7738 = vpop.f32.mrf.mxu0
      %v7739 = vpop.f32.mrf.mxu0
      %v7740 = vadd.f32 0.0, %v7739
      %v7741 = vpop.f32.mrf.mxu0
      %7742 = vmatprep.mubr.bf16.mxu0 0
      %7743 = vmatmul.mubr.bf16.gmra.mxu0 %v2968
      %v7744 = vpop.f32.mrf.mxu0
      %v7745 = vadd.f32 0.0, %v7744
      %v7746 = vpop.f32.mrf.mxu0
      %v7747 = vpop.f32.mrf.mxu0
      %v7748 = vadd.f32 0.0, %v7747
      %v7749 = vpop.f32.mrf.mxu0
      %7750 = vmatprep.mubr.bf16.mxu0 0
      %7751 = vmatmul.mubr.bf16.gmra.mxu0 %v2969
      %v7752 = vpop.f32.mrf.mxu0
      %v7753 = vadd.f32 0.0, %v7752
      %v7754 = vpop.f32.mrf.mxu0
      %v7755 = vpop.f32.mrf.mxu0
      %v7756 = vadd.f32 0.0, %v7755
      %v7757 = vpop.f32.mrf.mxu0
      %7758 = vmatprep.mubr.bf16.mxu0 0
      %7759 = vmatmul.mubr.bf16.gmra.mxu0 %v2970
      %v7760 = vpop.f32.mrf.mxu0
      %v7761 = vadd.f32 0.0, %v7760
      %v7762 = vpop.f32.mrf.mxu0
      %v7763 = vpop.f32.mrf.mxu0
      %v7764 = vadd.f32 0.0, %v7763
      %v7765 = vpop.f32.mrf.mxu0
      %7766 = vmatprep.mubr.bf16.mxu0 0
      %7767 = vmatmul.mubr.bf16.gmra.mxu0 %v2971
      %v7768 = vpop.f32.mrf.mxu0
      %v7769 = vadd.f32 0.0, %v7768
      %v7770 = vpop.f32.mrf.mxu0
      %v7771 = vpop.f32.mrf.mxu0
      %v7772 = vadd.f32 0.0, %v7771
      %v7773 = vpop.f32.mrf.mxu0
      %7774 = vmatprep.mubr.bf16.mxu0 0
      %7775 = vmatmul.mubr.bf16.gmra.mxu0 %v2972
      %v7776 = vpop.f32.mrf.mxu0
      %v7777 = vadd.f32 0.0, %v7776
      %v7778 = vpop.f32.mrf.mxu0
      %v7779 = vpop.f32.mrf.mxu0
      %v7780 = vadd.f32 0.0, %v7779
      %v7781 = vpop.f32.mrf.mxu0
      %7782 = vmatprep.mubr.bf16.mxu0 0
      %7783 = vmatmul.mubr.bf16.gmra.mxu0 %v2973
      %v7784 = vpop.f32.mrf.mxu0
      %v7785 = vadd.f32 0.0, %v7784
      %v7786 = vpop.f32.mrf.mxu0
      %v7787 = vpop.f32.mrf.mxu0
      %v7788 = vadd.f32 0.0, %v7787
      %v7789 = vpop.f32.mrf.mxu0
      %7790 = vmatprep.mubr.bf16.mxu0 0
      %7791 = vmatmul.mubr.bf16.gmra.mxu0 %v2974
      %v7792 = vpop.f32.mrf.mxu0
      %v7793 = vadd.f32 0.0, %v7792
      %v7794 = vpop.f32.mrf.mxu0
      %v7795 = vpop.f32.mrf.mxu0
      %v7796 = vadd.f32 0.0, %v7795
      %v7797 = vpop.f32.mrf.mxu0
      %7798 = vmatprep.mubr.bf16.mxu0 0
      %7799 = vmatmul.mubr.bf16.gmra.mxu0 %v2975
      %v7800 = vpop.f32.mrf.mxu0
      %v7801 = vadd.f32 0.0, %v7800
      %v7802 = vpop.f32.mrf.mxu0
      %v7803 = vpop.f32.mrf.mxu0
      %v7804 = vadd.f32 0.0, %v7803
      %v7805 = vpop.f32.mrf.mxu0
      %7806 = vmatprep.mubr.bf16.mxu0 0
      %7807 = vmatmul.mubr.bf16.gmra.mxu0 %v2976
      %v7808 = vpop.f32.mrf.mxu0
      %v7809 = vadd.f32 0.0, %v7808
      %v7810 = vpop.f32.mrf.mxu0
      %v7811 = vpop.f32.mrf.mxu0
      %v7812 = vadd.f32 0.0, %v7811
      %v7813 = vpop.f32.mrf.mxu0
      %7814 = vmatprep.mubr.bf16.mxu0 0
      %7815 = vmatmul.mubr.bf16.gmra.mxu0 %v2977
      %v7816 = vpop.f32.mrf.mxu0
      %v7817 = vadd.f32 0.0, %v7816
      %v7818 = vpop.f32.mrf.mxu0
      %v7819 = vpop.f32.mrf.mxu0
      %v7820 = vadd.f32 0.0, %v7819
      %v7821 = vpop.f32.mrf.mxu0
      %7822 = vmatprep.mubr.bf16.mxu0 0
      %7823 = vmatmul.mubr.bf16.gmra.mxu0 %v2978
      %v7824 = vpop.f32.mrf.mxu0
      %v7825 = vadd.f32 0.0, %v7824
      %v7826 = vpop.f32.mrf.mxu0
      %v7827 = vpop.f32.mrf.mxu0
      %v7828 = vadd.f32 0.0, %v7827
      %v7829 = vpop.f32.mrf.mxu0
      %7830 = vmatprep.mubr.bf16.mxu0 0
      %7831 = vmatmul.mubr.bf16.gmra.mxu0 %v2979
      %v7832 = vpop.f32.mrf.mxu0
      %v7833 = vadd.f32 0.0, %v7832
      %v7834 = vpop.f32.mrf.mxu0
      %v7835 = vpop.f32.mrf.mxu0
      %v7836 = vadd.f32 0.0, %v7835
      %v7837 = vpop.f32.mrf.mxu0
      %7838 = vmatprep.mubr.bf16.mxu0 0
      %7839 = vmatmul.mubr.bf16.gmra.mxu0 %v2980
      %v7840 = vpop.f32.mrf.mxu0
      %v7841 = vadd.f32 0.0, %v7840
      %v7842 = vpop.f32.mrf.mxu0
      %v7843 = vpop.f32.mrf.mxu0
      %v7844 = vadd.f32 0.0, %v7843
      %v7845 = vpop.f32.mrf.mxu0
      %7846 = vmatprep.mubr.bf16.mxu0 0
      %7847 = vmatmul.mubr.bf16.gmra.mxu0 %v2981
      %v7848 = vpop.f32.mrf.mxu0
      %v7849 = vadd.f32 0.0, %v7848
      %v7850 = vpop.f32.mrf.mxu0
      %v7851 = vpop.f32.mrf.mxu0
      %v7852 = vadd.f32 0.0, %v7851
      %v7853 = vpop.f32.mrf.mxu0
      %7854 = vmatprep.mubr.bf16.mxu0 0
      %7855 = vmatmul.mubr.bf16.gmra.mxu0 %v2982
      %v7856 = vpop.f32.mrf.mxu0
      %v7857 = vadd.f32 0.0, %v7856
      %v7858 = vpop.f32.mrf.mxu0
      %v7859 = vpop.f32.mrf.mxu0
      %v7860 = vadd.f32 0.0, %v7859
      %v7861 = vpop.f32.mrf.mxu0
      %7862 = vmatprep.mubr.bf16.mxu0 0
      %7863 = vmatmul.mubr.bf16.gmra.mxu0 %v2983
      %v7864 = vpop.f32.mrf.mxu0
      %v7865 = vadd.f32 0.0, %v7864
      %v7866 = vpop.f32.mrf.mxu0
      %v7867 = vpop.f32.mrf.mxu0
      %v7868 = vadd.f32 0.0, %v7867
      %v7869 = vpop.f32.mrf.mxu0
      %7870 = vmatprep.mubr.bf16.mxu0 0
      %7871 = vmatmul.mubr.bf16.gmra.mxu0 %v2984
      %v7872 = vpop.f32.mrf.mxu0
      %v7873 = vadd.f32 0.0, %v7872
      %v7874 = vpop.f32.mrf.mxu0
      %v7875 = vpop.f32.mrf.mxu0
      %v7876 = vadd.f32 0.0, %v7875
      %v7877 = vpop.f32.mrf.mxu0
      %7878 = vmatprep.mubr.bf16.mxu0 0
      %7879 = vmatmul.mubr.bf16.gmra.mxu0 %v2985
      %v7880 = vpop.f32.mrf.mxu0
      %v7881 = vadd.f32 0.0, %v7880
      %v7882 = vpop.f32.mrf.mxu0
      %v7883 = vpop.f32.mrf.mxu0
      %v7884 = vadd.f32 0.0, %v7883
      %v7885 = vpop.f32.mrf.mxu0
      %7886 = vmatprep.mubr.bf16.mxu0 0
      %7887 = vmatmul.mubr.bf16.gmra.mxu0 %v2986
      %v7888 = vpop.f32.mrf.mxu0
      %v7889 = vadd.f32 0.0, %v7888
      %v7890 = vpop.f32.mrf.mxu0
      %v7891 = vpop.f32.mrf.mxu0
      %v7892 = vadd.f32 0.0, %v7891
      %v7893 = vpop.f32.mrf.mxu0
      %7894 = vmatprep.mubr.bf16.mxu0 0
      %7895 = vmatmul.mubr.bf16.gmra.mxu0 %v2987
      %v7896 = vpop.f32.mrf.mxu0
      %v7897 = vadd.f32 0.0, %v7896
      %v7898 = vpop.f32.mrf.mxu0
      %v7899 = vpop.f32.mrf.mxu0
      %v7900 = vadd.f32 0.0, %v7899
      %v7901 = vpop.f32.mrf.mxu0
      %7902 = vmatprep.mubr.bf16.mxu0 0
      %7903 = vmatmul.mubr.bf16.gmra.mxu0 %v2988
      %v7904 = vpop.f32.mrf.mxu0
      %v7905 = vadd.f32 0.0, %v7904
      %v7906 = vpop.f32.mrf.mxu0
      %v7907 = vpop.f32.mrf.mxu0
      %v7908 = vadd.f32 0.0, %v7907
      %v7909 = vpop.f32.mrf.mxu0
      %7910 = vmatprep.mubr.bf16.mxu0 0
      %7911 = vmatmul.mubr.bf16.gmra.mxu0 %v2989
      %v7912 = vpop.f32.mrf.mxu0
      %v7913 = vadd.f32 0.0, %v7912
      %v7914 = vpop.f32.mrf.mxu0
      %v7915 = vpop.f32.mrf.mxu0
      %v7916 = vadd.f32 0.0, %v7915
      %v7917 = vpop.f32.mrf.mxu0
      %7918 = vmatprep.mubr.bf16.mxu0 0
      %7919 = vmatmul.mubr.bf16.gmra.mxu0 %v2990
      %v7920 = vpop.f32.mrf.mxu0
      %v7921 = vadd.f32 0.0, %v7920
      %v7922 = vpop.f32.mrf.mxu0
      %v7923 = vpop.f32.mrf.mxu0
      %v7924 = vadd.f32 0.0, %v7923
      %v7925 = vpop.f32.mrf.mxu0
      %7926 = vmatprep.mubr.bf16.mxu0 0
      %7927 = vmatmul.mubr.bf16.gmra.mxu0 %v2991
      %v7928 = vpop.f32.mrf.mxu0
      %v7929 = vadd.f32 0.0, %v7928
      %v7930 = vpop.f32.mrf.mxu0
      %v7931 = vpop.f32.mrf.mxu0
      %v7932 = vadd.f32 0.0, %v7931
      %v7933 = vpop.f32.mrf.mxu0
      %7934 = vmatprep.mubr.bf16.mxu0 0
      %7935 = vmatmul.mubr.bf16.gmra.mxu0 %v2992
      %v7936 = vpop.f32.mrf.mxu0
      %v7937 = vadd.f32 0.0, %v7936
      %v7938 = vpop.f32.mrf.mxu0
      %v7939 = vpop.f32.mrf.mxu0
      %v7940 = vadd.f32 0.0, %v7939
      %v7941 = vpop.f32.mrf.mxu0
      %7942 = vmatprep.mubr.bf16.mxu0 0
      %7943 = vmatmul.mubr.bf16.gmra.mxu0 %v2993
      %v7944 = vpop.f32.mrf.mxu0
      %v7945 = vadd.f32 0.0, %v7944
      %v7946 = vpop.f32.mrf.mxu0
      %v7947 = vpop.f32.mrf.mxu0
      %v7948 = vadd.f32 0.0, %v7947
      %v7949 = vpop.f32.mrf.mxu0
      %7950 = vmatprep.mubr.bf16.mxu0 0
      %7951 = vmatmul.mubr.bf16.gmra.mxu0 %v2994
      %v7952 = vpop.f32.mrf.mxu0
      %v7953 = vadd.f32 0.0, %v7952
      %v7954 = vpop.f32.mrf.mxu0
      %v7955 = vpop.f32.mrf.mxu0
      %v7956 = vadd.f32 0.0, %v7955
      %v7957 = vpop.f32.mrf.mxu0
      %7958 = vmatprep.mubr.bf16.mxu0 0
      %7959 = vmatmul.mubr.bf16.gmra.mxu0 %v2995
      %v7960 = vpop.f32.mrf.mxu0
      %v7961 = vadd.f32 0.0, %v7960
      %v7962 = vpop.f32.mrf.mxu0
      %v7963 = vpop.f32.mrf.mxu0
      %v7964 = vadd.f32 0.0, %v7963
      %v7965 = vpop.f32.mrf.mxu0
      %7966 = vmatprep.mubr.bf16.mxu0 0
      %7967 = vmatmul.mubr.bf16.gmra.mxu0 %v2996
      %v7968 = vpop.f32.mrf.mxu0
      %v7969 = vadd.f32 0.0, %v7968
      %v7970 = vpop.f32.mrf.mxu0
      %v7971 = vpop.f32.mrf.mxu0
      %v7972 = vadd.f32 0.0, %v7971
      %v7973 = vpop.f32.mrf.mxu0
      %7974 = vmatprep.mubr.bf16.mxu0 0
      %7975 = vmatmul.mubr.bf16.gmra.mxu0 %v2997
      %v7976 = vpop.f32.mrf.mxu0
      %v7977 = vadd.f32 0.0, %v7976
      %v7978 = vpop.f32.mrf.mxu0
      %v7979 = vpop.f32.mrf.mxu0
      %v7980 = vadd.f32 0.0, %v7979
      %v7981 = vpop.f32.mrf.mxu0
      %7982 = vmatprep.mubr.bf16.mxu0 0
      %7983 = vmatmul.mubr.bf16.gmra.mxu0 %v2998
      %v7984 = vpop.f32.mrf.mxu0
      %v7985 = vadd.f32 0.0, %v7984
      %v7986 = vpop.f32.mrf.mxu0
      %v7987 = vpop.f32.mrf.mxu0
      %v7988 = vadd.f32 0.0, %v7987
      %v7989 = vpop.f32.mrf.mxu0
      %7990 = vmatprep.mubr.bf16.mxu0 0
      %7991 = vmatmul.mubr.bf16.gmra.mxu0 %v5126
      %v7992 = vpop.f32.mrf.mxu0
      %v7993 = vadd.f32 0.0, %v7992
      %v7994 = vpop.f32.mrf.mxu0
      %v7995 = vpop.f32.mrf.mxu0
      %v7996 = vadd.f32 0.0, %v7995
      %v7997 = vpop.f32.mrf.mxu0
      %7998 = vmatprep.mubr.bf16.mxu0 0
      %7999 = vmatmul.mubr.bf16.gmra.mxu0 %v5127
      %v8000 = vpop.f32.mrf.mxu0
      %v8001 = vadd.f32 0.0, %v8000
      %v8002 = vpop.f32.mrf.mxu0
      %v8003 = vpop.f32.mrf.mxu0
      %v8004 = vadd.f32 0.0, %v8003
      %v8005 = vpop.f32.mrf.mxu0
      %8006 = vmatprep.mubr.bf16.mxu0 0
      %8007 = vmatmul.mubr.bf16.gmra.mxu0 %v7426
      %v8008 = vpop.f32.mrf.mxu0
      %v8009 = vadd.f32 0.0, %v8008
      %v8010 = vpop.f32.mrf.mxu0
      %v8011 = vpop.f32.mrf.mxu0
      %v8012 = vadd.f32 0.0, %v8011
      %v8013 = vpop.f32.mrf.mxu0
      %8014 = vmatprep.mubr.bf16.mxu0 0
      %8015 = vmatmul.mubr.bf16.gmra.mxu0 %v7427
      %v8016 = vpop.f32.mrf.mxu0
      %v8017 = vadd.f32 0.0, %v8016
      %v8018 = vpop.f32.mrf.mxu0
      %v8019 = vpop.f32.mrf.mxu0
      %v8020 = vadd.f32 0.0, %v8019
      %v8021 = vpop.f32.mrf.mxu0
      %8022 = vdwg.mxu0
      %v8023 = vadd.f32 %v7273, %v7513
      %v8024 = vadd.f32 %v7274, %v7516
      %v8025 = vadd.f32 %v7275, %v7521
      %v8026 = vadd.f32 %v7276, %v7524
      %v8027 = vadd.f32 %v7277, %v7529
      %v8028 = vadd.f32 %v7278, %v7532
      %v8029 = vadd.f32 %v7279, %v7537
      %v8030 = vadd.f32 %v7280, %v7540
      %v8031 = vadd.f32 %v7281, %v7545
      %v8032 = vadd.f32 %v7282, %v7548
      %v8033 = vadd.f32 %v7283, %v7553
      %v8034 = vadd.f32 %v7284, %v7556
      %v8035 = vadd.f32 %v7285, %v7561
      %v8036 = vadd.f32 %v7286, %v7564
      %v8037 = vadd.f32 %v7287, %v7569
      %v8038 = vadd.f32 %v7288, %v7572
      %v8039 = vadd.f32 %v7289, %v7577
      %v8040 = vadd.f32 %v7290, %v7580
      %v8041 = vadd.f32 %v7291, %v7585
      %v8042 = vadd.f32 %v7292, %v7588
      %v8043 = vadd.f32 %v7293, %v7593
      %v8044 = vadd.f32 %v7294, %v7596
      %v8045 = vadd.f32 %v7295, %v7601
      %v8046 = vadd.f32 %v7296, %v7604
      %v8047 = vadd.f32 %v7297, %v7609
      %v8048 = vadd.f32 %v7298, %v7612
      %v8049 = vadd.f32 %v7299, %v7617
      %v8050 = vadd.f32 %v7300, %v7620
      %v8051 = vadd.f32 %v7301, %v7625
      %v8052 = vadd.f32 %v7302, %v7628
      %v8053 = vadd.f32 %v7303, %v7633
      %v8054 = vadd.f32 %v7304, %v7636
      %v8055 = vadd.f32 %v7305, %v7641
      %v8056 = vadd.f32 %v7306, %v7644
      %v8057 = vadd.f32 %v7307, %v7649
      %v8058 = vadd.f32 %v7308, %v7652
      %v8059 = vadd.f32 %v7309, %v7657
      %v8060 = vadd.f32 %v7310, %v7660
      %v8061 = vadd.f32 %v7311, %v7665
      %v8062 = vadd.f32 %v7312, %v7668
      %v8063 = vadd.f32 %v7313, %v7673
      %v8064 = vadd.f32 %v7314, %v7676
      %v8065 = vadd.f32 %v7315, %v7681
      %v8066 = vadd.f32 %v7316, %v7684
      %v8067 = vadd.f32 %v7317, %v7689
      %v8068 = vadd.f32 %v7318, %v7692
      %v8069 = vadd.f32 %v7319, %v7697
      %v8070 = vadd.f32 %v7320, %v7700
      %v8071 = vadd.f32 %v7321, %v7705
      %v8072 = vadd.f32 %v7322, %v7708
      %v8073 = vadd.f32 %v7323, %v7713
      %v8074 = vadd.f32 %v7324, %v7716
      %v8075 = vadd.f32 %v7325, %v7721
      %v8076 = vadd.f32 %v7326, %v7724
      %v8077 = vadd.f32 %v7327, %v7729
      %v8078 = vadd.f32 %v7328, %v7732
      %v8079 = vadd.f32 %v7329, %v7737
      %v8080 = vadd.f32 %v7330, %v7740
      %v8081 = vadd.f32 %v7331, %v7745
      %v8082 = vadd.f32 %v7332, %v7748
      %v8083 = vadd.f32 %v7333, %v7753
      %v8084 = vadd.f32 %v7334, %v7756
      %v8085 = vadd.f32 %v7335, %v7761
      %v8086 = vadd.f32 %v7336, %v7764
      %v8087 = vadd.f32 %v7337, %v7769
      %v8088 = vadd.f32 %v7338, %v7772
      %v8089 = vadd.f32 %v7339, %v7777
      %v8090 = vadd.f32 %v7340, %v7780
      %v8091 = vadd.f32 %v7341, %v7785
      %v8092 = vadd.f32 %v7342, %v7788
      %v8093 = vadd.f32 %v7343, %v7793
      %v8094 = vadd.f32 %v7344, %v7796
      %v8095 = vadd.f32 %v7345, %v7801
      %v8096 = vadd.f32 %v7346, %v7804
      %v8097 = vadd.f32 %v7347, %v7809
      %v8098 = vadd.f32 %v7348, %v7812
      %v8099 = vadd.f32 %v7349, %v7817
      %v8100 = vadd.f32 %v7350, %v7820
      %v8101 = vadd.f32 %v7351, %v7825
      %v8102 = vadd.f32 %v7352, %v7828
      %v8103 = vadd.f32 %v7353, %v7833
      %v8104 = vadd.f32 %v7354, %v7836
      %v8105 = vadd.f32 %v7355, %v7841
      %v8106 = vadd.f32 %v7356, %v7844
      %v8107 = vadd.f32 %v7357, %v7849
      %v8108 = vadd.f32 %v7358, %v7852
      %v8109 = vadd.f32 %v7359, %v7857
      %v8110 = vadd.f32 %v7360, %v7860
      %v8111 = vadd.f32 %v7361, %v7865
      %v8112 = vadd.f32 %v7362, %v7868
      %v8113 = vadd.f32 %v7363, %v7873
      %v8114 = vadd.f32 %v7364, %v7876
      %v8115 = vadd.f32 %v7365, %v7881
      %v8116 = vadd.f32 %v7366, %v7884
      %v8117 = vadd.f32 %v7367, %v7889
      %v8118 = vadd.f32 %v7368, %v7892
      %v8119 = vadd.f32 %v7369, %v7897
      %v8120 = vadd.f32 %v7370, %v7900
      %v8121 = vadd.f32 %v7371, %v7905
      %v8122 = vadd.f32 %v7372, %v7908
      %v8123 = vadd.f32 %v7373, %v7913
      %v8124 = vadd.f32 %v7374, %v7916
      %v8125 = vadd.f32 %v7375, %v7921
      %v8126 = vadd.f32 %v7376, %v7924
      %v8127 = vadd.f32 %v7377, %v7929
      %v8128 = vadd.f32 %v7378, %v7932
      %v8129 = vadd.f32 %v7379, %v7937
      %v8130 = vadd.f32 %v7380, %v7940
      %v8131 = vadd.f32 %v7381, %v7945
      %v8132 = vadd.f32 %v7382, %v7948
      %v8133 = vadd.f32 %v7383, %v7953
      %v8134 = vadd.f32 %v7384, %v7956
      %v8135 = vadd.f32 %v7385, %v7961
      %v8136 = vadd.f32 %v7386, %v7964
      %v8137 = vadd.f32 %v7387, %v7969
      %v8138 = vadd.f32 %v7388, %v7972
      %v8139 = vadd.f32 %v7389, %v7977
      %v8140 = vadd.f32 %v7390, %v7980
      %v8141 = vadd.f32 %v7391, %v7985
      %v8142 = vadd.f32 %v7392, %v7988
      %v8143 = vadd.f32 %v7393, %v7993
      %v8144 = vadd.f32 %v7394, %v7996
      %v8145 = vadd.f32 %v7395, %v8001
      %v8146 = vadd.f32 %v7396, %v8004
      %v8147 = vadd.f32 %v7397, %v8009
      %v8148 = vadd.f32 %v7398, %v8012
      %v8149 = vadd.f32 %v7399, %v8017
      %v8150 = vadd.f32 %v7400, %v8020
      %v8152 = vshrl.u32 %v381, 16
      %v8154 = vrot.slane %v8152, 4
      %v8155 = vshll.u32 %v381, 16
      %v8157 = vrot.slane %v8155, 5
      %v8158 = vor.u32 %v8154, %v8157
      %v8159 = vrot.slane %v8158, 4
      %v8161 = vshll.u32 %v382, 16
      %v8163 = vrot.slane %v8161, 5
      %v8164 = vsel %vm404, %v8159, %v8163
      %v8165 = vshrl.u32 %v382, 16
      %v8167 = vrot.slane %v8165, 4
      %v8168 = vor.u32 %v8167, %v8163
      %v8169 = vrot.slane %v8168, 4
      %v8171 = vshll.u32 %v383, 16
      %v8173 = vrot.slane %v8171, 5
      %v8174 = vsel %vm404, %v8169, %v8173
      %v8175 = vshrl.u32 %v383, 16
      %v8177 = vrot.slane %v8175, 4
      %v8178 = vor.u32 %v8177, %v8173
      %v8179 = vrot.slane %v8178, 4
      %v8181 = vshll.u32 %v384, 16
      %v8183 = vrot.slane %v8181, 5
      %v8184 = vsel %vm404, %v8179, %v8183
      %v8185 = vshrl.u32 %v384, 16
      %v8187 = vrot.slane %v8185, 4
      %v8188 = vor.u32 %v8187, %v8183
      %v8189 = vrot.slane %v8188, 4
      %v8191 = vshll.u32 %v385, 16
      %v8193 = vrot.slane %v8191, 5
      %v8194 = vsel %vm404, %v8189, %v8193
      %s8195 = scalar_lea.vmem %s1, 448
      %v8196 = vld [vmem:[%s8195] sm:$0xf]
      %v8197 = vld [vmem:[%s8195 + $0x4] sm:$0xf]
      %v8198 = vld [vmem:[%s8195 + $0x8] sm:$0xf]
      %v8199 = vld [vmem:[%s8195 + $0xc] sm:$0xf]
      %v8200 = vld [vmem:[%s8195 + $0x10] sm:$0xf]
      %v8201 = vld [vmem:[%s8195 + $0x14] sm:$0xf]
      %v8202 = vld [vmem:[%s8195 + $0x18] sm:$0xf]
      %v8203 = vld [vmem:[%s8195 + $0x1c] sm:$0xf]
      %v8204 = vld [vmem:[%s8195 + $0x20] sm:$0xf]
      %v8205 = vld [vmem:[%s8195 + $0x24] sm:$0xf]
      %v8206 = vld [vmem:[%s8195 + $0x28] sm:$0xf]
      %v8207 = vld [vmem:[%s8195 + $0x2c] sm:$0xf]
      %v8208 = vld [vmem:[%s8195 + $0x30] sm:$0xf]
      %v8209 = vld [vmem:[%s8195 + $0x34] sm:$0xf]
      %v8210 = vld [vmem:[%s8195 + $0x38] sm:$0xf]
      %v8211 = vld [vmem:[%s8195 + $0x3c] sm:$0xf]
      %v8212 = vunpack.c.l.b16 %v8164
      %v8213 = vunpack.c.l.b16 %v8174
      %v8214 = vunpack.c.l.b16 %v8184
      %v8215 = vunpack.c.l.b16 %v8194
      %v8216 = vpack.c.b16 %v8213, %v8212
      %v8217 = vpack.c.b16 %v8215, %v8214
      %v8236 = vunpack.c.l.b16 %v8196
      %v8237 = vunpack.c.l.b16 %v8197
      %v8238 = vunpack.c.l.b16 %v8198
      %v8239 = vunpack.c.l.b16 %v8199
      %v8240 = vunpack.c.l.b16 %v8200
      %v8241 = vunpack.c.l.b16 %v8201
      %v8242 = vunpack.c.l.b16 %v8202
      %v8243 = vunpack.c.l.b16 %v8203
      %v8244 = vunpack.c.l.b16 %v8204
      %v8245 = vunpack.c.l.b16 %v8205
      %v8246 = vunpack.c.l.b16 %v8206
      %v8247 = vunpack.c.l.b16 %v8207
      %v8248 = vunpack.c.l.b16 %v8208
      %v8249 = vunpack.c.l.b16 %v8209
      %v8250 = vunpack.c.l.b16 %v8210
      %v8251 = vunpack.c.l.b16 %v8211
      %v8252 = vpack.c.b16 %v8237, %v8236
      %v8253 = vpack.c.b16 %v8239, %v8238
      %v8254 = vpack.c.b16 %v8241, %v8240
      %v8255 = vpack.c.b16 %v8243, %v8242
      %v8256 = vpack.c.b16 %v8245, %v8244
      %v8257 = vpack.c.b16 %v8247, %v8246
      %v8258 = vpack.c.b16 %v8249, %v8248
      %v8259 = vpack.c.b16 %v8251, %v8250
      %8268 = vmatprep.subr.bf16.mxu0 0
      %8269 = vmatpush1.bf16.msra.mxu0 %v8259
      %8270 = vmatprep.subr.bf16.mxu0 0
      %8271 = vmatpush1.bf16.msra.mxu0 %v8258
      %8272 = vmatprep.subr.bf16.mxu0 0
      %8273 = vmatpush1.bf16.msra.mxu0 %v8257
      %8274 = vmatprep.subr.bf16.mxu0 0
      %8275 = vmatpush1.bf16.msra.mxu0 %v8256
      %8276 = vmatprep.subr.bf16.mxu0 0
      %8277 = vmatpush1.bf16.msra.mxu0 %v8255
      %8278 = vmatprep.subr.bf16.mxu0 0
      %8279 = vmatpush1.bf16.msra.mxu0 %v8254
      %8280 = vmatprep.subr.bf16.mxu0 0
      %8281 = vmatpush1.bf16.msra.mxu0 %v8253
      %8282 = vmatprep.subr.bf16.mxu0 0
      %8283 = vmatpush1.bf16.msra.mxu0 %v8252
      %8284 = vmatprep.subr.bf16.mxu0 0
      %8285 = vmatpush2.bf16.msra.mxu0 0
      %8286 = vmatprep.subr.bf16.mxu0 0
      %8287 = vmatpush2.bf16.msra.mxu0 0
      %8288 = vmatprep.subr.bf16.mxu0 0
      %8289 = vmatpush2.bf16.msra.mxu0 0
      %8290 = vmatprep.subr.bf16.mxu0 0
      %8291 = vmatpush2.bf16.msra.mxu0 0
      %8292 = vmatprep.subr.bf16.mxu0 0
      %8293 = vmatpush2.bf16.msra.mxu0 0
      %8294 = vmatprep.subr.bf16.mxu0 0
      %8295 = vmatpush2.bf16.msra.mxu0 0
      %8296 = vmatprep.subr.bf16.mxu0 0
      %8297 = vmatpush2.bf16.msra.mxu0 0
      %8298 = vmatprep.subr.bf16.mxu0 0
      %8299 = vmatpush2.bf16.msra.mxu0 0
      %8300 = vmatprep.mubr.bf16.mxu0 0
      %8301 = vmatmul.mubr.bf16.gmra.mxu0 %v1962
      %v8302 = vpop.f32.mrf.mxu0
      %v8303 = vadd.f32 0.0, %v8302
      %v8304 = vpop.f32.mrf.mxu0
      %v8305 = vpop.f32.mrf.mxu0
      %v8306 = vadd.f32 0.0, %v8305
      %v8307 = vpop.f32.mrf.mxu0
      %8308 = vmatprep.mubr.bf16.mxu0 0
      %8309 = vmatmul.mubr.bf16.gmra.mxu0 %v1963
      %v8310 = vpop.f32.mrf.mxu0
      %v8311 = vadd.f32 0.0, %v8310
      %v8312 = vpop.f32.mrf.mxu0
      %v8313 = vpop.f32.mrf.mxu0
      %v8314 = vadd.f32 0.0, %v8313
      %v8315 = vpop.f32.mrf.mxu0
      %8316 = vmatprep.mubr.bf16.mxu0 0
      %8317 = vmatmul.mubr.bf16.gmra.mxu0 %v1964
      %v8318 = vpop.f32.mrf.mxu0
      %v8319 = vadd.f32 0.0, %v8318
      %v8320 = vpop.f32.mrf.mxu0
      %v8321 = vpop.f32.mrf.mxu0
      %v8322 = vadd.f32 0.0, %v8321
      %v8323 = vpop.f32.mrf.mxu0
      %8324 = vmatprep.mubr.bf16.mxu0 0
      %8325 = vmatmul.mubr.bf16.gmra.mxu0 %v1965
      %v8326 = vpop.f32.mrf.mxu0
      %v8327 = vadd.f32 0.0, %v8326
      %v8328 = vpop.f32.mrf.mxu0
      %v8329 = vpop.f32.mrf.mxu0
      %v8330 = vadd.f32 0.0, %v8329
      %v8331 = vpop.f32.mrf.mxu0
      %8332 = vmatprep.mubr.bf16.mxu0 0
      %8333 = vmatmul.mubr.bf16.gmra.mxu0 %v1966
      %v8334 = vpop.f32.mrf.mxu0
      %v8335 = vadd.f32 0.0, %v8334
      %v8336 = vpop.f32.mrf.mxu0
      %v8337 = vpop.f32.mrf.mxu0
      %v8338 = vadd.f32 0.0, %v8337
      %v8339 = vpop.f32.mrf.mxu0
      %8340 = vmatprep.mubr.bf16.mxu0 0
      %8341 = vmatmul.mubr.bf16.gmra.mxu0 %v1967
      %v8342 = vpop.f32.mrf.mxu0
      %v8343 = vadd.f32 0.0, %v8342
      %v8344 = vpop.f32.mrf.mxu0
      %v8345 = vpop.f32.mrf.mxu0
      %v8346 = vadd.f32 0.0, %v8345
      %v8347 = vpop.f32.mrf.mxu0
      %8348 = vmatprep.mubr.bf16.mxu0 0
      %8349 = vmatmul.mubr.bf16.gmra.mxu0 %v1968
      %v8350 = vpop.f32.mrf.mxu0
      %v8351 = vadd.f32 0.0, %v8350
      %v8352 = vpop.f32.mrf.mxu0
      %v8353 = vpop.f32.mrf.mxu0
      %v8354 = vadd.f32 0.0, %v8353
      %v8355 = vpop.f32.mrf.mxu0
      %8356 = vmatprep.mubr.bf16.mxu0 0
      %8357 = vmatmul.mubr.bf16.gmra.mxu0 %v1969
      %v8358 = vpop.f32.mrf.mxu0
      %v8359 = vadd.f32 0.0, %v8358
      %v8360 = vpop.f32.mrf.mxu0
      %v8361 = vpop.f32.mrf.mxu0
      %v8362 = vadd.f32 0.0, %v8361
      %v8363 = vpop.f32.mrf.mxu0
      %8364 = vmatprep.mubr.bf16.mxu0 0
      %8365 = vmatmul.mubr.bf16.gmra.mxu0 %v1970
      %v8366 = vpop.f32.mrf.mxu0
      %v8367 = vadd.f32 0.0, %v8366
      %v8368 = vpop.f32.mrf.mxu0
      %v8369 = vpop.f32.mrf.mxu0
      %v8370 = vadd.f32 0.0, %v8369
      %v8371 = vpop.f32.mrf.mxu0
      %8372 = vmatprep.mubr.bf16.mxu0 0
      %8373 = vmatmul.mubr.bf16.gmra.mxu0 %v1971
      %v8374 = vpop.f32.mrf.mxu0
      %v8375 = vadd.f32 0.0, %v8374
      %v8376 = vpop.f32.mrf.mxu0
      %v8377 = vpop.f32.mrf.mxu0
      %v8378 = vadd.f32 0.0, %v8377
      %v8379 = vpop.f32.mrf.mxu0
      %8380 = vmatprep.mubr.bf16.mxu0 0
      %8381 = vmatmul.mubr.bf16.gmra.mxu0 %v1972
      %v8382 = vpop.f32.mrf.mxu0
      %v8383 = vadd.f32 0.0, %v8382
      %v8384 = vpop.f32.mrf.mxu0
      %v8385 = vpop.f32.mrf.mxu0
      %v8386 = vadd.f32 0.0, %v8385
      %v8387 = vpop.f32.mrf.mxu0
      %8388 = vmatprep.mubr.bf16.mxu0 0
      %8389 = vmatmul.mubr.bf16.gmra.mxu0 %v1973
      %v8390 = vpop.f32.mrf.mxu0
      %v8391 = vadd.f32 0.0, %v8390
      %v8392 = vpop.f32.mrf.mxu0
      %v8393 = vpop.f32.mrf.mxu0
      %v8394 = vadd.f32 0.0, %v8393
      %v8395 = vpop.f32.mrf.mxu0
      %8396 = vmatprep.mubr.bf16.mxu0 0
      %8397 = vmatmul.mubr.bf16.gmra.mxu0 %v1974
      %v8398 = vpop.f32.mrf.mxu0
      %v8399 = vadd.f32 0.0, %v8398
      %v8400 = vpop.f32.mrf.mxu0
      %v8401 = vpop.f32.mrf.mxu0
      %v8402 = vadd.f32 0.0, %v8401
      %v8403 = vpop.f32.mrf.mxu0
      %8404 = vmatprep.mubr.bf16.mxu0 0
      %8405 = vmatmul.mubr.bf16.gmra.mxu0 %v1975
      %v8406 = vpop.f32.mrf.mxu0
      %v8407 = vadd.f32 0.0, %v8406
      %v8408 = vpop.f32.mrf.mxu0
      %v8409 = vpop.f32.mrf.mxu0
      %v8410 = vadd.f32 0.0, %v8409
      %v8411 = vpop.f32.mrf.mxu0
      %8412 = vmatprep.mubr.bf16.mxu0 0
      %8413 = vmatmul.mubr.bf16.gmra.mxu0 %v1976
      %v8414 = vpop.f32.mrf.mxu0
      %v8415 = vadd.f32 0.0, %v8414
      %v8416 = vpop.f32.mrf.mxu0
      %v8417 = vpop.f32.mrf.mxu0
      %v8418 = vadd.f32 0.0, %v8417
      %v8419 = vpop.f32.mrf.mxu0
      %8420 = vmatprep.mubr.bf16.mxu0 0
      %8421 = vmatmul.mubr.bf16.gmra.mxu0 %v1977
      %v8422 = vpop.f32.mrf.mxu0
      %v8423 = vadd.f32 0.0, %v8422
      %v8424 = vpop.f32.mrf.mxu0
      %v8425 = vpop.f32.mrf.mxu0
      %v8426 = vadd.f32 0.0, %v8425
      %v8427 = vpop.f32.mrf.mxu0
      %8428 = vmatprep.mubr.bf16.mxu0 0
      %8429 = vmatmul.mubr.bf16.gmra.mxu0 %v1978
      %v8430 = vpop.f32.mrf.mxu0
      %v8431 = vadd.f32 0.0, %v8430
      %v8432 = vpop.f32.mrf.mxu0
      %v8433 = vpop.f32.mrf.mxu0
      %v8434 = vadd.f32 0.0, %v8433
      %v8435 = vpop.f32.mrf.mxu0
      %8436 = vmatprep.mubr.bf16.mxu0 0
      %8437 = vmatmul.mubr.bf16.gmra.mxu0 %v1979
      %v8438 = vpop.f32.mrf.mxu0
      %v8439 = vadd.f32 0.0, %v8438
      %v8440 = vpop.f32.mrf.mxu0
      %v8441 = vpop.f32.mrf.mxu0
      %v8442 = vadd.f32 0.0, %v8441
      %v8443 = vpop.f32.mrf.mxu0
      %8444 = vmatprep.mubr.bf16.mxu0 0
      %8445 = vmatmul.mubr.bf16.gmra.mxu0 %v1980
      %v8446 = vpop.f32.mrf.mxu0
      %v8447 = vadd.f32 0.0, %v8446
      %v8448 = vpop.f32.mrf.mxu0
      %v8449 = vpop.f32.mrf.mxu0
      %v8450 = vadd.f32 0.0, %v8449
      %v8451 = vpop.f32.mrf.mxu0
      %8452 = vmatprep.mubr.bf16.mxu0 0
      %8453 = vmatmul.mubr.bf16.gmra.mxu0 %v1981
      %v8454 = vpop.f32.mrf.mxu0
      %v8455 = vadd.f32 0.0, %v8454
      %v8456 = vpop.f32.mrf.mxu0
      %v8457 = vpop.f32.mrf.mxu0
      %v8458 = vadd.f32 0.0, %v8457
      %v8459 = vpop.f32.mrf.mxu0
      %8460 = vmatprep.mubr.bf16.mxu0 0
      %8461 = vmatmul.mubr.bf16.gmra.mxu0 %v1982
      %v8462 = vpop.f32.mrf.mxu0
      %v8463 = vadd.f32 0.0, %v8462
      %v8464 = vpop.f32.mrf.mxu0
      %v8465 = vpop.f32.mrf.mxu0
      %v8466 = vadd.f32 0.0, %v8465
      %v8467 = vpop.f32.mrf.mxu0
      %8468 = vmatprep.mubr.bf16.mxu0 0
      %8469 = vmatmul.mubr.bf16.gmra.mxu0 %v1983
      %v8470 = vpop.f32.mrf.mxu0
      %v8471 = vadd.f32 0.0, %v8470
      %v8472 = vpop.f32.mrf.mxu0
      %v8473 = vpop.f32.mrf.mxu0
      %v8474 = vadd.f32 0.0, %v8473
      %v8475 = vpop.f32.mrf.mxu0
      %8476 = vmatprep.mubr.bf16.mxu0 0
      %8477 = vmatmul.mubr.bf16.gmra.mxu0 %v1984
      %v8478 = vpop.f32.mrf.mxu0
      %v8479 = vadd.f32 0.0, %v8478
      %v8480 = vpop.f32.mrf.mxu0
      %v8481 = vpop.f32.mrf.mxu0
      %v8482 = vadd.f32 0.0, %v8481
      %v8483 = vpop.f32.mrf.mxu0
      %8484 = vmatprep.mubr.bf16.mxu0 0
      %8485 = vmatmul.mubr.bf16.gmra.mxu0 %v1985
      %v8486 = vpop.f32.mrf.mxu0
      %v8487 = vadd.f32 0.0, %v8486
      %v8488 = vpop.f32.mrf.mxu0
      %v8489 = vpop.f32.mrf.mxu0
      %v8490 = vadd.f32 0.0, %v8489
      %v8491 = vpop.f32.mrf.mxu0
      %8492 = vmatprep.mubr.bf16.mxu0 0
      %8493 = vmatmul.mubr.bf16.gmra.mxu0 %v1986
      %v8494 = vpop.f32.mrf.mxu0
      %v8495 = vadd.f32 0.0, %v8494
      %v8496 = vpop.f32.mrf.mxu0
      %v8497 = vpop.f32.mrf.mxu0
      %v8498 = vadd.f32 0.0, %v8497
      %v8499 = vpop.f32.mrf.mxu0
      %8500 = vmatprep.mubr.bf16.mxu0 0
      %8501 = vmatmul.mubr.bf16.gmra.mxu0 %v1987
      %v8502 = vpop.f32.mrf.mxu0
      %v8503 = vadd.f32 0.0, %v8502
      %v8504 = vpop.f32.mrf.mxu0
      %v8505 = vpop.f32.mrf.mxu0
      %v8506 = vadd.f32 0.0, %v8505
      %v8507 = vpop.f32.mrf.mxu0
      %8508 = vmatprep.mubr.bf16.mxu0 0
      %8509 = vmatmul.mubr.bf16.gmra.mxu0 %v1988
      %v8510 = vpop.f32.mrf.mxu0
      %v8511 = vadd.f32 0.0, %v8510
      %v8512 = vpop.f32.mrf.mxu0
      %v8513 = vpop.f32.mrf.mxu0
      %v8514 = vadd.f32 0.0, %v8513
      %v8515 = vpop.f32.mrf.mxu0
      %8516 = vmatprep.mubr.bf16.mxu0 0
      %8517 = vmatmul.mubr.bf16.gmra.mxu0 %v1989
      %v8518 = vpop.f32.mrf.mxu0
      %v8519 = vadd.f32 0.0, %v8518
      %v8520 = vpop.f32.mrf.mxu0
      %v8521 = vpop.f32.mrf.mxu0
      %v8522 = vadd.f32 0.0, %v8521
      %v8523 = vpop.f32.mrf.mxu0
      %8524 = vmatprep.mubr.bf16.mxu0 0
      %8525 = vmatmul.mubr.bf16.gmra.mxu0 %v1990
      %v8526 = vpop.f32.mrf.mxu0
      %v8527 = vadd.f32 0.0, %v8526
      %v8528 = vpop.f32.mrf.mxu0
      %v8529 = vpop.f32.mrf.mxu0
      %v8530 = vadd.f32 0.0, %v8529
      %v8531 = vpop.f32.mrf.mxu0
      %8532 = vmatprep.mubr.bf16.mxu0 0
      %8533 = vmatmul.mubr.bf16.gmra.mxu0 %v1991
      %v8534 = vpop.f32.mrf.mxu0
      %v8535 = vadd.f32 0.0, %v8534
      %v8536 = vpop.f32.mrf.mxu0
      %v8537 = vpop.f32.mrf.mxu0
      %v8538 = vadd.f32 0.0, %v8537
      %v8539 = vpop.f32.mrf.mxu0
      %8540 = vmatprep.mubr.bf16.mxu0 0
      %8541 = vmatmul.mubr.bf16.gmra.mxu0 %v1992
      %v8542 = vpop.f32.mrf.mxu0
      %v8543 = vadd.f32 0.0, %v8542
      %v8544 = vpop.f32.mrf.mxu0
      %v8545 = vpop.f32.mrf.mxu0
      %v8546 = vadd.f32 0.0, %v8545
      %v8547 = vpop.f32.mrf.mxu0
      %8548 = vmatprep.mubr.bf16.mxu0 0
      %8549 = vmatmul.mubr.bf16.gmra.mxu0 %v1993
      %v8550 = vpop.f32.mrf.mxu0
      %v8551 = vadd.f32 0.0, %v8550
      %v8552 = vpop.f32.mrf.mxu0
      %v8553 = vpop.f32.mrf.mxu0
      %v8554 = vadd.f32 0.0, %v8553
      %v8555 = vpop.f32.mrf.mxu0
      %8556 = vmatprep.mubr.bf16.mxu0 0
      %8557 = vmatmul.mubr.bf16.gmra.mxu0 %v1994
      %v8558 = vpop.f32.mrf.mxu0
      %v8559 = vadd.f32 0.0, %v8558
      %v8560 = vpop.f32.mrf.mxu0
      %v8561 = vpop.f32.mrf.mxu0
      %v8562 = vadd.f32 0.0, %v8561
      %v8563 = vpop.f32.mrf.mxu0
      %8564 = vmatprep.mubr.bf16.mxu0 0
      %8565 = vmatmul.mubr.bf16.gmra.mxu0 %v1995
      %v8566 = vpop.f32.mrf.mxu0
      %v8567 = vadd.f32 0.0, %v8566
      %v8568 = vpop.f32.mrf.mxu0
      %v8569 = vpop.f32.mrf.mxu0
      %v8570 = vadd.f32 0.0, %v8569
      %v8571 = vpop.f32.mrf.mxu0
      %8572 = vmatprep.mubr.bf16.mxu0 0
      %8573 = vmatmul.mubr.bf16.gmra.mxu0 %v1996
      %v8574 = vpop.f32.mrf.mxu0
      %v8575 = vadd.f32 0.0, %v8574
      %v8576 = vpop.f32.mrf.mxu0
      %v8577 = vpop.f32.mrf.mxu0
      %v8578 = vadd.f32 0.0, %v8577
      %v8579 = vpop.f32.mrf.mxu0
      %8580 = vmatprep.mubr.bf16.mxu0 0
      %8581 = vmatmul.mubr.bf16.gmra.mxu0 %v1997
      %v8582 = vpop.f32.mrf.mxu0
      %v8583 = vadd.f32 0.0, %v8582
      %v8584 = vpop.f32.mrf.mxu0
      %v8585 = vpop.f32.mrf.mxu0
      %v8586 = vadd.f32 0.0, %v8585
      %v8587 = vpop.f32.mrf.mxu0
      %8588 = vmatprep.mubr.bf16.mxu0 0
      %8589 = vmatmul.mubr.bf16.gmra.mxu0 %v1998
      %v8590 = vpop.f32.mrf.mxu0
      %v8591 = vadd.f32 0.0, %v8590
      %v8592 = vpop.f32.mrf.mxu0
      %v8593 = vpop.f32.mrf.mxu0
      %v8594 = vadd.f32 0.0, %v8593
      %v8595 = vpop.f32.mrf.mxu0
      %8596 = vmatprep.mubr.bf16.mxu0 0
      %8597 = vmatmul.mubr.bf16.gmra.mxu0 %v1999
      %v8598 = vpop.f32.mrf.mxu0
      %v8599 = vadd.f32 0.0, %v8598
      %v8600 = vpop.f32.mrf.mxu0
      %v8601 = vpop.f32.mrf.mxu0
      %v8602 = vadd.f32 0.0, %v8601
      %v8603 = vpop.f32.mrf.mxu0
      %8604 = vmatprep.mubr.bf16.mxu0 0
      %8605 = vmatmul.mubr.bf16.gmra.mxu0 %v2000
      %v8606 = vpop.f32.mrf.mxu0
      %v8607 = vadd.f32 0.0, %v8606
      %v8608 = vpop.f32.mrf.mxu0
      %v8609 = vpop.f32.mrf.mxu0
      %v8610 = vadd.f32 0.0, %v8609
      %v8611 = vpop.f32.mrf.mxu0
      %8612 = vmatprep.mubr.bf16.mxu0 0
      %8613 = vmatmul.mubr.bf16.gmra.mxu0 %v2001
      %v8614 = vpop.f32.mrf.mxu0
      %v8615 = vadd.f32 0.0, %v8614
      %v8616 = vpop.f32.mrf.mxu0
      %v8617 = vpop.f32.mrf.mxu0
      %v8618 = vadd.f32 0.0, %v8617
      %v8619 = vpop.f32.mrf.mxu0
      %8620 = vmatprep.mubr.bf16.mxu0 0
      %8621 = vmatmul.mubr.bf16.gmra.mxu0 %v2002
      %v8622 = vpop.f32.mrf.mxu0
      %v8623 = vadd.f32 0.0, %v8622
      %v8624 = vpop.f32.mrf.mxu0
      %v8625 = vpop.f32.mrf.mxu0
      %v8626 = vadd.f32 0.0, %v8625
      %v8627 = vpop.f32.mrf.mxu0
      %8628 = vmatprep.mubr.bf16.mxu0 0
      %8629 = vmatmul.mubr.bf16.gmra.mxu0 %v2003
      %v8630 = vpop.f32.mrf.mxu0
      %v8631 = vadd.f32 0.0, %v8630
      %v8632 = vpop.f32.mrf.mxu0
      %v8633 = vpop.f32.mrf.mxu0
      %v8634 = vadd.f32 0.0, %v8633
      %v8635 = vpop.f32.mrf.mxu0
      %8636 = vmatprep.mubr.bf16.mxu0 0
      %8637 = vmatmul.mubr.bf16.gmra.mxu0 %v2004
      %v8638 = vpop.f32.mrf.mxu0
      %v8639 = vadd.f32 0.0, %v8638
      %v8640 = vpop.f32.mrf.mxu0
      %v8641 = vpop.f32.mrf.mxu0
      %v8642 = vadd.f32 0.0, %v8641
      %v8643 = vpop.f32.mrf.mxu0
      %8644 = vmatprep.mubr.bf16.mxu0 0
      %8645 = vmatmul.mubr.bf16.gmra.mxu0 %v2005
      %v8646 = vpop.f32.mrf.mxu0
      %v8647 = vadd.f32 0.0, %v8646
      %v8648 = vpop.f32.mrf.mxu0
      %v8649 = vpop.f32.mrf.mxu0
      %v8650 = vadd.f32 0.0, %v8649
      %v8651 = vpop.f32.mrf.mxu0
      %8652 = vmatprep.mubr.bf16.mxu0 0
      %8653 = vmatmul.mubr.bf16.gmra.mxu0 %v2006
      %v8654 = vpop.f32.mrf.mxu0
      %v8655 = vadd.f32 0.0, %v8654
      %v8656 = vpop.f32.mrf.mxu0
      %v8657 = vpop.f32.mrf.mxu0
      %v8658 = vadd.f32 0.0, %v8657
      %v8659 = vpop.f32.mrf.mxu0
      %8660 = vmatprep.mubr.bf16.mxu0 0
      %8661 = vmatmul.mubr.bf16.gmra.mxu0 %v2007
      %v8662 = vpop.f32.mrf.mxu0
      %v8663 = vadd.f32 0.0, %v8662
      %v8664 = vpop.f32.mrf.mxu0
      %v8665 = vpop.f32.mrf.mxu0
      %v8666 = vadd.f32 0.0, %v8665
      %v8667 = vpop.f32.mrf.mxu0
      %8668 = vmatprep.mubr.bf16.mxu0 0
      %8669 = vmatmul.mubr.bf16.gmra.mxu0 %v2008
      %v8670 = vpop.f32.mrf.mxu0
      %v8671 = vadd.f32 0.0, %v8670
      %v8672 = vpop.f32.mrf.mxu0
      %v8673 = vpop.f32.mrf.mxu0
      %v8674 = vadd.f32 0.0, %v8673
      %v8675 = vpop.f32.mrf.mxu0
      %8676 = vmatprep.mubr.bf16.mxu0 0
      %8677 = vmatmul.mubr.bf16.gmra.mxu0 %v2009
      %v8678 = vpop.f32.mrf.mxu0
      %v8679 = vadd.f32 0.0, %v8678
      %v8680 = vpop.f32.mrf.mxu0
      %v8681 = vpop.f32.mrf.mxu0
      %v8682 = vadd.f32 0.0, %v8681
      %v8683 = vpop.f32.mrf.mxu0
      %8684 = vmatprep.mubr.bf16.mxu0 0
      %8685 = vmatmul.mubr.bf16.gmra.mxu0 %v2010
      %v8686 = vpop.f32.mrf.mxu0
      %v8687 = vadd.f32 0.0, %v8686
      %v8688 = vpop.f32.mrf.mxu0
      %v8689 = vpop.f32.mrf.mxu0
      %v8690 = vadd.f32 0.0, %v8689
      %v8691 = vpop.f32.mrf.mxu0
      %8692 = vmatprep.mubr.bf16.mxu0 0
      %8693 = vmatmul.mubr.bf16.gmra.mxu0 %v2011
      %v8694 = vpop.f32.mrf.mxu0
      %v8695 = vadd.f32 0.0, %v8694
      %v8696 = vpop.f32.mrf.mxu0
      %v8697 = vpop.f32.mrf.mxu0
      %v8698 = vadd.f32 0.0, %v8697
      %v8699 = vpop.f32.mrf.mxu0
      %8700 = vmatprep.mubr.bf16.mxu0 0
      %8701 = vmatmul.mubr.bf16.gmra.mxu0 %v2012
      %v8702 = vpop.f32.mrf.mxu0
      %v8703 = vadd.f32 0.0, %v8702
      %v8704 = vpop.f32.mrf.mxu0
      %v8705 = vpop.f32.mrf.mxu0
      %v8706 = vadd.f32 0.0, %v8705
      %v8707 = vpop.f32.mrf.mxu0
      %8708 = vmatprep.mubr.bf16.mxu0 0
      %8709 = vmatmul.mubr.bf16.gmra.mxu0 %v2013
      %v8710 = vpop.f32.mrf.mxu0
      %v8711 = vadd.f32 0.0, %v8710
      %v8712 = vpop.f32.mrf.mxu0
      %v8713 = vpop.f32.mrf.mxu0
      %v8714 = vadd.f32 0.0, %v8713
      %v8715 = vpop.f32.mrf.mxu0
      %8716 = vmatprep.mubr.bf16.mxu0 0
      %8717 = vmatmul.mubr.bf16.gmra.mxu0 %v2014
      %v8718 = vpop.f32.mrf.mxu0
      %v8719 = vadd.f32 0.0, %v8718
      %v8720 = vpop.f32.mrf.mxu0
      %v8721 = vpop.f32.mrf.mxu0
      %v8722 = vadd.f32 0.0, %v8721
      %v8723 = vpop.f32.mrf.mxu0
      %8724 = vmatprep.mubr.bf16.mxu0 0
      %8725 = vmatmul.mubr.bf16.gmra.mxu0 %v2015
      %v8726 = vpop.f32.mrf.mxu0
      %v8727 = vadd.f32 0.0, %v8726
      %v8728 = vpop.f32.mrf.mxu0
      %v8729 = vpop.f32.mrf.mxu0
      %v8730 = vadd.f32 0.0, %v8729
      %v8731 = vpop.f32.mrf.mxu0
      %8732 = vmatprep.mubr.bf16.mxu0 0
      %8733 = vmatmul.mubr.bf16.gmra.mxu0 %v2016
      %v8734 = vpop.f32.mrf.mxu0
      %v8735 = vadd.f32 0.0, %v8734
      %v8736 = vpop.f32.mrf.mxu0
      %v8737 = vpop.f32.mrf.mxu0
      %v8738 = vadd.f32 0.0, %v8737
      %v8739 = vpop.f32.mrf.mxu0
      %8740 = vmatprep.mubr.bf16.mxu0 0
      %8741 = vmatmul.mubr.bf16.gmra.mxu0 %v2017
      %v8742 = vpop.f32.mrf.mxu0
      %v8743 = vadd.f32 0.0, %v8742
      %v8744 = vpop.f32.mrf.mxu0
      %v8745 = vpop.f32.mrf.mxu0
      %v8746 = vadd.f32 0.0, %v8745
      %v8747 = vpop.f32.mrf.mxu0
      %8748 = vmatprep.mubr.bf16.mxu0 0
      %8749 = vmatmul.mubr.bf16.gmra.mxu0 %v2018
      %v8750 = vpop.f32.mrf.mxu0
      %v8751 = vadd.f32 0.0, %v8750
      %v8752 = vpop.f32.mrf.mxu0
      %v8753 = vpop.f32.mrf.mxu0
      %v8754 = vadd.f32 0.0, %v8753
      %v8755 = vpop.f32.mrf.mxu0
      %8756 = vmatprep.mubr.bf16.mxu0 0
      %8757 = vmatmul.mubr.bf16.gmra.mxu0 %v2019
      %v8758 = vpop.f32.mrf.mxu0
      %v8759 = vadd.f32 0.0, %v8758
      %v8760 = vpop.f32.mrf.mxu0
      %v8761 = vpop.f32.mrf.mxu0
      %v8762 = vadd.f32 0.0, %v8761
      %v8763 = vpop.f32.mrf.mxu0
      %8764 = vmatprep.mubr.bf16.mxu0 0
      %8765 = vmatmul.mubr.bf16.gmra.mxu0 %v2020
      %v8766 = vpop.f32.mrf.mxu0
      %v8767 = vadd.f32 0.0, %v8766
      %v8768 = vpop.f32.mrf.mxu0
      %v8769 = vpop.f32.mrf.mxu0
      %v8770 = vadd.f32 0.0, %v8769
      %v8771 = vpop.f32.mrf.mxu0
      %8772 = vmatprep.mubr.bf16.mxu0 0
      %8773 = vmatmul.mubr.bf16.gmra.mxu0 %v2021
      %v8774 = vpop.f32.mrf.mxu0
      %v8775 = vadd.f32 0.0, %v8774
      %v8776 = vpop.f32.mrf.mxu0
      %v8777 = vpop.f32.mrf.mxu0
      %v8778 = vadd.f32 0.0, %v8777
      %v8779 = vpop.f32.mrf.mxu0
      %8780 = vmatprep.mubr.bf16.mxu0 0
      %8781 = vmatmul.mubr.bf16.gmra.mxu0 %v5916
      %v8782 = vpop.f32.mrf.mxu0
      %v8783 = vadd.f32 0.0, %v8782
      %v8784 = vpop.f32.mrf.mxu0
      %v8785 = vpop.f32.mrf.mxu0
      %v8786 = vadd.f32 0.0, %v8785
      %v8787 = vpop.f32.mrf.mxu0
      %8788 = vmatprep.mubr.bf16.mxu0 0
      %8789 = vmatmul.mubr.bf16.gmra.mxu0 %v5917
      %v8790 = vpop.f32.mrf.mxu0
      %v8791 = vadd.f32 0.0, %v8790
      %v8792 = vpop.f32.mrf.mxu0
      %v8793 = vpop.f32.mrf.mxu0
      %v8794 = vadd.f32 0.0, %v8793
      %v8795 = vpop.f32.mrf.mxu0
      %8796 = vmatprep.mubr.bf16.mxu0 0
      %8797 = vmatmul.mubr.bf16.gmra.mxu0 %v8216
      %v8798 = vpop.f32.mrf.mxu0
      %v8799 = vadd.f32 0.0, %v8798
      %v8800 = vpop.f32.mrf.mxu0
      %v8801 = vpop.f32.mrf.mxu0
      %v8802 = vadd.f32 0.0, %v8801
      %v8803 = vpop.f32.mrf.mxu0
      %8804 = vmatprep.mubr.bf16.mxu0 0
      %8805 = vmatmul.mubr.bf16.gmra.mxu0 %v8217
      %v8806 = vpop.f32.mrf.mxu0
      %v8807 = vadd.f32 0.0, %v8806
      %v8808 = vpop.f32.mrf.mxu0
      %v8809 = vpop.f32.mrf.mxu0
      %v8810 = vadd.f32 0.0, %v8809
      %v8811 = vpop.f32.mrf.mxu0
      %8812 = vdwg.mxu0
      %v8813 = vadd.f32 %v8023, %v8303
      %v8814 = vadd.f32 %v8024, %v8306
      %v8815 = vadd.f32 %v8025, %v8311
      %v8816 = vadd.f32 %v8026, %v8314
      %v8817 = vadd.f32 %v8027, %v8319
      %v8818 = vadd.f32 %v8028, %v8322
      %v8819 = vadd.f32 %v8029, %v8327
      %v8820 = vadd.f32 %v8030, %v8330
      %v8821 = vadd.f32 %v8031, %v8335
      %v8822 = vadd.f32 %v8032, %v8338
      %v8823 = vadd.f32 %v8033, %v8343
      %v8824 = vadd.f32 %v8034, %v8346
      %v8825 = vadd.f32 %v8035, %v8351
      %v8826 = vadd.f32 %v8036, %v8354
      %v8827 = vadd.f32 %v8037, %v8359
      %v8828 = vadd.f32 %v8038, %v8362
      %v8829 = vadd.f32 %v8039, %v8367
      %v8830 = vadd.f32 %v8040, %v8370
      %v8831 = vadd.f32 %v8041, %v8375
      %v8832 = vadd.f32 %v8042, %v8378
      %v8833 = vadd.f32 %v8043, %v8383
      %v8834 = vadd.f32 %v8044, %v8386
      %v8835 = vadd.f32 %v8045, %v8391
      %v8836 = vadd.f32 %v8046, %v8394
      %v8837 = vadd.f32 %v8047, %v8399
      %v8838 = vadd.f32 %v8048, %v8402
      %v8839 = vadd.f32 %v8049, %v8407
      %v8840 = vadd.f32 %v8050, %v8410
      %v8841 = vadd.f32 %v8051, %v8415
      %v8842 = vadd.f32 %v8052, %v8418
      %v8843 = vadd.f32 %v8053, %v8423
      %v8844 = vadd.f32 %v8054, %v8426
      %v8845 = vadd.f32 %v8055, %v8431
      %v8846 = vadd.f32 %v8056, %v8434
      %v8847 = vadd.f32 %v8057, %v8439
      %v8848 = vadd.f32 %v8058, %v8442
      %v8849 = vadd.f32 %v8059, %v8447
      %v8850 = vadd.f32 %v8060, %v8450
      %v8851 = vadd.f32 %v8061, %v8455
      %v8852 = vadd.f32 %v8062, %v8458
      %v8853 = vadd.f32 %v8063, %v8463
      %v8854 = vadd.f32 %v8064, %v8466
      %v8855 = vadd.f32 %v8065, %v8471
      %v8856 = vadd.f32 %v8066, %v8474
      %v8857 = vadd.f32 %v8067, %v8479
      %v8858 = vadd.f32 %v8068, %v8482
      %v8859 = vadd.f32 %v8069, %v8487
      %v8860 = vadd.f32 %v8070, %v8490
      %v8861 = vadd.f32 %v8071, %v8495
      %v8862 = vadd.f32 %v8072, %v8498
      %v8863 = vadd.f32 %v8073, %v8503
      %v8864 = vadd.f32 %v8074, %v8506
      %v8865 = vadd.f32 %v8075, %v8511
      %v8866 = vadd.f32 %v8076, %v8514
      %v8867 = vadd.f32 %v8077, %v8519
      %v8868 = vadd.f32 %v8078, %v8522
      %v8869 = vadd.f32 %v8079, %v8527
      %v8870 = vadd.f32 %v8080, %v8530
      %v8871 = vadd.f32 %v8081, %v8535
      %v8872 = vadd.f32 %v8082, %v8538
      %v8873 = vadd.f32 %v8083, %v8543
      %v8874 = vadd.f32 %v8084, %v8546
      %v8875 = vadd.f32 %v8085, %v8551
      %v8876 = vadd.f32 %v8086, %v8554
      %v8877 = vadd.f32 %v8087, %v8559
      %v8878 = vadd.f32 %v8088, %v8562
      %v8879 = vadd.f32 %v8089, %v8567
      %v8880 = vadd.f32 %v8090, %v8570
      %v8881 = vadd.f32 %v8091, %v8575
      %v8882 = vadd.f32 %v8092, %v8578
      %v8883 = vadd.f32 %v8093, %v8583
      %v8884 = vadd.f32 %v8094, %v8586
      %v8885 = vadd.f32 %v8095, %v8591
      %v8886 = vadd.f32 %v8096, %v8594
      %v8887 = vadd.f32 %v8097, %v8599
      %v8888 = vadd.f32 %v8098, %v8602
      %v8889 = vadd.f32 %v8099, %v8607
      %v8890 = vadd.f32 %v8100, %v8610
      %v8891 = vadd.f32 %v8101, %v8615
      %v8892 = vadd.f32 %v8102, %v8618
      %v8893 = vadd.f32 %v8103, %v8623
      %v8894 = vadd.f32 %v8104, %v8626
      %v8895 = vadd.f32 %v8105, %v8631
      %v8896 = vadd.f32 %v8106, %v8634
      %v8897 = vadd.f32 %v8107, %v8639
      %v8898 = vadd.f32 %v8108, %v8642
      %v8899 = vadd.f32 %v8109, %v8647
      %v8900 = vadd.f32 %v8110, %v8650
      %v8901 = vadd.f32 %v8111, %v8655
      %v8902 = vadd.f32 %v8112, %v8658
      %v8903 = vadd.f32 %v8113, %v8663
      %v8904 = vadd.f32 %v8114, %v8666
      %v8905 = vadd.f32 %v8115, %v8671
      %v8906 = vadd.f32 %v8116, %v8674
      %v8907 = vadd.f32 %v8117, %v8679
      %v8908 = vadd.f32 %v8118, %v8682
      %v8909 = vadd.f32 %v8119, %v8687
      %v8910 = vadd.f32 %v8120, %v8690
      %v8911 = vadd.f32 %v8121, %v8695
      %v8912 = vadd.f32 %v8122, %v8698
      %v8913 = vadd.f32 %v8123, %v8703
      %v8914 = vadd.f32 %v8124, %v8706
      %v8915 = vadd.f32 %v8125, %v8711
      %v8916 = vadd.f32 %v8126, %v8714
      %v8917 = vadd.f32 %v8127, %v8719
      %v8918 = vadd.f32 %v8128, %v8722
      %v8919 = vadd.f32 %v8129, %v8727
      %v8920 = vadd.f32 %v8130, %v8730
      %v8921 = vadd.f32 %v8131, %v8735
      %v8922 = vadd.f32 %v8132, %v8738
      %v8923 = vadd.f32 %v8133, %v8743
      %v8924 = vadd.f32 %v8134, %v8746
      %v8925 = vadd.f32 %v8135, %v8751
      %v8926 = vadd.f32 %v8136, %v8754
      %v8927 = vadd.f32 %v8137, %v8759
      %v8928 = vadd.f32 %v8138, %v8762
      %v8929 = vadd.f32 %v8139, %v8767
      %v8930 = vadd.f32 %v8140, %v8770
      %v8931 = vadd.f32 %v8141, %v8775
      %v8932 = vadd.f32 %v8142, %v8778
      %v8933 = vadd.f32 %v8143, %v8783
      %v8934 = vadd.f32 %v8144, %v8786
      %v8935 = vadd.f32 %v8145, %v8791
      %v8936 = vadd.f32 %v8146, %v8794
      %v8937 = vadd.f32 %v8147, %v8799
      %v8938 = vadd.f32 %v8148, %v8802
      %v8939 = vadd.f32 %v8149, %v8807
      %v8940 = vadd.f32 %v8150, %v8810
      %v8942 = vrot.slane %v381, 5
      %v8943 = vrot.slane %v8942, 4
      %v8944 = vrot.slane %v382, 5
      %v8945 = vsel %vm3690, %v8943, %v8944
      %v8946 = vrot.slane %v8944, 4
      %v8947 = vrot.slane %v383, 5
      %v8948 = vsel %vm3690, %v8946, %v8947
      %v8949 = vrot.slane %v8947, 4
      %v8950 = vrot.slane %v384, 5
      %v8951 = vsel %vm3690, %v8949, %v8950
      %v8952 = vrot.slane %v8950, 4
      %v8953 = vrot.slane %v385, 5
      %v8954 = vsel %vm3690, %v8952, %v8953
      %s8955 = scalar_lea.vmem %s1, 512
      %v8956 = vld [vmem:[%s8955] sm:$0xf]
      %v8957 = vld [vmem:[%s8955 + $0x4] sm:$0xf]
      %v8958 = vld [vmem:[%s8955 + $0x8] sm:$0xf]
      %v8959 = vld [vmem:[%s8955 + $0xc] sm:$0xf]
      %v8960 = vld [vmem:[%s8955 + $0x10] sm:$0xf]
      %v8961 = vld [vmem:[%s8955 + $0x14] sm:$0xf]
      %v8962 = vld [vmem:[%s8955 + $0x18] sm:$0xf]
      %v8963 = vld [vmem:[%s8955 + $0x1c] sm:$0xf]
      %v8964 = vld [vmem:[%s8955 + $0x20] sm:$0xf]
      %v8965 = vld [vmem:[%s8955 + $0x24] sm:$0xf]
      %v8966 = vld [vmem:[%s8955 + $0x28] sm:$0xf]
      %v8967 = vld [vmem:[%s8955 + $0x2c] sm:$0xf]
      %v8968 = vld [vmem:[%s8955 + $0x30] sm:$0xf]
      %v8969 = vld [vmem:[%s8955 + $0x34] sm:$0xf]
      %v8970 = vld [vmem:[%s8955 + $0x38] sm:$0xf]
      %v8971 = vld [vmem:[%s8955 + $0x3c] sm:$0xf]
      %v8972 = vunpack.c.l.b16 %v8945
      %v8973 = vunpack.c.l.b16 %v8948
      %v8974 = vunpack.c.l.b16 %v8951
      %v8975 = vunpack.c.l.b16 %v8954
      %v8976 = vpack.c.b16 %v8973, %v8972
      %v8977 = vpack.c.b16 %v8975, %v8974
      %v8996 = vunpack.c.l.b16 %v8956
      %v8997 = vunpack.c.l.b16 %v8957
      %v8998 = vunpack.c.l.b16 %v8958
      %v8999 = vunpack.c.l.b16 %v8959
      %v9000 = vunpack.c.l.b16 %v8960
      %v9001 = vunpack.c.l.b16 %v8961
      %v9002 = vunpack.c.l.b16 %v8962
      %v9003 = vunpack.c.l.b16 %v8963
      %v9004 = vunpack.c.l.b16 %v8964
      %v9005 = vunpack.c.l.b16 %v8965
      %v9006 = vunpack.c.l.b16 %v8966
      %v9007 = vunpack.c.l.b16 %v8967
      %v9008 = vunpack.c.l.b16 %v8968
      %v9009 = vunpack.c.l.b16 %v8969
      %v9010 = vunpack.c.l.b16 %v8970
      %v9011 = vunpack.c.l.b16 %v8971
      %v9012 = vpack.c.b16 %v8997, %v8996
      %v9013 = vpack.c.b16 %v8999, %v8998
      %v9014 = vpack.c.b16 %v9001, %v9000
      %v9015 = vpack.c.b16 %v9003, %v9002
      %v9016 = vpack.c.b16 %v9005, %v9004
      %v9017 = vpack.c.b16 %v9007, %v9006
      %v9018 = vpack.c.b16 %v9009, %v9008
      %v9019 = vpack.c.b16 %v9011, %v9010
      %9028 = vmatprep.subr.bf16.mxu0 0
      %9029 = vmatpush1.bf16.msra.mxu0 %v9019
      %9030 = vmatprep.subr.bf16.mxu0 0
      %9031 = vmatpush1.bf16.msra.mxu0 %v9018
      %9032 = vmatprep.subr.bf16.mxu0 0
      %9033 = vmatpush1.bf16.msra.mxu0 %v9017
      %9034 = vmatprep.subr.bf16.mxu0 0
      %9035 = vmatpush1.bf16.msra.mxu0 %v9016
      %9036 = vmatprep.subr.bf16.mxu0 0
      %9037 = vmatpush1.bf16.msra.mxu0 %v9015
      %9038 = vmatprep.subr.bf16.mxu0 0
      %9039 = vmatpush1.bf16.msra.mxu0 %v9014
      %9040 = vmatprep.subr.bf16.mxu0 0
      %9041 = vmatpush1.bf16.msra.mxu0 %v9013
      %9042 = vmatprep.subr.bf16.mxu0 0
      %9043 = vmatpush1.bf16.msra.mxu0 %v9012
      %9044 = vmatprep.subr.bf16.mxu0 0
      %9045 = vmatpush2.bf16.msra.mxu0 0
      %9046 = vmatprep.subr.bf16.mxu0 0
      %9047 = vmatpush2.bf16.msra.mxu0 0
      %9048 = vmatprep.subr.bf16.mxu0 0
      %9049 = vmatpush2.bf16.msra.mxu0 0
      %9050 = vmatprep.subr.bf16.mxu0 0
      %9051 = vmatpush2.bf16.msra.mxu0 0
      %9052 = vmatprep.subr.bf16.mxu0 0
      %9053 = vmatpush2.bf16.msra.mxu0 0
      %9054 = vmatprep.subr.bf16.mxu0 0
      %9055 = vmatpush2.bf16.msra.mxu0 0
      %9056 = vmatprep.subr.bf16.mxu0 0
      %9057 = vmatpush2.bf16.msra.mxu0 0
      %9058 = vmatprep.subr.bf16.mxu0 0
      %9059 = vmatpush2.bf16.msra.mxu0 0
      %9060 = vmatprep.mubr.bf16.mxu0 0
      %9061 = vmatmul.mubr.bf16.gmra.mxu0 %v4256
      %v9062 = vpop.f32.mrf.mxu0
      %v9063 = vadd.f32 0.0, %v9062
      %v9064 = vpop.f32.mrf.mxu0
      %v9065 = vpop.f32.mrf.mxu0
      %v9066 = vadd.f32 0.0, %v9065
      %v9067 = vpop.f32.mrf.mxu0
      %9068 = vmatprep.mubr.bf16.mxu0 0
      %9069 = vmatmul.mubr.bf16.gmra.mxu0 %v4257
      %v9070 = vpop.f32.mrf.mxu0
      %v9071 = vadd.f32 0.0, %v9070
      %v9072 = vpop.f32.mrf.mxu0
      %v9073 = vpop.f32.mrf.mxu0
      %v9074 = vadd.f32 0.0, %v9073
      %v9075 = vpop.f32.mrf.mxu0
      %9076 = vmatprep.mubr.bf16.mxu0 0
      %9077 = vmatmul.mubr.bf16.gmra.mxu0 %v4258
      %v9078 = vpop.f32.mrf.mxu0
      %v9079 = vadd.f32 0.0, %v9078
      %v9080 = vpop.f32.mrf.mxu0
      %v9081 = vpop.f32.mrf.mxu0
      %v9082 = vadd.f32 0.0, %v9081
      %v9083 = vpop.f32.mrf.mxu0
      %9084 = vmatprep.mubr.bf16.mxu0 0
      %9085 = vmatmul.mubr.bf16.gmra.mxu0 %v4259
      %v9086 = vpop.f32.mrf.mxu0
      %v9087 = vadd.f32 0.0, %v9086
      %v9088 = vpop.f32.mrf.mxu0
      %v9089 = vpop.f32.mrf.mxu0
      %v9090 = vadd.f32 0.0, %v9089
      %v9091 = vpop.f32.mrf.mxu0
      %9092 = vmatprep.mubr.bf16.mxu0 0
      %9093 = vmatmul.mubr.bf16.gmra.mxu0 %v4260
      %v9094 = vpop.f32.mrf.mxu0
      %v9095 = vadd.f32 0.0, %v9094
      %v9096 = vpop.f32.mrf.mxu0
      %v9097 = vpop.f32.mrf.mxu0
      %v9098 = vadd.f32 0.0, %v9097
      %v9099 = vpop.f32.mrf.mxu0
      %9100 = vmatprep.mubr.bf16.mxu0 0
      %9101 = vmatmul.mubr.bf16.gmra.mxu0 %v4261
      %v9102 = vpop.f32.mrf.mxu0
      %v9103 = vadd.f32 0.0, %v9102
      %v9104 = vpop.f32.mrf.mxu0
      %v9105 = vpop.f32.mrf.mxu0
      %v9106 = vadd.f32 0.0, %v9105
      %v9107 = vpop.f32.mrf.mxu0
      %9108 = vmatprep.mubr.bf16.mxu0 0
      %9109 = vmatmul.mubr.bf16.gmra.mxu0 %v4262
      %v9110 = vpop.f32.mrf.mxu0
      %v9111 = vadd.f32 0.0, %v9110
      %v9112 = vpop.f32.mrf.mxu0
      %v9113 = vpop.f32.mrf.mxu0
      %v9114 = vadd.f32 0.0, %v9113
      %v9115 = vpop.f32.mrf.mxu0
      %9116 = vmatprep.mubr.bf16.mxu0 0
      %9117 = vmatmul.mubr.bf16.gmra.mxu0 %v4263
      %v9118 = vpop.f32.mrf.mxu0
      %v9119 = vadd.f32 0.0, %v9118
      %v9120 = vpop.f32.mrf.mxu0
      %v9121 = vpop.f32.mrf.mxu0
      %v9122 = vadd.f32 0.0, %v9121
      %v9123 = vpop.f32.mrf.mxu0
      %9124 = vmatprep.mubr.bf16.mxu0 0
      %9125 = vmatmul.mubr.bf16.gmra.mxu0 %v4264
      %v9126 = vpop.f32.mrf.mxu0
      %v9127 = vadd.f32 0.0, %v9126
      %v9128 = vpop.f32.mrf.mxu0
      %v9129 = vpop.f32.mrf.mxu0
      %v9130 = vadd.f32 0.0, %v9129
      %v9131 = vpop.f32.mrf.mxu0
      %9132 = vmatprep.mubr.bf16.mxu0 0
      %9133 = vmatmul.mubr.bf16.gmra.mxu0 %v4265
      %v9134 = vpop.f32.mrf.mxu0
      %v9135 = vadd.f32 0.0, %v9134
      %v9136 = vpop.f32.mrf.mxu0
      %v9137 = vpop.f32.mrf.mxu0
      %v9138 = vadd.f32 0.0, %v9137
      %v9139 = vpop.f32.mrf.mxu0
      %9140 = vmatprep.mubr.bf16.mxu0 0
      %9141 = vmatmul.mubr.bf16.gmra.mxu0 %v4266
      %v9142 = vpop.f32.mrf.mxu0
      %v9143 = vadd.f32 0.0, %v9142
      %v9144 = vpop.f32.mrf.mxu0
      %v9145 = vpop.f32.mrf.mxu0
      %v9146 = vadd.f32 0.0, %v9145
      %v9147 = vpop.f32.mrf.mxu0
      %9148 = vmatprep.mubr.bf16.mxu0 0
      %9149 = vmatmul.mubr.bf16.gmra.mxu0 %v4267
      %v9150 = vpop.f32.mrf.mxu0
      %v9151 = vadd.f32 0.0, %v9150
      %v9152 = vpop.f32.mrf.mxu0
      %v9153 = vpop.f32.mrf.mxu0
      %v9154 = vadd.f32 0.0, %v9153
      %v9155 = vpop.f32.mrf.mxu0
      %9156 = vmatprep.mubr.bf16.mxu0 0
      %9157 = vmatmul.mubr.bf16.gmra.mxu0 %v4268
      %v9158 = vpop.f32.mrf.mxu0
      %v9159 = vadd.f32 0.0, %v9158
      %v9160 = vpop.f32.mrf.mxu0
      %v9161 = vpop.f32.mrf.mxu0
      %v9162 = vadd.f32 0.0, %v9161
      %v9163 = vpop.f32.mrf.mxu0
      %9164 = vmatprep.mubr.bf16.mxu0 0
      %9165 = vmatmul.mubr.bf16.gmra.mxu0 %v4269
      %v9166 = vpop.f32.mrf.mxu0
      %v9167 = vadd.f32 0.0, %v9166
      %v9168 = vpop.f32.mrf.mxu0
      %v9169 = vpop.f32.mrf.mxu0
      %v9170 = vadd.f32 0.0, %v9169
      %v9171 = vpop.f32.mrf.mxu0
      %9172 = vmatprep.mubr.bf16.mxu0 0
      %9173 = vmatmul.mubr.bf16.gmra.mxu0 %v4270
      %v9174 = vpop.f32.mrf.mxu0
      %v9175 = vadd.f32 0.0, %v9174
      %v9176 = vpop.f32.mrf.mxu0
      %v9177 = vpop.f32.mrf.mxu0
      %v9178 = vadd.f32 0.0, %v9177
      %v9179 = vpop.f32.mrf.mxu0
      %9180 = vmatprep.mubr.bf16.mxu0 0
      %9181 = vmatmul.mubr.bf16.gmra.mxu0 %v4271
      %v9182 = vpop.f32.mrf.mxu0
      %v9183 = vadd.f32 0.0, %v9182
      %v9184 = vpop.f32.mrf.mxu0
      %v9185 = vpop.f32.mrf.mxu0
      %v9186 = vadd.f32 0.0, %v9185
      %v9187 = vpop.f32.mrf.mxu0
      %9188 = vmatprep.mubr.bf16.mxu0 0
      %9189 = vmatmul.mubr.bf16.gmra.mxu0 %v4272
      %v9190 = vpop.f32.mrf.mxu0
      %v9191 = vadd.f32 0.0, %v9190
      %v9192 = vpop.f32.mrf.mxu0
      %v9193 = vpop.f32.mrf.mxu0
      %v9194 = vadd.f32 0.0, %v9193
      %v9195 = vpop.f32.mrf.mxu0
      %9196 = vmatprep.mubr.bf16.mxu0 0
      %9197 = vmatmul.mubr.bf16.gmra.mxu0 %v4273
      %v9198 = vpop.f32.mrf.mxu0
      %v9199 = vadd.f32 0.0, %v9198
      %v9200 = vpop.f32.mrf.mxu0
      %v9201 = vpop.f32.mrf.mxu0
      %v9202 = vadd.f32 0.0, %v9201
      %v9203 = vpop.f32.mrf.mxu0
      %9204 = vmatprep.mubr.bf16.mxu0 0
      %9205 = vmatmul.mubr.bf16.gmra.mxu0 %v4274
      %v9206 = vpop.f32.mrf.mxu0
      %v9207 = vadd.f32 0.0, %v9206
      %v9208 = vpop.f32.mrf.mxu0
      %v9209 = vpop.f32.mrf.mxu0
      %v9210 = vadd.f32 0.0, %v9209
      %v9211 = vpop.f32.mrf.mxu0
      %9212 = vmatprep.mubr.bf16.mxu0 0
      %9213 = vmatmul.mubr.bf16.gmra.mxu0 %v4275
      %v9214 = vpop.f32.mrf.mxu0
      %v9215 = vadd.f32 0.0, %v9214
      %v9216 = vpop.f32.mrf.mxu0
      %v9217 = vpop.f32.mrf.mxu0
      %v9218 = vadd.f32 0.0, %v9217
      %v9219 = vpop.f32.mrf.mxu0
      %9220 = vmatprep.mubr.bf16.mxu0 0
      %9221 = vmatmul.mubr.bf16.gmra.mxu0 %v4276
      %v9222 = vpop.f32.mrf.mxu0
      %v9223 = vadd.f32 0.0, %v9222
      %v9224 = vpop.f32.mrf.mxu0
      %v9225 = vpop.f32.mrf.mxu0
      %v9226 = vadd.f32 0.0, %v9225
      %v9227 = vpop.f32.mrf.mxu0
      %9228 = vmatprep.mubr.bf16.mxu0 0
      %9229 = vmatmul.mubr.bf16.gmra.mxu0 %v4277
      %v9230 = vpop.f32.mrf.mxu0
      %v9231 = vadd.f32 0.0, %v9230
      %v9232 = vpop.f32.mrf.mxu0
      %v9233 = vpop.f32.mrf.mxu0
      %v9234 = vadd.f32 0.0, %v9233
      %v9235 = vpop.f32.mrf.mxu0
      %9236 = vmatprep.mubr.bf16.mxu0 0
      %9237 = vmatmul.mubr.bf16.gmra.mxu0 %v4278
      %v9238 = vpop.f32.mrf.mxu0
      %v9239 = vadd.f32 0.0, %v9238
      %v9240 = vpop.f32.mrf.mxu0
      %v9241 = vpop.f32.mrf.mxu0
      %v9242 = vadd.f32 0.0, %v9241
      %v9243 = vpop.f32.mrf.mxu0
      %9244 = vmatprep.mubr.bf16.mxu0 0
      %9245 = vmatmul.mubr.bf16.gmra.mxu0 %v4279
      %v9246 = vpop.f32.mrf.mxu0
      %v9247 = vadd.f32 0.0, %v9246
      %v9248 = vpop.f32.mrf.mxu0
      %v9249 = vpop.f32.mrf.mxu0
      %v9250 = vadd.f32 0.0, %v9249
      %v9251 = vpop.f32.mrf.mxu0
      %9252 = vmatprep.mubr.bf16.mxu0 0
      %9253 = vmatmul.mubr.bf16.gmra.mxu0 %v4280
      %v9254 = vpop.f32.mrf.mxu0
      %v9255 = vadd.f32 0.0, %v9254
      %v9256 = vpop.f32.mrf.mxu0
      %v9257 = vpop.f32.mrf.mxu0
      %v9258 = vadd.f32 0.0, %v9257
      %v9259 = vpop.f32.mrf.mxu0
      %9260 = vmatprep.mubr.bf16.mxu0 0
      %9261 = vmatmul.mubr.bf16.gmra.mxu0 %v4281
      %v9262 = vpop.f32.mrf.mxu0
      %v9263 = vadd.f32 0.0, %v9262
      %v9264 = vpop.f32.mrf.mxu0
      %v9265 = vpop.f32.mrf.mxu0
      %v9266 = vadd.f32 0.0, %v9265
      %v9267 = vpop.f32.mrf.mxu0
      %9268 = vmatprep.mubr.bf16.mxu0 0
      %9269 = vmatmul.mubr.bf16.gmra.mxu0 %v4282
      %v9270 = vpop.f32.mrf.mxu0
      %v9271 = vadd.f32 0.0, %v9270
      %v9272 = vpop.f32.mrf.mxu0
      %v9273 = vpop.f32.mrf.mxu0
      %v9274 = vadd.f32 0.0, %v9273
      %v9275 = vpop.f32.mrf.mxu0
      %9276 = vmatprep.mubr.bf16.mxu0 0
      %9277 = vmatmul.mubr.bf16.gmra.mxu0 %v4283
      %v9278 = vpop.f32.mrf.mxu0
      %v9279 = vadd.f32 0.0, %v9278
      %v9280 = vpop.f32.mrf.mxu0
      %v9281 = vpop.f32.mrf.mxu0
      %v9282 = vadd.f32 0.0, %v9281
      %v9283 = vpop.f32.mrf.mxu0
      %9284 = vmatprep.mubr.bf16.mxu0 0
      %9285 = vmatmul.mubr.bf16.gmra.mxu0 %v4284
      %v9286 = vpop.f32.mrf.mxu0
      %v9287 = vadd.f32 0.0, %v9286
      %v9288 = vpop.f32.mrf.mxu0
      %v9289 = vpop.f32.mrf.mxu0
      %v9290 = vadd.f32 0.0, %v9289
      %v9291 = vpop.f32.mrf.mxu0
      %9292 = vmatprep.mubr.bf16.mxu0 0
      %9293 = vmatmul.mubr.bf16.gmra.mxu0 %v4285
      %v9294 = vpop.f32.mrf.mxu0
      %v9295 = vadd.f32 0.0, %v9294
      %v9296 = vpop.f32.mrf.mxu0
      %v9297 = vpop.f32.mrf.mxu0
      %v9298 = vadd.f32 0.0, %v9297
      %v9299 = vpop.f32.mrf.mxu0
      %9300 = vmatprep.mubr.bf16.mxu0 0
      %9301 = vmatmul.mubr.bf16.gmra.mxu0 %v4286
      %v9302 = vpop.f32.mrf.mxu0
      %v9303 = vadd.f32 0.0, %v9302
      %v9304 = vpop.f32.mrf.mxu0
      %v9305 = vpop.f32.mrf.mxu0
      %v9306 = vadd.f32 0.0, %v9305
      %v9307 = vpop.f32.mrf.mxu0
      %9308 = vmatprep.mubr.bf16.mxu0 0
      %9309 = vmatmul.mubr.bf16.gmra.mxu0 %v4287
      %v9310 = vpop.f32.mrf.mxu0
      %v9311 = vadd.f32 0.0, %v9310
      %v9312 = vpop.f32.mrf.mxu0
      %v9313 = vpop.f32.mrf.mxu0
      %v9314 = vadd.f32 0.0, %v9313
      %v9315 = vpop.f32.mrf.mxu0
      %9316 = vmatprep.mubr.bf16.mxu0 0
      %9317 = vmatmul.mubr.bf16.gmra.mxu0 %v4288
      %v9318 = vpop.f32.mrf.mxu0
      %v9319 = vadd.f32 0.0, %v9318
      %v9320 = vpop.f32.mrf.mxu0
      %v9321 = vpop.f32.mrf.mxu0
      %v9322 = vadd.f32 0.0, %v9321
      %v9323 = vpop.f32.mrf.mxu0
      %9324 = vmatprep.mubr.bf16.mxu0 0
      %9325 = vmatmul.mubr.bf16.gmra.mxu0 %v4289
      %v9326 = vpop.f32.mrf.mxu0
      %v9327 = vadd.f32 0.0, %v9326
      %v9328 = vpop.f32.mrf.mxu0
      %v9329 = vpop.f32.mrf.mxu0
      %v9330 = vadd.f32 0.0, %v9329
      %v9331 = vpop.f32.mrf.mxu0
      %9332 = vmatprep.mubr.bf16.mxu0 0
      %9333 = vmatmul.mubr.bf16.gmra.mxu0 %v4290
      %v9334 = vpop.f32.mrf.mxu0
      %v9335 = vadd.f32 0.0, %v9334
      %v9336 = vpop.f32.mrf.mxu0
      %v9337 = vpop.f32.mrf.mxu0
      %v9338 = vadd.f32 0.0, %v9337
      %v9339 = vpop.f32.mrf.mxu0
      %9340 = vmatprep.mubr.bf16.mxu0 0
      %9341 = vmatmul.mubr.bf16.gmra.mxu0 %v4291
      %v9342 = vpop.f32.mrf.mxu0
      %v9343 = vadd.f32 0.0, %v9342
      %v9344 = vpop.f32.mrf.mxu0
      %v9345 = vpop.f32.mrf.mxu0
      %v9346 = vadd.f32 0.0, %v9345
      %v9347 = vpop.f32.mrf.mxu0
      %9348 = vmatprep.mubr.bf16.mxu0 0
      %9349 = vmatmul.mubr.bf16.gmra.mxu0 %v4292
      %v9350 = vpop.f32.mrf.mxu0
      %v9351 = vadd.f32 0.0, %v9350
      %v9352 = vpop.f32.mrf.mxu0
      %v9353 = vpop.f32.mrf.mxu0
      %v9354 = vadd.f32 0.0, %v9353
      %v9355 = vpop.f32.mrf.mxu0
      %9356 = vmatprep.mubr.bf16.mxu0 0
      %9357 = vmatmul.mubr.bf16.gmra.mxu0 %v4293
      %v9358 = vpop.f32.mrf.mxu0
      %v9359 = vadd.f32 0.0, %v9358
      %v9360 = vpop.f32.mrf.mxu0
      %v9361 = vpop.f32.mrf.mxu0
      %v9362 = vadd.f32 0.0, %v9361
      %v9363 = vpop.f32.mrf.mxu0
      %9364 = vmatprep.mubr.bf16.mxu0 0
      %9365 = vmatmul.mubr.bf16.gmra.mxu0 %v4294
      %v9366 = vpop.f32.mrf.mxu0
      %v9367 = vadd.f32 0.0, %v9366
      %v9368 = vpop.f32.mrf.mxu0
      %v9369 = vpop.f32.mrf.mxu0
      %v9370 = vadd.f32 0.0, %v9369
      %v9371 = vpop.f32.mrf.mxu0
      %9372 = vmatprep.mubr.bf16.mxu0 0
      %9373 = vmatmul.mubr.bf16.gmra.mxu0 %v4295
      %v9374 = vpop.f32.mrf.mxu0
      %v9375 = vadd.f32 0.0, %v9374
      %v9376 = vpop.f32.mrf.mxu0
      %v9377 = vpop.f32.mrf.mxu0
      %v9378 = vadd.f32 0.0, %v9377
      %v9379 = vpop.f32.mrf.mxu0
      %9380 = vmatprep.mubr.bf16.mxu0 0
      %9381 = vmatmul.mubr.bf16.gmra.mxu0 %v4296
      %v9382 = vpop.f32.mrf.mxu0
      %v9383 = vadd.f32 0.0, %v9382
      %v9384 = vpop.f32.mrf.mxu0
      %v9385 = vpop.f32.mrf.mxu0
      %v9386 = vadd.f32 0.0, %v9385
      %v9387 = vpop.f32.mrf.mxu0
      %9388 = vmatprep.mubr.bf16.mxu0 0
      %9389 = vmatmul.mubr.bf16.gmra.mxu0 %v4297
      %v9390 = vpop.f32.mrf.mxu0
      %v9391 = vadd.f32 0.0, %v9390
      %v9392 = vpop.f32.mrf.mxu0
      %v9393 = vpop.f32.mrf.mxu0
      %v9394 = vadd.f32 0.0, %v9393
      %v9395 = vpop.f32.mrf.mxu0
      %9396 = vmatprep.mubr.bf16.mxu0 0
      %9397 = vmatmul.mubr.bf16.gmra.mxu0 %v4298
      %v9398 = vpop.f32.mrf.mxu0
      %v9399 = vadd.f32 0.0, %v9398
      %v9400 = vpop.f32.mrf.mxu0
      %v9401 = vpop.f32.mrf.mxu0
      %v9402 = vadd.f32 0.0, %v9401
      %v9403 = vpop.f32.mrf.mxu0
      %9404 = vmatprep.mubr.bf16.mxu0 0
      %9405 = vmatmul.mubr.bf16.gmra.mxu0 %v4299
      %v9406 = vpop.f32.mrf.mxu0
      %v9407 = vadd.f32 0.0, %v9406
      %v9408 = vpop.f32.mrf.mxu0
      %v9409 = vpop.f32.mrf.mxu0
      %v9410 = vadd.f32 0.0, %v9409
      %v9411 = vpop.f32.mrf.mxu0
      %9412 = vmatprep.mubr.bf16.mxu0 0
      %9413 = vmatmul.mubr.bf16.gmra.mxu0 %v4300
      %v9414 = vpop.f32.mrf.mxu0
      %v9415 = vadd.f32 0.0, %v9414
      %v9416 = vpop.f32.mrf.mxu0
      %v9417 = vpop.f32.mrf.mxu0
      %v9418 = vadd.f32 0.0, %v9417
      %v9419 = vpop.f32.mrf.mxu0
      %9420 = vmatprep.mubr.bf16.mxu0 0
      %9421 = vmatmul.mubr.bf16.gmra.mxu0 %v4301
      %v9422 = vpop.f32.mrf.mxu0
      %v9423 = vadd.f32 0.0, %v9422
      %v9424 = vpop.f32.mrf.mxu0
      %v9425 = vpop.f32.mrf.mxu0
      %v9426 = vadd.f32 0.0, %v9425
      %v9427 = vpop.f32.mrf.mxu0
      %9428 = vmatprep.mubr.bf16.mxu0 0
      %9429 = vmatmul.mubr.bf16.gmra.mxu0 %v4302
      %v9430 = vpop.f32.mrf.mxu0
      %v9431 = vadd.f32 0.0, %v9430
      %v9432 = vpop.f32.mrf.mxu0
      %v9433 = vpop.f32.mrf.mxu0
      %v9434 = vadd.f32 0.0, %v9433
      %v9435 = vpop.f32.mrf.mxu0
      %9436 = vmatprep.mubr.bf16.mxu0 0
      %9437 = vmatmul.mubr.bf16.gmra.mxu0 %v4303
      %v9438 = vpop.f32.mrf.mxu0
      %v9439 = vadd.f32 0.0, %v9438
      %v9440 = vpop.f32.mrf.mxu0
      %v9441 = vpop.f32.mrf.mxu0
      %v9442 = vadd.f32 0.0, %v9441
      %v9443 = vpop.f32.mrf.mxu0
      %9444 = vmatprep.mubr.bf16.mxu0 0
      %9445 = vmatmul.mubr.bf16.gmra.mxu0 %v4304
      %v9446 = vpop.f32.mrf.mxu0
      %v9447 = vadd.f32 0.0, %v9446
      %v9448 = vpop.f32.mrf.mxu0
      %v9449 = vpop.f32.mrf.mxu0
      %v9450 = vadd.f32 0.0, %v9449
      %v9451 = vpop.f32.mrf.mxu0
      %9452 = vmatprep.mubr.bf16.mxu0 0
      %9453 = vmatmul.mubr.bf16.gmra.mxu0 %v4305
      %v9454 = vpop.f32.mrf.mxu0
      %v9455 = vadd.f32 0.0, %v9454
      %v9456 = vpop.f32.mrf.mxu0
      %v9457 = vpop.f32.mrf.mxu0
      %v9458 = vadd.f32 0.0, %v9457
      %v9459 = vpop.f32.mrf.mxu0
      %9460 = vmatprep.mubr.bf16.mxu0 0
      %9461 = vmatmul.mubr.bf16.gmra.mxu0 %v4306
      %v9462 = vpop.f32.mrf.mxu0
      %v9463 = vadd.f32 0.0, %v9462
      %v9464 = vpop.f32.mrf.mxu0
      %v9465 = vpop.f32.mrf.mxu0
      %v9466 = vadd.f32 0.0, %v9465
      %v9467 = vpop.f32.mrf.mxu0
      %9468 = vmatprep.mubr.bf16.mxu0 0
      %9469 = vmatmul.mubr.bf16.gmra.mxu0 %v4307
      %v9470 = vpop.f32.mrf.mxu0
      %v9471 = vadd.f32 0.0, %v9470
      %v9472 = vpop.f32.mrf.mxu0
      %v9473 = vpop.f32.mrf.mxu0
      %v9474 = vadd.f32 0.0, %v9473
      %v9475 = vpop.f32.mrf.mxu0
      %9476 = vmatprep.mubr.bf16.mxu0 0
      %9477 = vmatmul.mubr.bf16.gmra.mxu0 %v4308
      %v9478 = vpop.f32.mrf.mxu0
      %v9479 = vadd.f32 0.0, %v9478
      %v9480 = vpop.f32.mrf.mxu0
      %v9481 = vpop.f32.mrf.mxu0
      %v9482 = vadd.f32 0.0, %v9481
      %v9483 = vpop.f32.mrf.mxu0
      %9484 = vmatprep.mubr.bf16.mxu0 0
      %9485 = vmatmul.mubr.bf16.gmra.mxu0 %v4309
      %v9486 = vpop.f32.mrf.mxu0
      %v9487 = vadd.f32 0.0, %v9486
      %v9488 = vpop.f32.mrf.mxu0
      %v9489 = vpop.f32.mrf.mxu0
      %v9490 = vadd.f32 0.0, %v9489
      %v9491 = vpop.f32.mrf.mxu0
      %9492 = vmatprep.mubr.bf16.mxu0 0
      %9493 = vmatmul.mubr.bf16.gmra.mxu0 %v4310
      %v9494 = vpop.f32.mrf.mxu0
      %v9495 = vadd.f32 0.0, %v9494
      %v9496 = vpop.f32.mrf.mxu0
      %v9497 = vpop.f32.mrf.mxu0
      %v9498 = vadd.f32 0.0, %v9497
      %v9499 = vpop.f32.mrf.mxu0
      %9500 = vmatprep.mubr.bf16.mxu0 0
      %9501 = vmatmul.mubr.bf16.gmra.mxu0 %v4311
      %v9502 = vpop.f32.mrf.mxu0
      %v9503 = vadd.f32 0.0, %v9502
      %v9504 = vpop.f32.mrf.mxu0
      %v9505 = vpop.f32.mrf.mxu0
      %v9506 = vadd.f32 0.0, %v9505
      %v9507 = vpop.f32.mrf.mxu0
      %9508 = vmatprep.mubr.bf16.mxu0 0
      %9509 = vmatmul.mubr.bf16.gmra.mxu0 %v4312
      %v9510 = vpop.f32.mrf.mxu0
      %v9511 = vadd.f32 0.0, %v9510
      %v9512 = vpop.f32.mrf.mxu0
      %v9513 = vpop.f32.mrf.mxu0
      %v9514 = vadd.f32 0.0, %v9513
      %v9515 = vpop.f32.mrf.mxu0
      %9516 = vmatprep.mubr.bf16.mxu0 0
      %9517 = vmatmul.mubr.bf16.gmra.mxu0 %v4313
      %v9518 = vpop.f32.mrf.mxu0
      %v9519 = vadd.f32 0.0, %v9518
      %v9520 = vpop.f32.mrf.mxu0
      %v9521 = vpop.f32.mrf.mxu0
      %v9522 = vadd.f32 0.0, %v9521
      %v9523 = vpop.f32.mrf.mxu0
      %9524 = vmatprep.mubr.bf16.mxu0 0
      %9525 = vmatmul.mubr.bf16.gmra.mxu0 %v4314
      %v9526 = vpop.f32.mrf.mxu0
      %v9527 = vadd.f32 0.0, %v9526
      %v9528 = vpop.f32.mrf.mxu0
      %v9529 = vpop.f32.mrf.mxu0
      %v9530 = vadd.f32 0.0, %v9529
      %v9531 = vpop.f32.mrf.mxu0
      %9532 = vmatprep.mubr.bf16.mxu0 0
      %9533 = vmatmul.mubr.bf16.gmra.mxu0 %v4315
      %v9534 = vpop.f32.mrf.mxu0
      %v9535 = vadd.f32 0.0, %v9534
      %v9536 = vpop.f32.mrf.mxu0
      %v9537 = vpop.f32.mrf.mxu0
      %v9538 = vadd.f32 0.0, %v9537
      %v9539 = vpop.f32.mrf.mxu0
      %9540 = vmatprep.mubr.bf16.mxu0 0
      %9541 = vmatmul.mubr.bf16.gmra.mxu0 %v6676
      %v9542 = vpop.f32.mrf.mxu0
      %v9543 = vadd.f32 0.0, %v9542
      %v9544 = vpop.f32.mrf.mxu0
      %v9545 = vpop.f32.mrf.mxu0
      %v9546 = vadd.f32 0.0, %v9545
      %v9547 = vpop.f32.mrf.mxu0
      %9548 = vmatprep.mubr.bf16.mxu0 0
      %9549 = vmatmul.mubr.bf16.gmra.mxu0 %v6677
      %v9550 = vpop.f32.mrf.mxu0
      %v9551 = vadd.f32 0.0, %v9550
      %v9552 = vpop.f32.mrf.mxu0
      %v9553 = vpop.f32.mrf.mxu0
      %v9554 = vadd.f32 0.0, %v9553
      %v9555 = vpop.f32.mrf.mxu0
      %9556 = vmatprep.mubr.bf16.mxu0 0
      %9557 = vmatmul.mubr.bf16.gmra.mxu0 %v8976
      %v9558 = vpop.f32.mrf.mxu0
      %v9559 = vadd.f32 0.0, %v9558
      %v9560 = vpop.f32.mrf.mxu0
      %v9561 = vpop.f32.mrf.mxu0
      %v9562 = vadd.f32 0.0, %v9561
      %v9563 = vpop.f32.mrf.mxu0
      %9564 = vmatprep.mubr.bf16.mxu0 0
      %9565 = vmatmul.mubr.bf16.gmra.mxu0 %v8977
      %v9566 = vpop.f32.mrf.mxu0
      %v9567 = vadd.f32 0.0, %v9566
      %v9568 = vpop.f32.mrf.mxu0
      %v9569 = vpop.f32.mrf.mxu0
      %v9570 = vadd.f32 0.0, %v9569
      %v9571 = vpop.f32.mrf.mxu0
      %9572 = vdwg.mxu0
      %v9573 = vadd.f32 %v8813, %v9063
      %v9574 = vadd.f32 %v8814, %v9066
      %v9575 = vadd.f32 %v8815, %v9071
      %v9576 = vadd.f32 %v8816, %v9074
      %v9577 = vadd.f32 %v8817, %v9079
      %v9578 = vadd.f32 %v8818, %v9082
      %v9579 = vadd.f32 %v8819, %v9087
      %v9580 = vadd.f32 %v8820, %v9090
      %v9581 = vadd.f32 %v8821, %v9095
      %v9582 = vadd.f32 %v8822, %v9098
      %v9583 = vadd.f32 %v8823, %v9103
      %v9584 = vadd.f32 %v8824, %v9106
      %v9585 = vadd.f32 %v8825, %v9111
      %v9586 = vadd.f32 %v8826, %v9114
      %v9587 = vadd.f32 %v8827, %v9119
      %v9588 = vadd.f32 %v8828, %v9122
      %v9589 = vadd.f32 %v8829, %v9127
      %v9590 = vadd.f32 %v8830, %v9130
      %v9591 = vadd.f32 %v8831, %v9135
      %v9592 = vadd.f32 %v8832, %v9138
      %v9593 = vadd.f32 %v8833, %v9143
      %v9594 = vadd.f32 %v8834, %v9146
      %v9595 = vadd.f32 %v8835, %v9151
      %v9596 = vadd.f32 %v8836, %v9154
      %v9597 = vadd.f32 %v8837, %v9159
      %v9598 = vadd.f32 %v8838, %v9162
      %v9599 = vadd.f32 %v8839, %v9167
      %v9600 = vadd.f32 %v8840, %v9170
      %v9601 = vadd.f32 %v8841, %v9175
      %v9602 = vadd.f32 %v8842, %v9178
      %v9603 = vadd.f32 %v8843, %v9183
      %v9604 = vadd.f32 %v8844, %v9186
      %v9605 = vadd.f32 %v8845, %v9191
      %v9606 = vadd.f32 %v8846, %v9194
      %v9607 = vadd.f32 %v8847, %v9199
      %v9608 = vadd.f32 %v8848, %v9202
      %v9609 = vadd.f32 %v8849, %v9207
      %v9610 = vadd.f32 %v8850, %v9210
      %v9611 = vadd.f32 %v8851, %v9215
      %v9612 = vadd.f32 %v8852, %v9218
      %v9613 = vadd.f32 %v8853, %v9223
      %v9614 = vadd.f32 %v8854, %v9226
      %v9615 = vadd.f32 %v8855, %v9231
      %v9616 = vadd.f32 %v8856, %v9234
      %v9617 = vadd.f32 %v8857, %v9239
      %v9618 = vadd.f32 %v8858, %v9242
      %v9619 = vadd.f32 %v8859, %v9247
      %v9620 = vadd.f32 %v8860, %v9250
      %v9621 = vadd.f32 %v8861, %v9255
      %v9622 = vadd.f32 %v8862, %v9258
      %v9623 = vadd.f32 %v8863, %v9263
      %v9624 = vadd.f32 %v8864, %v9266
      %v9625 = vadd.f32 %v8865, %v9271
      %v9626 = vadd.f32 %v8866, %v9274
      %v9627 = vadd.f32 %v8867, %v9279
      %v9628 = vadd.f32 %v8868, %v9282
      %v9629 = vadd.f32 %v8869, %v9287
      %v9630 = vadd.f32 %v8870, %v9290
      %v9631 = vadd.f32 %v8871, %v9295
      %v9632 = vadd.f32 %v8872, %v9298
      %v9633 = vadd.f32 %v8873, %v9303
      %v9634 = vadd.f32 %v8874, %v9306
      %v9635 = vadd.f32 %v8875, %v9311
      %v9636 = vadd.f32 %v8876, %v9314
      %v9637 = vadd.f32 %v8877, %v9319
      %v9638 = vadd.f32 %v8878, %v9322
      %v9639 = vadd.f32 %v8879, %v9327
      %v9640 = vadd.f32 %v8880, %v9330
      %v9641 = vadd.f32 %v8881, %v9335
      %v9642 = vadd.f32 %v8882, %v9338
      %v9643 = vadd.f32 %v8883, %v9343
      %v9644 = vadd.f32 %v8884, %v9346
      %v9645 = vadd.f32 %v8885, %v9351
      %v9646 = vadd.f32 %v8886, %v9354
      %v9647 = vadd.f32 %v8887, %v9359
      %v9648 = vadd.f32 %v8888, %v9362
      %v9649 = vadd.f32 %v8889, %v9367
      %v9650 = vadd.f32 %v8890, %v9370
      %v9651 = vadd.f32 %v8891, %v9375
      %v9652 = vadd.f32 %v8892, %v9378
      %v9653 = vadd.f32 %v8893, %v9383
      %v9654 = vadd.f32 %v8894, %v9386
      %v9655 = vadd.f32 %v8895, %v9391
      %v9656 = vadd.f32 %v8896, %v9394
      %v9657 = vadd.f32 %v8897, %v9399
      %v9658 = vadd.f32 %v8898, %v9402
      %v9659 = vadd.f32 %v8899, %v9407
      %v9660 = vadd.f32 %v8900, %v9410
      %v9661 = vadd.f32 %v8901, %v9415
      %v9662 = vadd.f32 %v8902, %v9418
      %v9663 = vadd.f32 %v8903, %v9423
      %v9664 = vadd.f32 %v8904, %v9426
      %v9665 = vadd.f32 %v8905, %v9431
      %v9666 = vadd.f32 %v8906, %v9434
      %v9667 = vadd.f32 %v8907, %v9439
      %v9668 = vadd.f32 %v8908, %v9442
      %v9669 = vadd.f32 %v8909, %v9447
      %v9670 = vadd.f32 %v8910, %v9450
      %v9671 = vadd.f32 %v8911, %v9455
      %v9672 = vadd.f32 %v8912, %v9458
      %v9673 = vadd.f32 %v8913, %v9463
      %v9674 = vadd.f32 %v8914, %v9466
      %v9675 = vadd.f32 %v8915, %v9471
      %v9676 = vadd.f32 %v8916, %v9474
      %v9677 = vadd.f32 %v8917, %v9479
      %v9678 = vadd.f32 %v8918, %v9482
      %v9679 = vadd.f32 %v8919, %v9487
      %v9680 = vadd.f32 %v8920, %v9490
      %v9681 = vadd.f32 %v8921, %v9495
      %v9682 = vadd.f32 %v8922, %v9498
      %v9683 = vadd.f32 %v8923, %v9503
      %v9684 = vadd.f32 %v8924, %v9506
      %v9685 = vadd.f32 %v8925, %v9511
      %v9686 = vadd.f32 %v8926, %v9514
      %v9687 = vadd.f32 %v8927, %v9519
      %v9688 = vadd.f32 %v8928, %v9522
      %v9689 = vadd.f32 %v8929, %v9527
      %v9690 = vadd.f32 %v8930, %v9530
      %v9691 = vadd.f32 %v8931, %v9535
      %v9692 = vadd.f32 %v8932, %v9538
      %v9693 = vadd.f32 %v8933, %v9543
      %v9694 = vadd.f32 %v8934, %v9546
      %v9695 = vadd.f32 %v8935, %v9551
      %v9696 = vadd.f32 %v8936, %v9554
      %v9697 = vadd.f32 %v8937, %v9559
      %v9698 = vadd.f32 %v8938, %v9562
      %v9699 = vadd.f32 %v8939, %v9567
      %v9700 = vadd.f32 %v8940, %v9570
      %9701 = vst [vmem:[%s208] sm:$0xff] %v9573
      %9702 = vst [vmem:[%s208 + $0x8] sm:$0xff] %v9574
      %9703 = vst [vmem:[%s208 + $0x10] sm:$0xff] %v9575
      %9704 = vst [vmem:[%s208 + $0x18] sm:$0xff] %v9576
      %9705 = vst [vmem:[%s208 + $0x20] sm:$0xff] %v9577
      %9706 = vst [vmem:[%s208 + $0x28] sm:$0xff] %v9578
      %9707 = vst [vmem:[%s208 + $0x30] sm:$0xff] %v9579
      %9708 = vst [vmem:[%s208 + $0x38] sm:$0xff] %v9580
      %9709 = vst [vmem:[%s208 + $0x40] sm:$0xff] %v9581
      %9710 = vst [vmem:[%s208 + $0x48] sm:$0xff] %v9582
      %9711 = vst [vmem:[%s208 + $0x50] sm:$0xff] %v9583
      %9712 = vst [vmem:[%s208 + $0x58] sm:$0xff] %v9584
      %9713 = vst [vmem:[%s208 + $0x60] sm:$0xff] %v9585
      %9714 = vst [vmem:[%s208 + $0x68] sm:$0xff] %v9586
      %9715 = vst [vmem:[%s208 + $0x70] sm:$0xff] %v9587
      %9716 = vst [vmem:[%s208 + $0x78] sm:$0xff] %v9588
      %9717 = vst [vmem:[%s208 + $0x80] sm:$0xff] %v9589
      %9718 = vst [vmem:[%s208 + $0x88] sm:$0xff] %v9590
      %9719 = vst [vmem:[%s208 + $0x90] sm:$0xff] %v9591
      %9720 = vst [vmem:[%s208 + $0x98] sm:$0xff] %v9592
      %9721 = vst [vmem:[%s208 + $0xa0] sm:$0xff] %v9593
      %9722 = vst [vmem:[%s208 + $0xa8] sm:$0xff] %v9594
      %9723 = vst [vmem:[%s208 + $0xb0] sm:$0xff] %v9595
      %9724 = vst [vmem:[%s208 + $0xb8] sm:$0xff] %v9596
      %9725 = vst [vmem:[%s208 + $0xc0] sm:$0xff] %v9597
      %9726 = vst [vmem:[%s208 + $0xc8] sm:$0xff] %v9598
      %9727 = vst [vmem:[%s208 + $0xd0] sm:$0xff] %v9599
      %9728 = vst [vmem:[%s208 + $0xd8] sm:$0xff] %v9600
      %9729 = vst [vmem:[%s208 + $0xe0] sm:$0xff] %v9601
      %9730 = vst [vmem:[%s208 + $0xe8] sm:$0xff] %v9602
      %9731 = vst [vmem:[%s208 + $0xf0] sm:$0xff] %v9603
      %9732 = vst [vmem:[%s208 + $0xf8] sm:$0xff] %v9604
      %9733 = vst [vmem:[%s208 + $0x100] sm:$0xff] %v9605
      %9734 = vst [vmem:[%s208 + $0x108] sm:$0xff] %v9606
      %9735 = vst [vmem:[%s208 + $0x110] sm:$0xff] %v9607
      %9736 = vst [vmem:[%s208 + $0x118] sm:$0xff] %v9608
      %9737 = vst [vmem:[%s208 + $0x120] sm:$0xff] %v9609
      %9738 = vst [vmem:[%s208 + $0x128] sm:$0xff] %v9610
      %9739 = vst [vmem:[%s208 + $0x130] sm:$0xff] %v9611
      %9740 = vst [vmem:[%s208 + $0x138] sm:$0xff] %v9612
      %9741 = vst [vmem:[%s208 + $0x140] sm:$0xff] %v9613
      %9742 = vst [vmem:[%s208 + $0x148] sm:$0xff] %v9614
      %9743 = vst [vmem:[%s208 + $0x150] sm:$0xff] %v9615
      %9744 = vst [vmem:[%s208 + $0x158] sm:$0xff] %v9616
      %9745 = vst [vmem:[%s208 + $0x160] sm:$0xff] %v9617
      %9746 = vst [vmem:[%s208 + $0x168] sm:$0xff] %v9618
      %9747 = vst [vmem:[%s208 + $0x170] sm:$0xff] %v9619
      %9748 = vst [vmem:[%s208 + $0x178] sm:$0xff] %v9620
      %9749 = vst [vmem:[%s208 + $0x180] sm:$0xff] %v9621
      %9750 = vst [vmem:[%s208 + $0x188] sm:$0xff] %v9622
      %9751 = vst [vmem:[%s208 + $0x190] sm:$0xff] %v9623
      %9752 = vst [vmem:[%s208 + $0x198] sm:$0xff] %v9624
      %9753 = vst [vmem:[%s208 + $0x1a0] sm:$0xff] %v9625
      %9754 = vst [vmem:[%s208 + $0x1a8] sm:$0xff] %v9626
      %9755 = vst [vmem:[%s208 + $0x1b0] sm:$0xff] %v9627
      %9756 = vst [vmem:[%s208 + $0x1b8] sm:$0xff] %v9628
      %9757 = vst [vmem:[%s208 + $0x1c0] sm:$0xff] %v9629
      %9758 = vst [vmem:[%s208 + $0x1c8] sm:$0xff] %v9630
      %9759 = vst [vmem:[%s208 + $0x1d0] sm:$0xff] %v9631
      %9760 = vst [vmem:[%s208 + $0x1d8] sm:$0xff] %v9632
      %9761 = vst [vmem:[%s208 + $0x1e0] sm:$0xff] %v9633
      %9762 = vst [vmem:[%s208 + $0x1e8] sm:$0xff] %v9634
      %9763 = vst [vmem:[%s208 + $0x1f0] sm:$0xff] %v9635
      %9764 = vst [vmem:[%s208 + $0x1f8] sm:$0xff] %v9636
      %9765 = vst [vmem:[%s208 + $0x200] sm:$0xff] %v9637
      %9766 = vst [vmem:[%s208 + $0x208] sm:$0xff] %v9638
      %9767 = vst [vmem:[%s208 + $0x210] sm:$0xff] %v9639
      %9768 = vst [vmem:[%s208 + $0x218] sm:$0xff] %v9640
      %9769 = vst [vmem:[%s208 + $0x220] sm:$0xff] %v9641
      %9770 = vst [vmem:[%s208 + $0x228] sm:$0xff] %v9642
      %9771 = vst [vmem:[%s208 + $0x230] sm:$0xff] %v9643
      %9772 = vst [vmem:[%s208 + $0x238] sm:$0xff] %v9644
      %9773 = vst [vmem:[%s208 + $0x240] sm:$0xff] %v9645
      %9774 = vst [vmem:[%s208 + $0x248] sm:$0xff] %v9646
      %9775 = vst [vmem:[%s208 + $0x250] sm:$0xff] %v9647
      %9776 = vst [vmem:[%s208 + $0x258] sm:$0xff] %v9648
      %9777 = vst [vmem:[%s208 + $0x260] sm:$0xff] %v9649
      %9778 = vst [vmem:[%s208 + $0x268] sm:$0xff] %v9650
      %9779 = vst [vmem:[%s208 + $0x270] sm:$0xff] %v9651
      %9780 = vst [vmem:[%s208 + $0x278] sm:$0xff] %v9652
      %9781 = vst [vmem:[%s208 + $0x280] sm:$0xff] %v9653
      %9782 = vst [vmem:[%s208 + $0x288] sm:$0xff] %v9654
      %9783 = vst [vmem:[%s208 + $0x290] sm:$0xff] %v9655
      %9784 = vst [vmem:[%s208 + $0x298] sm:$0xff] %v9656
      %9785 = vst [vmem:[%s208 + $0x2a0] sm:$0xff] %v9657
      %9786 = vst [vmem:[%s208 + $0x2a8] sm:$0xff] %v9658
      %9787 = vst [vmem:[%s208 + $0x2b0] sm:$0xff] %v9659
      %9788 = vst [vmem:[%s208 + $0x2b8] sm:$0xff] %v9660
      %9789 = vst [vmem:[%s208 + $0x2c0] sm:$0xff] %v9661
      %9790 = vst [vmem:[%s208 + $0x2c8] sm:$0xff] %v9662
      %9791 = vst [vmem:[%s208 + $0x2d0] sm:$0xff] %v9663
      %9792 = vst [vmem:[%s208 + $0x2d8] sm:$0xff] %v9664
      %9793 = vst [vmem:[%s208 + $0x2e0] sm:$0xff] %v9665
      %9794 = vst [vmem:[%s208 + $0x2e8] sm:$0xff] %v9666
      %9795 = vst [vmem:[%s208 + $0x2f0] sm:$0xff] %v9667
      %9796 = vst [vmem:[%s208 + $0x2f8] sm:$0xff] %v9668
      %9797 = vst [vmem:[%s208 + $0x300] sm:$0xff] %v9669
      %9798 = vst [vmem:[%s208 + $0x308] sm:$0xff] %v9670
      %9799 = vst [vmem:[%s208 + $0x310] sm:$0xff] %v9671
      %9800 = vst [vmem:[%s208 + $0x318] sm:$0xff] %v9672
      %9801 = vst [vmem:[%s208 + $0x320] sm:$0xff] %v9673
      %9802 = vst [vmem:[%s208 + $0x328] sm:$0xff] %v9674
      %9803 = vst [vmem:[%s208 + $0x330] sm:$0xff] %v9675
      %9804 = vst [vmem:[%s208 + $0x338] sm:$0xff] %v9676
      %9805 = vst [vmem:[%s208 + $0x340] sm:$0xff] %v9677
      %9806 = vst [vmem:[%s208 + $0x348] sm:$0xff] %v9678
      %9807 = vst [vmem:[%s208 + $0x350] sm:$0xff] %v9679
      %9808 = vst [vmem:[%s208 + $0x358] sm:$0xff] %v9680
      %9809 = vst [vmem:[%s208 + $0x360] sm:$0xff] %v9681
      %9810 = vst [vmem:[%s208 + $0x368] sm:$0xff] %v9682
      %9811 = vst [vmem:[%s208 + $0x370] sm:$0xff] %v9683
      %9812 = vst [vmem:[%s208 + $0x378] sm:$0xff] %v9684
      %9813 = vst [vmem:[%s208 + $0x380] sm:$0xff] %v9685
      %9814 = vst [vmem:[%s208 + $0x388] sm:$0xff] %v9686
      %9815 = vst [vmem:[%s208 + $0x390] sm:$0xff] %v9687
      %9816 = vst [vmem:[%s208 + $0x398] sm:$0xff] %v9688
      %9817 = vst [vmem:[%s208 + $0x3a0] sm:$0xff] %v9689
      %9818 = vst [vmem:[%s208 + $0x3a8] sm:$0xff] %v9690
      %9819 = vst [vmem:[%s208 + $0x3b0] sm:$0xff] %v9691
      %9820 = vst [vmem:[%s208 + $0x3b8] sm:$0xff] %v9692
      %9821 = vst [vmem:[%s208 + $0x3c0] sm:$0xff] %v9693
      %9822 = vst [vmem:[%s208 + $0x3c8] sm:$0xff] %v9694
      %9823 = vst [vmem:[%s208 + $0x3d0] sm:$0xff] %v9695
      %9824 = vst [vmem:[%s208 + $0x3d8] sm:$0xff] %v9696
      %9825 = vst [vmem:[%s208 + $0x3e0] sm:$0xff] %v9697
      %9826 = vst [vmem:[%s208 + $0x3e8] sm:$0xff] %v9698
      %9827 = vst [vmem:[%s208 + $0x3f0] sm:$0xff] %v9699
      %9828 = vst [vmem:[%s208 + $0x3f8] sm:$0xff] %v9700
      %v9829 = vadd.f32 %v9573, %v9574
      %v9830 = vadd.f32 %v9829, %v9575
      %v9831 = vadd.f32 %v9830, %v9576
      %v9832 = vadd.f32 %v9831, %v9577
      %v9833 = vadd.f32 %v9832, %v9578
      %v9834 = vadd.f32 %v9833, %v9579
      %v9835 = vadd.f32 %v9834, %v9580
      %v9836 = vadd.f32 %v9835, %v9581
      %v9837 = vadd.f32 %v9836, %v9582
      %v9838 = vadd.f32 %v9837, %v9583
      %v9839 = vadd.f32 %v9838, %v9584
      %v9840 = vadd.f32 %v9839, %v9585
      %v9841 = vadd.f32 %v9840, %v9586
      %v9842 = vadd.f32 %v9841, %v9587
      %v9843 = vadd.f32 %v9842, %v9588
      %v9844 = vadd.f32 %v9843, %v9589
      %v9845 = vadd.f32 %v9844, %v9590
      %v9846 = vadd.f32 %v9845, %v9591
      %v9847 = vadd.f32 %v9846, %v9592
      %v9848 = vadd.f32 %v9847, %v9593
      %v9849 = vadd.f32 %v9848, %v9594
      %v9850 = vadd.f32 %v9849, %v9595
      %v9851 = vadd.f32 %v9850, %v9596
      %v9852 = vadd.f32 %v9851, %v9597
      %v9853 = vadd.f32 %v9852, %v9598
      %v9854 = vadd.f32 %v9853, %v9599
      %v9855 = vadd.f32 %v9854, %v9600
      %v9856 = vadd.f32 %v9855, %v9601
      %v9857 = vadd.f32 %v9856, %v9602
      %v9858 = vadd.f32 %v9857, %v9603
      %v9859 = vadd.f32 %v9858, %v9604
      %v9860 = vadd.f32 %v9859, %v9605
      %v9861 = vadd.f32 %v9860, %v9606
      %v9862 = vadd.f32 %v9861, %v9607
      %v9863 = vadd.f32 %v9862, %v9608
      %v9864 = vadd.f32 %v9863, %v9609
      %v9865 = vadd.f32 %v9864, %v9610
      %v9866 = vadd.f32 %v9865, %v9611
      %v9867 = vadd.f32 %v9866, %v9612
      %v9868 = vadd.f32 %v9867, %v9613
      %v9869 = vadd.f32 %v9868, %v9614
      %v9870 = vadd.f32 %v9869, %v9615
      %v9871 = vadd.f32 %v9870, %v9616
      %v9872 = vadd.f32 %v9871, %v9617
      %v9873 = vadd.f32 %v9872, %v9618
      %v9874 = vadd.f32 %v9873, %v9619
      %v9875 = vadd.f32 %v9874, %v9620
      %v9876 = vadd.f32 %v9875, %v9621
      %v9877 = vadd.f32 %v9876, %v9622
      %v9878 = vadd.f32 %v9877, %v9623
      %v9879 = vadd.f32 %v9878, %v9624
      %v9880 = vadd.f32 %v9879, %v9625
      %v9881 = vadd.f32 %v9880, %v9626
      %v9882 = vadd.f32 %v9881, %v9627
      %v9883 = vadd.f32 %v9882, %v9628
      %v9884 = vadd.f32 %v9883, %v9629
      %v9885 = vadd.f32 %v9884, %v9630
      %v9886 = vadd.f32 %v9885, %v9631
      %v9887 = vadd.f32 %v9886, %v9632
      %v9888 = vadd.f32 %v9887, %v9633
      %v9889 = vadd.f32 %v9888, %v9634
      %v9890 = vadd.f32 %v9889, %v9635
      %v9891 = vadd.f32 %v9890, %v9636
      %v9892 = vadd.f32 %v9891, %v9637
      %v9893 = vadd.f32 %v9892, %v9638
      %v9894 = vadd.f32 %v9893, %v9639
      %v9895 = vadd.f32 %v9894, %v9640
      %v9896 = vadd.f32 %v9895, %v9641
      %v9897 = vadd.f32 %v9896, %v9642
      %v9898 = vadd.f32 %v9897, %v9643
      %v9899 = vadd.f32 %v9898, %v9644
      %v9900 = vadd.f32 %v9899, %v9645
      %v9901 = vadd.f32 %v9900, %v9646
      %v9902 = vadd.f32 %v9901, %v9647
      %v9903 = vadd.f32 %v9902, %v9648
      %v9904 = vadd.f32 %v9903, %v9649
      %v9905 = vadd.f32 %v9904, %v9650
      %v9906 = vadd.f32 %v9905, %v9651
      %v9907 = vadd.f32 %v9906, %v9652
      %v9908 = vadd.f32 %v9907, %v9653
      %v9909 = vadd.f32 %v9908, %v9654
      %v9910 = vadd.f32 %v9909, %v9655
      %v9911 = vadd.f32 %v9910, %v9656
      %v9912 = vadd.f32 %v9911, %v9657
      %v9913 = vadd.f32 %v9912, %v9658
      %v9914 = vadd.f32 %v9913, %v9659
      %v9915 = vadd.f32 %v9914, %v9660
      %v9916 = vadd.f32 %v9915, %v9661
      %v9917 = vadd.f32 %v9916, %v9662
      %v9918 = vadd.f32 %v9917, %v9663
      %v9919 = vadd.f32 %v9918, %v9664
      %v9920 = vadd.f32 %v9919, %v9665
      %v9921 = vadd.f32 %v9920, %v9666
      %v9922 = vadd.f32 %v9921, %v9667
      %v9923 = vadd.f32 %v9922, %v9668
      %v9924 = vadd.f32 %v9923, %v9669
      %v9925 = vadd.f32 %v9924, %v9670
      %v9926 = vadd.f32 %v9925, %v9671
      %v9927 = vadd.f32 %v9926, %v9672
      %v9928 = vadd.f32 %v9927, %v9673
      %v9929 = vadd.f32 %v9928, %v9674
      %v9930 = vadd.f32 %v9929, %v9675
      %v9931 = vadd.f32 %v9930, %v9676
      %v9932 = vadd.f32 %v9931, %v9677
      %v9933 = vadd.f32 %v9932, %v9678
      %v9934 = vadd.f32 %v9933, %v9679
      %v9935 = vadd.f32 %v9934, %v9680
      %v9936 = vadd.f32 %v9935, %v9681
      %v9937 = vadd.f32 %v9936, %v9682
      %v9938 = vadd.f32 %v9937, %v9683
      %v9939 = vadd.f32 %v9938, %v9684
      %v9940 = vadd.f32 %v9939, %v9685
      %v9941 = vadd.f32 %v9940, %v9686
      %v9942 = vadd.f32 %v9941, %v9687
      %v9943 = vadd.f32 %v9942, %v9688
      %v9944 = vadd.f32 %v9943, %v9689
      %v9945 = vadd.f32 %v9944, %v9690
      %v9946 = vadd.f32 %v9945, %v9691
      %v9947 = vadd.f32 %v9946, %v9692
      %v9948 = vadd.f32 %v9947, %v9693
      %v9949 = vadd.f32 %v9948, %v9694
      %v9950 = vadd.f32 %v9949, %v9695
      %v9951 = vadd.f32 %v9950, %v9696
      %v9952 = vadd.f32 %v9951, %v9697
      %v9953 = vadd.f32 %v9952, %v9698
      %v9954 = vadd.f32 %v9953, %v9699
      %v9955 = vadd.f32 %v9954, %v9700
      %v9956 = vrot.slane %v9955, 4
      %v9957 = vadd.f32 %v9955, %v9956
      %v9958 = vrot.slane %v9957, 2
      %v9959 = vadd.f32 %v9957, %v9958
      %v9960 = vrot.slane %v9959, 1
      %v9961 = vadd.f32 %v9959, %v9960
      %9962 = vst [vmem:[%s211] sm:$0x1] %v9961
      %v9963 = vmul.f32 %v9573, %v9573
      %v9964 = vmul.f32 %v9574, %v9574
      %v9965 = vmul.f32 %v9575, %v9575
      %v9966 = vmul.f32 %v9576, %v9576
      %v9967 = vmul.f32 %v9577, %v9577
      %v9968 = vmul.f32 %v9578, %v9578
      %v9969 = vmul.f32 %v9579, %v9579
      %v9970 = vmul.f32 %v9580, %v9580
      %v9971 = vmul.f32 %v9581, %v9581
      %v9972 = vmul.f32 %v9582, %v9582
      %v9973 = vmul.f32 %v9583, %v9583
      %v9974 = vmul.f32 %v9584, %v9584
      %v9975 = vmul.f32 %v9585, %v9585
      %v9976 = vmul.f32 %v9586, %v9586
      %v9977 = vmul.f32 %v9587, %v9587
      %v9978 = vmul.f32 %v9588, %v9588
      %v9979 = vmul.f32 %v9589, %v9589
      %v9980 = vmul.f32 %v9590, %v9590
      %v9981 = vmul.f32 %v9591, %v9591
      %v9982 = vmul.f32 %v9592, %v9592
      %v9983 = vmul.f32 %v9593, %v9593
      %v9984 = vmul.f32 %v9594, %v9594
      %v9985 = vmul.f32 %v9595, %v9595
      %v9986 = vmul.f32 %v9596, %v9596
      %v9987 = vmul.f32 %v9597, %v9597
      %v9988 = vmul.f32 %v9598, %v9598
      %v9989 = vmul.f32 %v9599, %v9599
      %v9990 = vmul.f32 %v9600, %v9600
      %v9991 = vmul.f32 %v9601, %v9601
      %v9992 = vmul.f32 %v9602, %v9602
      %v9993 = vmul.f32 %v9603, %v9603
      %v9994 = vmul.f32 %v9604, %v9604
      %v9995 = vmul.f32 %v9605, %v9605
      %v9996 = vmul.f32 %v9606, %v9606
      %v9997 = vmul.f32 %v9607, %v9607
      %v9998 = vmul.f32 %v9608, %v9608
      %v9999 = vmul.f32 %v9609, %v9609
      %v10000 = vmul.f32 %v9610, %v9610
      %v10001 = vmul.f32 %v9611, %v9611
      %v10002 = vmul.f32 %v9612, %v9612
      %v10003 = vmul.f32 %v9613, %v9613
      %v10004 = vmul.f32 %v9614, %v9614
      %v10005 = vmul.f32 %v9615, %v9615
      %v10006 = vmul.f32 %v9616, %v9616
      %v10007 = vmul.f32 %v9617, %v9617
      %v10008 = vmul.f32 %v9618, %v9618
      %v10009 = vmul.f32 %v9619, %v9619
      %v10010 = vmul.f32 %v9620, %v9620
      %v10011 = vmul.f32 %v9621, %v9621
      %v10012 = vmul.f32 %v9622, %v9622
      %v10013 = vmul.f32 %v9623, %v9623
      %v10014 = vmul.f32 %v9624, %v9624
      %v10015 = vmul.f32 %v9625, %v9625
      %v10016 = vmul.f32 %v9626, %v9626
      %v10017 = vmul.f32 %v9627, %v9627
      %v10018 = vmul.f32 %v9628, %v9628
      %v10019 = vmul.f32 %v9629, %v9629
      %v10020 = vmul.f32 %v9630, %v9630
      %v10021 = vmul.f32 %v9631, %v9631
      %v10022 = vmul.f32 %v9632, %v9632
      %v10023 = vmul.f32 %v9633, %v9633
      %v10024 = vmul.f32 %v9634, %v9634
      %v10025 = vmul.f32 %v9635, %v9635
      %v10026 = vmul.f32 %v9636, %v9636
      %v10027 = vmul.f32 %v9637, %v9637
      %v10028 = vmul.f32 %v9638, %v9638
      %v10029 = vmul.f32 %v9639, %v9639
      %v10030 = vmul.f32 %v9640, %v9640
      %v10031 = vmul.f32 %v9641, %v9641
      %v10032 = vmul.f32 %v9642, %v9642
      %v10033 = vmul.f32 %v9643, %v9643
      %v10034 = vmul.f32 %v9644, %v9644
      %v10035 = vmul.f32 %v9645, %v9645
      %v10036 = vmul.f32 %v9646, %v9646
      %v10037 = vmul.f32 %v9647, %v9647
      %v10038 = vmul.f32 %v9648, %v9648
      %v10039 = vmul.f32 %v9649, %v9649
      %v10040 = vmul.f32 %v9650, %v9650
      %v10041 = vmul.f32 %v9651, %v9651
      %v10042 = vmul.f32 %v9652, %v9652
      %v10043 = vmul.f32 %v9653, %v9653
      %v10044 = vmul.f32 %v9654, %v9654
      %v10045 = vmul.f32 %v9655, %v9655
      %v10046 = vmul.f32 %v9656, %v9656
      %v10047 = vmul.f32 %v9657, %v9657
      %v10048 = vmul.f32 %v9658, %v9658
      %v10049 = vmul.f32 %v9659, %v9659
      %v10050 = vmul.f32 %v9660, %v9660
      %v10051 = vmul.f32 %v9661, %v9661
      %v10052 = vmul.f32 %v9662, %v9662
      %v10053 = vmul.f32 %v9663, %v9663
      %v10054 = vmul.f32 %v9664, %v9664
      %v10055 = vmul.f32 %v9665, %v9665
      %v10056 = vmul.f32 %v9666, %v9666
      %v10057 = vmul.f32 %v9667, %v9667
      %v10058 = vmul.f32 %v9668, %v9668
      %v10059 = vmul.f32 %v9669, %v9669
      %v10060 = vmul.f32 %v9670, %v9670
      %v10061 = vmul.f32 %v9671, %v9671
      %v10062 = vmul.f32 %v9672, %v9672
      %v10063 = vmul.f32 %v9673, %v9673
      %v10064 = vmul.f32 %v9674, %v9674
      %v10065 = vmul.f32 %v9675, %v9675
      %v10066 = vmul.f32 %v9676, %v9676
      %v10067 = vmul.f32 %v9677, %v9677
      %v10068 = vmul.f32 %v9678, %v9678
      %v10069 = vmul.f32 %v9679, %v9679
      %v10070 = vmul.f32 %v9680, %v9680
      %v10071 = vmul.f32 %v9681, %v9681
      %v10072 = vmul.f32 %v9682, %v9682
      %v10073 = vmul.f32 %v9683, %v9683
      %v10074 = vmul.f32 %v9684, %v9684
      %v10075 = vmul.f32 %v9685, %v9685
      %v10076 = vmul.f32 %v9686, %v9686
      %v10077 = vmul.f32 %v9687, %v9687
      %v10078 = vmul.f32 %v9688, %v9688
      %v10079 = vmul.f32 %v9689, %v9689
      %v10080 = vmul.f32 %v9690, %v9690
      %v10081 = vmul.f32 %v9691, %v9691
      %v10082 = vmul.f32 %v9692, %v9692
      %v10083 = vmul.f32 %v9693, %v9693
      %v10084 = vmul.f32 %v9694, %v9694
      %v10085 = vmul.f32 %v9695, %v9695
      %v10086 = vmul.f32 %v9696, %v9696
      %v10087 = vmul.f32 %v9697, %v9697
      %v10088 = vmul.f32 %v9698, %v9698
      %v10089 = vmul.f32 %v9699, %v9699
      %v10090 = vmul.f32 %v9700, %v9700
      %v10091 = vadd.f32 %v9963, %v9964
      %v10092 = vadd.f32 %v10091, %v9965
      %v10093 = vadd.f32 %v10092, %v9966
      %v10094 = vadd.f32 %v10093, %v9967
      %v10095 = vadd.f32 %v10094, %v9968
      %v10096 = vadd.f32 %v10095, %v9969
      %v10097 = vadd.f32 %v10096, %v9970
      %v10098 = vadd.f32 %v10097, %v9971
      %v10099 = vadd.f32 %v10098, %v9972
      %v10100 = vadd.f32 %v10099, %v9973
      %v10101 = vadd.f32 %v10100, %v9974
      %v10102 = vadd.f32 %v10101, %v9975
      %v10103 = vadd.f32 %v10102, %v9976
      %v10104 = vadd.f32 %v10103, %v9977
      %v10105 = vadd.f32 %v10104, %v9978
      %v10106 = vadd.f32 %v10105, %v9979
      %v10107 = vadd.f32 %v10106, %v9980
      %v10108 = vadd.f32 %v10107, %v9981
      %v10109 = vadd.f32 %v10108, %v9982
      %v10110 = vadd.f32 %v10109, %v9983
      %v10111 = vadd.f32 %v10110, %v9984
      %v10112 = vadd.f32 %v10111, %v9985
      %v10113 = vadd.f32 %v10112, %v9986
      %v10114 = vadd.f32 %v10113, %v9987
      %v10115 = vadd.f32 %v10114, %v9988
      %v10116 = vadd.f32 %v10115, %v9989
      %v10117 = vadd.f32 %v10116, %v9990
      %v10118 = vadd.f32 %v10117, %v9991
      %v10119 = vadd.f32 %v10118, %v9992
      %v10120 = vadd.f32 %v10119, %v9993
      %v10121 = vadd.f32 %v10120, %v9994
      %v10122 = vadd.f32 %v10121, %v9995
      %v10123 = vadd.f32 %v10122, %v9996
      %v10124 = vadd.f32 %v10123, %v9997
      %v10125 = vadd.f32 %v10124, %v9998
      %v10126 = vadd.f32 %v10125, %v9999
      %v10127 = vadd.f32 %v10126, %v10000
      %v10128 = vadd.f32 %v10127, %v10001
      %v10129 = vadd.f32 %v10128, %v10002
      %v10130 = vadd.f32 %v10129, %v10003
      %v10131 = vadd.f32 %v10130, %v10004
      %v10132 = vadd.f32 %v10131, %v10005
      %v10133 = vadd.f32 %v10132, %v10006
      %v10134 = vadd.f32 %v10133, %v10007
      %v10135 = vadd.f32 %v10134, %v10008
      %v10136 = vadd.f32 %v10135, %v10009
      %v10137 = vadd.f32 %v10136, %v10010
      %v10138 = vadd.f32 %v10137, %v10011
      %v10139 = vadd.f32 %v10138, %v10012
      %v10140 = vadd.f32 %v10139, %v10013
      %v10141 = vadd.f32 %v10140, %v10014
      %v10142 = vadd.f32 %v10141, %v10015
      %v10143 = vadd.f32 %v10142, %v10016
      %v10144 = vadd.f32 %v10143, %v10017
      %v10145 = vadd.f32 %v10144, %v10018
      %v10146 = vadd.f32 %v10145, %v10019
      %v10147 = vadd.f32 %v10146, %v10020
      %v10148 = vadd.f32 %v10147, %v10021
      %v10149 = vadd.f32 %v10148, %v10022
      %v10150 = vadd.f32 %v10149, %v10023
      %v10151 = vadd.f32 %v10150, %v10024
      %v10152 = vadd.f32 %v10151, %v10025
      %v10153 = vadd.f32 %v10152, %v10026
      %v10154 = vadd.f32 %v10153, %v10027
      %v10155 = vadd.f32 %v10154, %v10028
      %v10156 = vadd.f32 %v10155, %v10029
      %v10157 = vadd.f32 %v10156, %v10030
      %v10158 = vadd.f32 %v10157, %v10031
      %v10159 = vadd.f32 %v10158, %v10032
      %v10160 = vadd.f32 %v10159, %v10033
      %v10161 = vadd.f32 %v10160, %v10034
      %v10162 = vadd.f32 %v10161, %v10035
      %v10163 = vadd.f32 %v10162, %v10036
      %v10164 = vadd.f32 %v10163, %v10037
      %v10165 = vadd.f32 %v10164, %v10038
      %v10166 = vadd.f32 %v10165, %v10039
      %v10167 = vadd.f32 %v10166, %v10040
      %v10168 = vadd.f32 %v10167, %v10041
      %v10169 = vadd.f32 %v10168, %v10042
      %v10170 = vadd.f32 %v10169, %v10043
      %v10171 = vadd.f32 %v10170, %v10044
      %v10172 = vadd.f32 %v10171, %v10045
      %v10173 = vadd.f32 %v10172, %v10046
      %v10174 = vadd.f32 %v10173, %v10047
      %v10175 = vadd.f32 %v10174, %v10048
      %v10176 = vadd.f32 %v10175, %v10049
      %v10177 = vadd.f32 %v10176, %v10050
      %v10178 = vadd.f32 %v10177, %v10051
      %v10179 = vadd.f32 %v10178, %v10052
      %v10180 = vadd.f32 %v10179, %v10053
      %v10181 = vadd.f32 %v10180, %v10054
      %v10182 = vadd.f32 %v10181, %v10055
      %v10183 = vadd.f32 %v10182, %v10056
      %v10184 = vadd.f32 %v10183, %v10057
      %v10185 = vadd.f32 %v10184, %v10058
      %v10186 = vadd.f32 %v10185, %v10059
      %v10187 = vadd.f32 %v10186, %v10060
      %v10188 = vadd.f32 %v10187, %v10061
      %v10189 = vadd.f32 %v10188, %v10062
      %v10190 = vadd.f32 %v10189, %v10063
      %v10191 = vadd.f32 %v10190, %v10064
      %v10192 = vadd.f32 %v10191, %v10065
      %v10193 = vadd.f32 %v10192, %v10066
      %v10194 = vadd.f32 %v10193, %v10067
      %v10195 = vadd.f32 %v10194, %v10068
      %v10196 = vadd.f32 %v10195, %v10069
      %v10197 = vadd.f32 %v10196, %v10070
      %v10198 = vadd.f32 %v10197, %v10071
      %v10199 = vadd.f32 %v10198, %v10072
      %v10200 = vadd.f32 %v10199, %v10073
      %v10201 = vadd.f32 %v10200, %v10074
      %v10202 = vadd.f32 %v10201, %v10075
      %v10203 = vadd.f32 %v10202, %v10076
      %v10204 = vadd.f32 %v10203, %v10077
      %v10205 = vadd.f32 %v10204, %v10078
      %v10206 = vadd.f32 %v10205, %v10079
      %v10207 = vadd.f32 %v10206, %v10080
      %v10208 = vadd.f32 %v10207, %v10081
      %v10209 = vadd.f32 %v10208, %v10082
      %v10210 = vadd.f32 %v10209, %v10083
      %v10211 = vadd.f32 %v10210, %v10084
      %v10212 = vadd.f32 %v10211, %v10085
      %v10213 = vadd.f32 %v10212, %v10086
      %v10214 = vadd.f32 %v10213, %v10087
      %v10215 = vadd.f32 %v10214, %v10088
      %v10216 = vadd.f32 %v10215, %v10089
      %v10217 = vadd.f32 %v10216, %v10090
      %v10218 = vrot.slane %v10217, 4
      %v10219 = vadd.f32 %v10217, %v10218
      %v10220 = vrot.slane %v10219, 2
      %v10221 = vadd.f32 %v10219, %v10220
      %v10222 = vrot.slane %v10221, 1
      %v10223 = vadd.f32 %v10221, %v10222
      %10224 = vst [vmem:[%s214] sm:$0x1] %v10223
      %p10225 = scmp.lt.s32.totalorder %s16, 1
      %s10226 = scalar_select %p10225, %s16, 1
      %s10227 = smul.addr %s10226, 128
      %s10228 = smul.addr %s10227, 8
      %s10229 = scalar_lea.vmem %s2, %s10228
      %p10230 = scmp.lt.s32.totalorder %s16, 1
      %s10231 = scalar_select %p10230, %s16, 1
      %s10232 = scalar_lea.vmem %s3, %s10231
      %p10233 = scmp.lt.s32.totalorder %s16, 1
      %s10234 = scalar_select %p10233, %s16, 1
      %s10235 = scalar_lea.vmem %s4, %s10234
      // Predicated region
      $region29: #{unet2d_up_forward.4} parent=27 // pred_check
        %p10236 = pneg %p81
      $region30: #{unet2d_up_forward.4} parent=27 // pred_check_branch
        %10238 = sbr.rel (%p10236) target = $region32
      $region31: #{unet2d_up_forward.4} parent=27 // pred_region
        _
      $region32: #{unet2d_up_forward.4} parent=27 // pred_fallthru
        _
      // Predicated region
      $region33: #{unet2d_up_forward.4} parent=27 // pred_check
        %p10239 = pneg %p107
      $region34: #{unet2d_up_forward.4} parent=27 // pred_check_branch
        %10241 = sbr.rel (%p10239) target = $region36
      $region35: #{unet2d_up_forward.4} parent=27 // pred_region
        _
      $region36: #{unet2d_up_forward.4} parent=27 // pred_fallthru
        _
      // Predicated region
      $region37: #{unet2d_up_forward.4} parent=27 // pred_check
        %p10242 = pneg %p133
      $region38: #{unet2d_up_forward.4} parent=27 // pred_check_branch
        %10244 = sbr.rel (%p10242) target = $region40
      $region39: #{unet2d_up_forward.4} parent=27 // pred_region
        _
      $region40: #{unet2d_up_forward.4} parent=27 // pred_fallthru
        _
    $region28: #{unet2d_up_forward.4} parent=5 // pred_fallthru
      _
    %p10245 = scmp.le.s32.totalorder 2, %s11
    // Predicated region
    $region41: #{unet2d_up_forward.4} parent=5 // pred_check
      %p10246 = pneg %p10245
    $region42: #{unet2d_up_forward.4} parent=5 // pred_check_branch
      %10248 = sbr.rel (%p10246) target = $region44
    $region43: #{unet2d_up_forward.4} parent=5 // pred_region
      %s10249 = ssub.s32 %s11, 2
      // Predicated region
      $region45: #{unet2d_up_forward.4} parent=43 // pred_check
        %p10250 = pneg %p87
      $region46: #{unet2d_up_forward.4} parent=43 // pred_check_branch
        %10252 = sbr.rel (%p10250) target = $region48
      $region47: #{unet2d_up_forward.4} parent=43 // pred_region
        %p10253 = scmp.lt.s32.totalorder %s17, 1
        %s10254 = scalar_select %p10253, %s17, 1
        %s10255 = smul.addr %s10254, 128
        %s10256 = smul.addr %s10255, 8
        %s10257 = scalar_lea.vmem %s2, %s10256
      $region48: #{unet2d_up_forward.4} parent=43 // pred_fallthru
        _
      // Predicated region
      $region49: #{unet2d_up_forward.4} parent=43 // pred_check
        %p10258 = pneg %p113
      $region50: #{unet2d_up_forward.4} parent=43 // pred_check_branch
        %10260 = sbr.rel (%p10258) target = $region52
      $region51: #{unet2d_up_forward.4} parent=43 // pred_region
        %p10261 = scmp.lt.s32.totalorder %s17, 1
        %s10262 = scalar_select %p10261, %s17, 1
        %s10263 = scalar_lea.vmem %s3, %s10262
      $region52: #{unet2d_up_forward.4} parent=43 // pred_fallthru
        _
      // Predicated region
      $region53: #{unet2d_up_forward.4} parent=43 // pred_check
        %p10264 = pneg %p139
      $region54: #{unet2d_up_forward.4} parent=43 // pred_check_branch
        %10266 = sbr.rel (%p10264) target = $region56
      $region55: #{unet2d_up_forward.4} parent=43 // pred_region
        %p10267 = scmp.lt.s32.totalorder %s17, 1
        %s10268 = scalar_select %p10267, %s17, 1
        %s10269 = scalar_lea.vmem %s4, %s10268
      $region56: #{unet2d_up_forward.4} parent=43 // pred_fallthru
        _
    $region44: #{unet2d_up_forward.4} parent=5 // pred_fallthru
      _
  $region6: #{unet2d_up_forward.4} parent=0 // loop_footer
    %s15 = sadd.s32 1, %s11
  $region7: #{unet2d_up_forward.4} parent=0 // loop_footer_branch
    %10 = sbr.rel target = $region3
  $region8: #{unet2d_up_forward.4} parent=0 // loop_exit
    _

</llo_original>
